<compile_context>
chip_gen: v7x
topology: tpu7x:2x2x1
jax: 0.10.0
libtpu: 0.0.40
codegen_flags: <defaults>
</compile_context>

<pallas_src>
import functools

import jax
import jax.numpy as jnp
from jax.experimental import pallas as pl
from jax.experimental.pallas import tpu as pltpu

IN_FEATURES = 778 * 3        # 2334
IN_PAD = 2432                # 19 * 128  (lane-aligned K for the first matmul)
HIDDEN = 1024
OUT_FEATURES = 48
OUT_PAD = 128                # lane-dense output tile
BN_EPS = 1e-5


# ----------------------------- Pallas kernel -------------------------------- #

def _fused_forward_kernel(
    # small VMEM inputs (auto-DMA'd by BlockSpec)
    x_ref, b1_ref, ba1_ref, bb1_ref, ba2_ref, bb2_ref, bo_ref,
    # big weights left in HBM (memory_space=pl.ANY), streamed manually
    w1_hbm, wa1_hbm, wb1_hbm, wa2_hbm, wb2_hbm, wo_hbm,
    # output
    o_ref,
    # scratch: single-buffered VMEM weight tiles + DMA semaphores
    w1_v, wa1_v, wb1_v, wa2_v, wb2_v, wo_v, sem,
):
    """Whole SMPLParamRegressor forward for one (padded) batch tile."""
    # --- DMA schedule (perf review) -----------------------------------------
    # Give w1 exclusive HBM bandwidth: if all six copies were in flight together
    # they would fair-share and w1 (largest, first needed) would finish LAST,
    # pushing every matmul past the end of the whole weight stream.
    cp_w1 = pltpu.make_async_copy(w1_hbm, w1_v, sem.at[0])
    cp_w1.start()

    rest = (
        pltpu.make_async_copy(wa1_hbm, wa1_v, sem.at[1]),
        pltpu.make_async_copy(wb1_hbm, wb1_v, sem.at[2]),
        pltpu.make_async_copy(wa2_hbm, wa2_v, sem.at[3]),
        pltpu.make_async_copy(wb2_hbm, wb2_v, sem.at[4]),
        pltpu.make_async_copy(wo_hbm, wo_v, sem.at[5]),
    )

    cp_w1.wait()
    for cp in rest:               # issued in the order the layers consume them
        cp.start()

    def linear(h, w_v, b_ref, cp=None):
        if cp is not None:
            cp.wait()             # each layer waits only on its own weight
        y = jnp.dot(h.astype(jnp.bfloat16), w_v[...],
                    preferred_element_type=jnp.float32)
        return y + b_ref[...]

    # FCBlock(2334 -> 1024): Linear + (fused eval-mode) BN + ReLU
    h = jnp.maximum(linear(x_ref[...], w1_v, b1_ref), 0.0)

    # FCResBlock 1: relu(h + Lin_b(relu(Lin_a(h))))   (BN fused into both Linears)
    t = jnp.maximum(linear(h, wa1_v, ba1_ref, rest[0]), 0.0)
    t = linear(t, wb1_v, bb1_ref, rest[1])
    h = jnp.maximum(h + t, 0.0)

    # FCResBlock 2
    t = jnp.maximum(linear(h, wa2_v, ba2_ref, rest[2]), 0.0)
    t = linear(t, wb2_v, bb2_ref, rest[3])
    h = jnp.maximum(h + t, 0.0)

    # Final Linear(1024 -> 48), N padded to 128 for lane-dense stores
    o_ref[...] = linear(h, wo_v, bo_ref, rest[4]).astype(o_ref.dtype)


def _full_spec(shape):
    nd = len(shape)
    return pl.BlockSpec(shape, lambda i, _nd=nd: (0,) * _nd)


def _fused_pallas_forward(x_pad, fused):
    """x_pad: (B_pad, IN_PAD) bf16 -> (B_pad, OUT_PAD) f32."""
    b_pad = x_pad.shape[0]
    w1, b1 = fused["fc1"]
    wa1, ba1, wb1, bb1 = fused["res1"]
    wa2, ba2, wb2, bb2 = fused["res2"]
    wo, bo = fused["fc_out"]

    small_inputs = (x_pad, b1, ba1, bb1, ba2, bb2, bo)
    weight_inputs = (w1, wa1, wb1, wa2, wb2, wo)

    in_specs = ([_full_spec(a.shape) for a in small_inputs]
                + [pl.BlockSpec(memory_space=pl.ANY) for _ in weight_inputs])

    return pl.pallas_call(
        _fused_forward_kernel,
        out_shape=jax.ShapeDtypeStruct((b_pad, OUT_PAD), jnp.float32),
        grid=(1,),
        in_specs=in_specs,
        out_specs=_full_spec((b_pad, OUT_PAD)),
        scratch_shapes=[
            pltpu.VMEM((IN_PAD, HIDDEN), jnp.bfloat16),
            pltpu.VMEM((HIDDEN, HIDDEN), jnp.bfloat16),
            pltpu.VMEM((HIDDEN, HIDDEN), jnp.bfloat16),
            pltpu.VMEM((HIDDEN, HIDDEN), jnp.bfloat16),
            pltpu.VMEM((HIDDEN, HIDDEN), jnp.bfloat16),
            pltpu.VMEM((HIDDEN, OUT_PAD), jnp.bfloat16),
            pltpu.SemaphoreType.DMA((6,)),
        ],
        compiler_params=pltpu.CompilerParams(
            dimension_semantics=("arbitrary",),
            vmem_limit_bytes=40 * 1024 * 1024,   # headroom vs v7x's 64 MiB physical
        ),
    )(*small_inputs, *weight_inputs)


# --------------------------- parameter handling ----------------------------- #

def _fuse_bn(w, b, gamma, beta, mean, var, eps=BN_EPS):
    """Fold eval-mode BatchNorm1d into the preceding Linear (w: (in,out), b: (out,))."""
    scale = gamma / jnp.sqrt(var + eps)          # (out,)
    w_f = w * scale[None, :]
    b_f = b * scale + (beta - mean * scale)
    return w_f, b_f


def init_params(key):
    """Deterministic synthetic parameters matching SMPLParamRegressor's shapes."""
    ks = jax.random.split(key, 32)
    i = iter(range(32))

    def lin(kw, kb, fan_in, fan_out):
        w = jax.random.normal(kw, (fan_in, fan_out), jnp.float32) * 0.02
        b = jax.random.normal(kb, (fan_out,), jnp.float32) * 0.01
        return w, b

    def bn(k, n):
        k1, k2, k3, k4 = jax.random.split(k, 4)
        gamma = 1.0 + 0.1 * jax.random.normal(k1, (n,), jnp.float32)
        beta = 0.05 * jax.random.normal(k2, (n,), jnp.float32)
        mean = 0.05 * jax.random.normal(k3, (n,), jnp.float32)
        var = 1.0 + 0.1 * jax.nn.softplus(jax.random.normal(k4, (n,), jnp.float32))
        return gamma, beta, mean, var

    p = {}
    p["fc1"] = {"lin": lin(ks[next(i)], ks[next(i)], IN_FEATURES, HIDDEN),
                "bn": bn(ks[next(i)], HIDDEN)}
    for name in ("res1", "res2"):
        p[name] = {"lin_a": lin(ks[next(i)], ks[next(i)], HIDDEN, HIDDEN),
                   "bn_a": bn(ks[next(i)], HIDDEN),
                   "lin_b": lin(ks[next(i)], ks[next(i)], HIDDEN, HIDDEN),
                   "bn_b": bn(ks[next(i)], HIDDEN)}
    p["fc_out"] = {"lin": lin(ks[next(i)], ks[next(i)], HIDDEN, OUT_FEATURES)}
    return p


def fuse_params(p):
    """Pre-fold BN into linear weights, pad to lane-aligned shapes, cast weights to bf16."""
    f = {}
    w, b = _fuse_bn(*p["fc1"]["lin"], *p["fc1"]["bn"])
    w = jnp.pad(w, ((0, IN_PAD - IN_FEATURES), (0, 0)))       # padded x columns are zero
    f["fc1"] = (w.astype(jnp.bfloat16), b[None, :].astype(jnp.float32))
    for name in ("res1", "res2"):
        wa, ba = _fuse_bn(*p[name]["lin_a"], *p[name]["bn_a"])
        wb, bb = _fuse_bn(*p[name]["lin_b"], *p[name]["bn_b"])
        f[name] = (wa.astype(jnp.bfloat16), ba[None, :].astype(jnp.float32),
                   wb.astype(jnp.bfloat16), bb[None, :].astype(jnp.float32))
    w, b = p["fc_out"]["lin"]
    w = jnp.pad(w, ((0, 0), (0, OUT_PAD - OUT_FEATURES)))
    b = jnp.pad(b, (0, OUT_PAD - OUT_FEATURES))
    f["fc_out"] = (w.astype(jnp.bfloat16), b[None, :].astype(jnp.float32))
    return f


# ------------------------------ forward pass -------------------------------- #

@functools.partial(jax.jit, static_argnames=())
def smpl_param_regressor_forward(x, fused):
    """x: (B, ...) -> (B, 48), mirroring SMPLParamRegressor.forward (x.view(B, -1) first)."""
    B = x.shape[0]
    x = x.reshape(B, -1).astype(jnp.float32)                  # == x.view(batch_size, -1)
    b_pad = -(-B // 8) * 8                                    # sublane-aligned batch
    x = jnp.pad(x, ((0, b_pad - B), (0, IN_PAD - x.shape[1])))
    x = x.astype(jnp.bfloat16)
    out = _fused_pallas_forward(x, fused)
    return out[:B, :OUT_FEATURES]


def reference_forward(x, p):
    """Pure-JAX f32 reference with explicit eval-mode BatchNorm1d (validates fusion + bf16)."""
    def bn_apply(y, bn):
        gamma, beta, mean, var = bn
        return (y - mean) / jnp.sqrt(var + BN_EPS) * gamma + beta

    B = x.shape[0]
    h = x.reshape(B, -1).astype(jnp.float32)
    w, b = p["fc1"]["lin"]
    h = jax.nn.relu(bn_apply(h @ w + b, p["fc1"]["bn"]))
    for name in ("res1", "res2"):
        wa, ba = p[name]["lin_a"]
        wb, bb = p[name]["lin_b"]
        t = jax.nn.relu(bn_apply(h @ wa + ba, p[name]["bn_a"]))
        t = bn_apply(t @ wb + bb, p[name]["bn_b"])
        h = jax.nn.relu(h + t)
    w, b = p["fc_out"]["lin"]
    return h @ w + b


# ---------------------------------- main ------------------------------------ #

if __name__ == "__main__":
    key = jax.random.PRNGKey(0)
    k_param, k_x = jax.random.split(key)

    params = init_params(k_param)
    fused = fuse_params(params)

    B = 2
    # Module flattens with x.view(B, -1); feed (B, 778, 3) vertices-style input.
    x = jax.random.normal(k_x, (B, 778, 3), jnp.float32)

    out = smpl_param_regressor_forward(x, fused)
    out = jax.block_until_ready(out)
    assert out.shape == (B, OUT_FEATURES), out.shape

    ref = jax.block_until_ready(reference_forward(x, params))
    assert jnp.allclose(out, ref, rtol=2e-2, atol=2e-2), (
        float(jnp.max(jnp.abs(out - ref))))

    print("KERNEL_OK")
</pallas_src>

<mosaic_0001>
module attributes {stable_mosaic.version = 11 : i64} {
  func.func @_fused_forward_kernel(%arg0: i32, %arg1: memref<8x2432xbf16, #tpu.memory_space<vmem>>, %arg2: memref<1x1024xf32, #tpu.memory_space<vmem>>, %arg3: memref<1x1024xf32, #tpu.memory_space<vmem>>, %arg4: memref<1x1024xf32, #tpu.memory_space<vmem>>, %arg5: memref<1x1024xf32, #tpu.memory_space<vmem>>, %arg6: memref<1x1024xf32, #tpu.memory_space<vmem>>, %arg7: memref<1x128xf32, #tpu.memory_space<vmem>>, %arg8: memref<2432x1024xbf16, #tpu.memory_space<any>>, %arg9: memref<1024x1024xbf16, #tpu.memory_space<any>>, %arg10: memref<1024x1024xbf16, #tpu.memory_space<any>>, %arg11: memref<1024x1024xbf16, #tpu.memory_space<any>>, %arg12: memref<1024x1024xbf16, #tpu.memory_space<any>>, %arg13: memref<1024x128xbf16, #tpu.memory_space<any>>, %arg14: memref<8x128xf32, #tpu.memory_space<vmem>>, %arg15: memref<2432x1024xbf16, #tpu.memory_space<vmem>>, %arg16: memref<1024x1024xbf16, #tpu.memory_space<vmem>>, %arg17: memref<1024x1024xbf16, #tpu.memory_space<vmem>>, %arg18: memref<1024x1024xbf16, #tpu.memory_space<vmem>>, %arg19: memref<1024x1024xbf16, #tpu.memory_space<vmem>>, %arg20: memref<1024x128xbf16, #tpu.memory_space<vmem>>, %arg21: memref<6x!tpu.dma_semaphore, #tpu.memory_space<semaphore_mem>>) attributes {dimension_semantics = [#tpu.dimension_semantics<arbitrary>], iteration_bounds = array<i64: 1>, scalar_prefetch = 0 : i64, scratch_operands = 7 : i64, tpu.core_type = #tpu.core_type<tc>, window_params = [{pipeline_mode = #tpu.pipeline_mode<synchronous>, transform_indices = @transform_0, window_bounds = array<i64: 8, 2432>}, {pipeline_mode = #tpu.pipeline_mode<synchronous>, transform_indices = @transform_1, window_bounds = array<i64: 1, 1024>}, {pipeline_mode = #tpu.pipeline_mode<synchronous>, transform_indices = @transform_2, window_bounds = array<i64: 1, 1024>}, {pipeline_mode = #tpu.pipeline_mode<synchronous>, transform_indices = @transform_3, window_bounds = array<i64: 1, 1024>}, {pipeline_mode = #tpu.pipeline_mode<synchronous>, transform_indices = @transform_4, window_bounds = array<i64: 1, 1024>}, {pipeline_mode = #tpu.pipeline_mode<synchronous>, transform_indices = @transform_5, window_bounds = array<i64: 1, 1024>}, {pipeline_mode = #tpu.pipeline_mode<synchronous>, transform_indices = @transform_6, window_bounds = array<i64: 1, 128>}, {}, {}, {}, {}, {}, {}, {pipeline_mode = #tpu.pipeline_mode<synchronous>, transform_indices = @transform_13, window_bounds = array<i64: 8, 128>}]} {
    %c0_i32 = arith.constant 0 : i32
    %0 = tpu.memref_slice %arg21[%c0_i32] : memref<6x!tpu.dma_semaphore, #tpu.memory_space<semaphore_mem>> -> memref<1x!tpu.dma_semaphore, #tpu.memory_space<semaphore_mem>>
    %1 = tpu.memref_squeeze %0 : memref<1x!tpu.dma_semaphore, #tpu.memory_space<semaphore_mem>> -> memref<!tpu.dma_semaphore, #tpu.memory_space<semaphore_mem>>
    tpu.enqueue_dma source(%arg8 : memref<2432x1024xbf16, #tpu.memory_space<any>>) target(%arg15 : memref<2432x1024xbf16, #tpu.memory_space<vmem>>) target_semaphore(%1 : memref<!tpu.dma_semaphore, #tpu.memory_space<semaphore_mem>>)
    %c0_i32_0 = arith.constant 0 : i32
    %2 = tpu.memref_slice %arg21[%c0_i32_0] : memref<6x!tpu.dma_semaphore, #tpu.memory_space<semaphore_mem>> -> memref<1x!tpu.dma_semaphore, #tpu.memory_space<semaphore_mem>>
    %3 = tpu.memref_squeeze %2 : memref<1x!tpu.dma_semaphore, #tpu.memory_space<semaphore_mem>> -> memref<!tpu.dma_semaphore, #tpu.memory_space<semaphore_mem>>
    tpu.wait_dma2 semaphore(%3 : memref<!tpu.dma_semaphore, #tpu.memory_space<semaphore_mem>>) src(%arg8 : memref<2432x1024xbf16, #tpu.memory_space<any>>) dst(%arg15 : memref<2432x1024xbf16, #tpu.memory_space<vmem>>)
    %c1_i32 = arith.constant 1 : i32
    %4 = tpu.memref_slice %arg21[%c1_i32] : memref<6x!tpu.dma_semaphore, #tpu.memory_space<semaphore_mem>> -> memref<1x!tpu.dma_semaphore, #tpu.memory_space<semaphore_mem>>
    %5 = tpu.memref_squeeze %4 : memref<1x!tpu.dma_semaphore, #tpu.memory_space<semaphore_mem>> -> memref<!tpu.dma_semaphore, #tpu.memory_space<semaphore_mem>>
    tpu.enqueue_dma source(%arg9 : memref<1024x1024xbf16, #tpu.memory_space<any>>) target(%arg16 : memref<1024x1024xbf16, #tpu.memory_space<vmem>>) target_semaphore(%5 : memref<!tpu.dma_semaphore, #tpu.memory_space<semaphore_mem>>)
    %c2_i32 = arith.constant 2 : i32
    %6 = tpu.memref_slice %arg21[%c2_i32] : memref<6x!tpu.dma_semaphore, #tpu.memory_space<semaphore_mem>> -> memref<1x!tpu.dma_semaphore, #tpu.memory_space<semaphore_mem>>
    %7 = tpu.memref_squeeze %6 : memref<1x!tpu.dma_semaphore, #tpu.memory_space<semaphore_mem>> -> memref<!tpu.dma_semaphore, #tpu.memory_space<semaphore_mem>>
    tpu.enqueue_dma source(%arg10 : memref<1024x1024xbf16, #tpu.memory_space<any>>) target(%arg17 : memref<1024x1024xbf16, #tpu.memory_space<vmem>>) target_semaphore(%7 : memref<!tpu.dma_semaphore, #tpu.memory_space<semaphore_mem>>)
    %c3_i32 = arith.constant 3 : i32
    %8 = tpu.memref_slice %arg21[%c3_i32] : memref<6x!tpu.dma_semaphore, #tpu.memory_space<semaphore_mem>> -> memref<1x!tpu.dma_semaphore, #tpu.memory_space<semaphore_mem>>
    %9 = tpu.memref_squeeze %8 : memref<1x!tpu.dma_semaphore, #tpu.memory_space<semaphore_mem>> -> memref<!tpu.dma_semaphore, #tpu.memory_space<semaphore_mem>>
    tpu.enqueue_dma source(%arg11 : memref<1024x1024xbf16, #tpu.memory_space<any>>) target(%arg18 : memref<1024x1024xbf16, #tpu.memory_space<vmem>>) target_semaphore(%9 : memref<!tpu.dma_semaphore, #tpu.memory_space<semaphore_mem>>)
    %c4_i32 = arith.constant 4 : i32
    %10 = tpu.memref_slice %arg21[%c4_i32] : memref<6x!tpu.dma_semaphore, #tpu.memory_space<semaphore_mem>> -> memref<1x!tpu.dma_semaphore, #tpu.memory_space<semaphore_mem>>
    %11 = tpu.memref_squeeze %10 : memref<1x!tpu.dma_semaphore, #tpu.memory_space<semaphore_mem>> -> memref<!tpu.dma_semaphore, #tpu.memory_space<semaphore_mem>>
    tpu.enqueue_dma source(%arg12 : memref<1024x1024xbf16, #tpu.memory_space<any>>) target(%arg19 : memref<1024x1024xbf16, #tpu.memory_space<vmem>>) target_semaphore(%11 : memref<!tpu.dma_semaphore, #tpu.memory_space<semaphore_mem>>)
    %c5_i32 = arith.constant 5 : i32
    %12 = tpu.memref_slice %arg21[%c5_i32] : memref<6x!tpu.dma_semaphore, #tpu.memory_space<semaphore_mem>> -> memref<1x!tpu.dma_semaphore, #tpu.memory_space<semaphore_mem>>
    %13 = tpu.memref_squeeze %12 : memref<1x!tpu.dma_semaphore, #tpu.memory_space<semaphore_mem>> -> memref<!tpu.dma_semaphore, #tpu.memory_space<semaphore_mem>>
    tpu.enqueue_dma source(%arg13 : memref<1024x128xbf16, #tpu.memory_space<any>>) target(%arg20 : memref<1024x128xbf16, #tpu.memory_space<vmem>>) target_semaphore(%13 : memref<!tpu.dma_semaphore, #tpu.memory_space<semaphore_mem>>)
    %c0 = arith.constant 0 : index
    %c0_1 = arith.constant 0 : index
    %14 = vector.load %arg1[%c0, %c0_1] : memref<8x2432xbf16, #tpu.memory_space<vmem>>, vector<8x2432xbf16>
    %c0_2 = arith.constant 0 : index
    %c0_3 = arith.constant 0 : index
    %15 = vector.load %arg15[%c0_2, %c0_3] : memref<2432x1024xbf16, #tpu.memory_space<vmem>>, vector<2432x1024xbf16>
    %cst = arith.constant dense<0.000000e+00> : vector<8x1024xf32>
    %16 = tpu.matmul %14, %15, %cst {dimension_numbers = #tpu.dot_dimension_numbers<[1], [0], [0], [1], [0, 0, 1, 1], [], []>} : vector<8x2432xbf16>, vector<2432x1024xbf16>, vector<8x1024xf32> -> vector<8x1024xf32>
    %c0_4 = arith.constant 0 : index
    %c0_5 = arith.constant 0 : index
    %17 = vector.load %arg2[%c0_4, %c0_5] : memref<1x1024xf32, #tpu.memory_space<vmem>>, vector<1x1024xf32>
    %18 = vector.broadcast %17 : vector<1x1024xf32> to vector<8x1024xf32>
    %19 = arith.addf %16, %18 : vector<8x1024xf32>
    %cst_6 = arith.constant 0.000000e+00 : f32
    %20 = vector.broadcast %cst_6 : f32 to vector<8x1024xf32>
    %21 = arith.maximumf %19, %20 : vector<8x1024xf32>
    %c1_i32_7 = arith.constant 1 : i32
    %22 = tpu.memref_slice %arg21[%c1_i32_7] : memref<6x!tpu.dma_semaphore, #tpu.memory_space<semaphore_mem>> -> memref<1x!tpu.dma_semaphore, #tpu.memory_space<semaphore_mem>>
    %23 = tpu.memref_squeeze %22 : memref<1x!tpu.dma_semaphore, #tpu.memory_space<semaphore_mem>> -> memref<!tpu.dma_semaphore, #tpu.memory_space<semaphore_mem>>
    tpu.wait_dma2 semaphore(%23 : memref<!tpu.dma_semaphore, #tpu.memory_space<semaphore_mem>>) src(%arg9 : memref<1024x1024xbf16, #tpu.memory_space<any>>) dst(%arg16 : memref<1024x1024xbf16, #tpu.memory_space<vmem>>)
    %24 = arith.truncf %21 : vector<8x1024xf32> to vector<8x1024xbf16>
    %c0_8 = arith.constant 0 : index
    %c0_9 = arith.constant 0 : index
    %25 = vector.load %arg16[%c0_8, %c0_9] : memref<1024x1024xbf16, #tpu.memory_space<vmem>>, vector<1024x1024xbf16>
    %cst_10 = arith.constant dense<0.000000e+00> : vector<8x1024xf32>
    %26 = tpu.matmul %24, %25, %cst_10 {dimension_numbers = #tpu.dot_dimension_numbers<[1], [0], [0], [1], [0, 0, 1, 1], [], []>} : vector<8x1024xbf16>, vector<1024x1024xbf16>, vector<8x1024xf32> -> vector<8x1024xf32>
    %c0_11 = arith.constant 0 : index
    %c0_12 = arith.constant 0 : index
    %27 = vector.load %arg3[%c0_11, %c0_12] : memref<1x1024xf32, #tpu.memory_space<vmem>>, vector<1x1024xf32>
    %28 = vector.broadcast %27 : vector<1x1024xf32> to vector<8x1024xf32>
    %29 = arith.addf %26, %28 : vector<8x1024xf32>
    %cst_13 = arith.constant 0.000000e+00 : f32
    %30 = vector.broadcast %cst_13 : f32 to vector<8x1024xf32>
    %31 = arith.maximumf %29, %30 : vector<8x1024xf32>
    %c2_i32_14 = arith.constant 2 : i32
    %32 = tpu.memref_slice %arg21[%c2_i32_14] : memref<6x!tpu.dma_semaphore, #tpu.memory_space<semaphore_mem>> -> memref<1x!tpu.dma_semaphore, #tpu.memory_space<semaphore_mem>>
    %33 = tpu.memref_squeeze %32 : memref<1x!tpu.dma_semaphore, #tpu.memory_space<semaphore_mem>> -> memref<!tpu.dma_semaphore, #tpu.memory_space<semaphore_mem>>
    tpu.wait_dma2 semaphore(%33 : memref<!tpu.dma_semaphore, #tpu.memory_space<semaphore_mem>>) src(%arg10 : memref<1024x1024xbf16, #tpu.memory_space<any>>) dst(%arg17 : memref<1024x1024xbf16, #tpu.memory_space<vmem>>)
    %34 = arith.truncf %31 : vector<8x1024xf32> to vector<8x1024xbf16>
    %c0_15 = arith.constant 0 : index
    %c0_16 = arith.constant 0 : index
    %35 = vector.load %arg17[%c0_15, %c0_16] : memref<1024x1024xbf16, #tpu.memory_space<vmem>>, vector<1024x1024xbf16>
    %cst_17 = arith.constant dense<0.000000e+00> : vector<8x1024xf32>
    %36 = tpu.matmul %34, %35, %cst_17 {dimension_numbers = #tpu.dot_dimension_numbers<[1], [0], [0], [1], [0, 0, 1, 1], [], []>} : vector<8x1024xbf16>, vector<1024x1024xbf16>, vector<8x1024xf32> -> vector<8x1024xf32>
    %c0_18 = arith.constant 0 : index
    %c0_19 = arith.constant 0 : index
    %37 = vector.load %arg4[%c0_18, %c0_19] : memref<1x1024xf32, #tpu.memory_space<vmem>>, vector<1x1024xf32>
    %38 = vector.broadcast %37 : vector<1x1024xf32> to vector<8x1024xf32>
    %39 = arith.addf %36, %38 : vector<8x1024xf32>
    %40 = arith.addf %21, %39 : vector<8x1024xf32>
    %cst_20 = arith.constant 0.000000e+00 : f32
    %41 = vector.broadcast %cst_20 : f32 to vector<8x1024xf32>
    %42 = arith.maximumf %40, %41 : vector<8x1024xf32>
    %c3_i32_21 = arith.constant 3 : i32
    %43 = tpu.memref_slice %arg21[%c3_i32_21] : memref<6x!tpu.dma_semaphore, #tpu.memory_space<semaphore_mem>> -> memref<1x!tpu.dma_semaphore, #tpu.memory_space<semaphore_mem>>
    %44 = tpu.memref_squeeze %43 : memref<1x!tpu.dma_semaphore, #tpu.memory_space<semaphore_mem>> -> memref<!tpu.dma_semaphore, #tpu.memory_space<semaphore_mem>>
    tpu.wait_dma2 semaphore(%44 : memref<!tpu.dma_semaphore, #tpu.memory_space<semaphore_mem>>) src(%arg11 : memref<1024x1024xbf16, #tpu.memory_space<any>>) dst(%arg18 : memref<1024x1024xbf16, #tpu.memory_space<vmem>>)
    %45 = arith.truncf %42 : vector<8x1024xf32> to vector<8x1024xbf16>
    %c0_22 = arith.constant 0 : index
    %c0_23 = arith.constant 0 : index
    %46 = vector.load %arg18[%c0_22, %c0_23] : memref<1024x1024xbf16, #tpu.memory_space<vmem>>, vector<1024x1024xbf16>
    %cst_24 = arith.constant dense<0.000000e+00> : vector<8x1024xf32>
    %47 = tpu.matmul %45, %46, %cst_24 {dimension_numbers = #tpu.dot_dimension_numbers<[1], [0], [0], [1], [0, 0, 1, 1], [], []>} : vector<8x1024xbf16>, vector<1024x1024xbf16>, vector<8x1024xf32> -> vector<8x1024xf32>
    %c0_25 = arith.constant 0 : index
    %c0_26 = arith.constant 0 : index
    %48 = vector.load %arg5[%c0_25, %c0_26] : memref<1x1024xf32, #tpu.memory_space<vmem>>, vector<1x1024xf32>
    %49 = vector.broadcast %48 : vector<1x1024xf32> to vector<8x1024xf32>
    %50 = arith.addf %47, %49 : vector<8x1024xf32>
    %cst_27 = arith.constant 0.000000e+00 : f32
    %51 = vector.broadcast %cst_27 : f32 to vector<8x1024xf32>
    %52 = arith.maximumf %50, %51 : vector<8x1024xf32>
    %c4_i32_28 = arith.constant 4 : i32
    %53 = tpu.memref_slice %arg21[%c4_i32_28] : memref<6x!tpu.dma_semaphore, #tpu.memory_space<semaphore_mem>> -> memref<1x!tpu.dma_semaphore, #tpu.memory_space<semaphore_mem>>
    %54 = tpu.memref_squeeze %53 : memref<1x!tpu.dma_semaphore, #tpu.memory_space<semaphore_mem>> -> memref<!tpu.dma_semaphore, #tpu.memory_space<semaphore_mem>>
    tpu.wait_dma2 semaphore(%54 : memref<!tpu.dma_semaphore, #tpu.memory_space<semaphore_mem>>) src(%arg12 : memref<1024x1024xbf16, #tpu.memory_space<any>>) dst(%arg19 : memref<1024x1024xbf16, #tpu.memory_space<vmem>>)
    %55 = arith.truncf %52 : vector<8x1024xf32> to vector<8x1024xbf16>
    %c0_29 = arith.constant 0 : index
    %c0_30 = arith.constant 0 : index
    %56 = vector.load %arg19[%c0_29, %c0_30] : memref<1024x1024xbf16, #tpu.memory_space<vmem>>, vector<1024x1024xbf16>
    %cst_31 = arith.constant dense<0.000000e+00> : vector<8x1024xf32>
    %57 = tpu.matmul %55, %56, %cst_31 {dimension_numbers = #tpu.dot_dimension_numbers<[1], [0], [0], [1], [0, 0, 1, 1], [], []>} : vector<8x1024xbf16>, vector<1024x1024xbf16>, vector<8x1024xf32> -> vector<8x1024xf32>
    %c0_32 = arith.constant 0 : index
    %c0_33 = arith.constant 0 : index
    %58 = vector.load %arg6[%c0_32, %c0_33] : memref<1x1024xf32, #tpu.memory_space<vmem>>, vector<1x1024xf32>
    %59 = vector.broadcast %58 : vector<1x1024xf32> to vector<8x1024xf32>
    %60 = arith.addf %57, %59 : vector<8x1024xf32>
    %61 = arith.addf %42, %60 : vector<8x1024xf32>
    %cst_34 = arith.constant 0.000000e+00 : f32
    %62 = vector.broadcast %cst_34 : f32 to vector<8x1024xf32>
    %63 = arith.maximumf %61, %62 : vector<8x1024xf32>
    %c5_i32_35 = arith.constant 5 : i32
    %64 = tpu.memref_slice %arg21[%c5_i32_35] : memref<6x!tpu.dma_semaphore, #tpu.memory_space<semaphore_mem>> -> memref<1x!tpu.dma_semaphore, #tpu.memory_space<semaphore_mem>>
    %65 = tpu.memref_squeeze %64 : memref<1x!tpu.dma_semaphore, #tpu.memory_space<semaphore_mem>> -> memref<!tpu.dma_semaphore, #tpu.memory_space<semaphore_mem>>
    tpu.wait_dma2 semaphore(%65 : memref<!tpu.dma_semaphore, #tpu.memory_space<semaphore_mem>>) src(%arg13 : memref<1024x128xbf16, #tpu.memory_space<any>>) dst(%arg20 : memref<1024x128xbf16, #tpu.memory_space<vmem>>)
    %66 = arith.truncf %63 : vector<8x1024xf32> to vector<8x1024xbf16>
    %c0_36 = arith.constant 0 : index
    %c0_37 = arith.constant 0 : index
    %67 = vector.load %arg20[%c0_36, %c0_37] : memref<1024x128xbf16, #tpu.memory_space<vmem>>, vector<1024x128xbf16>
    %cst_38 = arith.constant dense<0.000000e+00> : vector<8x128xf32>
    %68 = tpu.matmul %66, %67, %cst_38 {dimension_numbers = #tpu.dot_dimension_numbers<[1], [0], [0], [1], [0, 0, 1, 1], [], []>} : vector<8x1024xbf16>, vector<1024x128xbf16>, vector<8x128xf32> -> vector<8x128xf32>
    %c0_39 = arith.constant 0 : index
    %c0_40 = arith.constant 0 : index
    %69 = vector.load %arg7[%c0_39, %c0_40] : memref<1x128xf32, #tpu.memory_space<vmem>>, vector<1x128xf32>
    %70 = vector.broadcast %69 : vector<1x128xf32> to vector<8x128xf32>
    %71 = arith.addf %68, %70 : vector<8x128xf32>
    %c0_41 = arith.constant 0 : index
    %c0_42 = arith.constant 0 : index
    %72 = vector.load %arg14[%c0_41, %c0_42] : memref<8x128xf32, #tpu.memory_space<vmem>>, vector<8x128xf32>
    tpu.vector_store %arg14[%c0_41, %c0_42], %71 {strides = array<i32>} : memref<8x128xf32, #tpu.memory_space<vmem>>, vector<8x128xf32>,
    return
  }
  func.func @transform_0(%arg0: i32) -> (i32, i32) {
    %c0_i32 = arith.constant 0 : i32
    %c0_i32_0 = arith.constant 0 : i32
    %c0_i32_1 = arith.constant 0 : i32
    return %c0_i32, %c0_i32_0 : i32, i32
  }
  func.func @transform_1(%arg0: i32) -> (i32, i32) {
    %c0_i32 = arith.constant 0 : i32
    %c0_i32_0 = arith.constant 0 : i32
    %c0_i32_1 = arith.constant 0 : i32
    return %c0_i32, %c0_i32_0 : i32, i32
  }
  func.func @transform_2(%arg0: i32) -> (i32, i32) {
    %c0_i32 = arith.constant 0 : i32
    %c0_i32_0 = arith.constant 0 : i32
    %c0_i32_1 = arith.constant 0 : i32
    return %c0_i32, %c0_i32_0 : i32, i32
  }
  func.func @transform_3(%arg0: i32) -> (i32, i32) {
    %c0_i32 = arith.constant 0 : i32
    %c0_i32_0 = arith.constant 0 : i32
    %c0_i32_1 = arith.constant 0 : i32
    return %c0_i32, %c0_i32_0 : i32, i32
  }
  func.func @transform_4(%arg0: i32) -> (i32, i32) {
    %c0_i32 = arith.constant 0 : i32
    %c0_i32_0 = arith.constant 0 : i32
    %c0_i32_1 = arith.constant 0 : i32
    return %c0_i32, %c0_i32_0 : i32, i32
  }
  func.func @transform_5(%arg0: i32) -> (i32, i32) {
    %c0_i32 = arith.constant 0 : i32
    %c0_i32_0 = arith.constant 0 : i32
    %c0_i32_1 = arith.constant 0 : i32
    return %c0_i32, %c0_i32_0 : i32, i32
  }
  func.func @transform_6(%arg0: i32) -> (i32, i32) {
    %c0_i32 = arith.constant 0 : i32
    %c0_i32_0 = arith.constant 0 : i32
    %c0_i32_1 = arith.constant 0 : i32
    return %c0_i32, %c0_i32_0 : i32, i32
  }
  func.func @transform_13(%arg0: i32) -> (i32, i32) {
    %c0_i32 = arith.constant 0 : i32
    %c0_i32_0 = arith.constant 0 : i32
    %c0_i32_1 = arith.constant 0 : i32
    return %c0_i32, %c0_i32_0 : i32, i32
  }
}

</mosaic_0001>

<llo_original>
// kernel: smpl_param_regressor_forward.1
$region0: #{smpl_param_regressor_forward.1}
  #allocation0 [shape = 'u32[]', space=smem, size = 0x4, offset = 0x4, fixed_abs, tag = 'smem constant byte address 0x4 - core index']
  #allocation1 [shape = 'u32[144,128]{1,0:T(1,128)}', space=vmem, size = 0x12000, scoped, tag = 'internal scratch']
  #allocation2 [shape = 'bf16[2432,1024]{1,0:T(16,128)(2,1)}', space=vmem, size = 0x4c0000, scoped, tag = 'scratch operand']
  #allocation3 [shape = 'bf16[1024,1024]{1,0:T(16,128)(2,1)}', space=vmem, size = 0x200000, scoped, tag = 'scratch operand']
  #allocation4 [shape = 'bf16[1024,1024]{1,0:T(16,128)(2,1)}', space=vmem, size = 0x200000, scoped, tag = 'scratch operand']
  #allocation5 [shape = 'bf16[1024,1024]{1,0:T(16,128)(2,1)}', space=vmem, size = 0x200000, scoped, tag = 'scratch operand']
  #allocation6 [shape = 'bf16[1024,1024]{1,0:T(16,128)(2,1)}', space=vmem, size = 0x200000, scoped, tag = 'scratch operand']
  #allocation7 [shape = 'bf16[1024,128]{1,0:T(16,128)(2,1)}', space=vmem, size = 0x40000, scoped, tag = 'scratch operand']
  #allocation8 [shape = 's32[6]{0}', space=sflag, size = 0x18, scoped, tag = 'scratch operand']
  #allocation19 [shape = 's32[]', space=sflag, size = 0x4, offset = 0, fixed_abs, tag = 'sflag constant byte address 0x0 - dummy sync flag']
  #allocation21 [shape = 's32[]', space=sflag, size = 0x4, offset = 0, fixed_abs, tag = 'sflag constant byte address 0x0 - dummy sync flag']
  #allocation23 [shape = 's32[]', space=sflag, size = 0x4, offset = 0, fixed_abs, tag = 'sflag constant byte address 0x0 - dummy sync flag']
  #allocation25 [shape = 's32[]', space=sflag, size = 0x4, offset = 0, fixed_abs, tag = 'sflag constant byte address 0x0 - dummy sync flag']
  #allocation27 [shape = 's32[]', space=sflag, size = 0x4, offset = 0, fixed_abs, tag = 'sflag constant byte address 0x0 - dummy sync flag']
  #allocation29 [shape = 's32[]', space=sflag, size = 0x4, offset = 0, fixed_abs, tag = 'sflag constant byte address 0x0 - dummy sync flag']
  #allocation30 [shape = 's32[]', space=sflag, size = 0x4, offset = 0, fixed_abs, tag = 'sflag constant byte address 0x0 - dummy sync flag']
  #allocation31 [shape = 'u32[]', space=smem, size = 0x4, offset = 0x44, fixed_abs, tag = 'smem constant byte address 0x44 - assertion arg 0']
  #allocation32 [shape = 'u32[]', space=smem, size = 0x4, offset = 0x48, fixed_abs, tag = 'smem constant byte address 0x48 - assertion arg 1']
  %s0 = inlined_call_operand.vmem [shape: bf16[8,2432], index: 0, kind: input, shape index: {}]
  %s1 = inlined_call_operand.hbm [shape: f32[1,1024], index: 1, kind: input, shape index: {}]
  %s2 = inlined_call_operand.hbm [shape: f32[1,1024], index: 2, kind: input, shape index: {}]
  %s3 = inlined_call_operand.hbm [shape: f32[1,1024], index: 3, kind: input, shape index: {}]
  %s4 = inlined_call_operand.hbm [shape: f32[1,1024], index: 4, kind: input, shape index: {}]
  %s5 = inlined_call_operand.hbm [shape: f32[1,1024], index: 5, kind: input, shape index: {}]
  %s6 = inlined_call_operand.hbm [shape: f32[1,128], index: 6, kind: input, shape index: {}]
  %s7 = inlined_call_operand.hbm [shape: bf16[2432,1024], index: 7, kind: input, shape index: {}]
  %s8 = inlined_call_operand.hbm [shape: bf16[1024,1024], index: 8, kind: input, shape index: {}]
  %s9 = inlined_call_operand.hbm [shape: bf16[1024,1024], index: 9, kind: input, shape index: {}]
  %s10 = inlined_call_operand.hbm [shape: bf16[1024,1024], index: 10, kind: input, shape index: {}]
  %s11 = inlined_call_operand.hbm [shape: bf16[1024,1024], index: 11, kind: input, shape index: {}]
  %s12 = inlined_call_operand.hbm [shape: bf16[1024,128], index: 12, kind: input, shape index: {}]
  %s13 = inlined_call_operand.vmem [shape: f32[8,128], index: 13, kind: output, shape index: {}]
  %s14 = sld [smem:[#allocation0]]
  $region66: #{smpl_param_regressor_forward.1} parent=0
    _
  %s16 = ssub.s32 1, %s14
  %s17 = scalar_select 0, %s16, %s14
  $region1: #{smpl_param_regressor_forward.1} parent=0
    #allocation9 [shape = 'u8[4096]{0}', space=vmem, size = 0x1000, scoped, tag = 'input window, operand 1, single buffered']
    #allocation10 [shape = 's32[1]{0}', space=sflag, size = 0x4, scoped, tag = 'scoped memory for smpl_param_regressor_forward.1']
    #allocation11 [shape = 'u8[4096]{0}', space=vmem, size = 0x1000, scoped, tag = 'input window, operand 2, single buffered']
    #allocation12 [shape = 's32[1]{0}', space=sflag, size = 0x4, scoped, tag = 'scoped memory for smpl_param_regressor_forward.1']
    #allocation13 [shape = 'u8[4096]{0}', space=vmem, size = 0x1000, scoped, tag = 'input window, operand 3, single buffered']
    #allocation14 [shape = 'u8[4096]{0}', space=vmem, size = 0x1000, scoped, tag = 'input window, operand 4, single buffered']
    #allocation15 [shape = 's32[1]{0}', space=sflag, size = 0x4, scoped, tag = 'scoped memory for smpl_param_regressor_forward.1']
    #allocation16 [shape = 'u8[4096]{0}', space=vmem, size = 0x1000, scoped, tag = 'input window, operand 5, single buffered']
    #allocation17 [shape = 'u8[512]{0}', space=vmem, size = 0x400, scoped, tag = 'input window, operand 6, single buffered']
    #allocation18 [shape = 's32[1]{0}', space=sflag, size = 0x4, scoped, tag = 'scoped memory for smpl_param_regressor_forward.1']
    #allocation20 [shape = 'u32[9]{0}', space=smem, size = 0x24, scoped, tag = 'DMA stride descriptor']
    #allocation22 [shape = 'u32[9]{0}', space=smem, size = 0x24, scoped, tag = 'DMA stride descriptor']
    #allocation24 [shape = 'u32[9]{0}', space=smem, size = 0x24, scoped, tag = 'DMA stride descriptor']
    #allocation26 [shape = 'u32[9]{0}', space=smem, size = 0x24, scoped, tag = 'DMA stride descriptor']
    #allocation28 [shape = 'u32[9]{0}', space=smem, size = 0x24, scoped, tag = 'DMA stride descriptor']
    %18 = vsyncpa [#allocation10], 0
    %19 = vsyncpa [#allocation12], 0
    %20 = vsyncpa [#allocation15], 0
    %21 = vsyncpa [#allocation18], 0
    // Predicated region
    $region2: #{smpl_param_regressor_forward.1} parent=1 // pred_check
      _
    $region3: #{smpl_param_regressor_forward.1} parent=1 // pred_check_branch
      %23 = sbr.rel (0) target = $region5
    $region4: #{smpl_param_regressor_forward.1} parent=1 // pred_region
      _
    $region5: #{smpl_param_regressor_forward.1} parent=1 // pred_fallthru
      _
    // Predicated region
    $region6: #{smpl_param_regressor_forward.1} parent=1 // pred_check
      _
    $region7: #{smpl_param_regressor_forward.1} parent=1 // pred_check_branch
      %25 = sbr.rel (0) target = $region9
    $region8: #{smpl_param_regressor_forward.1} parent=1 // pred_region
      %s27 = ssub.s32 128, 128
      %28 = vsyncadd [#allocation10], %s27
      %s30 = sshll.u32 [#allocation9], 4
      %s31 = int_to_ptr.vmem [resolvable:$true] %s30
      %33 = dma.hbm_to_vmem [thread:$0]  %s1, 128, %s31, [#allocation10]
    $region9: #{smpl_param_regressor_forward.1} parent=1 // pred_fallthru
      _
    // Predicated region
    $region10: #{smpl_param_regressor_forward.1} parent=1 // pred_check
      _
    $region11: #{smpl_param_regressor_forward.1} parent=1 // pred_check_branch
      %35 = sbr.rel (0) target = $region13
    $region12: #{smpl_param_regressor_forward.1} parent=1 // pred_region
      %s37 = ssub.s32 128, 128
      %38 = vsyncadd [#allocation12], %s37
      %s40 = sshll.u32 [#allocation11], 4
      %s41 = int_to_ptr.vmem [resolvable:$true] %s40
      %43 = dma.hbm_to_vmem [thread:$0]  %s2, 128, %s41, [#allocation12]
    $region13: #{smpl_param_regressor_forward.1} parent=1 // pred_fallthru
      _
    // Predicated region
    $region14: #{smpl_param_regressor_forward.1} parent=1 // pred_check
      _
    $region15: #{smpl_param_regressor_forward.1} parent=1 // pred_check_branch
      %45 = sbr.rel (0) target = $region17
    $region16: #{smpl_param_regressor_forward.1} parent=1 // pred_region
      %s47 = ssub.s32 128, 128
      %48 = vsyncadd [#allocation12], %s47
      %s50 = sshll.u32 [#allocation13], 4
      %s51 = int_to_ptr.vmem [resolvable:$true] %s50
      %53 = dma.hbm_to_vmem [thread:$0]  %s3, 128, %s51, [#allocation12]
    $region17: #{smpl_param_regressor_forward.1} parent=1 // pred_fallthru
      _
    // Predicated region
    $region18: #{smpl_param_regressor_forward.1} parent=1 // pred_check
      _
    $region19: #{smpl_param_regressor_forward.1} parent=1 // pred_check_branch
      %55 = sbr.rel (0) target = $region21
    $region20: #{smpl_param_regressor_forward.1} parent=1 // pred_region
      %s57 = ssub.s32 128, 128
      %58 = vsyncadd [#allocation15], %s57
      %s60 = sshll.u32 [#allocation14], 4
      %s61 = int_to_ptr.vmem [resolvable:$true] %s60
      %63 = dma.hbm_to_vmem [thread:$0]  %s4, 128, %s61, [#allocation15]
    $region21: #{smpl_param_regressor_forward.1} parent=1 // pred_fallthru
      _
    // Predicated region
    $region22: #{smpl_param_regressor_forward.1} parent=1 // pred_check
      _
    $region23: #{smpl_param_regressor_forward.1} parent=1 // pred_check_branch
      %65 = sbr.rel (0) target = $region25
    $region24: #{smpl_param_regressor_forward.1} parent=1 // pred_region
      %s67 = ssub.s32 128, 128
      %68 = vsyncadd [#allocation15], %s67
      %s70 = sshll.u32 [#allocation16], 4
      %s71 = int_to_ptr.vmem [resolvable:$true] %s70
      %73 = dma.hbm_to_vmem [thread:$0]  %s5, 128, %s71, [#allocation15]
    $region25: #{smpl_param_regressor_forward.1} parent=1 // pred_fallthru
      _
    // Predicated region
    $region26: #{smpl_param_regressor_forward.1} parent=1 // pred_check
      _
    $region27: #{smpl_param_regressor_forward.1} parent=1 // pred_check_branch
      %75 = sbr.rel (0) target = $region29
    $region28: #{smpl_param_regressor_forward.1} parent=1 // pred_region
      %s77 = ssub.s32 16, 16
      %78 = vsyncadd [#allocation18], %s77
      %s80 = sshll.u32 [#allocation17], 4
      %s81 = int_to_ptr.vmem [resolvable:$true] %s80
      %83 = dma.hbm_to_vmem [thread:$0]  %s6, 16, %s81, [#allocation18]
    $region29: #{smpl_param_regressor_forward.1} parent=1 // pred_fallthru
      _
    // Predicated region
    $region30: #{smpl_param_regressor_forward.1} parent=1 // pred_check
      _
    $region31: #{smpl_param_regressor_forward.1} parent=1 // pred_check_branch
      %85 = sbr.rel (0) target = $region33
    $region32: #{smpl_param_regressor_forward.1} parent=1 // pred_region
      %86 = dma.done [#allocation10], 128
    $region33: #{smpl_param_regressor_forward.1} parent=1 // pred_fallthru
      _
    // Predicated region
    $region34: #{smpl_param_regressor_forward.1} parent=1 // pred_check
      _
    $region35: #{smpl_param_regressor_forward.1} parent=1 // pred_check_branch
      %88 = sbr.rel (0) target = $region37
    $region36: #{smpl_param_regressor_forward.1} parent=1 // pred_region
      %89 = dma.done [#allocation12], 128
    $region37: #{smpl_param_regressor_forward.1} parent=1 // pred_fallthru
      _
    // Predicated region
    $region38: #{smpl_param_regressor_forward.1} parent=1 // pred_check
      _
    $region39: #{smpl_param_regressor_forward.1} parent=1 // pred_check_branch
      %91 = sbr.rel (0) target = $region41
    $region40: #{smpl_param_regressor_forward.1} parent=1 // pred_region
      %92 = dma.done [#allocation12], 128
    $region41: #{smpl_param_regressor_forward.1} parent=1 // pred_fallthru
      _
    // Predicated region
    $region42: #{smpl_param_regressor_forward.1} parent=1 // pred_check
      _
    $region43: #{smpl_param_regressor_forward.1} parent=1 // pred_check_branch
      %94 = sbr.rel (0) target = $region45
    $region44: #{smpl_param_regressor_forward.1} parent=1 // pred_region
      %95 = dma.done [#allocation15], 128
    $region45: #{smpl_param_regressor_forward.1} parent=1 // pred_fallthru
      _
    // Predicated region
    $region46: #{smpl_param_regressor_forward.1} parent=1 // pred_check
      _
    $region47: #{smpl_param_regressor_forward.1} parent=1 // pred_check_branch
      %97 = sbr.rel (0) target = $region49
    $region48: #{smpl_param_regressor_forward.1} parent=1 // pred_region
      %98 = dma.done [#allocation15], 128
    $region49: #{smpl_param_regressor_forward.1} parent=1 // pred_fallthru
      _
    // Predicated region
    $region50: #{smpl_param_regressor_forward.1} parent=1 // pred_check
      _
    $region51: #{smpl_param_regressor_forward.1} parent=1 // pred_check_branch
      %100 = sbr.rel (0) target = $region53
    $region52: #{smpl_param_regressor_forward.1} parent=1 // pred_region
      %101 = dma.done [#allocation18], 16
    $region53: #{smpl_param_regressor_forward.1} parent=1 // pred_fallthru
      _
    %s104 = sshll.u32 1, 14
    %s105 = sxor.u32 4294967295, %s104
    %s107 = sld [smem:[#allocation0]]
    %s108 = sadd.s32 2, %s107
    %s110 = sshll.u32 7, 26
    %s111 = sxor.u32 4294967295, %s110
    %s112 = sand.u32 0, %s111
    %s113 = sshll.u32 %s108, 26
    %s114 = sor.u32 %s112, %s113
    %s115 = sshll.u32 [#allocation2], 4
    %s116 = int_to_ptr.vmem [resolvable:$true] %s115
    %119 = sst [smem:[#allocation20]] 1024
    %s120 = scalar_lea.smem [#allocation20], 1
    %121 = sst [smem:[%s120]] 1024
    %s122 = scalar_lea.smem [#allocation20], 2
    %123 = sst [smem:[%s122]] 8
    %s124 = scalar_lea.smem [#allocation20], 3
    %125 = sst [smem:[%s124]] 64
    %s126 = scalar_lea.smem [#allocation20], 4
    %127 = sst [smem:[%s126]] 128
    %s128 = scalar_lea.smem [#allocation20], 5
    %129 = sst [smem:[%s128]] 2
    %s130 = scalar_lea.smem [#allocation20], 6
    %131 = sst [smem:[%s130]] 512
    %s132 = scalar_lea.smem [#allocation20], 7
    %133 = sst [smem:[%s132]] 64
    %s134 = scalar_lea.smem [#allocation20], 8
    %135 = sst [smem:[%s134]] 4
    %137 = dma.general %s7, 155648, %s116, [#allocation8], [#allocation19], [#allocation20], %s114, 0
    %s138 = smul.u32 4, 304
    %s139 = smul.u32 %s138, 8
    %s140 = sshll.u32 %s139, 4
    %141 = dma.done [#allocation8], %s140
    %s142 = scalar_lea.sflag [#allocation8], 1
    %s144 = sshll.u32 1, 14
    %s145 = sxor.u32 4294967295, %s144
    %s147 = sadd.s32 2, %s107
    %s149 = sshll.u32 7, 26
    %s150 = sxor.u32 4294967295, %s149
    %s151 = sand.u32 0, %s150
    %s152 = sshll.u32 %s147, 26
    %s153 = sor.u32 %s151, %s152
    %s154 = sshll.u32 [#allocation3], 4
    %s155 = int_to_ptr.vmem [resolvable:$true] %s154
    %158 = sst [smem:[#allocation22]] 1024
    %s159 = scalar_lea.smem [#allocation22], 1
    %160 = sst [smem:[%s159]] 1024
    %s161 = scalar_lea.smem [#allocation22], 2
    %162 = sst [smem:[%s161]] 8
    %s163 = scalar_lea.smem [#allocation22], 3
    %164 = sst [smem:[%s163]] 64
    %s165 = scalar_lea.smem [#allocation22], 4
    %166 = sst [smem:[%s165]] 128
    %s167 = scalar_lea.smem [#allocation22], 5
    %168 = sst [smem:[%s167]] 2
    %s169 = scalar_lea.smem [#allocation22], 6
    %170 = sst [smem:[%s169]] 512
    %s171 = scalar_lea.smem [#allocation22], 7
    %172 = sst [smem:[%s171]] 64
    %s173 = scalar_lea.smem [#allocation22], 8
    %174 = sst [smem:[%s173]] 4
    %176 = dma.general %s8, 65536, %s155, %s142, [#allocation21], [#allocation22], %s153, 0
    %s177 = scalar_lea.sflag [#allocation8], 2
    %s179 = sshll.u32 1, 14
    %s180 = sxor.u32 4294967295, %s179
    %s182 = sadd.s32 2, %s107
    %s184 = sshll.u32 7, 26
    %s185 = sxor.u32 4294967295, %s184
    %s186 = sand.u32 0, %s185
    %s187 = sshll.u32 %s182, 26
    %s188 = sor.u32 %s186, %s187
    %s189 = sshll.u32 [#allocation4], 4
    %s190 = int_to_ptr.vmem [resolvable:$true] %s189
    %193 = sst [smem:[#allocation24]] 1024
    %s194 = scalar_lea.smem [#allocation24], 1
    %195 = sst [smem:[%s194]] 1024
    %s196 = scalar_lea.smem [#allocation24], 2
    %197 = sst [smem:[%s196]] 8
    %s198 = scalar_lea.smem [#allocation24], 3
    %199 = sst [smem:[%s198]] 64
    %s200 = scalar_lea.smem [#allocation24], 4
    %201 = sst [smem:[%s200]] 128
    %s202 = scalar_lea.smem [#allocation24], 5
    %203 = sst [smem:[%s202]] 2
    %s204 = scalar_lea.smem [#allocation24], 6
    %205 = sst [smem:[%s204]] 512
    %s206 = scalar_lea.smem [#allocation24], 7
    %207 = sst [smem:[%s206]] 64
    %s208 = scalar_lea.smem [#allocation24], 8
    %209 = sst [smem:[%s208]] 4
    %211 = dma.general %s9, 65536, %s190, %s177, [#allocation23], [#allocation24], %s188, 0
    %s212 = scalar_lea.sflag [#allocation8], 3
    %s214 = sshll.u32 1, 14
    %s215 = sxor.u32 4294967295, %s214
    %s217 = sadd.s32 2, %s107
    %s219 = sshll.u32 7, 26
    %s220 = sxor.u32 4294967295, %s219
    %s221 = sand.u32 0, %s220
    %s222 = sshll.u32 %s217, 26
    %s223 = sor.u32 %s221, %s222
    %s224 = sshll.u32 [#allocation5], 4
    %s225 = int_to_ptr.vmem [resolvable:$true] %s224
    %228 = sst [smem:[#allocation26]] 1024
    %s229 = scalar_lea.smem [#allocation26], 1
    %230 = sst [smem:[%s229]] 1024
    %s231 = scalar_lea.smem [#allocation26], 2
    %232 = sst [smem:[%s231]] 8
    %s233 = scalar_lea.smem [#allocation26], 3
    %234 = sst [smem:[%s233]] 64
    %s235 = scalar_lea.smem [#allocation26], 4
    %236 = sst [smem:[%s235]] 128
    %s237 = scalar_lea.smem [#allocation26], 5
    %238 = sst [smem:[%s237]] 2
    %s239 = scalar_lea.smem [#allocation26], 6
    %240 = sst [smem:[%s239]] 512
    %s241 = scalar_lea.smem [#allocation26], 7
    %242 = sst [smem:[%s241]] 64
    %s243 = scalar_lea.smem [#allocation26], 8
    %244 = sst [smem:[%s243]] 4
    %246 = dma.general %s10, 65536, %s225, %s212, [#allocation25], [#allocation26], %s223, 0
    %s247 = scalar_lea.sflag [#allocation8], 4
    %s249 = sshll.u32 1, 14
    %s250 = sxor.u32 4294967295, %s249
    %s252 = sadd.s32 2, %s107
    %s254 = sshll.u32 7, 26
    %s255 = sxor.u32 4294967295, %s254
    %s256 = sand.u32 0, %s255
    %s257 = sshll.u32 %s252, 26
    %s258 = sor.u32 %s256, %s257
    %s259 = sshll.u32 [#allocation6], 4
    %s260 = int_to_ptr.vmem [resolvable:$true] %s259
    %263 = sst [smem:[#allocation28]] 1024
    %s264 = scalar_lea.smem [#allocation28], 1
    %265 = sst [smem:[%s264]] 1024
    %s266 = scalar_lea.smem [#allocation28], 2
    %267 = sst [smem:[%s266]] 8
    %s268 = scalar_lea.smem [#allocation28], 3
    %269 = sst [smem:[%s268]] 64
    %s270 = scalar_lea.smem [#allocation28], 4
    %271 = sst [smem:[%s270]] 128
    %s272 = scalar_lea.smem [#allocation28], 5
    %273 = sst [smem:[%s272]] 2
    %s274 = scalar_lea.smem [#allocation28], 6
    %275 = sst [smem:[%s274]] 512
    %s276 = scalar_lea.smem [#allocation28], 7
    %277 = sst [smem:[%s276]] 64
    %s278 = scalar_lea.smem [#allocation28], 8
    %279 = sst [smem:[%s278]] 4
    %281 = dma.general %s11, 65536, %s260, %s247, [#allocation27], [#allocation28], %s258, 0
    %s282 = scalar_lea.sflag [#allocation8], 5
    // Predicated region
    $region54: #{smpl_param_regressor_forward.1} parent=1 // pred_check
      _
    $region55: #{smpl_param_regressor_forward.1} parent=1 // pred_check_branch
      %284 = sbr.rel target = $region57
    $region56: #{smpl_param_regressor_forward.1} parent=1 // pred_region
      %285 = sst [smem:[#allocation31]] [#allocation30]
      %286 = sst [smem:[#allocation32]] [#allocation29]
    $region57: #{smpl_param_regressor_forward.1} parent=1 // pred_fallthru
      _
    %288 = shalt.err (0)
    %s290 = sshll.u32 [#allocation7], 4
    %s291 = int_to_ptr.vmem [resolvable:$true] %s290
    %293 = dma.hbm_to_vmem [thread:$0]  %s12, 8192, %s291, %s282
    %v294 = vld [vmem:[%s0] sm:$0xff]
    %v295 = vld [vmem:[%s0 + $0x8] sm:$0xff]
    %v296 = vld [vmem:[%s0 + $0x10] sm:$0xff]
    %v297 = vld [vmem:[%s0 + $0x18] sm:$0xff]
    %v298 = vld [vmem:[%s0 + $0x20] sm:$0xff]
    %v299 = vld [vmem:[%s0 + $0x28] sm:$0xff]
    %v300 = vld [vmem:[%s0 + $0x30] sm:$0xff]
    %v301 = vld [vmem:[%s0 + $0x38] sm:$0xff]
    %v302 = vld [vmem:[%s0 + $0x40] sm:$0xff]
    %v303 = vld [vmem:[%s0 + $0x48] sm:$0xf]
    %v304 = vld [vmem:[#allocation2] sm:$0xff]
    %v305 = vld [vmem:[#allocation2 + $0x8] sm:$0xff]
    %v306 = vld [vmem:[#allocation2 + $0x10] sm:$0xff]
    %v307 = vld [vmem:[#allocation2 + $0x18] sm:$0xff]
    %v308 = vld [vmem:[#allocation2 + $0x20] sm:$0xff]
    %v309 = vld [vmem:[#allocation2 + $0x28] sm:$0xff]
    %v310 = vld [vmem:[#allocation2 + $0x30] sm:$0xff]
    %v311 = vld [vmem:[#allocation2 + $0x38] sm:$0xff]
    %v312 = vld [vmem:[#allocation2 + $0x40] sm:$0xff]
    %v313 = vld [vmem:[#allocation2 + $0x48] sm:$0xff]
    %v314 = vld [vmem:[#allocation2 + $0x50] sm:$0xff]
    %v315 = vld [vmem:[#allocation2 + $0x58] sm:$0xff]
    %v316 = vld [vmem:[#allocation2 + $0x60] sm:$0xff]
    %v317 = vld [vmem:[#allocation2 + $0x68] sm:$0xff]
    %v318 = vld [vmem:[#allocation2 + $0x70] sm:$0xff]
    %v319 = vld [vmem:[#allocation2 + $0x78] sm:$0xff]
    %v320 = vld [vmem:[#allocation2 + $0x80] sm:$0xff]
    %v321 = vld [vmem:[#allocation2 + $0x88] sm:$0xff]
    %v322 = vld [vmem:[#allocation2 + $0x90] sm:$0xff]
    %v323 = vld [vmem:[#allocation2 + $0x98] sm:$0xff]
    %v324 = vld [vmem:[#allocation2 + $0xa0] sm:$0xff]
    %v325 = vld [vmem:[#allocation2 + $0xa8] sm:$0xff]
    %v326 = vld [vmem:[#allocation2 + $0xb0] sm:$0xff]
    %v327 = vld [vmem:[#allocation2 + $0xb8] sm:$0xff]
    %v328 = vld [vmem:[#allocation2 + $0xc0] sm:$0xff]
    %v329 = vld [vmem:[#allocation2 + $0xc8] sm:$0xff]
    %v330 = vld [vmem:[#allocation2 + $0xd0] sm:$0xff]
    %v331 = vld [vmem:[#allocation2 + $0xd8] sm:$0xff]
    %v332 = vld [vmem:[#allocation2 + $0xe0] sm:$0xff]
    %v333 = vld [vmem:[#allocation2 + $0xe8] sm:$0xff]
    %v334 = vld [vmem:[#allocation2 + $0xf0] sm:$0xff]
    %v335 = vld [vmem:[#allocation2 + $0xf8] sm:$0xff]
    %v336 = vld [vmem:[#allocation2 + $0x100] sm:$0xff]
    %v337 = vld [vmem:[#allocation2 + $0x108] sm:$0xff]
    %v338 = vld [vmem:[#allocation2 + $0x110] sm:$0xff]
    %v339 = vld [vmem:[#allocation2 + $0x118] sm:$0xff]
    %v340 = vld [vmem:[#allocation2 + $0x120] sm:$0xff]
    %v341 = vld [vmem:[#allocation2 + $0x128] sm:$0xff]
    %v342 = vld [vmem:[#allocation2 + $0x130] sm:$0xff]
    %v343 = vld [vmem:[#allocation2 + $0x138] sm:$0xff]
    %v344 = vld [vmem:[#allocation2 + $0x140] sm:$0xff]
    %v345 = vld [vmem:[#allocation2 + $0x148] sm:$0xff]
    %v346 = vld [vmem:[#allocation2 + $0x150] sm:$0xff]
    %v347 = vld [vmem:[#allocation2 + $0x158] sm:$0xff]
    %v348 = vld [vmem:[#allocation2 + $0x160] sm:$0xff]
    %v349 = vld [vmem:[#allocation2 + $0x168] sm:$0xff]
    %v350 = vld [vmem:[#allocation2 + $0x170] sm:$0xff]
    %v351 = vld [vmem:[#allocation2 + $0x178] sm:$0xff]
    %v352 = vld [vmem:[#allocation2 + $0x180] sm:$0xff]
    %v353 = vld [vmem:[#allocation2 + $0x188] sm:$0xff]
    %v354 = vld [vmem:[#allocation2 + $0x190] sm:$0xff]
    %v355 = vld [vmem:[#allocation2 + $0x198] sm:$0xff]
    %v356 = vld [vmem:[#allocation2 + $0x1a0] sm:$0xff]
    %v357 = vld [vmem:[#allocation2 + $0x1a8] sm:$0xff]
    %v358 = vld [vmem:[#allocation2 + $0x1b0] sm:$0xff]
    %v359 = vld [vmem:[#allocation2 + $0x1b8] sm:$0xff]
    %v360 = vld [vmem:[#allocation2 + $0x1c0] sm:$0xff]
    %v361 = vld [vmem:[#allocation2 + $0x1c8] sm:$0xff]
    %v362 = vld [vmem:[#allocation2 + $0x1d0] sm:$0xff]
    %v363 = vld [vmem:[#allocation2 + $0x1d8] sm:$0xff]
    %v364 = vld [vmem:[#allocation2 + $0x1e0] sm:$0xff]
    %v365 = vld [vmem:[#allocation2 + $0x1e8] sm:$0xff]
    %v366 = vld [vmem:[#allocation2 + $0x1f0] sm:$0xff]
    %v367 = vld [vmem:[#allocation2 + $0x1f8] sm:$0xff]
    %v368 = vld [vmem:[#allocation2 + $0x200] sm:$0xff]
    %v369 = vld [vmem:[#allocation2 + $0x208] sm:$0xff]
    %v370 = vld [vmem:[#allocation2 + $0x210] sm:$0xff]
    %v371 = vld [vmem:[#allocation2 + $0x218] sm:$0xff]
    %v372 = vld [vmem:[#allocation2 + $0x220] sm:$0xff]
    %v373 = vld [vmem:[#allocation2 + $0x228] sm:$0xff]
    %v374 = vld [vmem:[#allocation2 + $0x230] sm:$0xff]
    %v375 = vld [vmem:[#allocation2 + $0x238] sm:$0xff]
    %v376 = vld [vmem:[#allocation2 + $0x240] sm:$0xff]
    %v377 = vld [vmem:[#allocation2 + $0x248] sm:$0xff]
    %v378 = vld [vmem:[#allocation2 + $0x250] sm:$0xff]
    %v379 = vld [vmem:[#allocation2 + $0x258] sm:$0xff]
    %v380 = vld [vmem:[#allocation2 + $0x260] sm:$0xff]
    %v381 = vld [vmem:[#allocation2 + $0x268] sm:$0xff]
    %v382 = vld [vmem:[#allocation2 + $0x270] sm:$0xff]
    %v383 = vld [vmem:[#allocation2 + $0x278] sm:$0xff]
    %v384 = vld [vmem:[#allocation2 + $0x280] sm:$0xff]
    %v385 = vld [vmem:[#allocation2 + $0x288] sm:$0xff]
    %v386 = vld [vmem:[#allocation2 + $0x290] sm:$0xff]
    %v387 = vld [vmem:[#allocation2 + $0x298] sm:$0xff]
    %v388 = vld [vmem:[#allocation2 + $0x2a0] sm:$0xff]
    %v389 = vld [vmem:[#allocation2 + $0x2a8] sm:$0xff]
    %v390 = vld [vmem:[#allocation2 + $0x2b0] sm:$0xff]
    %v391 = vld [vmem:[#allocation2 + $0x2b8] sm:$0xff]
    %v392 = vld [vmem:[#allocation2 + $0x2c0] sm:$0xff]
    %v393 = vld [vmem:[#allocation2 + $0x2c8] sm:$0xff]
    %v394 = vld [vmem:[#allocation2 + $0x2d0] sm:$0xff]
    %v395 = vld [vmem:[#allocation2 + $0x2d8] sm:$0xff]
    %v396 = vld [vmem:[#allocation2 + $0x2e0] sm:$0xff]
    %v397 = vld [vmem:[#allocation2 + $0x2e8] sm:$0xff]
    %v398 = vld [vmem:[#allocation2 + $0x2f0] sm:$0xff]
    %v399 = vld [vmem:[#allocation2 + $0x2f8] sm:$0xff]
    %v400 = vld [vmem:[#allocation2 + $0x300] sm:$0xff]
    %v401 = vld [vmem:[#allocation2 + $0x308] sm:$0xff]
    %v402 = vld [vmem:[#allocation2 + $0x310] sm:$0xff]
    %v403 = vld [vmem:[#allocation2 + $0x318] sm:$0xff]
    %v404 = vld [vmem:[#allocation2 + $0x320] sm:$0xff]
    %v405 = vld [vmem:[#allocation2 + $0x328] sm:$0xff]
    %v406 = vld [vmem:[#allocation2 + $0x330] sm:$0xff]
    %v407 = vld [vmem:[#allocation2 + $0x338] sm:$0xff]
    %v408 = vld [vmem:[#allocation2 + $0x340] sm:$0xff]
    %v409 = vld [vmem:[#allocation2 + $0x348] sm:$0xff]
    %v410 = vld [vmem:[#allocation2 + $0x350] sm:$0xff]
    %v411 = vld [vmem:[#allocation2 + $0x358] sm:$0xff]
    %v412 = vld [vmem:[#allocation2 + $0x360] sm:$0xff]
    %v413 = vld [vmem:[#allocation2 + $0x368] sm:$0xff]
    %v414 = vld [vmem:[#allocation2 + $0x370] sm:$0xff]
    %v415 = vld [vmem:[#allocation2 + $0x378] sm:$0xff]
    %v416 = vld [vmem:[#allocation2 + $0x380] sm:$0xff]
    %v417 = vld [vmem:[#allocation2 + $0x388] sm:$0xff]
    %v418 = vld [vmem:[#allocation2 + $0x390] sm:$0xff]
    %v419 = vld [vmem:[#allocation2 + $0x398] sm:$0xff]
    %v420 = vld [vmem:[#allocation2 + $0x3a0] sm:$0xff]
    %v421 = vld [vmem:[#allocation2 + $0x3a8] sm:$0xff]
    %v422 = vld [vmem:[#allocation2 + $0x3b0] sm:$0xff]
    %v423 = vld [vmem:[#allocation2 + $0x3b8] sm:$0xff]
    %v424 = vld [vmem:[#allocation2 + $0x3c0] sm:$0xff]
    %v425 = vld [vmem:[#allocation2 + $0x3c8] sm:$0xff]
    %v426 = vld [vmem:[#allocation2 + $0x3d0] sm:$0xff]
    %v427 = vld [vmem:[#allocation2 + $0x3d8] sm:$0xff]
    %v428 = vld [vmem:[#allocation2 + $0x3e0] sm:$0xff]
    %v429 = vld [vmem:[#allocation2 + $0x3e8] sm:$0xff]
    %v430 = vld [vmem:[#allocation2 + $0x3f0] sm:$0xff]
    %v431 = vld [vmem:[#allocation2 + $0x3f8] sm:$0xff]
    %v432 = vld [vmem:[#allocation2 + $0x400] sm:$0xff]
    %v433 = vld [vmem:[#allocation2 + $0x408] sm:$0xff]
    %v434 = vld [vmem:[#allocation2 + $0x410] sm:$0xff]
    %v435 = vld [vmem:[#allocation2 + $0x418] sm:$0xff]
    %v436 = vld [vmem:[#allocation2 + $0x420] sm:$0xff]
    %v437 = vld [vmem:[#allocation2 + $0x428] sm:$0xff]
    %v438 = vld [vmem:[#allocation2 + $0x430] sm:$0xff]
    %v439 = vld [vmem:[#allocation2 + $0x438] sm:$0xff]
    %v440 = vld [vmem:[#allocation2 + $0x440] sm:$0xff]
    %v441 = vld [vmem:[#allocation2 + $0x448] sm:$0xff]
    %v442 = vld [vmem:[#allocation2 + $0x450] sm:$0xff]
    %v443 = vld [vmem:[#allocation2 + $0x458] sm:$0xff]
    %v444 = vld [vmem:[#allocation2 + $0x460] sm:$0xff]
    %v445 = vld [vmem:[#allocation2 + $0x468] sm:$0xff]
    %v446 = vld [vmem:[#allocation2 + $0x470] sm:$0xff]
    %v447 = vld [vmem:[#allocation2 + $0x478] sm:$0xff]
    %v448 = vld [vmem:[#allocation2 + $0x480] sm:$0xff]
    %v449 = vld [vmem:[#allocation2 + $0x488] sm:$0xff]
    %v450 = vld [vmem:[#allocation2 + $0x490] sm:$0xff]
    %v451 = vld [vmem:[#allocation2 + $0x498] sm:$0xff]
    %v452 = vld [vmem:[#allocation2 + $0x4a0] sm:$0xff]
    %v453 = vld [vmem:[#allocation2 + $0x4a8] sm:$0xff]
    %v454 = vld [vmem:[#allocation2 + $0x4b0] sm:$0xff]
    %v455 = vld [vmem:[#allocation2 + $0x4b8] sm:$0xff]
    %v456 = vld [vmem:[#allocation2 + $0x4c0] sm:$0xff]
    %v457 = vld [vmem:[#allocation2 + $0x4c8] sm:$0xff]
    %v458 = vld [vmem:[#allocation2 + $0x4d0] sm:$0xff]
    %v459 = vld [vmem:[#allocation2 + $0x4d8] sm:$0xff]
    %v460 = vld [vmem:[#allocation2 + $0x4e0] sm:$0xff]
    %v461 = vld [vmem:[#allocation2 + $0x4e8] sm:$0xff]
    %v462 = vld [vmem:[#allocation2 + $0x4f0] sm:$0xff]
    %v463 = vld [vmem:[#allocation2 + $0x4f8] sm:$0xff]
    %v464 = vld [vmem:[#allocation2 + $0x500] sm:$0xff]
    %v465 = vld [vmem:[#allocation2 + $0x508] sm:$0xff]
    %v466 = vld [vmem:[#allocation2 + $0x510] sm:$0xff]
    %v467 = vld [vmem:[#allocation2 + $0x518] sm:$0xff]
    %v468 = vld [vmem:[#allocation2 + $0x520] sm:$0xff]
    %v469 = vld [vmem:[#allocation2 + $0x528] sm:$0xff]
    %v470 = vld [vmem:[#allocation2 + $0x530] sm:$0xff]
    %v471 = vld [vmem:[#allocation2 + $0x538] sm:$0xff]
    %v472 = vld [vmem:[#allocation2 + $0x540] sm:$0xff]
    %v473 = vld [vmem:[#allocation2 + $0x548] sm:$0xff]
    %v474 = vld [vmem:[#allocation2 + $0x550] sm:$0xff]
    %v475 = vld [vmem:[#allocation2 + $0x558] sm:$0xff]
    %v476 = vld [vmem:[#allocation2 + $0x560] sm:$0xff]
    %v477 = vld [vmem:[#allocation2 + $0x568] sm:$0xff]
    %v478 = vld [vmem:[#allocation2 + $0x570] sm:$0xff]
    %v479 = vld [vmem:[#allocation2 + $0x578] sm:$0xff]
    %v480 = vld [vmem:[#allocation2 + $0x580] sm:$0xff]
    %v481 = vld [vmem:[#allocation2 + $0x588] sm:$0xff]
    %v482 = vld [vmem:[#allocation2 + $0x590] sm:$0xff]
    %v483 = vld [vmem:[#allocation2 + $0x598] sm:$0xff]
    %v484 = vld [vmem:[#allocation2 + $0x5a0] sm:$0xff]
    %v485 = vld [vmem:[#allocation2 + $0x5a8] sm:$0xff]
    %v486 = vld [vmem:[#allocation2 + $0x5b0] sm:$0xff]
    %v487 = vld [vmem:[#allocation2 + $0x5b8] sm:$0xff]
    %v488 = vld [vmem:[#allocation2 + $0x5c0] sm:$0xff]
    %v489 = vld [vmem:[#allocation2 + $0x5c8] sm:$0xff]
    %v490 = vld [vmem:[#allocation2 + $0x5d0] sm:$0xff]
    %v491 = vld [vmem:[#allocation2 + $0x5d8] sm:$0xff]
    %v492 = vld [vmem:[#allocation2 + $0x5e0] sm:$0xff]
    %v493 = vld [vmem:[#allocation2 + $0x5e8] sm:$0xff]
    %v494 = vld [vmem:[#allocation2 + $0x5f0] sm:$0xff]
    %v495 = vld [vmem:[#allocation2 + $0x5f8] sm:$0xff]
    %v496 = vld [vmem:[#allocation2 + $0x600] sm:$0xff]
    %v497 = vld [vmem:[#allocation2 + $0x608] sm:$0xff]
    %v498 = vld [vmem:[#allocation2 + $0x610] sm:$0xff]
    %v499 = vld [vmem:[#allocation2 + $0x618] sm:$0xff]
    %v500 = vld [vmem:[#allocation2 + $0x620] sm:$0xff]
    %v501 = vld [vmem:[#allocation2 + $0x628] sm:$0xff]
    %v502 = vld [vmem:[#allocation2 + $0x630] sm:$0xff]
    %v503 = vld [vmem:[#allocation2 + $0x638] sm:$0xff]
    %v504 = vld [vmem:[#allocation2 + $0x640] sm:$0xff]
    %v505 = vld [vmem:[#allocation2 + $0x648] sm:$0xff]
    %v506 = vld [vmem:[#allocation2 + $0x650] sm:$0xff]
    %v507 = vld [vmem:[#allocation2 + $0x658] sm:$0xff]
    %v508 = vld [vmem:[#allocation2 + $0x660] sm:$0xff]
    %v509 = vld [vmem:[#allocation2 + $0x668] sm:$0xff]
    %v510 = vld [vmem:[#allocation2 + $0x670] sm:$0xff]
    %v511 = vld [vmem:[#allocation2 + $0x678] sm:$0xff]
    %v512 = vld [vmem:[#allocation2 + $0x680] sm:$0xff]
    %v513 = vld [vmem:[#allocation2 + $0x688] sm:$0xff]
    %v514 = vld [vmem:[#allocation2 + $0x690] sm:$0xff]
    %v515 = vld [vmem:[#allocation2 + $0x698] sm:$0xff]
    %v516 = vld [vmem:[#allocation2 + $0x6a0] sm:$0xff]
    %v517 = vld [vmem:[#allocation2 + $0x6a8] sm:$0xff]
    %v518 = vld [vmem:[#allocation2 + $0x6b0] sm:$0xff]
    %v519 = vld [vmem:[#allocation2 + $0x6b8] sm:$0xff]
    %v520 = vld [vmem:[#allocation2 + $0x6c0] sm:$0xff]
    %v521 = vld [vmem:[#allocation2 + $0x6c8] sm:$0xff]
    %v522 = vld [vmem:[#allocation2 + $0x6d0] sm:$0xff]
    %v523 = vld [vmem:[#allocation2 + $0x6d8] sm:$0xff]
    %v524 = vld [vmem:[#allocation2 + $0x6e0] sm:$0xff]
    %v525 = vld [vmem:[#allocation2 + $0x6e8] sm:$0xff]
    %v526 = vld [vmem:[#allocation2 + $0x6f0] sm:$0xff]
    %v527 = vld [vmem:[#allocation2 + $0x6f8] sm:$0xff]
    %v528 = vld [vmem:[#allocation2 + $0x700] sm:$0xff]
    %v529 = vld [vmem:[#allocation2 + $0x708] sm:$0xff]
    %v530 = vld [vmem:[#allocation2 + $0x710] sm:$0xff]
    %v531 = vld [vmem:[#allocation2 + $0x718] sm:$0xff]
    %v532 = vld [vmem:[#allocation2 + $0x720] sm:$0xff]
    %v533 = vld [vmem:[#allocation2 + $0x728] sm:$0xff]
    %v534 = vld [vmem:[#allocation2 + $0x730] sm:$0xff]
    %v535 = vld [vmem:[#allocation2 + $0x738] sm:$0xff]
    %v536 = vld [vmem:[#allocation2 + $0x740] sm:$0xff]
    %v537 = vld [vmem:[#allocation2 + $0x748] sm:$0xff]
    %v538 = vld [vmem:[#allocation2 + $0x750] sm:$0xff]
    %v539 = vld [vmem:[#allocation2 + $0x758] sm:$0xff]
    %v540 = vld [vmem:[#allocation2 + $0x760] sm:$0xff]
    %v541 = vld [vmem:[#allocation2 + $0x768] sm:$0xff]
    %v542 = vld [vmem:[#allocation2 + $0x770] sm:$0xff]
    %v543 = vld [vmem:[#allocation2 + $0x778] sm:$0xff]
    %v544 = vld [vmem:[#allocation2 + $0x780] sm:$0xff]
    %v545 = vld [vmem:[#allocation2 + $0x788] sm:$0xff]
    %v546 = vld [vmem:[#allocation2 + $0x790] sm:$0xff]
    %v547 = vld [vmem:[#allocation2 + $0x798] sm:$0xff]
    %v548 = vld [vmem:[#allocation2 + $0x7a0] sm:$0xff]
    %v549 = vld [vmem:[#allocation2 + $0x7a8] sm:$0xff]
    %v550 = vld [vmem:[#allocation2 + $0x7b0] sm:$0xff]
    %v551 = vld [vmem:[#allocation2 + $0x7b8] sm:$0xff]
    %v552 = vld [vmem:[#allocation2 + $0x7c0] sm:$0xff]
    %v553 = vld [vmem:[#allocation2 + $0x7c8] sm:$0xff]
    %v554 = vld [vmem:[#allocation2 + $0x7d0] sm:$0xff]
    %v555 = vld [vmem:[#allocation2 + $0x7d8] sm:$0xff]
    %v556 = vld [vmem:[#allocation2 + $0x7e0] sm:$0xff]
    %v557 = vld [vmem:[#allocation2 + $0x7e8] sm:$0xff]
    %v558 = vld [vmem:[#allocation2 + $0x7f0] sm:$0xff]
    %v559 = vld [vmem:[#allocation2 + $0x7f8] sm:$0xff]
    %v560 = vld [vmem:[#allocation2 + $0x800] sm:$0xff]
    %v561 = vld [vmem:[#allocation2 + $0x808] sm:$0xff]
    %v562 = vld [vmem:[#allocation2 + $0x810] sm:$0xff]
    %v563 = vld [vmem:[#allocation2 + $0x818] sm:$0xff]
    %v564 = vld [vmem:[#allocation2 + $0x820] sm:$0xff]
    %v565 = vld [vmem:[#allocation2 + $0x828] sm:$0xff]
    %v566 = vld [vmem:[#allocation2 + $0x830] sm:$0xff]
    %v567 = vld [vmem:[#allocation2 + $0x838] sm:$0xff]
    %v568 = vld [vmem:[#allocation2 + $0x840] sm:$0xff]
    %v569 = vld [vmem:[#allocation2 + $0x848] sm:$0xff]
    %v570 = vld [vmem:[#allocation2 + $0x850] sm:$0xff]
    %v571 = vld [vmem:[#allocation2 + $0x858] sm:$0xff]
    %v572 = vld [vmem:[#allocation2 + $0x860] sm:$0xff]
    %v573 = vld [vmem:[#allocation2 + $0x868] sm:$0xff]
    %v574 = vld [vmem:[#allocation2 + $0x870] sm:$0xff]
    %v575 = vld [vmem:[#allocation2 + $0x878] sm:$0xff]
    %v576 = vld [vmem:[#allocation2 + $0x880] sm:$0xff]
    %v577 = vld [vmem:[#allocation2 + $0x888] sm:$0xff]
    %v578 = vld [vmem:[#allocation2 + $0x890] sm:$0xff]
    %v579 = vld [vmem:[#allocation2 + $0x898] sm:$0xff]
    %v580 = vld [vmem:[#allocation2 + $0x8a0] sm:$0xff]
    %v581 = vld [vmem:[#allocation2 + $0x8a8] sm:$0xff]
    %v582 = vld [vmem:[#allocation2 + $0x8b0] sm:$0xff]
    %v583 = vld [vmem:[#allocation2 + $0x8b8] sm:$0xff]
    %v584 = vld [vmem:[#allocation2 + $0x8c0] sm:$0xff]
    %v585 = vld [vmem:[#allocation2 + $0x8c8] sm:$0xff]
    %v586 = vld [vmem:[#allocation2 + $0x8d0] sm:$0xff]
    %v587 = vld [vmem:[#allocation2 + $0x8d8] sm:$0xff]
    %v588 = vld [vmem:[#allocation2 + $0x8e0] sm:$0xff]
    %v589 = vld [vmem:[#allocation2 + $0x8e8] sm:$0xff]
    %v590 = vld [vmem:[#allocation2 + $0x8f0] sm:$0xff]
    %v591 = vld [vmem:[#allocation2 + $0x8f8] sm:$0xff]
    %v592 = vld [vmem:[#allocation2 + $0x900] sm:$0xff]
    %v593 = vld [vmem:[#allocation2 + $0x908] sm:$0xff]
    %v594 = vld [vmem:[#allocation2 + $0x910] sm:$0xff]
    %v595 = vld [vmem:[#allocation2 + $0x918] sm:$0xff]
    %v596 = vld [vmem:[#allocation2 + $0x920] sm:$0xff]
    %v597 = vld [vmem:[#allocation2 + $0x928] sm:$0xff]
    %v598 = vld [vmem:[#allocation2 + $0x930] sm:$0xff]
    %v599 = vld [vmem:[#allocation2 + $0x938] sm:$0xff]
    %v600 = vld [vmem:[#allocation2 + $0x940] sm:$0xff]
    %v601 = vld [vmem:[#allocation2 + $0x948] sm:$0xff]
    %v602 = vld [vmem:[#allocation2 + $0x950] sm:$0xff]
    %v603 = vld [vmem:[#allocation2 + $0x958] sm:$0xff]
    %v604 = vld [vmem:[#allocation2 + $0x960] sm:$0xff]
    %v605 = vld [vmem:[#allocation2 + $0x968] sm:$0xff]
    %v606 = vld [vmem:[#allocation2 + $0x970] sm:$0xff]
    %v607 = vld [vmem:[#allocation2 + $0x978] sm:$0xff]
    %v608 = vld [vmem:[#allocation2 + $0x980] sm:$0xff]
    %v609 = vld [vmem:[#allocation2 + $0x988] sm:$0xff]
    %v610 = vld [vmem:[#allocation2 + $0x990] sm:$0xff]
    %v611 = vld [vmem:[#allocation2 + $0x998] sm:$0xff]
    %v612 = vld [vmem:[#allocation2 + $0x9a0] sm:$0xff]
    %v613 = vld [vmem:[#allocation2 + $0x9a8] sm:$0xff]
    %v614 = vld [vmem:[#allocation2 + $0x9b0] sm:$0xff]
    %v615 = vld [vmem:[#allocation2 + $0x9b8] sm:$0xff]
    %v616 = vld [vmem:[#allocation2 + $0x9c0] sm:$0xff]
    %v617 = vld [vmem:[#allocation2 + $0x9c8] sm:$0xff]
    %v618 = vld [vmem:[#allocation2 + $0x9d0] sm:$0xff]
    %v619 = vld [vmem:[#allocation2 + $0x9d8] sm:$0xff]
    %v620 = vld [vmem:[#allocation2 + $0x9e0] sm:$0xff]
    %v621 = vld [vmem:[#allocation2 + $0x9e8] sm:$0xff]
    %v622 = vld [vmem:[#allocation2 + $0x9f0] sm:$0xff]
    %v623 = vld [vmem:[#allocation2 + $0x9f8] sm:$0xff]
    %v624 = vld [vmem:[#allocation2 + $0xa00] sm:$0xff]
    %v625 = vld [vmem:[#allocation2 + $0xa08] sm:$0xff]
    %v626 = vld [vmem:[#allocation2 + $0xa10] sm:$0xff]
    %v627 = vld [vmem:[#allocation2 + $0xa18] sm:$0xff]
    %v628 = vld [vmem:[#allocation2 + $0xa20] sm:$0xff]
    %v629 = vld [vmem:[#allocation2 + $0xa28] sm:$0xff]
    %v630 = vld [vmem:[#allocation2 + $0xa30] sm:$0xff]
    %v631 = vld [vmem:[#allocation2 + $0xa38] sm:$0xff]
    %v632 = vld [vmem:[#allocation2 + $0xa40] sm:$0xff]
    %v633 = vld [vmem:[#allocation2 + $0xa48] sm:$0xff]
    %v634 = vld [vmem:[#allocation2 + $0xa50] sm:$0xff]
    %v635 = vld [vmem:[#allocation2 + $0xa58] sm:$0xff]
    %v636 = vld [vmem:[#allocation2 + $0xa60] sm:$0xff]
    %v637 = vld [vmem:[#allocation2 + $0xa68] sm:$0xff]
    %v638 = vld [vmem:[#allocation2 + $0xa70] sm:$0xff]
    %v639 = vld [vmem:[#allocation2 + $0xa78] sm:$0xff]
    %v640 = vld [vmem:[#allocation2 + $0xa80] sm:$0xff]
    %v641 = vld [vmem:[#allocation2 + $0xa88] sm:$0xff]
    %v642 = vld [vmem:[#allocation2 + $0xa90] sm:$0xff]
    %v643 = vld [vmem:[#allocation2 + $0xa98] sm:$0xff]
    %v644 = vld [vmem:[#allocation2 + $0xaa0] sm:$0xff]
    %v645 = vld [vmem:[#allocation2 + $0xaa8] sm:$0xff]
    %v646 = vld [vmem:[#allocation2 + $0xab0] sm:$0xff]
    %v647 = vld [vmem:[#allocation2 + $0xab8] sm:$0xff]
    %v648 = vld [vmem:[#allocation2 + $0xac0] sm:$0xff]
    %v649 = vld [vmem:[#allocation2 + $0xac8] sm:$0xff]
    %v650 = vld [vmem:[#allocation2 + $0xad0] sm:$0xff]
    %v651 = vld [vmem:[#allocation2 + $0xad8] sm:$0xff]
    %v652 = vld [vmem:[#allocation2 + $0xae0] sm:$0xff]
    %v653 = vld [vmem:[#allocation2 + $0xae8] sm:$0xff]
    %v654 = vld [vmem:[#allocation2 + $0xaf0] sm:$0xff]
    %v655 = vld [vmem:[#allocation2 + $0xaf8] sm:$0xff]
    %v656 = vld [vmem:[#allocation2 + $0xb00] sm:$0xff]
    %v657 = vld [vmem:[#allocation2 + $0xb08] sm:$0xff]
    %v658 = vld [vmem:[#allocation2 + $0xb10] sm:$0xff]
    %v659 = vld [vmem:[#allocation2 + $0xb18] sm:$0xff]
    %v660 = vld [vmem:[#allocation2 + $0xb20] sm:$0xff]
    %v661 = vld [vmem:[#allocation2 + $0xb28] sm:$0xff]
    %v662 = vld [vmem:[#allocation2 + $0xb30] sm:$0xff]
    %v663 = vld [vmem:[#allocation2 + $0xb38] sm:$0xff]
    %v664 = vld [vmem:[#allocation2 + $0xb40] sm:$0xff]
    %v665 = vld [vmem:[#allocation2 + $0xb48] sm:$0xff]
    %v666 = vld [vmem:[#allocation2 + $0xb50] sm:$0xff]
    %v667 = vld [vmem:[#allocation2 + $0xb58] sm:$0xff]
    %v668 = vld [vmem:[#allocation2 + $0xb60] sm:$0xff]
    %v669 = vld [vmem:[#allocation2 + $0xb68] sm:$0xff]
    %v670 = vld [vmem:[#allocation2 + $0xb70] sm:$0xff]
    %v671 = vld [vmem:[#allocation2 + $0xb78] sm:$0xff]
    %v672 = vld [vmem:[#allocation2 + $0xb80] sm:$0xff]
    %v673 = vld [vmem:[#allocation2 + $0xb88] sm:$0xff]
    %v674 = vld [vmem:[#allocation2 + $0xb90] sm:$0xff]
    %v675 = vld [vmem:[#allocation2 + $0xb98] sm:$0xff]
    %v676 = vld [vmem:[#allocation2 + $0xba0] sm:$0xff]
    %v677 = vld [vmem:[#allocation2 + $0xba8] sm:$0xff]
    %v678 = vld [vmem:[#allocation2 + $0xbb0] sm:$0xff]
    %v679 = vld [vmem:[#allocation2 + $0xbb8] sm:$0xff]
    %v680 = vld [vmem:[#allocation2 + $0xbc0] sm:$0xff]
    %v681 = vld [vmem:[#allocation2 + $0xbc8] sm:$0xff]
    %v682 = vld [vmem:[#allocation2 + $0xbd0] sm:$0xff]
    %v683 = vld [vmem:[#allocation2 + $0xbd8] sm:$0xff]
    %v684 = vld [vmem:[#allocation2 + $0xbe0] sm:$0xff]
    %v685 = vld [vmem:[#allocation2 + $0xbe8] sm:$0xff]
    %v686 = vld [vmem:[#allocation2 + $0xbf0] sm:$0xff]
    %v687 = vld [vmem:[#allocation2 + $0xbf8] sm:$0xff]
    %v688 = vld [vmem:[#allocation2 + $0xc00] sm:$0xff]
    %v689 = vld [vmem:[#allocation2 + $0xc08] sm:$0xff]
    %v690 = vld [vmem:[#allocation2 + $0xc10] sm:$0xff]
    %v691 = vld [vmem:[#allocation2 + $0xc18] sm:$0xff]
    %v692 = vld [vmem:[#allocation2 + $0xc20] sm:$0xff]
    %v693 = vld [vmem:[#allocation2 + $0xc28] sm:$0xff]
    %v694 = vld [vmem:[#allocation2 + $0xc30] sm:$0xff]
    %v695 = vld [vmem:[#allocation2 + $0xc38] sm:$0xff]
    %v696 = vld [vmem:[#allocation2 + $0xc40] sm:$0xff]
    %v697 = vld [vmem:[#allocation2 + $0xc48] sm:$0xff]
    %v698 = vld [vmem:[#allocation2 + $0xc50] sm:$0xff]
    %v699 = vld [vmem:[#allocation2 + $0xc58] sm:$0xff]
    %v700 = vld [vmem:[#allocation2 + $0xc60] sm:$0xff]
    %v701 = vld [vmem:[#allocation2 + $0xc68] sm:$0xff]
    %v702 = vld [vmem:[#allocation2 + $0xc70] sm:$0xff]
    %v703 = vld [vmem:[#allocation2 + $0xc78] sm:$0xff]
    %v704 = vld [vmem:[#allocation2 + $0xc80] sm:$0xff]
    %v705 = vld [vmem:[#allocation2 + $0xc88] sm:$0xff]
    %v706 = vld [vmem:[#allocation2 + $0xc90] sm:$0xff]
    %v707 = vld [vmem:[#allocation2 + $0xc98] sm:$0xff]
    %v708 = vld [vmem:[#allocation2 + $0xca0] sm:$0xff]
    %v709 = vld [vmem:[#allocation2 + $0xca8] sm:$0xff]
    %v710 = vld [vmem:[#allocation2 + $0xcb0] sm:$0xff]
    %v711 = vld [vmem:[#allocation2 + $0xcb8] sm:$0xff]
    %v712 = vld [vmem:[#allocation2 + $0xcc0] sm:$0xff]
    %v713 = vld [vmem:[#allocation2 + $0xcc8] sm:$0xff]
    %v714 = vld [vmem:[#allocation2 + $0xcd0] sm:$0xff]
    %v715 = vld [vmem:[#allocation2 + $0xcd8] sm:$0xff]
    %v716 = vld [vmem:[#allocation2 + $0xce0] sm:$0xff]
    %v717 = vld [vmem:[#allocation2 + $0xce8] sm:$0xff]
    %v718 = vld [vmem:[#allocation2 + $0xcf0] sm:$0xff]
    %v719 = vld [vmem:[#allocation2 + $0xcf8] sm:$0xff]
    %v720 = vld [vmem:[#allocation2 + $0xd00] sm:$0xff]
    %v721 = vld [vmem:[#allocation2 + $0xd08] sm:$0xff]
    %v722 = vld [vmem:[#allocation2 + $0xd10] sm:$0xff]
    %v723 = vld [vmem:[#allocation2 + $0xd18] sm:$0xff]
    %v724 = vld [vmem:[#allocation2 + $0xd20] sm:$0xff]
    %v725 = vld [vmem:[#allocation2 + $0xd28] sm:$0xff]
    %v726 = vld [vmem:[#allocation2 + $0xd30] sm:$0xff]
    %v727 = vld [vmem:[#allocation2 + $0xd38] sm:$0xff]
    %v728 = vld [vmem:[#allocation2 + $0xd40] sm:$0xff]
    %v729 = vld [vmem:[#allocation2 + $0xd48] sm:$0xff]
    %v730 = vld [vmem:[#allocation2 + $0xd50] sm:$0xff]
    %v731 = vld [vmem:[#allocation2 + $0xd58] sm:$0xff]
    %v732 = vld [vmem:[#allocation2 + $0xd60] sm:$0xff]
    %v733 = vld [vmem:[#allocation2 + $0xd68] sm:$0xff]
    %v734 = vld [vmem:[#allocation2 + $0xd70] sm:$0xff]
    %v735 = vld [vmem:[#allocation2 + $0xd78] sm:$0xff]
    %v736 = vld [vmem:[#allocation2 + $0xd80] sm:$0xff]
    %v737 = vld [vmem:[#allocation2 + $0xd88] sm:$0xff]
    %v738 = vld [vmem:[#allocation2 + $0xd90] sm:$0xff]
    %v739 = vld [vmem:[#allocation2 + $0xd98] sm:$0xff]
    %v740 = vld [vmem:[#allocation2 + $0xda0] sm:$0xff]
    %v741 = vld [vmem:[#allocation2 + $0xda8] sm:$0xff]
    %v742 = vld [vmem:[#allocation2 + $0xdb0] sm:$0xff]
    %v743 = vld [vmem:[#allocation2 + $0xdb8] sm:$0xff]
    %v744 = vld [vmem:[#allocation2 + $0xdc0] sm:$0xff]
    %v745 = vld [vmem:[#allocation2 + $0xdc8] sm:$0xff]
    %v746 = vld [vmem:[#allocation2 + $0xdd0] sm:$0xff]
    %v747 = vld [vmem:[#allocation2 + $0xdd8] sm:$0xff]
    %v748 = vld [vmem:[#allocation2 + $0xde0] sm:$0xff]
    %v749 = vld [vmem:[#allocation2 + $0xde8] sm:$0xff]
    %v750 = vld [vmem:[#allocation2 + $0xdf0] sm:$0xff]
    %v751 = vld [vmem:[#allocation2 + $0xdf8] sm:$0xff]
    %v752 = vld [vmem:[#allocation2 + $0xe00] sm:$0xff]
    %v753 = vld [vmem:[#allocation2 + $0xe08] sm:$0xff]
    %v754 = vld [vmem:[#allocation2 + $0xe10] sm:$0xff]
    %v755 = vld [vmem:[#allocation2 + $0xe18] sm:$0xff]
    %v756 = vld [vmem:[#allocation2 + $0xe20] sm:$0xff]
    %v757 = vld [vmem:[#allocation2 + $0xe28] sm:$0xff]
    %v758 = vld [vmem:[#allocation2 + $0xe30] sm:$0xff]
    %v759 = vld [vmem:[#allocation2 + $0xe38] sm:$0xff]
    %v760 = vld [vmem:[#allocation2 + $0xe40] sm:$0xff]
    %v761 = vld [vmem:[#allocation2 + $0xe48] sm:$0xff]
    %v762 = vld [vmem:[#allocation2 + $0xe50] sm:$0xff]
    %v763 = vld [vmem:[#allocation2 + $0xe58] sm:$0xff]
    %v764 = vld [vmem:[#allocation2 + $0xe60] sm:$0xff]
    %v765 = vld [vmem:[#allocation2 + $0xe68] sm:$0xff]
    %v766 = vld [vmem:[#allocation2 + $0xe70] sm:$0xff]
    %v767 = vld [vmem:[#allocation2 + $0xe78] sm:$0xff]
    %v768 = vld [vmem:[#allocation2 + $0xe80] sm:$0xff]
    %v769 = vld [vmem:[#allocation2 + $0xe88] sm:$0xff]
    %v770 = vld [vmem:[#allocation2 + $0xe90] sm:$0xff]
    %v771 = vld [vmem:[#allocation2 + $0xe98] sm:$0xff]
    %v772 = vld [vmem:[#allocation2 + $0xea0] sm:$0xff]
    %v773 = vld [vmem:[#allocation2 + $0xea8] sm:$0xff]
    %v774 = vld [vmem:[#allocation2 + $0xeb0] sm:$0xff]
    %v775 = vld [vmem:[#allocation2 + $0xeb8] sm:$0xff]
    %v776 = vld [vmem:[#allocation2 + $0xec0] sm:$0xff]
    %v777 = vld [vmem:[#allocation2 + $0xec8] sm:$0xff]
    %v778 = vld [vmem:[#allocation2 + $0xed0] sm:$0xff]
    %v779 = vld [vmem:[#allocation2 + $0xed8] sm:$0xff]
    %v780 = vld [vmem:[#allocation2 + $0xee0] sm:$0xff]
    %v781 = vld [vmem:[#allocation2 + $0xee8] sm:$0xff]
    %v782 = vld [vmem:[#allocation2 + $0xef0] sm:$0xff]
    %v783 = vld [vmem:[#allocation2 + $0xef8] sm:$0xff]
    %v784 = vld [vmem:[#allocation2 + $0xf00] sm:$0xff]
    %v785 = vld [vmem:[#allocation2 + $0xf08] sm:$0xff]
    %v786 = vld [vmem:[#allocation2 + $0xf10] sm:$0xff]
    %v787 = vld [vmem:[#allocation2 + $0xf18] sm:$0xff]
    %v788 = vld [vmem:[#allocation2 + $0xf20] sm:$0xff]
    %v789 = vld [vmem:[#allocation2 + $0xf28] sm:$0xff]
    %v790 = vld [vmem:[#allocation2 + $0xf30] sm:$0xff]
    %v791 = vld [vmem:[#allocation2 + $0xf38] sm:$0xff]
    %v792 = vld [vmem:[#allocation2 + $0xf40] sm:$0xff]
    %v793 = vld [vmem:[#allocation2 + $0xf48] sm:$0xff]
    %v794 = vld [vmem:[#allocation2 + $0xf50] sm:$0xff]
    %v795 = vld [vmem:[#allocation2 + $0xf58] sm:$0xff]
    %v796 = vld [vmem:[#allocation2 + $0xf60] sm:$0xff]
    %v797 = vld [vmem:[#allocation2 + $0xf68] sm:$0xff]
    %v798 = vld [vmem:[#allocation2 + $0xf70] sm:$0xff]
    %v799 = vld [vmem:[#allocation2 + $0xf78] sm:$0xff]
    %v800 = vld [vmem:[#allocation2 + $0xf80] sm:$0xff]
    %v801 = vld [vmem:[#allocation2 + $0xf88] sm:$0xff]
    %v802 = vld [vmem:[#allocation2 + $0xf90] sm:$0xff]
    %v803 = vld [vmem:[#allocation2 + $0xf98] sm:$0xff]
    %v804 = vld [vmem:[#allocation2 + $0xfa0] sm:$0xff]
    %v805 = vld [vmem:[#allocation2 + $0xfa8] sm:$0xff]
    %v806 = vld [vmem:[#allocation2 + $0xfb0] sm:$0xff]
    %v807 = vld [vmem:[#allocation2 + $0xfb8] sm:$0xff]
    %v808 = vld [vmem:[#allocation2 + $0xfc0] sm:$0xff]
    %v809 = vld [vmem:[#allocation2 + $0xfc8] sm:$0xff]
    %v810 = vld [vmem:[#allocation2 + $0xfd0] sm:$0xff]
    %v811 = vld [vmem:[#allocation2 + $0xfd8] sm:$0xff]
    %v812 = vld [vmem:[#allocation2 + $0xfe0] sm:$0xff]
    %v813 = vld [vmem:[#allocation2 + $0xfe8] sm:$0xff]
    %v814 = vld [vmem:[#allocation2 + $0xff0] sm:$0xff]
    %v815 = vld [vmem:[#allocation2 + $0xff8] sm:$0xff]
    %v816 = vld [vmem:[#allocation2 + $0x1000] sm:$0xff]
    %v817 = vld [vmem:[#allocation2 + $0x1008] sm:$0xff]
    %v818 = vld [vmem:[#allocation2 + $0x1010] sm:$0xff]
    %v819 = vld [vmem:[#allocation2 + $0x1018] sm:$0xff]
    %v820 = vld [vmem:[#allocation2 + $0x1020] sm:$0xff]
    %v821 = vld [vmem:[#allocation2 + $0x1028] sm:$0xff]
    %v822 = vld [vmem:[#allocation2 + $0x1030] sm:$0xff]
    %v823 = vld [vmem:[#allocation2 + $0x1038] sm:$0xff]
    %v824 = vld [vmem:[#allocation2 + $0x1040] sm:$0xff]
    %v825 = vld [vmem:[#allocation2 + $0x1048] sm:$0xff]
    %v826 = vld [vmem:[#allocation2 + $0x1050] sm:$0xff]
    %v827 = vld [vmem:[#allocation2 + $0x1058] sm:$0xff]
    %v828 = vld [vmem:[#allocation2 + $0x1060] sm:$0xff]
    %v829 = vld [vmem:[#allocation2 + $0x1068] sm:$0xff]
    %v830 = vld [vmem:[#allocation2 + $0x1070] sm:$0xff]
    %v831 = vld [vmem:[#allocation2 + $0x1078] sm:$0xff]
    %v832 = vld [vmem:[#allocation2 + $0x1080] sm:$0xff]
    %v833 = vld [vmem:[#allocation2 + $0x1088] sm:$0xff]
    %v834 = vld [vmem:[#allocation2 + $0x1090] sm:$0xff]
    %v835 = vld [vmem:[#allocation2 + $0x1098] sm:$0xff]
    %v836 = vld [vmem:[#allocation2 + $0x10a0] sm:$0xff]
    %v837 = vld [vmem:[#allocation2 + $0x10a8] sm:$0xff]
    %v838 = vld [vmem:[#allocation2 + $0x10b0] sm:$0xff]
    %v839 = vld [vmem:[#allocation2 + $0x10b8] sm:$0xff]
    %v840 = vld [vmem:[#allocation2 + $0x10c0] sm:$0xff]
    %v841 = vld [vmem:[#allocation2 + $0x10c8] sm:$0xff]
    %v842 = vld [vmem:[#allocation2 + $0x10d0] sm:$0xff]
    %v843 = vld [vmem:[#allocation2 + $0x10d8] sm:$0xff]
    %v844 = vld [vmem:[#allocation2 + $0x10e0] sm:$0xff]
    %v845 = vld [vmem:[#allocation2 + $0x10e8] sm:$0xff]
    %v846 = vld [vmem:[#allocation2 + $0x10f0] sm:$0xff]
    %v847 = vld [vmem:[#allocation2 + $0x10f8] sm:$0xff]
    %v848 = vld [vmem:[#allocation2 + $0x1100] sm:$0xff]
    %v849 = vld [vmem:[#allocation2 + $0x1108] sm:$0xff]
    %v850 = vld [vmem:[#allocation2 + $0x1110] sm:$0xff]
    %v851 = vld [vmem:[#allocation2 + $0x1118] sm:$0xff]
    %v852 = vld [vmem:[#allocation2 + $0x1120] sm:$0xff]
    %v853 = vld [vmem:[#allocation2 + $0x1128] sm:$0xff]
    %v854 = vld [vmem:[#allocation2 + $0x1130] sm:$0xff]
    %v855 = vld [vmem:[#allocation2 + $0x1138] sm:$0xff]
    %v856 = vld [vmem:[#allocation2 + $0x1140] sm:$0xff]
    %v857 = vld [vmem:[#allocation2 + $0x1148] sm:$0xff]
    %v858 = vld [vmem:[#allocation2 + $0x1150] sm:$0xff]
    %v859 = vld [vmem:[#allocation2 + $0x1158] sm:$0xff]
    %v860 = vld [vmem:[#allocation2 + $0x1160] sm:$0xff]
    %v861 = vld [vmem:[#allocation2 + $0x1168] sm:$0xff]
    %v862 = vld [vmem:[#allocation2 + $0x1170] sm:$0xff]
    %v863 = vld [vmem:[#allocation2 + $0x1178] sm:$0xff]
    %v864 = vld [vmem:[#allocation2 + $0x1180] sm:$0xff]
    %v865 = vld [vmem:[#allocation2 + $0x1188] sm:$0xff]
    %v866 = vld [vmem:[#allocation2 + $0x1190] sm:$0xff]
    %v867 = vld [vmem:[#allocation2 + $0x1198] sm:$0xff]
    %v868 = vld [vmem:[#allocation2 + $0x11a0] sm:$0xff]
    %v869 = vld [vmem:[#allocation2 + $0x11a8] sm:$0xff]
    %v870 = vld [vmem:[#allocation2 + $0x11b0] sm:$0xff]
    %v871 = vld [vmem:[#allocation2 + $0x11b8] sm:$0xff]
    %v872 = vld [vmem:[#allocation2 + $0x11c0] sm:$0xff]
    %v873 = vld [vmem:[#allocation2 + $0x11c8] sm:$0xff]
    %v874 = vld [vmem:[#allocation2 + $0x11d0] sm:$0xff]
    %v875 = vld [vmem:[#allocation2 + $0x11d8] sm:$0xff]
    %v876 = vld [vmem:[#allocation2 + $0x11e0] sm:$0xff]
    %v877 = vld [vmem:[#allocation2 + $0x11e8] sm:$0xff]
    %v878 = vld [vmem:[#allocation2 + $0x11f0] sm:$0xff]
    %v879 = vld [vmem:[#allocation2 + $0x11f8] sm:$0xff]
    %v880 = vld [vmem:[#allocation2 + $0x1200] sm:$0xff]
    %v881 = vld [vmem:[#allocation2 + $0x1208] sm:$0xff]
    %v882 = vld [vmem:[#allocation2 + $0x1210] sm:$0xff]
    %v883 = vld [vmem:[#allocation2 + $0x1218] sm:$0xff]
    %v884 = vld [vmem:[#allocation2 + $0x1220] sm:$0xff]
    %v885 = vld [vmem:[#allocation2 + $0x1228] sm:$0xff]
    %v886 = vld [vmem:[#allocation2 + $0x1230] sm:$0xff]
    %v887 = vld [vmem:[#allocation2 + $0x1238] sm:$0xff]
    %v888 = vld [vmem:[#allocation2 + $0x1240] sm:$0xff]
    %v889 = vld [vmem:[#allocation2 + $0x1248] sm:$0xff]
    %v890 = vld [vmem:[#allocation2 + $0x1250] sm:$0xff]
    %v891 = vld [vmem:[#allocation2 + $0x1258] sm:$0xff]
    %v892 = vld [vmem:[#allocation2 + $0x1260] sm:$0xff]
    %v893 = vld [vmem:[#allocation2 + $0x1268] sm:$0xff]
    %v894 = vld [vmem:[#allocation2 + $0x1270] sm:$0xff]
    %v895 = vld [vmem:[#allocation2 + $0x1278] sm:$0xff]
    %v896 = vld [vmem:[#allocation2 + $0x1280] sm:$0xff]
    %v897 = vld [vmem:[#allocation2 + $0x1288] sm:$0xff]
    %v898 = vld [vmem:[#allocation2 + $0x1290] sm:$0xff]
    %v899 = vld [vmem:[#allocation2 + $0x1298] sm:$0xff]
    %v900 = vld [vmem:[#allocation2 + $0x12a0] sm:$0xff]
    %v901 = vld [vmem:[#allocation2 + $0x12a8] sm:$0xff]
    %v902 = vld [vmem:[#allocation2 + $0x12b0] sm:$0xff]
    %v903 = vld [vmem:[#allocation2 + $0x12b8] sm:$0xff]
    %v904 = vld [vmem:[#allocation2 + $0x12c0] sm:$0xff]
    %v905 = vld [vmem:[#allocation2 + $0x12c8] sm:$0xff]
    %v906 = vld [vmem:[#allocation2 + $0x12d0] sm:$0xff]
    %v907 = vld [vmem:[#allocation2 + $0x12d8] sm:$0xff]
    %v908 = vld [vmem:[#allocation2 + $0x12e0] sm:$0xff]
    %v909 = vld [vmem:[#allocation2 + $0x12e8] sm:$0xff]
    %v910 = vld [vmem:[#allocation2 + $0x12f0] sm:$0xff]
    %v911 = vld [vmem:[#allocation2 + $0x12f8] sm:$0xff]
    %v912 = vld [vmem:[#allocation2 + $0x1300] sm:$0xff]
    %v913 = vld [vmem:[#allocation2 + $0x1308] sm:$0xff]
    %v914 = vld [vmem:[#allocation2 + $0x1310] sm:$0xff]
    %v915 = vld [vmem:[#allocation2 + $0x1318] sm:$0xff]
    %v916 = vld [vmem:[#allocation2 + $0x1320] sm:$0xff]
    %v917 = vld [vmem:[#allocation2 + $0x1328] sm:$0xff]
    %v918 = vld [vmem:[#allocation2 + $0x1330] sm:$0xff]
    %v919 = vld [vmem:[#allocation2 + $0x1338] sm:$0xff]
    %v920 = vld [vmem:[#allocation2 + $0x1340] sm:$0xff]
    %v921 = vld [vmem:[#allocation2 + $0x1348] sm:$0xff]
    %v922 = vld [vmem:[#allocation2 + $0x1350] sm:$0xff]
    %v923 = vld [vmem:[#allocation2 + $0x1358] sm:$0xff]
    %v924 = vld [vmem:[#allocation2 + $0x1360] sm:$0xff]
    %v925 = vld [vmem:[#allocation2 + $0x1368] sm:$0xff]
    %v926 = vld [vmem:[#allocation2 + $0x1370] sm:$0xff]
    %v927 = vld [vmem:[#allocation2 + $0x1378] sm:$0xff]
    %v928 = vld [vmem:[#allocation2 + $0x1380] sm:$0xff]
    %v929 = vld [vmem:[#allocation2 + $0x1388] sm:$0xff]
    %v930 = vld [vmem:[#allocation2 + $0x1390] sm:$0xff]
    %v931 = vld [vmem:[#allocation2 + $0x1398] sm:$0xff]
    %v932 = vld [vmem:[#allocation2 + $0x13a0] sm:$0xff]
    %v933 = vld [vmem:[#allocation2 + $0x13a8] sm:$0xff]
    %v934 = vld [vmem:[#allocation2 + $0x13b0] sm:$0xff]
    %v935 = vld [vmem:[#allocation2 + $0x13b8] sm:$0xff]
    %v936 = vld [vmem:[#allocation2 + $0x13c0] sm:$0xff]
    %v937 = vld [vmem:[#allocation2 + $0x13c8] sm:$0xff]
    %v938 = vld [vmem:[#allocation2 + $0x13d0] sm:$0xff]
    %v939 = vld [vmem:[#allocation2 + $0x13d8] sm:$0xff]
    %v940 = vld [vmem:[#allocation2 + $0x13e0] sm:$0xff]
    %v941 = vld [vmem:[#allocation2 + $0x13e8] sm:$0xff]
    %v942 = vld [vmem:[#allocation2 + $0x13f0] sm:$0xff]
    %v943 = vld [vmem:[#allocation2 + $0x13f8] sm:$0xff]
    %v944 = vld [vmem:[#allocation2 + $0x1400] sm:$0xff]
    %v945 = vld [vmem:[#allocation2 + $0x1408] sm:$0xff]
    %v946 = vld [vmem:[#allocation2 + $0x1410] sm:$0xff]
    %v947 = vld [vmem:[#allocation2 + $0x1418] sm:$0xff]
    %v948 = vld [vmem:[#allocation2 + $0x1420] sm:$0xff]
    %v949 = vld [vmem:[#allocation2 + $0x1428] sm:$0xff]
    %v950 = vld [vmem:[#allocation2 + $0x1430] sm:$0xff]
    %v951 = vld [vmem:[#allocation2 + $0x1438] sm:$0xff]
    %v952 = vld [vmem:[#allocation2 + $0x1440] sm:$0xff]
    %v953 = vld [vmem:[#allocation2 + $0x1448] sm:$0xff]
    %v954 = vld [vmem:[#allocation2 + $0x1450] sm:$0xff]
    %v955 = vld [vmem:[#allocation2 + $0x1458] sm:$0xff]
    %v956 = vld [vmem:[#allocation2 + $0x1460] sm:$0xff]
    %v957 = vld [vmem:[#allocation2 + $0x1468] sm:$0xff]
    %v958 = vld [vmem:[#allocation2 + $0x1470] sm:$0xff]
    %v959 = vld [vmem:[#allocation2 + $0x1478] sm:$0xff]
    %v960 = vld [vmem:[#allocation2 + $0x1480] sm:$0xff]
    %v961 = vld [vmem:[#allocation2 + $0x1488] sm:$0xff]
    %v962 = vld [vmem:[#allocation2 + $0x1490] sm:$0xff]
    %v963 = vld [vmem:[#allocation2 + $0x1498] sm:$0xff]
    %v964 = vld [vmem:[#allocation2 + $0x14a0] sm:$0xff]
    %v965 = vld [vmem:[#allocation2 + $0x14a8] sm:$0xff]
    %v966 = vld [vmem:[#allocation2 + $0x14b0] sm:$0xff]
    %v967 = vld [vmem:[#allocation2 + $0x14b8] sm:$0xff]
    %v968 = vld [vmem:[#allocation2 + $0x14c0] sm:$0xff]
    %v969 = vld [vmem:[#allocation2 + $0x14c8] sm:$0xff]
    %v970 = vld [vmem:[#allocation2 + $0x14d0] sm:$0xff]
    %v971 = vld [vmem:[#allocation2 + $0x14d8] sm:$0xff]
    %v972 = vld [vmem:[#allocation2 + $0x14e0] sm:$0xff]
    %v973 = vld [vmem:[#allocation2 + $0x14e8] sm:$0xff]
    %v974 = vld [vmem:[#allocation2 + $0x14f0] sm:$0xff]
    %v975 = vld [vmem:[#allocation2 + $0x14f8] sm:$0xff]
    %v976 = vld [vmem:[#allocation2 + $0x1500] sm:$0xff]
    %v977 = vld [vmem:[#allocation2 + $0x1508] sm:$0xff]
    %v978 = vld [vmem:[#allocation2 + $0x1510] sm:$0xff]
    %v979 = vld [vmem:[#allocation2 + $0x1518] sm:$0xff]
    %v980 = vld [vmem:[#allocation2 + $0x1520] sm:$0xff]
    %v981 = vld [vmem:[#allocation2 + $0x1528] sm:$0xff]
    %v982 = vld [vmem:[#allocation2 + $0x1530] sm:$0xff]
    %v983 = vld [vmem:[#allocation2 + $0x1538] sm:$0xff]
    %v984 = vld [vmem:[#allocation2 + $0x1540] sm:$0xff]
    %v985 = vld [vmem:[#allocation2 + $0x1548] sm:$0xff]
    %v986 = vld [vmem:[#allocation2 + $0x1550] sm:$0xff]
    %v987 = vld [vmem:[#allocation2 + $0x1558] sm:$0xff]
    %v988 = vld [vmem:[#allocation2 + $0x1560] sm:$0xff]
    %v989 = vld [vmem:[#allocation2 + $0x1568] sm:$0xff]
    %v990 = vld [vmem:[#allocation2 + $0x1570] sm:$0xff]
    %v991 = vld [vmem:[#allocation2 + $0x1578] sm:$0xff]
    %v992 = vld [vmem:[#allocation2 + $0x1580] sm:$0xff]
    %v993 = vld [vmem:[#allocation2 + $0x1588] sm:$0xff]
    %v994 = vld [vmem:[#allocation2 + $0x1590] sm:$0xff]
    %v995 = vld [vmem:[#allocation2 + $0x1598] sm:$0xff]
    %v996 = vld [vmem:[#allocation2 + $0x15a0] sm:$0xff]
    %v997 = vld [vmem:[#allocation2 + $0x15a8] sm:$0xff]
    %v998 = vld [vmem:[#allocation2 + $0x15b0] sm:$0xff]
    %v999 = vld [vmem:[#allocation2 + $0x15b8] sm:$0xff]
    %v1000 = vld [vmem:[#allocation2 + $0x15c0] sm:$0xff]
    %v1001 = vld [vmem:[#allocation2 + $0x15c8] sm:$0xff]
    %v1002 = vld [vmem:[#allocation2 + $0x15d0] sm:$0xff]
    %v1003 = vld [vmem:[#allocation2 + $0x15d8] sm:$0xff]
    %v1004 = vld [vmem:[#allocation2 + $0x15e0] sm:$0xff]
    %v1005 = vld [vmem:[#allocation2 + $0x15e8] sm:$0xff]
    %v1006 = vld [vmem:[#allocation2 + $0x15f0] sm:$0xff]
    %v1007 = vld [vmem:[#allocation2 + $0x15f8] sm:$0xff]
    %v1008 = vld [vmem:[#allocation2 + $0x1600] sm:$0xff]
    %v1009 = vld [vmem:[#allocation2 + $0x1608] sm:$0xff]
    %v1010 = vld [vmem:[#allocation2 + $0x1610] sm:$0xff]
    %v1011 = vld [vmem:[#allocation2 + $0x1618] sm:$0xff]
    %v1012 = vld [vmem:[#allocation2 + $0x1620] sm:$0xff]
    %v1013 = vld [vmem:[#allocation2 + $0x1628] sm:$0xff]
    %v1014 = vld [vmem:[#allocation2 + $0x1630] sm:$0xff]
    %v1015 = vld [vmem:[#allocation2 + $0x1638] sm:$0xff]
    %v1016 = vld [vmem:[#allocation2 + $0x1640] sm:$0xff]
    %v1017 = vld [vmem:[#allocation2 + $0x1648] sm:$0xff]
    %v1018 = vld [vmem:[#allocation2 + $0x1650] sm:$0xff]
    %v1019 = vld [vmem:[#allocation2 + $0x1658] sm:$0xff]
    %v1020 = vld [vmem:[#allocation2 + $0x1660] sm:$0xff]
    %v1021 = vld [vmem:[#allocation2 + $0x1668] sm:$0xff]
    %v1022 = vld [vmem:[#allocation2 + $0x1670] sm:$0xff]
    %v1023 = vld [vmem:[#allocation2 + $0x1678] sm:$0xff]
    %v1024 = vld [vmem:[#allocation2 + $0x1680] sm:$0xff]
    %v1025 = vld [vmem:[#allocation2 + $0x1688] sm:$0xff]
    %v1026 = vld [vmem:[#allocation2 + $0x1690] sm:$0xff]
    %v1027 = vld [vmem:[#allocation2 + $0x1698] sm:$0xff]
    %v1028 = vld [vmem:[#allocation2 + $0x16a0] sm:$0xff]
    %v1029 = vld [vmem:[#allocation2 + $0x16a8] sm:$0xff]
    %v1030 = vld [vmem:[#allocation2 + $0x16b0] sm:$0xff]
    %v1031 = vld [vmem:[#allocation2 + $0x16b8] sm:$0xff]
    %v1032 = vld [vmem:[#allocation2 + $0x16c0] sm:$0xff]
    %v1033 = vld [vmem:[#allocation2 + $0x16c8] sm:$0xff]
    %v1034 = vld [vmem:[#allocation2 + $0x16d0] sm:$0xff]
    %v1035 = vld [vmem:[#allocation2 + $0x16d8] sm:$0xff]
    %v1036 = vld [vmem:[#allocation2 + $0x16e0] sm:$0xff]
    %v1037 = vld [vmem:[#allocation2 + $0x16e8] sm:$0xff]
    %v1038 = vld [vmem:[#allocation2 + $0x16f0] sm:$0xff]
    %v1039 = vld [vmem:[#allocation2 + $0x16f8] sm:$0xff]
    %v1040 = vld [vmem:[#allocation2 + $0x1700] sm:$0xff]
    %v1041 = vld [vmem:[#allocation2 + $0x1708] sm:$0xff]
    %v1042 = vld [vmem:[#allocation2 + $0x1710] sm:$0xff]
    %v1043 = vld [vmem:[#allocation2 + $0x1718] sm:$0xff]
    %v1044 = vld [vmem:[#allocation2 + $0x1720] sm:$0xff]
    %v1045 = vld [vmem:[#allocation2 + $0x1728] sm:$0xff]
    %v1046 = vld [vmem:[#allocation2 + $0x1730] sm:$0xff]
    %v1047 = vld [vmem:[#allocation2 + $0x1738] sm:$0xff]
    %v1048 = vld [vmem:[#allocation2 + $0x1740] sm:$0xff]
    %v1049 = vld [vmem:[#allocation2 + $0x1748] sm:$0xff]
    %v1050 = vld [vmem:[#allocation2 + $0x1750] sm:$0xff]
    %v1051 = vld [vmem:[#allocation2 + $0x1758] sm:$0xff]
    %v1052 = vld [vmem:[#allocation2 + $0x1760] sm:$0xff]
    %v1053 = vld [vmem:[#allocation2 + $0x1768] sm:$0xff]
    %v1054 = vld [vmem:[#allocation2 + $0x1770] sm:$0xff]
    %v1055 = vld [vmem:[#allocation2 + $0x1778] sm:$0xff]
    %v1056 = vld [vmem:[#allocation2 + $0x1780] sm:$0xff]
    %v1057 = vld [vmem:[#allocation2 + $0x1788] sm:$0xff]
    %v1058 = vld [vmem:[#allocation2 + $0x1790] sm:$0xff]
    %v1059 = vld [vmem:[#allocation2 + $0x1798] sm:$0xff]
    %v1060 = vld [vmem:[#allocation2 + $0x17a0] sm:$0xff]
    %v1061 = vld [vmem:[#allocation2 + $0x17a8] sm:$0xff]
    %v1062 = vld [vmem:[#allocation2 + $0x17b0] sm:$0xff]
    %v1063 = vld [vmem:[#allocation2 + $0x17b8] sm:$0xff]
    %v1064 = vld [vmem:[#allocation2 + $0x17c0] sm:$0xff]
    %v1065 = vld [vmem:[#allocation2 + $0x17c8] sm:$0xff]
    %v1066 = vld [vmem:[#allocation2 + $0x17d0] sm:$0xff]
    %v1067 = vld [vmem:[#allocation2 + $0x17d8] sm:$0xff]
    %v1068 = vld [vmem:[#allocation2 + $0x17e0] sm:$0xff]
    %v1069 = vld [vmem:[#allocation2 + $0x17e8] sm:$0xff]
    %v1070 = vld [vmem:[#allocation2 + $0x17f0] sm:$0xff]
    %v1071 = vld [vmem:[#allocation2 + $0x17f8] sm:$0xff]
    %v1072 = vld [vmem:[#allocation2 + $0x1800] sm:$0xff]
    %v1073 = vld [vmem:[#allocation2 + $0x1808] sm:$0xff]
    %v1074 = vld [vmem:[#allocation2 + $0x1810] sm:$0xff]
    %v1075 = vld [vmem:[#allocation2 + $0x1818] sm:$0xff]
    %v1076 = vld [vmem:[#allocation2 + $0x1820] sm:$0xff]
    %v1077 = vld [vmem:[#allocation2 + $0x1828] sm:$0xff]
    %v1078 = vld [vmem:[#allocation2 + $0x1830] sm:$0xff]
    %v1079 = vld [vmem:[#allocation2 + $0x1838] sm:$0xff]
    %v1080 = vld [vmem:[#allocation2 + $0x1840] sm:$0xff]
    %v1081 = vld [vmem:[#allocation2 + $0x1848] sm:$0xff]
    %v1082 = vld [vmem:[#allocation2 + $0x1850] sm:$0xff]
    %v1083 = vld [vmem:[#allocation2 + $0x1858] sm:$0xff]
    %v1084 = vld [vmem:[#allocation2 + $0x1860] sm:$0xff]
    %v1085 = vld [vmem:[#allocation2 + $0x1868] sm:$0xff]
    %v1086 = vld [vmem:[#allocation2 + $0x1870] sm:$0xff]
    %v1087 = vld [vmem:[#allocation2 + $0x1878] sm:$0xff]
    %v1088 = vld [vmem:[#allocation2 + $0x1880] sm:$0xff]
    %v1089 = vld [vmem:[#allocation2 + $0x1888] sm:$0xff]
    %v1090 = vld [vmem:[#allocation2 + $0x1890] sm:$0xff]
    %v1091 = vld [vmem:[#allocation2 + $0x1898] sm:$0xff]
    %v1092 = vld [vmem:[#allocation2 + $0x18a0] sm:$0xff]
    %v1093 = vld [vmem:[#allocation2 + $0x18a8] sm:$0xff]
    %v1094 = vld [vmem:[#allocation2 + $0x18b0] sm:$0xff]
    %v1095 = vld [vmem:[#allocation2 + $0x18b8] sm:$0xff]
    %v1096 = vld [vmem:[#allocation2 + $0x18c0] sm:$0xff]
    %v1097 = vld [vmem:[#allocation2 + $0x18c8] sm:$0xff]
    %v1098 = vld [vmem:[#allocation2 + $0x18d0] sm:$0xff]
    %v1099 = vld [vmem:[#allocation2 + $0x18d8] sm:$0xff]
    %v1100 = vld [vmem:[#allocation2 + $0x18e0] sm:$0xff]
    %v1101 = vld [vmem:[#allocation2 + $0x18e8] sm:$0xff]
    %v1102 = vld [vmem:[#allocation2 + $0x18f0] sm:$0xff]
    %v1103 = vld [vmem:[#allocation2 + $0x18f8] sm:$0xff]
    %v1104 = vld [vmem:[#allocation2 + $0x1900] sm:$0xff]
    %v1105 = vld [vmem:[#allocation2 + $0x1908] sm:$0xff]
    %v1106 = vld [vmem:[#allocation2 + $0x1910] sm:$0xff]
    %v1107 = vld [vmem:[#allocation2 + $0x1918] sm:$0xff]
    %v1108 = vld [vmem:[#allocation2 + $0x1920] sm:$0xff]
    %v1109 = vld [vmem:[#allocation2 + $0x1928] sm:$0xff]
    %v1110 = vld [vmem:[#allocation2 + $0x1930] sm:$0xff]
    %v1111 = vld [vmem:[#allocation2 + $0x1938] sm:$0xff]
    %v1112 = vld [vmem:[#allocation2 + $0x1940] sm:$0xff]
    %v1113 = vld [vmem:[#allocation2 + $0x1948] sm:$0xff]
    %v1114 = vld [vmem:[#allocation2 + $0x1950] sm:$0xff]
    %v1115 = vld [vmem:[#allocation2 + $0x1958] sm:$0xff]
    %v1116 = vld [vmem:[#allocation2 + $0x1960] sm:$0xff]
    %v1117 = vld [vmem:[#allocation2 + $0x1968] sm:$0xff]
    %v1118 = vld [vmem:[#allocation2 + $0x1970] sm:$0xff]
    %v1119 = vld [vmem:[#allocation2 + $0x1978] sm:$0xff]
    %v1120 = vld [vmem:[#allocation2 + $0x1980] sm:$0xff]
    %v1121 = vld [vmem:[#allocation2 + $0x1988] sm:$0xff]
    %v1122 = vld [vmem:[#allocation2 + $0x1990] sm:$0xff]
    %v1123 = vld [vmem:[#allocation2 + $0x1998] sm:$0xff]
    %v1124 = vld [vmem:[#allocation2 + $0x19a0] sm:$0xff]
    %v1125 = vld [vmem:[#allocation2 + $0x19a8] sm:$0xff]
    %v1126 = vld [vmem:[#allocation2 + $0x19b0] sm:$0xff]
    %v1127 = vld [vmem:[#allocation2 + $0x19b8] sm:$0xff]
    %v1128 = vld [vmem:[#allocation2 + $0x19c0] sm:$0xff]
    %v1129 = vld [vmem:[#allocation2 + $0x19c8] sm:$0xff]
    %v1130 = vld [vmem:[#allocation2 + $0x19d0] sm:$0xff]
    %v1131 = vld [vmem:[#allocation2 + $0x19d8] sm:$0xff]
    %v1132 = vld [vmem:[#allocation2 + $0x19e0] sm:$0xff]
    %v1133 = vld [vmem:[#allocation2 + $0x19e8] sm:$0xff]
    %v1134 = vld [vmem:[#allocation2 + $0x19f0] sm:$0xff]
    %v1135 = vld [vmem:[#allocation2 + $0x19f8] sm:$0xff]
    %v1136 = vld [vmem:[#allocation2 + $0x1a00] sm:$0xff]
    %v1137 = vld [vmem:[#allocation2 + $0x1a08] sm:$0xff]
    %v1138 = vld [vmem:[#allocation2 + $0x1a10] sm:$0xff]
    %v1139 = vld [vmem:[#allocation2 + $0x1a18] sm:$0xff]
    %v1140 = vld [vmem:[#allocation2 + $0x1a20] sm:$0xff]
    %v1141 = vld [vmem:[#allocation2 + $0x1a28] sm:$0xff]
    %v1142 = vld [vmem:[#allocation2 + $0x1a30] sm:$0xff]
    %v1143 = vld [vmem:[#allocation2 + $0x1a38] sm:$0xff]
    %v1144 = vld [vmem:[#allocation2 + $0x1a40] sm:$0xff]
    %v1145 = vld [vmem:[#allocation2 + $0x1a48] sm:$0xff]
    %v1146 = vld [vmem:[#allocation2 + $0x1a50] sm:$0xff]
    %v1147 = vld [vmem:[#allocation2 + $0x1a58] sm:$0xff]
    %v1148 = vld [vmem:[#allocation2 + $0x1a60] sm:$0xff]
    %v1149 = vld [vmem:[#allocation2 + $0x1a68] sm:$0xff]
    %v1150 = vld [vmem:[#allocation2 + $0x1a70] sm:$0xff]
    %v1151 = vld [vmem:[#allocation2 + $0x1a78] sm:$0xff]
    %v1152 = vld [vmem:[#allocation2 + $0x1a80] sm:$0xff]
    %v1153 = vld [vmem:[#allocation2 + $0x1a88] sm:$0xff]
    %v1154 = vld [vmem:[#allocation2 + $0x1a90] sm:$0xff]
    %v1155 = vld [vmem:[#allocation2 + $0x1a98] sm:$0xff]
    %v1156 = vld [vmem:[#allocation2 + $0x1aa0] sm:$0xff]
    %v1157 = vld [vmem:[#allocation2 + $0x1aa8] sm:$0xff]
    %v1158 = vld [vmem:[#allocation2 + $0x1ab0] sm:$0xff]
    %v1159 = vld [vmem:[#allocation2 + $0x1ab8] sm:$0xff]
    %v1160 = vld [vmem:[#allocation2 + $0x1ac0] sm:$0xff]
    %v1161 = vld [vmem:[#allocation2 + $0x1ac8] sm:$0xff]
    %v1162 = vld [vmem:[#allocation2 + $0x1ad0] sm:$0xff]
    %v1163 = vld [vmem:[#allocation2 + $0x1ad8] sm:$0xff]
    %v1164 = vld [vmem:[#allocation2 + $0x1ae0] sm:$0xff]
    %v1165 = vld [vmem:[#allocation2 + $0x1ae8] sm:$0xff]
    %v1166 = vld [vmem:[#allocation2 + $0x1af0] sm:$0xff]
    %v1167 = vld [vmem:[#allocation2 + $0x1af8] sm:$0xff]
    %v1168 = vld [vmem:[#allocation2 + $0x1b00] sm:$0xff]
    %v1169 = vld [vmem:[#allocation2 + $0x1b08] sm:$0xff]
    %v1170 = vld [vmem:[#allocation2 + $0x1b10] sm:$0xff]
    %v1171 = vld [vmem:[#allocation2 + $0x1b18] sm:$0xff]
    %v1172 = vld [vmem:[#allocation2 + $0x1b20] sm:$0xff]
    %v1173 = vld [vmem:[#allocation2 + $0x1b28] sm:$0xff]
    %v1174 = vld [vmem:[#allocation2 + $0x1b30] sm:$0xff]
    %v1175 = vld [vmem:[#allocation2 + $0x1b38] sm:$0xff]
    %v1176 = vld [vmem:[#allocation2 + $0x1b40] sm:$0xff]
    %v1177 = vld [vmem:[#allocation2 + $0x1b48] sm:$0xff]
    %v1178 = vld [vmem:[#allocation2 + $0x1b50] sm:$0xff]
    %v1179 = vld [vmem:[#allocation2 + $0x1b58] sm:$0xff]
    %v1180 = vld [vmem:[#allocation2 + $0x1b60] sm:$0xff]
    %v1181 = vld [vmem:[#allocation2 + $0x1b68] sm:$0xff]
    %v1182 = vld [vmem:[#allocation2 + $0x1b70] sm:$0xff]
    %v1183 = vld [vmem:[#allocation2 + $0x1b78] sm:$0xff]
    %v1184 = vld [vmem:[#allocation2 + $0x1b80] sm:$0xff]
    %v1185 = vld [vmem:[#allocation2 + $0x1b88] sm:$0xff]
    %v1186 = vld [vmem:[#allocation2 + $0x1b90] sm:$0xff]
    %v1187 = vld [vmem:[#allocation2 + $0x1b98] sm:$0xff]
    %v1188 = vld [vmem:[#allocation2 + $0x1ba0] sm:$0xff]
    %v1189 = vld [vmem:[#allocation2 + $0x1ba8] sm:$0xff]
    %v1190 = vld [vmem:[#allocation2 + $0x1bb0] sm:$0xff]
    %v1191 = vld [vmem:[#allocation2 + $0x1bb8] sm:$0xff]
    %v1192 = vld [vmem:[#allocation2 + $0x1bc0] sm:$0xff]
    %v1193 = vld [vmem:[#allocation2 + $0x1bc8] sm:$0xff]
    %v1194 = vld [vmem:[#allocation2 + $0x1bd0] sm:$0xff]
    %v1195 = vld [vmem:[#allocation2 + $0x1bd8] sm:$0xff]
    %v1196 = vld [vmem:[#allocation2 + $0x1be0] sm:$0xff]
    %v1197 = vld [vmem:[#allocation2 + $0x1be8] sm:$0xff]
    %v1198 = vld [vmem:[#allocation2 + $0x1bf0] sm:$0xff]
    %v1199 = vld [vmem:[#allocation2 + $0x1bf8] sm:$0xff]
    %v1200 = vld [vmem:[#allocation2 + $0x1c00] sm:$0xff]
    %v1201 = vld [vmem:[#allocation2 + $0x1c08] sm:$0xff]
    %v1202 = vld [vmem:[#allocation2 + $0x1c10] sm:$0xff]
    %v1203 = vld [vmem:[#allocation2 + $0x1c18] sm:$0xff]
    %v1204 = vld [vmem:[#allocation2 + $0x1c20] sm:$0xff]
    %v1205 = vld [vmem:[#allocation2 + $0x1c28] sm:$0xff]
    %v1206 = vld [vmem:[#allocation2 + $0x1c30] sm:$0xff]
    %v1207 = vld [vmem:[#allocation2 + $0x1c38] sm:$0xff]
    %v1208 = vld [vmem:[#allocation2 + $0x1c40] sm:$0xff]
    %v1209 = vld [vmem:[#allocation2 + $0x1c48] sm:$0xff]
    %v1210 = vld [vmem:[#allocation2 + $0x1c50] sm:$0xff]
    %v1211 = vld [vmem:[#allocation2 + $0x1c58] sm:$0xff]
    %v1212 = vld [vmem:[#allocation2 + $0x1c60] sm:$0xff]
    %v1213 = vld [vmem:[#allocation2 + $0x1c68] sm:$0xff]
    %v1214 = vld [vmem:[#allocation2 + $0x1c70] sm:$0xff]
    %v1215 = vld [vmem:[#allocation2 + $0x1c78] sm:$0xff]
    %v1216 = vld [vmem:[#allocation2 + $0x1c80] sm:$0xff]
    %v1217 = vld [vmem:[#allocation2 + $0x1c88] sm:$0xff]
    %v1218 = vld [vmem:[#allocation2 + $0x1c90] sm:$0xff]
    %v1219 = vld [vmem:[#allocation2 + $0x1c98] sm:$0xff]
    %v1220 = vld [vmem:[#allocation2 + $0x1ca0] sm:$0xff]
    %v1221 = vld [vmem:[#allocation2 + $0x1ca8] sm:$0xff]
    %v1222 = vld [vmem:[#allocation2 + $0x1cb0] sm:$0xff]
    %v1223 = vld [vmem:[#allocation2 + $0x1cb8] sm:$0xff]
    %v1224 = vld [vmem:[#allocation2 + $0x1cc0] sm:$0xff]
    %v1225 = vld [vmem:[#allocation2 + $0x1cc8] sm:$0xff]
    %v1226 = vld [vmem:[#allocation2 + $0x1cd0] sm:$0xff]
    %v1227 = vld [vmem:[#allocation2 + $0x1cd8] sm:$0xff]
    %v1228 = vld [vmem:[#allocation2 + $0x1ce0] sm:$0xff]
    %v1229 = vld [vmem:[#allocation2 + $0x1ce8] sm:$0xff]
    %v1230 = vld [vmem:[#allocation2 + $0x1cf0] sm:$0xff]
    %v1231 = vld [vmem:[#allocation2 + $0x1cf8] sm:$0xff]
    %v1232 = vld [vmem:[#allocation2 + $0x1d00] sm:$0xff]
    %v1233 = vld [vmem:[#allocation2 + $0x1d08] sm:$0xff]
    %v1234 = vld [vmem:[#allocation2 + $0x1d10] sm:$0xff]
    %v1235 = vld [vmem:[#allocation2 + $0x1d18] sm:$0xff]
    %v1236 = vld [vmem:[#allocation2 + $0x1d20] sm:$0xff]
    %v1237 = vld [vmem:[#allocation2 + $0x1d28] sm:$0xff]
    %v1238 = vld [vmem:[#allocation2 + $0x1d30] sm:$0xff]
    %v1239 = vld [vmem:[#allocation2 + $0x1d38] sm:$0xff]
    %v1240 = vld [vmem:[#allocation2 + $0x1d40] sm:$0xff]
    %v1241 = vld [vmem:[#allocation2 + $0x1d48] sm:$0xff]
    %v1242 = vld [vmem:[#allocation2 + $0x1d50] sm:$0xff]
    %v1243 = vld [vmem:[#allocation2 + $0x1d58] sm:$0xff]
    %v1244 = vld [vmem:[#allocation2 + $0x1d60] sm:$0xff]
    %v1245 = vld [vmem:[#allocation2 + $0x1d68] sm:$0xff]
    %v1246 = vld [vmem:[#allocation2 + $0x1d70] sm:$0xff]
    %v1247 = vld [vmem:[#allocation2 + $0x1d78] sm:$0xff]
    %v1248 = vld [vmem:[#allocation2 + $0x1d80] sm:$0xff]
    %v1249 = vld [vmem:[#allocation2 + $0x1d88] sm:$0xff]
    %v1250 = vld [vmem:[#allocation2 + $0x1d90] sm:$0xff]
    %v1251 = vld [vmem:[#allocation2 + $0x1d98] sm:$0xff]
    %v1252 = vld [vmem:[#allocation2 + $0x1da0] sm:$0xff]
    %v1253 = vld [vmem:[#allocation2 + $0x1da8] sm:$0xff]
    %v1254 = vld [vmem:[#allocation2 + $0x1db0] sm:$0xff]
    %v1255 = vld [vmem:[#allocation2 + $0x1db8] sm:$0xff]
    %v1256 = vld [vmem:[#allocation2 + $0x1dc0] sm:$0xff]
    %v1257 = vld [vmem:[#allocation2 + $0x1dc8] sm:$0xff]
    %v1258 = vld [vmem:[#allocation2 + $0x1dd0] sm:$0xff]
    %v1259 = vld [vmem:[#allocation2 + $0x1dd8] sm:$0xff]
    %v1260 = vld [vmem:[#allocation2 + $0x1de0] sm:$0xff]
    %v1261 = vld [vmem:[#allocation2 + $0x1de8] sm:$0xff]
    %v1262 = vld [vmem:[#allocation2 + $0x1df0] sm:$0xff]
    %v1263 = vld [vmem:[#allocation2 + $0x1df8] sm:$0xff]
    %v1264 = vld [vmem:[#allocation2 + $0x1e00] sm:$0xff]
    %v1265 = vld [vmem:[#allocation2 + $0x1e08] sm:$0xff]
    %v1266 = vld [vmem:[#allocation2 + $0x1e10] sm:$0xff]
    %v1267 = vld [vmem:[#allocation2 + $0x1e18] sm:$0xff]
    %v1268 = vld [vmem:[#allocation2 + $0x1e20] sm:$0xff]
    %v1269 = vld [vmem:[#allocation2 + $0x1e28] sm:$0xff]
    %v1270 = vld [vmem:[#allocation2 + $0x1e30] sm:$0xff]
    %v1271 = vld [vmem:[#allocation2 + $0x1e38] sm:$0xff]
    %v1272 = vld [vmem:[#allocation2 + $0x1e40] sm:$0xff]
    %v1273 = vld [vmem:[#allocation2 + $0x1e48] sm:$0xff]
    %v1274 = vld [vmem:[#allocation2 + $0x1e50] sm:$0xff]
    %v1275 = vld [vmem:[#allocation2 + $0x1e58] sm:$0xff]
    %v1276 = vld [vmem:[#allocation2 + $0x1e60] sm:$0xff]
    %v1277 = vld [vmem:[#allocation2 + $0x1e68] sm:$0xff]
    %v1278 = vld [vmem:[#allocation2 + $0x1e70] sm:$0xff]
    %v1279 = vld [vmem:[#allocation2 + $0x1e78] sm:$0xff]
    %v1280 = vld [vmem:[#allocation2 + $0x1e80] sm:$0xff]
    %v1281 = vld [vmem:[#allocation2 + $0x1e88] sm:$0xff]
    %v1282 = vld [vmem:[#allocation2 + $0x1e90] sm:$0xff]
    %v1283 = vld [vmem:[#allocation2 + $0x1e98] sm:$0xff]
    %v1284 = vld [vmem:[#allocation2 + $0x1ea0] sm:$0xff]
    %v1285 = vld [vmem:[#allocation2 + $0x1ea8] sm:$0xff]
    %v1286 = vld [vmem:[#allocation2 + $0x1eb0] sm:$0xff]
    %v1287 = vld [vmem:[#allocation2 + $0x1eb8] sm:$0xff]
    %v1288 = vld [vmem:[#allocation2 + $0x1ec0] sm:$0xff]
    %v1289 = vld [vmem:[#allocation2 + $0x1ec8] sm:$0xff]
    %v1290 = vld [vmem:[#allocation2 + $0x1ed0] sm:$0xff]
    %v1291 = vld [vmem:[#allocation2 + $0x1ed8] sm:$0xff]
    %v1292 = vld [vmem:[#allocation2 + $0x1ee0] sm:$0xff]
    %v1293 = vld [vmem:[#allocation2 + $0x1ee8] sm:$0xff]
    %v1294 = vld [vmem:[#allocation2 + $0x1ef0] sm:$0xff]
    %v1295 = vld [vmem:[#allocation2 + $0x1ef8] sm:$0xff]
    %v1296 = vld [vmem:[#allocation2 + $0x1f00] sm:$0xff]
    %v1297 = vld [vmem:[#allocation2 + $0x1f08] sm:$0xff]
    %v1298 = vld [vmem:[#allocation2 + $0x1f10] sm:$0xff]
    %v1299 = vld [vmem:[#allocation2 + $0x1f18] sm:$0xff]
    %v1300 = vld [vmem:[#allocation2 + $0x1f20] sm:$0xff]
    %v1301 = vld [vmem:[#allocation2 + $0x1f28] sm:$0xff]
    %v1302 = vld [vmem:[#allocation2 + $0x1f30] sm:$0xff]
    %v1303 = vld [vmem:[#allocation2 + $0x1f38] sm:$0xff]
    %v1304 = vld [vmem:[#allocation2 + $0x1f40] sm:$0xff]
    %v1305 = vld [vmem:[#allocation2 + $0x1f48] sm:$0xff]
    %v1306 = vld [vmem:[#allocation2 + $0x1f50] sm:$0xff]
    %v1307 = vld [vmem:[#allocation2 + $0x1f58] sm:$0xff]
    %v1308 = vld [vmem:[#allocation2 + $0x1f60] sm:$0xff]
    %v1309 = vld [vmem:[#allocation2 + $0x1f68] sm:$0xff]
    %v1310 = vld [vmem:[#allocation2 + $0x1f70] sm:$0xff]
    %v1311 = vld [vmem:[#allocation2 + $0x1f78] sm:$0xff]
    %v1312 = vld [vmem:[#allocation2 + $0x1f80] sm:$0xff]
    %v1313 = vld [vmem:[#allocation2 + $0x1f88] sm:$0xff]
    %v1314 = vld [vmem:[#allocation2 + $0x1f90] sm:$0xff]
    %v1315 = vld [vmem:[#allocation2 + $0x1f98] sm:$0xff]
    %v1316 = vld [vmem:[#allocation2 + $0x1fa0] sm:$0xff]
    %v1317 = vld [vmem:[#allocation2 + $0x1fa8] sm:$0xff]
    %v1318 = vld [vmem:[#allocation2 + $0x1fb0] sm:$0xff]
    %v1319 = vld [vmem:[#allocation2 + $0x1fb8] sm:$0xff]
    %v1320 = vld [vmem:[#allocation2 + $0x1fc0] sm:$0xff]
    %v1321 = vld [vmem:[#allocation2 + $0x1fc8] sm:$0xff]
    %v1322 = vld [vmem:[#allocation2 + $0x1fd0] sm:$0xff]
    %v1323 = vld [vmem:[#allocation2 + $0x1fd8] sm:$0xff]
    %v1324 = vld [vmem:[#allocation2 + $0x1fe0] sm:$0xff]
    %v1325 = vld [vmem:[#allocation2 + $0x1fe8] sm:$0xff]
    %v1326 = vld [vmem:[#allocation2 + $0x1ff0] sm:$0xff]
    %v1327 = vld [vmem:[#allocation2 + $0x1ff8] sm:$0xff]
    %v1328 = vld [vmem:[#allocation2 + $0x2000] sm:$0xff]
    %v1329 = vld [vmem:[#allocation2 + $0x2008] sm:$0xff]
    %v1330 = vld [vmem:[#allocation2 + $0x2010] sm:$0xff]
    %v1331 = vld [vmem:[#allocation2 + $0x2018] sm:$0xff]
    %v1332 = vld [vmem:[#allocation2 + $0x2020] sm:$0xff]
    %v1333 = vld [vmem:[#allocation2 + $0x2028] sm:$0xff]
    %v1334 = vld [vmem:[#allocation2 + $0x2030] sm:$0xff]
    %v1335 = vld [vmem:[#allocation2 + $0x2038] sm:$0xff]
    %v1336 = vld [vmem:[#allocation2 + $0x2040] sm:$0xff]
    %v1337 = vld [vmem:[#allocation2 + $0x2048] sm:$0xff]
    %v1338 = vld [vmem:[#allocation2 + $0x2050] sm:$0xff]
    %v1339 = vld [vmem:[#allocation2 + $0x2058] sm:$0xff]
    %v1340 = vld [vmem:[#allocation2 + $0x2060] sm:$0xff]
    %v1341 = vld [vmem:[#allocation2 + $0x2068] sm:$0xff]
    %v1342 = vld [vmem:[#allocation2 + $0x2070] sm:$0xff]
    %v1343 = vld [vmem:[#allocation2 + $0x2078] sm:$0xff]
    %v1344 = vld [vmem:[#allocation2 + $0x2080] sm:$0xff]
    %v1345 = vld [vmem:[#allocation2 + $0x2088] sm:$0xff]
    %v1346 = vld [vmem:[#allocation2 + $0x2090] sm:$0xff]
    %v1347 = vld [vmem:[#allocation2 + $0x2098] sm:$0xff]
    %v1348 = vld [vmem:[#allocation2 + $0x20a0] sm:$0xff]
    %v1349 = vld [vmem:[#allocation2 + $0x20a8] sm:$0xff]
    %v1350 = vld [vmem:[#allocation2 + $0x20b0] sm:$0xff]
    %v1351 = vld [vmem:[#allocation2 + $0x20b8] sm:$0xff]
    %v1352 = vld [vmem:[#allocation2 + $0x20c0] sm:$0xff]
    %v1353 = vld [vmem:[#allocation2 + $0x20c8] sm:$0xff]
    %v1354 = vld [vmem:[#allocation2 + $0x20d0] sm:$0xff]
    %v1355 = vld [vmem:[#allocation2 + $0x20d8] sm:$0xff]
    %v1356 = vld [vmem:[#allocation2 + $0x20e0] sm:$0xff]
    %v1357 = vld [vmem:[#allocation2 + $0x20e8] sm:$0xff]
    %v1358 = vld [vmem:[#allocation2 + $0x20f0] sm:$0xff]
    %v1359 = vld [vmem:[#allocation2 + $0x20f8] sm:$0xff]
    %v1360 = vld [vmem:[#allocation2 + $0x2100] sm:$0xff]
    %v1361 = vld [vmem:[#allocation2 + $0x2108] sm:$0xff]
    %v1362 = vld [vmem:[#allocation2 + $0x2110] sm:$0xff]
    %v1363 = vld [vmem:[#allocation2 + $0x2118] sm:$0xff]
    %v1364 = vld [vmem:[#allocation2 + $0x2120] sm:$0xff]
    %v1365 = vld [vmem:[#allocation2 + $0x2128] sm:$0xff]
    %v1366 = vld [vmem:[#allocation2 + $0x2130] sm:$0xff]
    %v1367 = vld [vmem:[#allocation2 + $0x2138] sm:$0xff]
    %v1368 = vld [vmem:[#allocation2 + $0x2140] sm:$0xff]
    %v1369 = vld [vmem:[#allocation2 + $0x2148] sm:$0xff]
    %v1370 = vld [vmem:[#allocation2 + $0x2150] sm:$0xff]
    %v1371 = vld [vmem:[#allocation2 + $0x2158] sm:$0xff]
    %v1372 = vld [vmem:[#allocation2 + $0x2160] sm:$0xff]
    %v1373 = vld [vmem:[#allocation2 + $0x2168] sm:$0xff]
    %v1374 = vld [vmem:[#allocation2 + $0x2170] sm:$0xff]
    %v1375 = vld [vmem:[#allocation2 + $0x2178] sm:$0xff]
    %v1376 = vld [vmem:[#allocation2 + $0x2180] sm:$0xff]
    %v1377 = vld [vmem:[#allocation2 + $0x2188] sm:$0xff]
    %v1378 = vld [vmem:[#allocation2 + $0x2190] sm:$0xff]
    %v1379 = vld [vmem:[#allocation2 + $0x2198] sm:$0xff]
    %v1380 = vld [vmem:[#allocation2 + $0x21a0] sm:$0xff]
    %v1381 = vld [vmem:[#allocation2 + $0x21a8] sm:$0xff]
    %v1382 = vld [vmem:[#allocation2 + $0x21b0] sm:$0xff]
    %v1383 = vld [vmem:[#allocation2 + $0x21b8] sm:$0xff]
    %v1384 = vld [vmem:[#allocation2 + $0x21c0] sm:$0xff]
    %v1385 = vld [vmem:[#allocation2 + $0x21c8] sm:$0xff]
    %v1386 = vld [vmem:[#allocation2 + $0x21d0] sm:$0xff]
    %v1387 = vld [vmem:[#allocation2 + $0x21d8] sm:$0xff]
    %v1388 = vld [vmem:[#allocation2 + $0x21e0] sm:$0xff]
    %v1389 = vld [vmem:[#allocation2 + $0x21e8] sm:$0xff]
    %v1390 = vld [vmem:[#allocation2 + $0x21f0] sm:$0xff]
    %v1391 = vld [vmem:[#allocation2 + $0x21f8] sm:$0xff]
    %v1392 = vld [vmem:[#allocation2 + $0x2200] sm:$0xff]
    %v1393 = vld [vmem:[#allocation2 + $0x2208] sm:$0xff]
    %v1394 = vld [vmem:[#allocation2 + $0x2210] sm:$0xff]
    %v1395 = vld [vmem:[#allocation2 + $0x2218] sm:$0xff]
    %v1396 = vld [vmem:[#allocation2 + $0x2220] sm:$0xff]
    %v1397 = vld [vmem:[#allocation2 + $0x2228] sm:$0xff]
    %v1398 = vld [vmem:[#allocation2 + $0x2230] sm:$0xff]
    %v1399 = vld [vmem:[#allocation2 + $0x2238] sm:$0xff]
    %v1400 = vld [vmem:[#allocation2 + $0x2240] sm:$0xff]
    %v1401 = vld [vmem:[#allocation2 + $0x2248] sm:$0xff]
    %v1402 = vld [vmem:[#allocation2 + $0x2250] sm:$0xff]
    %v1403 = vld [vmem:[#allocation2 + $0x2258] sm:$0xff]
    %v1404 = vld [vmem:[#allocation2 + $0x2260] sm:$0xff]
    %v1405 = vld [vmem:[#allocation2 + $0x2268] sm:$0xff]
    %v1406 = vld [vmem:[#allocation2 + $0x2270] sm:$0xff]
    %v1407 = vld [vmem:[#allocation2 + $0x2278] sm:$0xff]
    %v1408 = vld [vmem:[#allocation2 + $0x2280] sm:$0xff]
    %v1409 = vld [vmem:[#allocation2 + $0x2288] sm:$0xff]
    %v1410 = vld [vmem:[#allocation2 + $0x2290] sm:$0xff]
    %v1411 = vld [vmem:[#allocation2 + $0x2298] sm:$0xff]
    %v1412 = vld [vmem:[#allocation2 + $0x22a0] sm:$0xff]
    %v1413 = vld [vmem:[#allocation2 + $0x22a8] sm:$0xff]
    %v1414 = vld [vmem:[#allocation2 + $0x22b0] sm:$0xff]
    %v1415 = vld [vmem:[#allocation2 + $0x22b8] sm:$0xff]
    %v1416 = vld [vmem:[#allocation2 + $0x22c0] sm:$0xff]
    %v1417 = vld [vmem:[#allocation2 + $0x22c8] sm:$0xff]
    %v1418 = vld [vmem:[#allocation2 + $0x22d0] sm:$0xff]
    %v1419 = vld [vmem:[#allocation2 + $0x22d8] sm:$0xff]
    %v1420 = vld [vmem:[#allocation2 + $0x22e0] sm:$0xff]
    %v1421 = vld [vmem:[#allocation2 + $0x22e8] sm:$0xff]
    %v1422 = vld [vmem:[#allocation2 + $0x22f0] sm:$0xff]
    %v1423 = vld [vmem:[#allocation2 + $0x22f8] sm:$0xff]
    %v1424 = vld [vmem:[#allocation2 + $0x2300] sm:$0xff]
    %v1425 = vld [vmem:[#allocation2 + $0x2308] sm:$0xff]
    %v1426 = vld [vmem:[#allocation2 + $0x2310] sm:$0xff]
    %v1427 = vld [vmem:[#allocation2 + $0x2318] sm:$0xff]
    %v1428 = vld [vmem:[#allocation2 + $0x2320] sm:$0xff]
    %v1429 = vld [vmem:[#allocation2 + $0x2328] sm:$0xff]
    %v1430 = vld [vmem:[#allocation2 + $0x2330] sm:$0xff]
    %v1431 = vld [vmem:[#allocation2 + $0x2338] sm:$0xff]
    %v1432 = vld [vmem:[#allocation2 + $0x2340] sm:$0xff]
    %v1433 = vld [vmem:[#allocation2 + $0x2348] sm:$0xff]
    %v1434 = vld [vmem:[#allocation2 + $0x2350] sm:$0xff]
    %v1435 = vld [vmem:[#allocation2 + $0x2358] sm:$0xff]
    %v1436 = vld [vmem:[#allocation2 + $0x2360] sm:$0xff]
    %v1437 = vld [vmem:[#allocation2 + $0x2368] sm:$0xff]
    %v1438 = vld [vmem:[#allocation2 + $0x2370] sm:$0xff]
    %v1439 = vld [vmem:[#allocation2 + $0x2378] sm:$0xff]
    %v1440 = vld [vmem:[#allocation2 + $0x2380] sm:$0xff]
    %v1441 = vld [vmem:[#allocation2 + $0x2388] sm:$0xff]
    %v1442 = vld [vmem:[#allocation2 + $0x2390] sm:$0xff]
    %v1443 = vld [vmem:[#allocation2 + $0x2398] sm:$0xff]
    %v1444 = vld [vmem:[#allocation2 + $0x23a0] sm:$0xff]
    %v1445 = vld [vmem:[#allocation2 + $0x23a8] sm:$0xff]
    %v1446 = vld [vmem:[#allocation2 + $0x23b0] sm:$0xff]
    %v1447 = vld [vmem:[#allocation2 + $0x23b8] sm:$0xff]
    %v1448 = vld [vmem:[#allocation2 + $0x23c0] sm:$0xff]
    %v1449 = vld [vmem:[#allocation2 + $0x23c8] sm:$0xff]
    %v1450 = vld [vmem:[#allocation2 + $0x23d0] sm:$0xff]
    %v1451 = vld [vmem:[#allocation2 + $0x23d8] sm:$0xff]
    %v1452 = vld [vmem:[#allocation2 + $0x23e0] sm:$0xff]
    %v1453 = vld [vmem:[#allocation2 + $0x23e8] sm:$0xff]
    %v1454 = vld [vmem:[#allocation2 + $0x23f0] sm:$0xff]
    %v1455 = vld [vmem:[#allocation2 + $0x23f8] sm:$0xff]
    %v1456 = vld [vmem:[#allocation2 + $0x2400] sm:$0xff]
    %v1457 = vld [vmem:[#allocation2 + $0x2408] sm:$0xff]
    %v1458 = vld [vmem:[#allocation2 + $0x2410] sm:$0xff]
    %v1459 = vld [vmem:[#allocation2 + $0x2418] sm:$0xff]
    %v1460 = vld [vmem:[#allocation2 + $0x2420] sm:$0xff]
    %v1461 = vld [vmem:[#allocation2 + $0x2428] sm:$0xff]
    %v1462 = vld [vmem:[#allocation2 + $0x2430] sm:$0xff]
    %v1463 = vld [vmem:[#allocation2 + $0x2438] sm:$0xff]
    %v1464 = vld [vmem:[#allocation2 + $0x2440] sm:$0xff]
    %v1465 = vld [vmem:[#allocation2 + $0x2448] sm:$0xff]
    %v1466 = vld [vmem:[#allocation2 + $0x2450] sm:$0xff]
    %v1467 = vld [vmem:[#allocation2 + $0x2458] sm:$0xff]
    %v1468 = vld [vmem:[#allocation2 + $0x2460] sm:$0xff]
    %v1469 = vld [vmem:[#allocation2 + $0x2468] sm:$0xff]
    %v1470 = vld [vmem:[#allocation2 + $0x2470] sm:$0xff]
    %v1471 = vld [vmem:[#allocation2 + $0x2478] sm:$0xff]
    %v1472 = vld [vmem:[#allocation2 + $0x2480] sm:$0xff]
    %v1473 = vld [vmem:[#allocation2 + $0x2488] sm:$0xff]
    %v1474 = vld [vmem:[#allocation2 + $0x2490] sm:$0xff]
    %v1475 = vld [vmem:[#allocation2 + $0x2498] sm:$0xff]
    %v1476 = vld [vmem:[#allocation2 + $0x24a0] sm:$0xff]
    %v1477 = vld [vmem:[#allocation2 + $0x24a8] sm:$0xff]
    %v1478 = vld [vmem:[#allocation2 + $0x24b0] sm:$0xff]
    %v1479 = vld [vmem:[#allocation2 + $0x24b8] sm:$0xff]
    %v1480 = vld [vmem:[#allocation2 + $0x24c0] sm:$0xff]
    %v1481 = vld [vmem:[#allocation2 + $0x24c8] sm:$0xff]
    %v1482 = vld [vmem:[#allocation2 + $0x24d0] sm:$0xff]
    %v1483 = vld [vmem:[#allocation2 + $0x24d8] sm:$0xff]
    %v1484 = vld [vmem:[#allocation2 + $0x24e0] sm:$0xff]
    %v1485 = vld [vmem:[#allocation2 + $0x24e8] sm:$0xff]
    %v1486 = vld [vmem:[#allocation2 + $0x24f0] sm:$0xff]
    %v1487 = vld [vmem:[#allocation2 + $0x24f8] sm:$0xff]
    %v1488 = vld [vmem:[#allocation2 + $0x2500] sm:$0xff]
    %v1489 = vld [vmem:[#allocation2 + $0x2508] sm:$0xff]
    %v1490 = vld [vmem:[#allocation2 + $0x2510] sm:$0xff]
    %v1491 = vld [vmem:[#allocation2 + $0x2518] sm:$0xff]
    %v1492 = vld [vmem:[#allocation2 + $0x2520] sm:$0xff]
    %v1493 = vld [vmem:[#allocation2 + $0x2528] sm:$0xff]
    %v1494 = vld [vmem:[#allocation2 + $0x2530] sm:$0xff]
    %v1495 = vld [vmem:[#allocation2 + $0x2538] sm:$0xff]
    %v1496 = vld [vmem:[#allocation2 + $0x2540] sm:$0xff]
    %v1497 = vld [vmem:[#allocation2 + $0x2548] sm:$0xff]
    %v1498 = vld [vmem:[#allocation2 + $0x2550] sm:$0xff]
    %v1499 = vld [vmem:[#allocation2 + $0x2558] sm:$0xff]
    %v1500 = vld [vmem:[#allocation2 + $0x2560] sm:$0xff]
    %v1501 = vld [vmem:[#allocation2 + $0x2568] sm:$0xff]
    %v1502 = vld [vmem:[#allocation2 + $0x2570] sm:$0xff]
    %v1503 = vld [vmem:[#allocation2 + $0x2578] sm:$0xff]
    %v1504 = vld [vmem:[#allocation2 + $0x2580] sm:$0xff]
    %v1505 = vld [vmem:[#allocation2 + $0x2588] sm:$0xff]
    %v1506 = vld [vmem:[#allocation2 + $0x2590] sm:$0xff]
    %v1507 = vld [vmem:[#allocation2 + $0x2598] sm:$0xff]
    %v1508 = vld [vmem:[#allocation2 + $0x25a0] sm:$0xff]
    %v1509 = vld [vmem:[#allocation2 + $0x25a8] sm:$0xff]
    %v1510 = vld [vmem:[#allocation2 + $0x25b0] sm:$0xff]
    %v1511 = vld [vmem:[#allocation2 + $0x25b8] sm:$0xff]
    %v1512 = vld [vmem:[#allocation2 + $0x25c0] sm:$0xff]
    %v1513 = vld [vmem:[#allocation2 + $0x25c8] sm:$0xff]
    %v1514 = vld [vmem:[#allocation2 + $0x25d0] sm:$0xff]
    %v1515 = vld [vmem:[#allocation2 + $0x25d8] sm:$0xff]
    %v1516 = vld [vmem:[#allocation2 + $0x25e0] sm:$0xff]
    %v1517 = vld [vmem:[#allocation2 + $0x25e8] sm:$0xff]
    %v1518 = vld [vmem:[#allocation2 + $0x25f0] sm:$0xff]
    %v1519 = vld [vmem:[#allocation2 + $0x25f8] sm:$0xff]
    %v1520 = vld [vmem:[#allocation9] sm:$0xff]
    %v1522 = vlaneseq
    %v1523 = vshrl.u32 %v1522, 7
    %v1524 = vsub.s32 0, %v1523
    %v1525 = vrot.slane %v1520, %v1524
    %v1526 = vlaneseq
    %v1527 = vshrl.u32 %v1526, 7
    %v1528 = vsub.s32 1, %v1527
    %v1529 = vrot.slane %v1520, %v1528
    %v1530 = vlaneseq
    %v1531 = vshrl.u32 %v1530, 7
    %v1532 = vsub.s32 2, %v1531
    %v1533 = vrot.slane %v1520, %v1532
    %v1534 = vlaneseq
    %v1535 = vshrl.u32 %v1534, 7
    %v1536 = vsub.s32 3, %v1535
    %v1537 = vrot.slane %v1520, %v1536
    %v1538 = vlaneseq
    %v1539 = vshrl.u32 %v1538, 7
    %v1540 = vsub.s32 4, %v1539
    %v1541 = vrot.slane %v1520, %v1540
    %v1542 = vlaneseq
    %v1543 = vshrl.u32 %v1542, 7
    %v1544 = vsub.s32 5, %v1543
    %v1545 = vrot.slane %v1520, %v1544
    %v1546 = vlaneseq
    %v1547 = vshrl.u32 %v1546, 7
    %v1548 = vsub.s32 6, %v1547
    %v1549 = vrot.slane %v1520, %v1548
    %v1550 = vlaneseq
    %v1551 = vshrl.u32 %v1550, 7
    %v1552 = vsub.s32 7, %v1551
    %v1553 = vrot.slane %v1520, %v1552
    %v1572 = vunpack.c.l.b16 %v294
    %v1573 = vunpack.c.h.b16 %v294
    %v1574 = vunpack.c.l.b16 %v295
    %v1575 = vunpack.c.h.b16 %v295
    %v1576 = vunpack.c.l.b16 %v296
    %v1577 = vunpack.c.h.b16 %v296
    %v1578 = vunpack.c.l.b16 %v297
    %v1579 = vunpack.c.h.b16 %v297
    %v1580 = vunpack.c.l.b16 %v298
    %v1581 = vunpack.c.h.b16 %v298
    %v1582 = vunpack.c.l.b16 %v299
    %v1583 = vunpack.c.h.b16 %v299
    %v1584 = vunpack.c.l.b16 %v300
    %v1585 = vunpack.c.h.b16 %v300
    %v1586 = vunpack.c.l.b16 %v301
    %v1587 = vunpack.c.h.b16 %v301
    %v1588 = vunpack.c.l.b16 %v302
    %v1589 = vunpack.c.h.b16 %v302
    %v1590 = vunpack.c.l.b16 %v303
    %v1591 = vpack.c.b16 %v1572, %v1572
    %v1592 = vpack.c.b16 %v1573, %v1573
    %v1593 = vpack.c.b16 %v1574, %v1574
    %v1594 = vpack.c.b16 %v1575, %v1575
    %v1595 = vpack.c.b16 %v1576, %v1576
    %v1596 = vpack.c.b16 %v1577, %v1577
    %v1597 = vpack.c.b16 %v1578, %v1578
    %v1598 = vpack.c.b16 %v1579, %v1579
    %v1599 = vpack.c.b16 %v1580, %v1580
    %v1600 = vpack.c.b16 %v1581, %v1581
    %v1601 = vpack.c.b16 %v1582, %v1582
    %v1602 = vpack.c.b16 %v1583, %v1583
    %v1603 = vpack.c.b16 %v1584, %v1584
    %v1604 = vpack.c.b16 %v1585, %v1585
    %v1605 = vpack.c.b16 %v1586, %v1586
    %v1606 = vpack.c.b16 %v1587, %v1587
    %v1607 = vpack.c.b16 %v1588, %v1588
    %v1608 = vpack.c.b16 %v1589, %v1589
    %v1609 = vpack.c.b16 %v1590, %v1590
    %1629 = vmatprep.subr.bf16.mxu0 %v305
    %1630 = vmatpush1.bf16.msra.mxu0 %v304
    %1631 = vmatprep.subr.bf16.mxu0 %v313
    %1632 = vmatpush1.bf16.msra.mxu0 %v312
    %1633 = vmatprep.subr.bf16.mxu0 %v321
    %1634 = vmatpush1.bf16.msra.mxu0 %v320
    %1635 = vmatprep.subr.bf16.mxu0 %v329
    %1636 = vmatpush1.bf16.msra.mxu0 %v328
    %1637 = vmatprep.subr.bf16.mxu0 %v337
    %1638 = vmatpush1.bf16.msra.mxu0 %v336
    %1639 = vmatprep.subr.bf16.mxu0 %v345
    %1640 = vmatpush1.bf16.msra.mxu0 %v344
    %1641 = vmatprep.subr.bf16.mxu0 %v353
    %1642 = vmatpush1.bf16.msra.mxu0 %v352
    %1643 = vmatprep.subr.bf16.mxu0 %v361
    %1644 = vmatpush1.bf16.msra.mxu0 %v360
    %1645 = vmatprep.subr.bf16.mxu0 %v369
    %1646 = vmatpush1.bf16.msra.mxu0 %v368
    %1647 = vmatprep.subr.bf16.mxu0 %v377
    %1648 = vmatpush1.bf16.msra.mxu0 %v376
    %1649 = vmatprep.subr.bf16.mxu0 %v385
    %1650 = vmatpush1.bf16.msra.mxu0 %v384
    %1651 = vmatprep.subr.bf16.mxu0 %v393
    %1652 = vmatpush1.bf16.msra.mxu0 %v392
    %1653 = vmatprep.subr.bf16.mxu0 %v401
    %1654 = vmatpush1.bf16.msra.mxu0 %v400
    %1655 = vmatprep.subr.bf16.mxu0 %v409
    %1656 = vmatpush1.bf16.msra.mxu0 %v408
    %1657 = vmatprep.subr.bf16.mxu0 %v417
    %1658 = vmatpush1.bf16.msra.mxu0 %v416
    %1659 = vmatprep.subr.bf16.mxu0 %v425
    %1660 = vmatpush1.bf16.msra.mxu0 %v424
    %1661 = vmatprep.mubr.bf16.mxu0 %v1592
    %1662 = vmatmul.mubr.bf16.gmra.mrb[0].mxu0 %v1591
    %v1663 = vpop.f32.mrb[0].mxu0
    %v1664 = vadd.f32 %v1525, %v1663
    %v1665 = vpop.f32.mrb[0].mxu0
    %v1666 = vadd.f32 %v1529, %v1665
    %v1667 = vpop.f32.mrb[0].mxu0
    %v1668 = vpop.f32.mrb[0].mxu0
    %1669 = vdwg.mxu0
    %1670 = vmatprep.subr.bf16.mxu0 %v433
    %1671 = vmatpush1.bf16.msra.mxu0 %v432
    %1672 = vmatprep.subr.bf16.mxu0 %v441
    %1673 = vmatpush1.bf16.msra.mxu0 %v440
    %1674 = vmatprep.subr.bf16.mxu0 %v449
    %1675 = vmatpush1.bf16.msra.mxu0 %v448
    %1676 = vmatprep.subr.bf16.mxu0 %v457
    %1677 = vmatpush1.bf16.msra.mxu0 %v456
    %1678 = vmatprep.subr.bf16.mxu0 %v465
    %1679 = vmatpush1.bf16.msra.mxu0 %v464
    %1680 = vmatprep.subr.bf16.mxu0 %v473
    %1681 = vmatpush1.bf16.msra.mxu0 %v472
    %1682 = vmatprep.subr.bf16.mxu0 %v481
    %1683 = vmatpush1.bf16.msra.mxu0 %v480
    %1684 = vmatprep.subr.bf16.mxu0 %v489
    %1685 = vmatpush1.bf16.msra.mxu0 %v488
    %1686 = vmatprep.subr.bf16.mxu0 %v497
    %1687 = vmatpush1.bf16.msra.mxu0 %v496
    %1688 = vmatprep.subr.bf16.mxu0 %v505
    %1689 = vmatpush1.bf16.msra.mxu0 %v504
    %1690 = vmatprep.subr.bf16.mxu0 %v513
    %1691 = vmatpush1.bf16.msra.mxu0 %v512
    %1692 = vmatprep.subr.bf16.mxu0 %v521
    %1693 = vmatpush1.bf16.msra.mxu0 %v520
    %1694 = vmatprep.subr.bf16.mxu0 %v529
    %1695 = vmatpush1.bf16.msra.mxu0 %v528
    %1696 = vmatprep.subr.bf16.mxu0 %v537
    %1697 = vmatpush1.bf16.msra.mxu0 %v536
    %1698 = vmatprep.subr.bf16.mxu0 %v545
    %1699 = vmatpush1.bf16.msra.mxu0 %v544
    %1700 = vmatprep.subr.bf16.mxu0 %v553
    %1701 = vmatpush1.bf16.msra.mxu0 %v552
    %1702 = vmatprep.mubr.bf16.mxu0 %v1594
    %1703 = vmatmul.mubr.bf16.gmra.mrb[0].mxu0 %v1593
    %v1704 = vpop.f32.mrb[0].mxu0
    %v1705 = vadd.f32 %v1664, %v1704
    %v1706 = vpop.f32.mrb[0].mxu0
    %v1707 = vadd.f32 %v1666, %v1706
    %v1708 = vpop.f32.mrb[0].mxu0
    %v1709 = vpop.f32.mrb[0].mxu0
    %1710 = vdwg.mxu0
    %1711 = vmatprep.subr.bf16.mxu0 %v561
    %1712 = vmatpush1.bf16.msra.mxu0 %v560
    %1713 = vmatprep.subr.bf16.mxu0 %v569
    %1714 = vmatpush1.bf16.msra.mxu0 %v568
    %1715 = vmatprep.subr.bf16.mxu0 %v577
    %1716 = vmatpush1.bf16.msra.mxu0 %v576
    %1717 = vmatprep.subr.bf16.mxu0 %v585
    %1718 = vmatpush1.bf16.msra.mxu0 %v584
    %1719 = vmatprep.subr.bf16.mxu0 %v593
    %1720 = vmatpush1.bf16.msra.mxu0 %v592
    %1721 = vmatprep.subr.bf16.mxu0 %v601
    %1722 = vmatpush1.bf16.msra.mxu0 %v600
    %1723 = vmatprep.subr.bf16.mxu0 %v609
    %1724 = vmatpush1.bf16.msra.mxu0 %v608
    %1725 = vmatprep.subr.bf16.mxu0 %v617
    %1726 = vmatpush1.bf16.msra.mxu0 %v616
    %1727 = vmatprep.subr.bf16.mxu0 %v625
    %1728 = vmatpush1.bf16.msra.mxu0 %v624
    %1729 = vmatprep.subr.bf16.mxu0 %v633
    %1730 = vmatpush1.bf16.msra.mxu0 %v632
    %1731 = vmatprep.subr.bf16.mxu0 %v641
    %1732 = vmatpush1.bf16.msra.mxu0 %v640
    %1733 = vmatprep.subr.bf16.mxu0 %v649
    %1734 = vmatpush1.bf16.msra.mxu0 %v648
    %1735 = vmatprep.subr.bf16.mxu0 %v657
    %1736 = vmatpush1.bf16.msra.mxu0 %v656
    %1737 = vmatprep.subr.bf16.mxu0 %v665
    %1738 = vmatpush1.bf16.msra.mxu0 %v664
    %1739 = vmatprep.subr.bf16.mxu0 %v673
    %1740 = vmatpush1.bf16.msra.mxu0 %v672
    %1741 = vmatprep.subr.bf16.mxu0 %v681
    %1742 = vmatpush1.bf16.msra.mxu0 %v680
    %1743 = vmatprep.mubr.bf16.mxu0 %v1596
    %1744 = vmatmul.mubr.bf16.gmra.mrb[0].mxu0 %v1595
    %v1745 = vpop.f32.mrb[0].mxu0
    %v1746 = vadd.f32 %v1705, %v1745
    %v1747 = vpop.f32.mrb[0].mxu0
    %v1748 = vadd.f32 %v1707, %v1747
    %v1749 = vpop.f32.mrb[0].mxu0
    %v1750 = vpop.f32.mrb[0].mxu0
    %1751 = vdwg.mxu0
    %1752 = vmatprep.subr.bf16.mxu0 %v689
    %1753 = vmatpush1.bf16.msra.mxu0 %v688
    %1754 = vmatprep.subr.bf16.mxu0 %v697
    %1755 = vmatpush1.bf16.msra.mxu0 %v696
    %1756 = vmatprep.subr.bf16.mxu0 %v705
    %1757 = vmatpush1.bf16.msra.mxu0 %v704
    %1758 = vmatprep.subr.bf16.mxu0 %v713
    %1759 = vmatpush1.bf16.msra.mxu0 %v712
    %1760 = vmatprep.subr.bf16.mxu0 %v721
    %1761 = vmatpush1.bf16.msra.mxu0 %v720
    %1762 = vmatprep.subr.bf16.mxu0 %v729
    %1763 = vmatpush1.bf16.msra.mxu0 %v728
    %1764 = vmatprep.subr.bf16.mxu0 %v737
    %1765 = vmatpush1.bf16.msra.mxu0 %v736
    %1766 = vmatprep.subr.bf16.mxu0 %v745
    %1767 = vmatpush1.bf16.msra.mxu0 %v744
    %1768 = vmatprep.subr.bf16.mxu0 %v753
    %1769 = vmatpush1.bf16.msra.mxu0 %v752
    %1770 = vmatprep.subr.bf16.mxu0 %v761
    %1771 = vmatpush1.bf16.msra.mxu0 %v760
    %1772 = vmatprep.subr.bf16.mxu0 %v769
    %1773 = vmatpush1.bf16.msra.mxu0 %v768
    %1774 = vmatprep.subr.bf16.mxu0 %v777
    %1775 = vmatpush1.bf16.msra.mxu0 %v776
    %1776 = vmatprep.subr.bf16.mxu0 %v785
    %1777 = vmatpush1.bf16.msra.mxu0 %v784
    %1778 = vmatprep.subr.bf16.mxu0 %v793
    %1779 = vmatpush1.bf16.msra.mxu0 %v792
    %1780 = vmatprep.subr.bf16.mxu0 %v801
    %1781 = vmatpush1.bf16.msra.mxu0 %v800
    %1782 = vmatprep.subr.bf16.mxu0 %v809
    %1783 = vmatpush1.bf16.msra.mxu0 %v808
    %1784 = vmatprep.mubr.bf16.mxu0 %v1598
    %1785 = vmatmul.mubr.bf16.gmra.mrb[0].mxu0 %v1597
    %v1786 = vpop.f32.mrb[0].mxu0
    %v1787 = vadd.f32 %v1746, %v1786
    %v1788 = vpop.f32.mrb[0].mxu0
    %v1789 = vadd.f32 %v1748, %v1788
    %v1790 = vpop.f32.mrb[0].mxu0
    %v1791 = vpop.f32.mrb[0].mxu0
    %1792 = vdwg.mxu0
    %1793 = vmatprep.subr.bf16.mxu0 %v817
    %1794 = vmatpush1.bf16.msra.mxu0 %v816
    %1795 = vmatprep.subr.bf16.mxu0 %v825
    %1796 = vmatpush1.bf16.msra.mxu0 %v824
    %1797 = vmatprep.subr.bf16.mxu0 %v833
    %1798 = vmatpush1.bf16.msra.mxu0 %v832
    %1799 = vmatprep.subr.bf16.mxu0 %v841
    %1800 = vmatpush1.bf16.msra.mxu0 %v840
    %1801 = vmatprep.subr.bf16.mxu0 %v849
    %1802 = vmatpush1.bf16.msra.mxu0 %v848
    %1803 = vmatprep.subr.bf16.mxu0 %v857
    %1804 = vmatpush1.bf16.msra.mxu0 %v856
    %1805 = vmatprep.subr.bf16.mxu0 %v865
    %1806 = vmatpush1.bf16.msra.mxu0 %v864
    %1807 = vmatprep.subr.bf16.mxu0 %v873
    %1808 = vmatpush1.bf16.msra.mxu0 %v872
    %1809 = vmatprep.subr.bf16.mxu0 %v881
    %1810 = vmatpush1.bf16.msra.mxu0 %v880
    %1811 = vmatprep.subr.bf16.mxu0 %v889
    %1812 = vmatpush1.bf16.msra.mxu0 %v888
    %1813 = vmatprep.subr.bf16.mxu0 %v897
    %1814 = vmatpush1.bf16.msra.mxu0 %v896
    %1815 = vmatprep.subr.bf16.mxu0 %v905
    %1816 = vmatpush1.bf16.msra.mxu0 %v904
    %1817 = vmatprep.subr.bf16.mxu0 %v913
    %1818 = vmatpush1.bf16.msra.mxu0 %v912
    %1819 = vmatprep.subr.bf16.mxu0 %v921
    %1820 = vmatpush1.bf16.msra.mxu0 %v920
    %1821 = vmatprep.subr.bf16.mxu0 %v929
    %1822 = vmatpush1.bf16.msra.mxu0 %v928
    %1823 = vmatprep.subr.bf16.mxu0 %v937
    %1824 = vmatpush1.bf16.msra.mxu0 %v936
    %1825 = vmatprep.mubr.bf16.mxu0 %v1600
    %1826 = vmatmul.mubr.bf16.gmra.mrb[0].mxu0 %v1599
    %v1827 = vpop.f32.mrb[0].mxu0
    %v1828 = vadd.f32 %v1787, %v1827
    %v1829 = vpop.f32.mrb[0].mxu0
    %v1830 = vadd.f32 %v1789, %v1829
    %v1831 = vpop.f32.mrb[0].mxu0
    %v1832 = vpop.f32.mrb[0].mxu0
    %1833 = vdwg.mxu0
    %1834 = vmatprep.subr.bf16.mxu0 %v945
    %1835 = vmatpush1.bf16.msra.mxu0 %v944
    %1836 = vmatprep.subr.bf16.mxu0 %v953
    %1837 = vmatpush1.bf16.msra.mxu0 %v952
    %1838 = vmatprep.subr.bf16.mxu0 %v961
    %1839 = vmatpush1.bf16.msra.mxu0 %v960
    %1840 = vmatprep.subr.bf16.mxu0 %v969
    %1841 = vmatpush1.bf16.msra.mxu0 %v968
    %1842 = vmatprep.subr.bf16.mxu0 %v977
    %1843 = vmatpush1.bf16.msra.mxu0 %v976
    %1844 = vmatprep.subr.bf16.mxu0 %v985
    %1845 = vmatpush1.bf16.msra.mxu0 %v984
    %1846 = vmatprep.subr.bf16.mxu0 %v993
    %1847 = vmatpush1.bf16.msra.mxu0 %v992
    %1848 = vmatprep.subr.bf16.mxu0 %v1001
    %1849 = vmatpush1.bf16.msra.mxu0 %v1000
    %1850 = vmatprep.subr.bf16.mxu0 %v1009
    %1851 = vmatpush1.bf16.msra.mxu0 %v1008
    %1852 = vmatprep.subr.bf16.mxu0 %v1017
    %1853 = vmatpush1.bf16.msra.mxu0 %v1016
    %1854 = vmatprep.subr.bf16.mxu0 %v1025
    %1855 = vmatpush1.bf16.msra.mxu0 %v1024
    %1856 = vmatprep.subr.bf16.mxu0 %v1033
    %1857 = vmatpush1.bf16.msra.mxu0 %v1032
    %1858 = vmatprep.subr.bf16.mxu0 %v1041
    %1859 = vmatpush1.bf16.msra.mxu0 %v1040
    %1860 = vmatprep.subr.bf16.mxu0 %v1049
    %1861 = vmatpush1.bf16.msra.mxu0 %v1048
    %1862 = vmatprep.subr.bf16.mxu0 %v1057
    %1863 = vmatpush1.bf16.msra.mxu0 %v1056
    %1864 = vmatprep.subr.bf16.mxu0 %v1065
    %1865 = vmatpush1.bf16.msra.mxu0 %v1064
    %1866 = vmatprep.mubr.bf16.mxu0 %v1602
    %1867 = vmatmul.mubr.bf16.gmra.mrb[0].mxu0 %v1601
    %v1868 = vpop.f32.mrb[0].mxu0
    %v1869 = vadd.f32 %v1828, %v1868
    %v1870 = vpop.f32.mrb[0].mxu0
    %v1871 = vadd.f32 %v1830, %v1870
    %v1872 = vpop.f32.mrb[0].mxu0
    %v1873 = vpop.f32.mrb[0].mxu0
    %1874 = vdwg.mxu0
    %1875 = vmatprep.subr.bf16.mxu0 %v1073
    %1876 = vmatpush1.bf16.msra.mxu0 %v1072
    %1877 = vmatprep.subr.bf16.mxu0 %v1081
    %1878 = vmatpush1.bf16.msra.mxu0 %v1080
    %1879 = vmatprep.subr.bf16.mxu0 %v1089
    %1880 = vmatpush1.bf16.msra.mxu0 %v1088
    %1881 = vmatprep.subr.bf16.mxu0 %v1097
    %1882 = vmatpush1.bf16.msra.mxu0 %v1096
    %1883 = vmatprep.subr.bf16.mxu0 %v1105
    %1884 = vmatpush1.bf16.msra.mxu0 %v1104
    %1885 = vmatprep.subr.bf16.mxu0 %v1113
    %1886 = vmatpush1.bf16.msra.mxu0 %v1112
    %1887 = vmatprep.subr.bf16.mxu0 %v1121
    %1888 = vmatpush1.bf16.msra.mxu0 %v1120
    %1889 = vmatprep.subr.bf16.mxu0 %v1129
    %1890 = vmatpush1.bf16.msra.mxu0 %v1128
    %1891 = vmatprep.subr.bf16.mxu0 %v1137
    %1892 = vmatpush1.bf16.msra.mxu0 %v1136
    %1893 = vmatprep.subr.bf16.mxu0 %v1145
    %1894 = vmatpush1.bf16.msra.mxu0 %v1144
    %1895 = vmatprep.subr.bf16.mxu0 %v1153
    %1896 = vmatpush1.bf16.msra.mxu0 %v1152
    %1897 = vmatprep.subr.bf16.mxu0 %v1161
    %1898 = vmatpush1.bf16.msra.mxu0 %v1160
    %1899 = vmatprep.subr.bf16.mxu0 %v1169
    %1900 = vmatpush1.bf16.msra.mxu0 %v1168
    %1901 = vmatprep.subr.bf16.mxu0 %v1177
    %1902 = vmatpush1.bf16.msra.mxu0 %v1176
    %1903 = vmatprep.subr.bf16.mxu0 %v1185
    %1904 = vmatpush1.bf16.msra.mxu0 %v1184
    %1905 = vmatprep.subr.bf16.mxu0 %v1193
    %1906 = vmatpush1.bf16.msra.mxu0 %v1192
    %1907 = vmatprep.mubr.bf16.mxu0 %v1604
    %1908 = vmatmul.mubr.bf16.gmra.mrb[0].mxu0 %v1603
    %v1909 = vpop.f32.mrb[0].mxu0
    %v1910 = vadd.f32 %v1869, %v1909
    %v1911 = vpop.f32.mrb[0].mxu0
    %v1912 = vadd.f32 %v1871, %v1911
    %v1913 = vpop.f32.mrb[0].mxu0
    %v1914 = vpop.f32.mrb[0].mxu0
    %1915 = vdwg.mxu0
    %1916 = vmatprep.subr.bf16.mxu0 %v1201
    %1917 = vmatpush1.bf16.msra.mxu0 %v1200
    %1918 = vmatprep.subr.bf16.mxu0 %v1209
    %1919 = vmatpush1.bf16.msra.mxu0 %v1208
    %1920 = vmatprep.subr.bf16.mxu0 %v1217
    %1921 = vmatpush1.bf16.msra.mxu0 %v1216
    %1922 = vmatprep.subr.bf16.mxu0 %v1225
    %1923 = vmatpush1.bf16.msra.mxu0 %v1224
    %1924 = vmatprep.subr.bf16.mxu0 %v1233
    %1925 = vmatpush1.bf16.msra.mxu0 %v1232
    %1926 = vmatprep.subr.bf16.mxu0 %v1241
    %1927 = vmatpush1.bf16.msra.mxu0 %v1240
    %1928 = vmatprep.subr.bf16.mxu0 %v1249
    %1929 = vmatpush1.bf16.msra.mxu0 %v1248
    %1930 = vmatprep.subr.bf16.mxu0 %v1257
    %1931 = vmatpush1.bf16.msra.mxu0 %v1256
    %1932 = vmatprep.subr.bf16.mxu0 %v1265
    %1933 = vmatpush1.bf16.msra.mxu0 %v1264
    %1934 = vmatprep.subr.bf16.mxu0 %v1273
    %1935 = vmatpush1.bf16.msra.mxu0 %v1272
    %1936 = vmatprep.subr.bf16.mxu0 %v1281
    %1937 = vmatpush1.bf16.msra.mxu0 %v1280
    %1938 = vmatprep.subr.bf16.mxu0 %v1289
    %1939 = vmatpush1.bf16.msra.mxu0 %v1288
    %1940 = vmatprep.subr.bf16.mxu0 %v1297
    %1941 = vmatpush1.bf16.msra.mxu0 %v1296
    %1942 = vmatprep.subr.bf16.mxu0 %v1305
    %1943 = vmatpush1.bf16.msra.mxu0 %v1304
    %1944 = vmatprep.subr.bf16.mxu0 %v1313
    %1945 = vmatpush1.bf16.msra.mxu0 %v1312
    %1946 = vmatprep.subr.bf16.mxu0 %v1321
    %1947 = vmatpush1.bf16.msra.mxu0 %v1320
    %1948 = vmatprep.mubr.bf16.mxu0 %v1606
    %1949 = vmatmul.mubr.bf16.gmra.mrb[0].mxu0 %v1605
    %v1950 = vpop.f32.mrb[0].mxu0
    %v1951 = vadd.f32 %v1910, %v1950
    %v1952 = vpop.f32.mrb[0].mxu0
    %v1953 = vadd.f32 %v1912, %v1952
    %v1954 = vpop.f32.mrb[0].mxu0
    %v1955 = vpop.f32.mrb[0].mxu0
    %1956 = vdwg.mxu0
    %1957 = vmatprep.subr.bf16.mxu0 %v1329
    %1958 = vmatpush1.bf16.msra.mxu0 %v1328
    %1959 = vmatprep.subr.bf16.mxu0 %v1337
    %1960 = vmatpush1.bf16.msra.mxu0 %v1336
    %1961 = vmatprep.subr.bf16.mxu0 %v1345
    %1962 = vmatpush1.bf16.msra.mxu0 %v1344
    %1963 = vmatprep.subr.bf16.mxu0 %v1353
    %1964 = vmatpush1.bf16.msra.mxu0 %v1352
    %1965 = vmatprep.subr.bf16.mxu0 %v1361
    %1966 = vmatpush1.bf16.msra.mxu0 %v1360
    %1967 = vmatprep.subr.bf16.mxu0 %v1369
    %1968 = vmatpush1.bf16.msra.mxu0 %v1368
    %1969 = vmatprep.subr.bf16.mxu0 %v1377
    %1970 = vmatpush1.bf16.msra.mxu0 %v1376
    %1971 = vmatprep.subr.bf16.mxu0 %v1385
    %1972 = vmatpush1.bf16.msra.mxu0 %v1384
    %1973 = vmatprep.subr.bf16.mxu0 %v1393
    %1974 = vmatpush1.bf16.msra.mxu0 %v1392
    %1975 = vmatprep.subr.bf16.mxu0 %v1401
    %1976 = vmatpush1.bf16.msra.mxu0 %v1400
    %1977 = vmatprep.subr.bf16.mxu0 %v1409
    %1978 = vmatpush1.bf16.msra.mxu0 %v1408
    %1979 = vmatprep.subr.bf16.mxu0 %v1417
    %1980 = vmatpush1.bf16.msra.mxu0 %v1416
    %1981 = vmatprep.subr.bf16.mxu0 %v1425
    %1982 = vmatpush1.bf16.msra.mxu0 %v1424
    %1983 = vmatprep.subr.bf16.mxu0 %v1433
    %1984 = vmatpush1.bf16.msra.mxu0 %v1432
    %1985 = vmatprep.subr.bf16.mxu0 %v1441
    %1986 = vmatpush1.bf16.msra.mxu0 %v1440
    %1987 = vmatprep.subr.bf16.mxu0 %v1449
    %1988 = vmatpush1.bf16.msra.mxu0 %v1448
    %1989 = vmatprep.mubr.bf16.mxu0 %v1608
    %1990 = vmatmul.mubr.bf16.gmra.mrb[0].mxu0 %v1607
    %v1991 = vpop.f32.mrb[0].mxu0
    %v1992 = vadd.f32 %v1951, %v1991
    %v1993 = vpop.f32.mrb[0].mxu0
    %v1994 = vadd.f32 %v1953, %v1993
    %v1995 = vpop.f32.mrb[0].mxu0
    %v1996 = vpop.f32.mrb[0].mxu0
    %1997 = vdwg.mxu0
    %1998 = vmatprep.subr.bf16.mxu0 %v1457
    %1999 = vmatpush1.bf16.msra.mxu0 %v1456
    %2000 = vmatprep.subr.bf16.mxu0 %v1465
    %2001 = vmatpush1.bf16.msra.mxu0 %v1464
    %2002 = vmatprep.subr.bf16.mxu0 %v1473
    %2003 = vmatpush1.bf16.msra.mxu0 %v1472
    %2004 = vmatprep.subr.bf16.mxu0 %v1481
    %2005 = vmatpush1.bf16.msra.mxu0 %v1480
    %2006 = vmatprep.subr.bf16.mxu0 %v1489
    %2007 = vmatpush1.bf16.msra.mxu0 %v1488
    %2008 = vmatprep.subr.bf16.mxu0 %v1497
    %2009 = vmatpush1.bf16.msra.mxu0 %v1496
    %2010 = vmatprep.subr.bf16.mxu0 %v1505
    %2011 = vmatpush1.bf16.msra.mxu0 %v1504
    %2012 = vmatprep.subr.bf16.mxu0 %v1513
    %2013 = vmatpush1.bf16.msra.mxu0 %v1512
    %2014 = vmatprep.subr.bf16.mxu0 0
    %2015 = vmatpush1.bf16.msra.mxu0 0
    %2016 = vmatprep.subr.bf16.mxu0 0
    %2017 = vmatpush1.bf16.msra.mxu0 0
    %2018 = vmatprep.subr.bf16.mxu0 0
    %2019 = vmatpush1.bf16.msra.mxu0 0
    %2020 = vmatprep.subr.bf16.mxu0 0
    %2021 = vmatpush1.bf16.msra.mxu0 0
    %2022 = vmatprep.subr.bf16.mxu0 0
    %2023 = vmatpush1.bf16.msra.mxu0 0
    %2024 = vmatprep.subr.bf16.mxu0 0
    %2025 = vmatpush1.bf16.msra.mxu0 0
    %2026 = vmatprep.subr.bf16.mxu0 0
    %2027 = vmatpush1.bf16.msra.mxu0 0
    %2028 = vmatprep.subr.bf16.mxu0 0
    %2029 = vmatpush1.bf16.msra.mxu0 0
    %2030 = vmatprep.mubr.bf16.mxu0 0
    %2031 = vmatmul.mubr.bf16.gmra.mrb[0].mxu0 %v1609
    %v2032 = vpop.f32.mrb[0].mxu0
    %v2033 = vadd.f32 %v1992, %v2032
    %v2034 = vpop.f32.mrb[0].mxu0
    %v2035 = vadd.f32 %v1994, %v2034
    %v2036 = vpop.f32.mrb[0].mxu0
    %v2037 = vpop.f32.mrb[0].mxu0
    %2038 = vdwg.mxu0
    %2039 = vmatprep.subr.bf16.mxu0 %v307
    %2040 = vmatpush1.bf16.msra.mxu0 %v306
    %2041 = vmatprep.subr.bf16.mxu0 %v315
    %2042 = vmatpush1.bf16.msra.mxu0 %v314
    %2043 = vmatprep.subr.bf16.mxu0 %v323
    %2044 = vmatpush1.bf16.msra.mxu0 %v322
    %2045 = vmatprep.subr.bf16.mxu0 %v331
    %2046 = vmatpush1.bf16.msra.mxu0 %v330
    %2047 = vmatprep.subr.bf16.mxu0 %v339
    %2048 = vmatpush1.bf16.msra.mxu0 %v338
    %2049 = vmatprep.subr.bf16.mxu0 %v347
    %2050 = vmatpush1.bf16.msra.mxu0 %v346
    %2051 = vmatprep.subr.bf16.mxu0 %v355
    %2052 = vmatpush1.bf16.msra.mxu0 %v354
    %2053 = vmatprep.subr.bf16.mxu0 %v363
    %2054 = vmatpush1.bf16.msra.mxu0 %v362
    %2055 = vmatprep.subr.bf16.mxu0 %v371
    %2056 = vmatpush1.bf16.msra.mxu0 %v370
    %2057 = vmatprep.subr.bf16.mxu0 %v379
    %2058 = vmatpush1.bf16.msra.mxu0 %v378
    %2059 = vmatprep.subr.bf16.mxu0 %v387
    %2060 = vmatpush1.bf16.msra.mxu0 %v386
    %2061 = vmatprep.subr.bf16.mxu0 %v395
    %2062 = vmatpush1.bf16.msra.mxu0 %v394
    %2063 = vmatprep.subr.bf16.mxu0 %v403
    %2064 = vmatpush1.bf16.msra.mxu0 %v402
    %2065 = vmatprep.subr.bf16.mxu0 %v411
    %2066 = vmatpush1.bf16.msra.mxu0 %v410
    %2067 = vmatprep.subr.bf16.mxu0 %v419
    %2068 = vmatpush1.bf16.msra.mxu0 %v418
    %2069 = vmatprep.subr.bf16.mxu0 %v427
    %2070 = vmatpush1.bf16.msra.mxu0 %v426
    %2071 = vmatprep.mubr.bf16.mxu0 %v1592
    %2072 = vmatmul.mubr.bf16.gmra.mrb[0].mxu0 %v1591
    %v2073 = vpop.f32.mrb[0].mxu0
    %v2074 = vadd.f32 %v1533, %v2073
    %v2075 = vpop.f32.mrb[0].mxu0
    %v2076 = vadd.f32 %v1537, %v2075
    %v2077 = vpop.f32.mrb[0].mxu0
    %v2078 = vpop.f32.mrb[0].mxu0
    %2079 = vdwg.mxu0
    %2080 = vmatprep.subr.bf16.mxu0 %v435
    %2081 = vmatpush1.bf16.msra.mxu0 %v434
    %2082 = vmatprep.subr.bf16.mxu0 %v443
    %2083 = vmatpush1.bf16.msra.mxu0 %v442
    %2084 = vmatprep.subr.bf16.mxu0 %v451
    %2085 = vmatpush1.bf16.msra.mxu0 %v450
    %2086 = vmatprep.subr.bf16.mxu0 %v459
    %2087 = vmatpush1.bf16.msra.mxu0 %v458
    %2088 = vmatprep.subr.bf16.mxu0 %v467
    %2089 = vmatpush1.bf16.msra.mxu0 %v466
    %2090 = vmatprep.subr.bf16.mxu0 %v475
    %2091 = vmatpush1.bf16.msra.mxu0 %v474
    %2092 = vmatprep.subr.bf16.mxu0 %v483
    %2093 = vmatpush1.bf16.msra.mxu0 %v482
    %2094 = vmatprep.subr.bf16.mxu0 %v491
    %2095 = vmatpush1.bf16.msra.mxu0 %v490
    %2096 = vmatprep.subr.bf16.mxu0 %v499
    %2097 = vmatpush1.bf16.msra.mxu0 %v498
    %2098 = vmatprep.subr.bf16.mxu0 %v507
    %2099 = vmatpush1.bf16.msra.mxu0 %v506
    %2100 = vmatprep.subr.bf16.mxu0 %v515
    %2101 = vmatpush1.bf16.msra.mxu0 %v514
    %2102 = vmatprep.subr.bf16.mxu0 %v523
    %2103 = vmatpush1.bf16.msra.mxu0 %v522
    %2104 = vmatprep.subr.bf16.mxu0 %v531
    %2105 = vmatpush1.bf16.msra.mxu0 %v530
    %2106 = vmatprep.subr.bf16.mxu0 %v539
    %2107 = vmatpush1.bf16.msra.mxu0 %v538
    %2108 = vmatprep.subr.bf16.mxu0 %v547
    %2109 = vmatpush1.bf16.msra.mxu0 %v546
    %2110 = vmatprep.subr.bf16.mxu0 %v555
    %2111 = vmatpush1.bf16.msra.mxu0 %v554
    %2112 = vmatprep.mubr.bf16.mxu0 %v1594
    %2113 = vmatmul.mubr.bf16.gmra.mrb[0].mxu0 %v1593
    %v2114 = vpop.f32.mrb[0].mxu0
    %v2115 = vadd.f32 %v2074, %v2114
    %v2116 = vpop.f32.mrb[0].mxu0
    %v2117 = vadd.f32 %v2076, %v2116
    %v2118 = vpop.f32.mrb[0].mxu0
    %v2119 = vpop.f32.mrb[0].mxu0
    %2120 = vdwg.mxu0
    %2121 = vmatprep.subr.bf16.mxu0 %v563
    %2122 = vmatpush1.bf16.msra.mxu0 %v562
    %2123 = vmatprep.subr.bf16.mxu0 %v571
    %2124 = vmatpush1.bf16.msra.mxu0 %v570
    %2125 = vmatprep.subr.bf16.mxu0 %v579
    %2126 = vmatpush1.bf16.msra.mxu0 %v578
    %2127 = vmatprep.subr.bf16.mxu0 %v587
    %2128 = vmatpush1.bf16.msra.mxu0 %v586
    %2129 = vmatprep.subr.bf16.mxu0 %v595
    %2130 = vmatpush1.bf16.msra.mxu0 %v594
    %2131 = vmatprep.subr.bf16.mxu0 %v603
    %2132 = vmatpush1.bf16.msra.mxu0 %v602
    %2133 = vmatprep.subr.bf16.mxu0 %v611
    %2134 = vmatpush1.bf16.msra.mxu0 %v610
    %2135 = vmatprep.subr.bf16.mxu0 %v619
    %2136 = vmatpush1.bf16.msra.mxu0 %v618
    %2137 = vmatprep.subr.bf16.mxu0 %v627
    %2138 = vmatpush1.bf16.msra.mxu0 %v626
    %2139 = vmatprep.subr.bf16.mxu0 %v635
    %2140 = vmatpush1.bf16.msra.mxu0 %v634
    %2141 = vmatprep.subr.bf16.mxu0 %v643
    %2142 = vmatpush1.bf16.msra.mxu0 %v642
    %2143 = vmatprep.subr.bf16.mxu0 %v651
    %2144 = vmatpush1.bf16.msra.mxu0 %v650
    %2145 = vmatprep.subr.bf16.mxu0 %v659
    %2146 = vmatpush1.bf16.msra.mxu0 %v658
    %2147 = vmatprep.subr.bf16.mxu0 %v667
    %2148 = vmatpush1.bf16.msra.mxu0 %v666
    %2149 = vmatprep.subr.bf16.mxu0 %v675
    %2150 = vmatpush1.bf16.msra.mxu0 %v674
    %2151 = vmatprep.subr.bf16.mxu0 %v683
    %2152 = vmatpush1.bf16.msra.mxu0 %v682
    %2153 = vmatprep.mubr.bf16.mxu0 %v1596
    %2154 = vmatmul.mubr.bf16.gmra.mrb[0].mxu0 %v1595
    %v2155 = vpop.f32.mrb[0].mxu0
    %v2156 = vadd.f32 %v2115, %v2155
    %v2157 = vpop.f32.mrb[0].mxu0
    %v2158 = vadd.f32 %v2117, %v2157
    %v2159 = vpop.f32.mrb[0].mxu0
    %v2160 = vpop.f32.mrb[0].mxu0
    %2161 = vdwg.mxu0
    %2162 = vmatprep.subr.bf16.mxu0 %v691
    %2163 = vmatpush1.bf16.msra.mxu0 %v690
    %2164 = vmatprep.subr.bf16.mxu0 %v699
    %2165 = vmatpush1.bf16.msra.mxu0 %v698
    %2166 = vmatprep.subr.bf16.mxu0 %v707
    %2167 = vmatpush1.bf16.msra.mxu0 %v706
    %2168 = vmatprep.subr.bf16.mxu0 %v715
    %2169 = vmatpush1.bf16.msra.mxu0 %v714
    %2170 = vmatprep.subr.bf16.mxu0 %v723
    %2171 = vmatpush1.bf16.msra.mxu0 %v722
    %2172 = vmatprep.subr.bf16.mxu0 %v731
    %2173 = vmatpush1.bf16.msra.mxu0 %v730
    %2174 = vmatprep.subr.bf16.mxu0 %v739
    %2175 = vmatpush1.bf16.msra.mxu0 %v738
    %2176 = vmatprep.subr.bf16.mxu0 %v747
    %2177 = vmatpush1.bf16.msra.mxu0 %v746
    %2178 = vmatprep.subr.bf16.mxu0 %v755
    %2179 = vmatpush1.bf16.msra.mxu0 %v754
    %2180 = vmatprep.subr.bf16.mxu0 %v763
    %2181 = vmatpush1.bf16.msra.mxu0 %v762
    %2182 = vmatprep.subr.bf16.mxu0 %v771
    %2183 = vmatpush1.bf16.msra.mxu0 %v770
    %2184 = vmatprep.subr.bf16.mxu0 %v779
    %2185 = vmatpush1.bf16.msra.mxu0 %v778
    %2186 = vmatprep.subr.bf16.mxu0 %v787
    %2187 = vmatpush1.bf16.msra.mxu0 %v786
    %2188 = vmatprep.subr.bf16.mxu0 %v795
    %2189 = vmatpush1.bf16.msra.mxu0 %v794
    %2190 = vmatprep.subr.bf16.mxu0 %v803
    %2191 = vmatpush1.bf16.msra.mxu0 %v802
    %2192 = vmatprep.subr.bf16.mxu0 %v811
    %2193 = vmatpush1.bf16.msra.mxu0 %v810
    %2194 = vmatprep.mubr.bf16.mxu0 %v1598
    %2195 = vmatmul.mubr.bf16.gmra.mrb[0].mxu0 %v1597
    %v2196 = vpop.f32.mrb[0].mxu0
    %v2197 = vadd.f32 %v2156, %v2196
    %v2198 = vpop.f32.mrb[0].mxu0
    %v2199 = vadd.f32 %v2158, %v2198
    %v2200 = vpop.f32.mrb[0].mxu0
    %v2201 = vpop.f32.mrb[0].mxu0
    %2202 = vdwg.mxu0
    %2203 = vmatprep.subr.bf16.mxu0 %v819
    %2204 = vmatpush1.bf16.msra.mxu0 %v818
    %2205 = vmatprep.subr.bf16.mxu0 %v827
    %2206 = vmatpush1.bf16.msra.mxu0 %v826
    %2207 = vmatprep.subr.bf16.mxu0 %v835
    %2208 = vmatpush1.bf16.msra.mxu0 %v834
    %2209 = vmatprep.subr.bf16.mxu0 %v843
    %2210 = vmatpush1.bf16.msra.mxu0 %v842
    %2211 = vmatprep.subr.bf16.mxu0 %v851
    %2212 = vmatpush1.bf16.msra.mxu0 %v850
    %2213 = vmatprep.subr.bf16.mxu0 %v859
    %2214 = vmatpush1.bf16.msra.mxu0 %v858
    %2215 = vmatprep.subr.bf16.mxu0 %v867
    %2216 = vmatpush1.bf16.msra.mxu0 %v866
    %2217 = vmatprep.subr.bf16.mxu0 %v875
    %2218 = vmatpush1.bf16.msra.mxu0 %v874
    %2219 = vmatprep.subr.bf16.mxu0 %v883
    %2220 = vmatpush1.bf16.msra.mxu0 %v882
    %2221 = vmatprep.subr.bf16.mxu0 %v891
    %2222 = vmatpush1.bf16.msra.mxu0 %v890
    %2223 = vmatprep.subr.bf16.mxu0 %v899
    %2224 = vmatpush1.bf16.msra.mxu0 %v898
    %2225 = vmatprep.subr.bf16.mxu0 %v907
    %2226 = vmatpush1.bf16.msra.mxu0 %v906
    %2227 = vmatprep.subr.bf16.mxu0 %v915
    %2228 = vmatpush1.bf16.msra.mxu0 %v914
    %2229 = vmatprep.subr.bf16.mxu0 %v923
    %2230 = vmatpush1.bf16.msra.mxu0 %v922
    %2231 = vmatprep.subr.bf16.mxu0 %v931
    %2232 = vmatpush1.bf16.msra.mxu0 %v930
    %2233 = vmatprep.subr.bf16.mxu0 %v939
    %2234 = vmatpush1.bf16.msra.mxu0 %v938
    %2235 = vmatprep.mubr.bf16.mxu0 %v1600
    %2236 = vmatmul.mubr.bf16.gmra.mrb[0].mxu0 %v1599
    %v2237 = vpop.f32.mrb[0].mxu0
    %v2238 = vadd.f32 %v2197, %v2237
    %v2239 = vpop.f32.mrb[0].mxu0
    %v2240 = vadd.f32 %v2199, %v2239
    %v2241 = vpop.f32.mrb[0].mxu0
    %v2242 = vpop.f32.mrb[0].mxu0
    %2243 = vdwg.mxu0
    %2244 = vmatprep.subr.bf16.mxu0 %v947
    %2245 = vmatpush1.bf16.msra.mxu0 %v946
    %2246 = vmatprep.subr.bf16.mxu0 %v955
    %2247 = vmatpush1.bf16.msra.mxu0 %v954
    %2248 = vmatprep.subr.bf16.mxu0 %v963
    %2249 = vmatpush1.bf16.msra.mxu0 %v962
    %2250 = vmatprep.subr.bf16.mxu0 %v971
    %2251 = vmatpush1.bf16.msra.mxu0 %v970
    %2252 = vmatprep.subr.bf16.mxu0 %v979
    %2253 = vmatpush1.bf16.msra.mxu0 %v978
    %2254 = vmatprep.subr.bf16.mxu0 %v987
    %2255 = vmatpush1.bf16.msra.mxu0 %v986
    %2256 = vmatprep.subr.bf16.mxu0 %v995
    %2257 = vmatpush1.bf16.msra.mxu0 %v994
    %2258 = vmatprep.subr.bf16.mxu0 %v1003
    %2259 = vmatpush1.bf16.msra.mxu0 %v1002
    %2260 = vmatprep.subr.bf16.mxu0 %v1011
    %2261 = vmatpush1.bf16.msra.mxu0 %v1010
    %2262 = vmatprep.subr.bf16.mxu0 %v1019
    %2263 = vmatpush1.bf16.msra.mxu0 %v1018
    %2264 = vmatprep.subr.bf16.mxu0 %v1027
    %2265 = vmatpush1.bf16.msra.mxu0 %v1026
    %2266 = vmatprep.subr.bf16.mxu0 %v1035
    %2267 = vmatpush1.bf16.msra.mxu0 %v1034
    %2268 = vmatprep.subr.bf16.mxu0 %v1043
    %2269 = vmatpush1.bf16.msra.mxu0 %v1042
    %2270 = vmatprep.subr.bf16.mxu0 %v1051
    %2271 = vmatpush1.bf16.msra.mxu0 %v1050
    %2272 = vmatprep.subr.bf16.mxu0 %v1059
    %2273 = vmatpush1.bf16.msra.mxu0 %v1058
    %2274 = vmatprep.subr.bf16.mxu0 %v1067
    %2275 = vmatpush1.bf16.msra.mxu0 %v1066
    %2276 = vmatprep.mubr.bf16.mxu0 %v1602
    %2277 = vmatmul.mubr.bf16.gmra.mrb[0].mxu0 %v1601
    %v2278 = vpop.f32.mrb[0].mxu0
    %v2279 = vadd.f32 %v2238, %v2278
    %v2280 = vpop.f32.mrb[0].mxu0
    %v2281 = vadd.f32 %v2240, %v2280
    %v2282 = vpop.f32.mrb[0].mxu0
    %v2283 = vpop.f32.mrb[0].mxu0
    %2284 = vdwg.mxu0
    %2285 = vmatprep.subr.bf16.mxu0 %v1075
    %2286 = vmatpush1.bf16.msra.mxu0 %v1074
    %2287 = vmatprep.subr.bf16.mxu0 %v1083
    %2288 = vmatpush1.bf16.msra.mxu0 %v1082
    %2289 = vmatprep.subr.bf16.mxu0 %v1091
    %2290 = vmatpush1.bf16.msra.mxu0 %v1090
    %2291 = vmatprep.subr.bf16.mxu0 %v1099
    %2292 = vmatpush1.bf16.msra.mxu0 %v1098
    %2293 = vmatprep.subr.bf16.mxu0 %v1107
    %2294 = vmatpush1.bf16.msra.mxu0 %v1106
    %2295 = vmatprep.subr.bf16.mxu0 %v1115
    %2296 = vmatpush1.bf16.msra.mxu0 %v1114
    %2297 = vmatprep.subr.bf16.mxu0 %v1123
    %2298 = vmatpush1.bf16.msra.mxu0 %v1122
    %2299 = vmatprep.subr.bf16.mxu0 %v1131
    %2300 = vmatpush1.bf16.msra.mxu0 %v1130
    %2301 = vmatprep.subr.bf16.mxu0 %v1139
    %2302 = vmatpush1.bf16.msra.mxu0 %v1138
    %2303 = vmatprep.subr.bf16.mxu0 %v1147
    %2304 = vmatpush1.bf16.msra.mxu0 %v1146
    %2305 = vmatprep.subr.bf16.mxu0 %v1155
    %2306 = vmatpush1.bf16.msra.mxu0 %v1154
    %2307 = vmatprep.subr.bf16.mxu0 %v1163
    %2308 = vmatpush1.bf16.msra.mxu0 %v1162
    %2309 = vmatprep.subr.bf16.mxu0 %v1171
    %2310 = vmatpush1.bf16.msra.mxu0 %v1170
    %2311 = vmatprep.subr.bf16.mxu0 %v1179
    %2312 = vmatpush1.bf16.msra.mxu0 %v1178
    %2313 = vmatprep.subr.bf16.mxu0 %v1187
    %2314 = vmatpush1.bf16.msra.mxu0 %v1186
    %2315 = vmatprep.subr.bf16.mxu0 %v1195
    %2316 = vmatpush1.bf16.msra.mxu0 %v1194
    %2317 = vmatprep.mubr.bf16.mxu0 %v1604
    %2318 = vmatmul.mubr.bf16.gmra.mrb[0].mxu0 %v1603
    %v2319 = vpop.f32.mrb[0].mxu0
    %v2320 = vadd.f32 %v2279, %v2319
    %v2321 = vpop.f32.mrb[0].mxu0
    %v2322 = vadd.f32 %v2281, %v2321
    %v2323 = vpop.f32.mrb[0].mxu0
    %v2324 = vpop.f32.mrb[0].mxu0
    %2325 = vdwg.mxu0
    %2326 = vmatprep.subr.bf16.mxu0 %v1203
    %2327 = vmatpush1.bf16.msra.mxu0 %v1202
    %2328 = vmatprep.subr.bf16.mxu0 %v1211
    %2329 = vmatpush1.bf16.msra.mxu0 %v1210
    %2330 = vmatprep.subr.bf16.mxu0 %v1219
    %2331 = vmatpush1.bf16.msra.mxu0 %v1218
    %2332 = vmatprep.subr.bf16.mxu0 %v1227
    %2333 = vmatpush1.bf16.msra.mxu0 %v1226
    %2334 = vmatprep.subr.bf16.mxu0 %v1235
    %2335 = vmatpush1.bf16.msra.mxu0 %v1234
    %2336 = vmatprep.subr.bf16.mxu0 %v1243
    %2337 = vmatpush1.bf16.msra.mxu0 %v1242
    %2338 = vmatprep.subr.bf16.mxu0 %v1251
    %2339 = vmatpush1.bf16.msra.mxu0 %v1250
    %2340 = vmatprep.subr.bf16.mxu0 %v1259
    %2341 = vmatpush1.bf16.msra.mxu0 %v1258
    %2342 = vmatprep.subr.bf16.mxu0 %v1267
    %2343 = vmatpush1.bf16.msra.mxu0 %v1266
    %2344 = vmatprep.subr.bf16.mxu0 %v1275
    %2345 = vmatpush1.bf16.msra.mxu0 %v1274
    %2346 = vmatprep.subr.bf16.mxu0 %v1283
    %2347 = vmatpush1.bf16.msra.mxu0 %v1282
    %2348 = vmatprep.subr.bf16.mxu0 %v1291
    %2349 = vmatpush1.bf16.msra.mxu0 %v1290
    %2350 = vmatprep.subr.bf16.mxu0 %v1299
    %2351 = vmatpush1.bf16.msra.mxu0 %v1298
    %2352 = vmatprep.subr.bf16.mxu0 %v1307
    %2353 = vmatpush1.bf16.msra.mxu0 %v1306
    %2354 = vmatprep.subr.bf16.mxu0 %v1315
    %2355 = vmatpush1.bf16.msra.mxu0 %v1314
    %2356 = vmatprep.subr.bf16.mxu0 %v1323
    %2357 = vmatpush1.bf16.msra.mxu0 %v1322
    %2358 = vmatprep.mubr.bf16.mxu0 %v1606
    %2359 = vmatmul.mubr.bf16.gmra.mrb[0].mxu0 %v1605
    %v2360 = vpop.f32.mrb[0].mxu0
    %v2361 = vadd.f32 %v2320, %v2360
    %v2362 = vpop.f32.mrb[0].mxu0
    %v2363 = vadd.f32 %v2322, %v2362
    %v2364 = vpop.f32.mrb[0].mxu0
    %v2365 = vpop.f32.mrb[0].mxu0
    %2366 = vdwg.mxu0
    %2367 = vmatprep.subr.bf16.mxu0 %v1331
    %2368 = vmatpush1.bf16.msra.mxu0 %v1330
    %2369 = vmatprep.subr.bf16.mxu0 %v1339
    %2370 = vmatpush1.bf16.msra.mxu0 %v1338
    %2371 = vmatprep.subr.bf16.mxu0 %v1347
    %2372 = vmatpush1.bf16.msra.mxu0 %v1346
    %2373 = vmatprep.subr.bf16.mxu0 %v1355
    %2374 = vmatpush1.bf16.msra.mxu0 %v1354
    %2375 = vmatprep.subr.bf16.mxu0 %v1363
    %2376 = vmatpush1.bf16.msra.mxu0 %v1362
    %2377 = vmatprep.subr.bf16.mxu0 %v1371
    %2378 = vmatpush1.bf16.msra.mxu0 %v1370
    %2379 = vmatprep.subr.bf16.mxu0 %v1379
    %2380 = vmatpush1.bf16.msra.mxu0 %v1378
    %2381 = vmatprep.subr.bf16.mxu0 %v1387
    %2382 = vmatpush1.bf16.msra.mxu0 %v1386
    %2383 = vmatprep.subr.bf16.mxu0 %v1395
    %2384 = vmatpush1.bf16.msra.mxu0 %v1394
    %2385 = vmatprep.subr.bf16.mxu0 %v1403
    %2386 = vmatpush1.bf16.msra.mxu0 %v1402
    %2387 = vmatprep.subr.bf16.mxu0 %v1411
    %2388 = vmatpush1.bf16.msra.mxu0 %v1410
    %2389 = vmatprep.subr.bf16.mxu0 %v1419
    %2390 = vmatpush1.bf16.msra.mxu0 %v1418
    %2391 = vmatprep.subr.bf16.mxu0 %v1427
    %2392 = vmatpush1.bf16.msra.mxu0 %v1426
    %2393 = vmatprep.subr.bf16.mxu0 %v1435
    %2394 = vmatpush1.bf16.msra.mxu0 %v1434
    %2395 = vmatprep.subr.bf16.mxu0 %v1443
    %2396 = vmatpush1.bf16.msra.mxu0 %v1442
    %2397 = vmatprep.subr.bf16.mxu0 %v1451
    %2398 = vmatpush1.bf16.msra.mxu0 %v1450
    %2399 = vmatprep.mubr.bf16.mxu0 %v1608
    %2400 = vmatmul.mubr.bf16.gmra.mrb[0].mxu0 %v1607
    %v2401 = vpop.f32.mrb[0].mxu0
    %v2402 = vadd.f32 %v2361, %v2401
    %v2403 = vpop.f32.mrb[0].mxu0
    %v2404 = vadd.f32 %v2363, %v2403
    %v2405 = vpop.f32.mrb[0].mxu0
    %v2406 = vpop.f32.mrb[0].mxu0
    %2407 = vdwg.mxu0
    %2408 = vmatprep.subr.bf16.mxu0 %v1459
    %2409 = vmatpush1.bf16.msra.mxu0 %v1458
    %2410 = vmatprep.subr.bf16.mxu0 %v1467
    %2411 = vmatpush1.bf16.msra.mxu0 %v1466
    %2412 = vmatprep.subr.bf16.mxu0 %v1475
    %2413 = vmatpush1.bf16.msra.mxu0 %v1474
    %2414 = vmatprep.subr.bf16.mxu0 %v1483
    %2415 = vmatpush1.bf16.msra.mxu0 %v1482
    %2416 = vmatprep.subr.bf16.mxu0 %v1491
    %2417 = vmatpush1.bf16.msra.mxu0 %v1490
    %2418 = vmatprep.subr.bf16.mxu0 %v1499
    %2419 = vmatpush1.bf16.msra.mxu0 %v1498
    %2420 = vmatprep.subr.bf16.mxu0 %v1507
    %2421 = vmatpush1.bf16.msra.mxu0 %v1506
    %2422 = vmatprep.subr.bf16.mxu0 %v1515
    %2423 = vmatpush1.bf16.msra.mxu0 %v1514
    %2424 = vmatprep.subr.bf16.mxu0 0
    %2425 = vmatpush1.bf16.msra.mxu0 0
    %2426 = vmatprep.subr.bf16.mxu0 0
    %2427 = vmatpush1.bf16.msra.mxu0 0
    %2428 = vmatprep.subr.bf16.mxu0 0
    %2429 = vmatpush1.bf16.msra.mxu0 0
    %2430 = vmatprep.subr.bf16.mxu0 0
    %2431 = vmatpush1.bf16.msra.mxu0 0
    %2432 = vmatprep.subr.bf16.mxu0 0
    %2433 = vmatpush1.bf16.msra.mxu0 0
    %2434 = vmatprep.subr.bf16.mxu0 0
    %2435 = vmatpush1.bf16.msra.mxu0 0
    %2436 = vmatprep.subr.bf16.mxu0 0
    %2437 = vmatpush1.bf16.msra.mxu0 0
    %2438 = vmatprep.subr.bf16.mxu0 0
    %2439 = vmatpush1.bf16.msra.mxu0 0
    %2440 = vmatprep.mubr.bf16.mxu0 0
    %2441 = vmatmul.mubr.bf16.gmra.mrb[0].mxu0 %v1609
    %v2442 = vpop.f32.mrb[0].mxu0
    %v2443 = vadd.f32 %v2402, %v2442
    %v2444 = vpop.f32.mrb[0].mxu0
    %v2445 = vadd.f32 %v2404, %v2444
    %v2446 = vpop.f32.mrb[0].mxu0
    %v2447 = vpop.f32.mrb[0].mxu0
    %2448 = vdwg.mxu0
    %2449 = vmatprep.subr.bf16.mxu0 %v309
    %2450 = vmatpush1.bf16.msra.mxu0 %v308
    %2451 = vmatprep.subr.bf16.mxu0 %v317
    %2452 = vmatpush1.bf16.msra.mxu0 %v316
    %2453 = vmatprep.subr.bf16.mxu0 %v325
    %2454 = vmatpush1.bf16.msra.mxu0 %v324
    %2455 = vmatprep.subr.bf16.mxu0 %v333
    %2456 = vmatpush1.bf16.msra.mxu0 %v332
    %2457 = vmatprep.subr.bf16.mxu0 %v341
    %2458 = vmatpush1.bf16.msra.mxu0 %v340
    %2459 = vmatprep.subr.bf16.mxu0 %v349
    %2460 = vmatpush1.bf16.msra.mxu0 %v348
    %2461 = vmatprep.subr.bf16.mxu0 %v357
    %2462 = vmatpush1.bf16.msra.mxu0 %v356
    %2463 = vmatprep.subr.bf16.mxu0 %v365
    %2464 = vmatpush1.bf16.msra.mxu0 %v364
    %2465 = vmatprep.subr.bf16.mxu0 %v373
    %2466 = vmatpush1.bf16.msra.mxu0 %v372
    %2467 = vmatprep.subr.bf16.mxu0 %v381
    %2468 = vmatpush1.bf16.msra.mxu0 %v380
    %2469 = vmatprep.subr.bf16.mxu0 %v389
    %2470 = vmatpush1.bf16.msra.mxu0 %v388
    %2471 = vmatprep.subr.bf16.mxu0 %v397
    %2472 = vmatpush1.bf16.msra.mxu0 %v396
    %2473 = vmatprep.subr.bf16.mxu0 %v405
    %2474 = vmatpush1.bf16.msra.mxu0 %v404
    %2475 = vmatprep.subr.bf16.mxu0 %v413
    %2476 = vmatpush1.bf16.msra.mxu0 %v412
    %2477 = vmatprep.subr.bf16.mxu0 %v421
    %2478 = vmatpush1.bf16.msra.mxu0 %v420
    %2479 = vmatprep.subr.bf16.mxu0 %v429
    %2480 = vmatpush1.bf16.msra.mxu0 %v428
    %2481 = vmatprep.mubr.bf16.mxu0 %v1592
    %2482 = vmatmul.mubr.bf16.gmra.mrb[0].mxu0 %v1591
    %v2483 = vpop.f32.mrb[0].mxu0
    %v2484 = vadd.f32 %v1541, %v2483
    %v2485 = vpop.f32.mrb[0].mxu0
    %v2486 = vadd.f32 %v1545, %v2485
    %v2487 = vpop.f32.mrb[0].mxu0
    %v2488 = vpop.f32.mrb[0].mxu0
    %2489 = vdwg.mxu0
    %2490 = vmatprep.subr.bf16.mxu0 %v437
    %2491 = vmatpush1.bf16.msra.mxu0 %v436
    %2492 = vmatprep.subr.bf16.mxu0 %v445
    %2493 = vmatpush1.bf16.msra.mxu0 %v444
    %2494 = vmatprep.subr.bf16.mxu0 %v453
    %2495 = vmatpush1.bf16.msra.mxu0 %v452
    %2496 = vmatprep.subr.bf16.mxu0 %v461
    %2497 = vmatpush1.bf16.msra.mxu0 %v460
    %2498 = vmatprep.subr.bf16.mxu0 %v469
    %2499 = vmatpush1.bf16.msra.mxu0 %v468
    %2500 = vmatprep.subr.bf16.mxu0 %v477
    %2501 = vmatpush1.bf16.msra.mxu0 %v476
    %2502 = vmatprep.subr.bf16.mxu0 %v485
    %2503 = vmatpush1.bf16.msra.mxu0 %v484
    %2504 = vmatprep.subr.bf16.mxu0 %v493
    %2505 = vmatpush1.bf16.msra.mxu0 %v492
    %2506 = vmatprep.subr.bf16.mxu0 %v501
    %2507 = vmatpush1.bf16.msra.mxu0 %v500
    %2508 = vmatprep.subr.bf16.mxu0 %v509
    %2509 = vmatpush1.bf16.msra.mxu0 %v508
    %2510 = vmatprep.subr.bf16.mxu0 %v517
    %2511 = vmatpush1.bf16.msra.mxu0 %v516
    %2512 = vmatprep.subr.bf16.mxu0 %v525
    %2513 = vmatpush1.bf16.msra.mxu0 %v524
    %2514 = vmatprep.subr.bf16.mxu0 %v533
    %2515 = vmatpush1.bf16.msra.mxu0 %v532
    %2516 = vmatprep.subr.bf16.mxu0 %v541
    %2517 = vmatpush1.bf16.msra.mxu0 %v540
    %2518 = vmatprep.subr.bf16.mxu0 %v549
    %2519 = vmatpush1.bf16.msra.mxu0 %v548
    %2520 = vmatprep.subr.bf16.mxu0 %v557
    %2521 = vmatpush1.bf16.msra.mxu0 %v556
    %2522 = vmatprep.mubr.bf16.mxu0 %v1594
    %2523 = vmatmul.mubr.bf16.gmra.mrb[0].mxu0 %v1593
    %v2524 = vpop.f32.mrb[0].mxu0
    %v2525 = vadd.f32 %v2484, %v2524
    %v2526 = vpop.f32.mrb[0].mxu0
    %v2527 = vadd.f32 %v2486, %v2526
    %v2528 = vpop.f32.mrb[0].mxu0
    %v2529 = vpop.f32.mrb[0].mxu0
    %2530 = vdwg.mxu0
    %2531 = vmatprep.subr.bf16.mxu0 %v565
    %2532 = vmatpush1.bf16.msra.mxu0 %v564
    %2533 = vmatprep.subr.bf16.mxu0 %v573
    %2534 = vmatpush1.bf16.msra.mxu0 %v572
    %2535 = vmatprep.subr.bf16.mxu0 %v581
    %2536 = vmatpush1.bf16.msra.mxu0 %v580
    %2537 = vmatprep.subr.bf16.mxu0 %v589
    %2538 = vmatpush1.bf16.msra.mxu0 %v588
    %2539 = vmatprep.subr.bf16.mxu0 %v597
    %2540 = vmatpush1.bf16.msra.mxu0 %v596
    %2541 = vmatprep.subr.bf16.mxu0 %v605
    %2542 = vmatpush1.bf16.msra.mxu0 %v604
    %2543 = vmatprep.subr.bf16.mxu0 %v613
    %2544 = vmatpush1.bf16.msra.mxu0 %v612
    %2545 = vmatprep.subr.bf16.mxu0 %v621
    %2546 = vmatpush1.bf16.msra.mxu0 %v620
    %2547 = vmatprep.subr.bf16.mxu0 %v629
    %2548 = vmatpush1.bf16.msra.mxu0 %v628
    %2549 = vmatprep.subr.bf16.mxu0 %v637
    %2550 = vmatpush1.bf16.msra.mxu0 %v636
    %2551 = vmatprep.subr.bf16.mxu0 %v645
    %2552 = vmatpush1.bf16.msra.mxu0 %v644
    %2553 = vmatprep.subr.bf16.mxu0 %v653
    %2554 = vmatpush1.bf16.msra.mxu0 %v652
    %2555 = vmatprep.subr.bf16.mxu0 %v661
    %2556 = vmatpush1.bf16.msra.mxu0 %v660
    %2557 = vmatprep.subr.bf16.mxu0 %v669
    %2558 = vmatpush1.bf16.msra.mxu0 %v668
    %2559 = vmatprep.subr.bf16.mxu0 %v677
    %2560 = vmatpush1.bf16.msra.mxu0 %v676
    %2561 = vmatprep.subr.bf16.mxu0 %v685
    %2562 = vmatpush1.bf16.msra.mxu0 %v684
    %2563 = vmatprep.mubr.bf16.mxu0 %v1596
    %2564 = vmatmul.mubr.bf16.gmra.mrb[0].mxu0 %v1595
    %v2565 = vpop.f32.mrb[0].mxu0
    %v2566 = vadd.f32 %v2525, %v2565
    %v2567 = vpop.f32.mrb[0].mxu0
    %v2568 = vadd.f32 %v2527, %v2567
    %v2569 = vpop.f32.mrb[0].mxu0
    %v2570 = vpop.f32.mrb[0].mxu0
    %2571 = vdwg.mxu0
    %2572 = vmatprep.subr.bf16.mxu0 %v693
    %2573 = vmatpush1.bf16.msra.mxu0 %v692
    %2574 = vmatprep.subr.bf16.mxu0 %v701
    %2575 = vmatpush1.bf16.msra.mxu0 %v700
    %2576 = vmatprep.subr.bf16.mxu0 %v709
    %2577 = vmatpush1.bf16.msra.mxu0 %v708
    %2578 = vmatprep.subr.bf16.mxu0 %v717
    %2579 = vmatpush1.bf16.msra.mxu0 %v716
    %2580 = vmatprep.subr.bf16.mxu0 %v725
    %2581 = vmatpush1.bf16.msra.mxu0 %v724
    %2582 = vmatprep.subr.bf16.mxu0 %v733
    %2583 = vmatpush1.bf16.msra.mxu0 %v732
    %2584 = vmatprep.subr.bf16.mxu0 %v741
    %2585 = vmatpush1.bf16.msra.mxu0 %v740
    %2586 = vmatprep.subr.bf16.mxu0 %v749
    %2587 = vmatpush1.bf16.msra.mxu0 %v748
    %2588 = vmatprep.subr.bf16.mxu0 %v757
    %2589 = vmatpush1.bf16.msra.mxu0 %v756
    %2590 = vmatprep.subr.bf16.mxu0 %v765
    %2591 = vmatpush1.bf16.msra.mxu0 %v764
    %2592 = vmatprep.subr.bf16.mxu0 %v773
    %2593 = vmatpush1.bf16.msra.mxu0 %v772
    %2594 = vmatprep.subr.bf16.mxu0 %v781
    %2595 = vmatpush1.bf16.msra.mxu0 %v780
    %2596 = vmatprep.subr.bf16.mxu0 %v789
    %2597 = vmatpush1.bf16.msra.mxu0 %v788
    %2598 = vmatprep.subr.bf16.mxu0 %v797
    %2599 = vmatpush1.bf16.msra.mxu0 %v796
    %2600 = vmatprep.subr.bf16.mxu0 %v805
    %2601 = vmatpush1.bf16.msra.mxu0 %v804
    %2602 = vmatprep.subr.bf16.mxu0 %v813
    %2603 = vmatpush1.bf16.msra.mxu0 %v812
    %2604 = vmatprep.mubr.bf16.mxu0 %v1598
    %2605 = vmatmul.mubr.bf16.gmra.mrb[0].mxu0 %v1597
    %v2606 = vpop.f32.mrb[0].mxu0
    %v2607 = vadd.f32 %v2566, %v2606
    %v2608 = vpop.f32.mrb[0].mxu0
    %v2609 = vadd.f32 %v2568, %v2608
    %v2610 = vpop.f32.mrb[0].mxu0
    %v2611 = vpop.f32.mrb[0].mxu0
    %2612 = vdwg.mxu0
    %2613 = vmatprep.subr.bf16.mxu0 %v821
    %2614 = vmatpush1.bf16.msra.mxu0 %v820
    %2615 = vmatprep.subr.bf16.mxu0 %v829
    %2616 = vmatpush1.bf16.msra.mxu0 %v828
    %2617 = vmatprep.subr.bf16.mxu0 %v837
    %2618 = vmatpush1.bf16.msra.mxu0 %v836
    %2619 = vmatprep.subr.bf16.mxu0 %v845
    %2620 = vmatpush1.bf16.msra.mxu0 %v844
    %2621 = vmatprep.subr.bf16.mxu0 %v853
    %2622 = vmatpush1.bf16.msra.mxu0 %v852
    %2623 = vmatprep.subr.bf16.mxu0 %v861
    %2624 = vmatpush1.bf16.msra.mxu0 %v860
    %2625 = vmatprep.subr.bf16.mxu0 %v869
    %2626 = vmatpush1.bf16.msra.mxu0 %v868
    %2627 = vmatprep.subr.bf16.mxu0 %v877
    %2628 = vmatpush1.bf16.msra.mxu0 %v876
    %2629 = vmatprep.subr.bf16.mxu0 %v885
    %2630 = vmatpush1.bf16.msra.mxu0 %v884
    %2631 = vmatprep.subr.bf16.mxu0 %v893
    %2632 = vmatpush1.bf16.msra.mxu0 %v892
    %2633 = vmatprep.subr.bf16.mxu0 %v901
    %2634 = vmatpush1.bf16.msra.mxu0 %v900
    %2635 = vmatprep.subr.bf16.mxu0 %v909
    %2636 = vmatpush1.bf16.msra.mxu0 %v908
    %2637 = vmatprep.subr.bf16.mxu0 %v917
    %2638 = vmatpush1.bf16.msra.mxu0 %v916
    %2639 = vmatprep.subr.bf16.mxu0 %v925
    %2640 = vmatpush1.bf16.msra.mxu0 %v924
    %2641 = vmatprep.subr.bf16.mxu0 %v933
    %2642 = vmatpush1.bf16.msra.mxu0 %v932
    %2643 = vmatprep.subr.bf16.mxu0 %v941
    %2644 = vmatpush1.bf16.msra.mxu0 %v940
    %2645 = vmatprep.mubr.bf16.mxu0 %v1600
    %2646 = vmatmul.mubr.bf16.gmra.mrb[0].mxu0 %v1599
    %v2647 = vpop.f32.mrb[0].mxu0
    %v2648 = vadd.f32 %v2607, %v2647
    %v2649 = vpop.f32.mrb[0].mxu0
    %v2650 = vadd.f32 %v2609, %v2649
    %v2651 = vpop.f32.mrb[0].mxu0
    %v2652 = vpop.f32.mrb[0].mxu0
    %2653 = vdwg.mxu0
    %2654 = vmatprep.subr.bf16.mxu0 %v949
    %2655 = vmatpush1.bf16.msra.mxu0 %v948
    %2656 = vmatprep.subr.bf16.mxu0 %v957
    %2657 = vmatpush1.bf16.msra.mxu0 %v956
    %2658 = vmatprep.subr.bf16.mxu0 %v965
    %2659 = vmatpush1.bf16.msra.mxu0 %v964
    %2660 = vmatprep.subr.bf16.mxu0 %v973
    %2661 = vmatpush1.bf16.msra.mxu0 %v972
    %2662 = vmatprep.subr.bf16.mxu0 %v981
    %2663 = vmatpush1.bf16.msra.mxu0 %v980
    %2664 = vmatprep.subr.bf16.mxu0 %v989
    %2665 = vmatpush1.bf16.msra.mxu0 %v988
    %2666 = vmatprep.subr.bf16.mxu0 %v997
    %2667 = vmatpush1.bf16.msra.mxu0 %v996
    %2668 = vmatprep.subr.bf16.mxu0 %v1005
    %2669 = vmatpush1.bf16.msra.mxu0 %v1004
    %2670 = vmatprep.subr.bf16.mxu0 %v1013
    %2671 = vmatpush1.bf16.msra.mxu0 %v1012
    %2672 = vmatprep.subr.bf16.mxu0 %v1021
    %2673 = vmatpush1.bf16.msra.mxu0 %v1020
    %2674 = vmatprep.subr.bf16.mxu0 %v1029
    %2675 = vmatpush1.bf16.msra.mxu0 %v1028
    %2676 = vmatprep.subr.bf16.mxu0 %v1037
    %2677 = vmatpush1.bf16.msra.mxu0 %v1036
    %2678 = vmatprep.subr.bf16.mxu0 %v1045
    %2679 = vmatpush1.bf16.msra.mxu0 %v1044
    %2680 = vmatprep.subr.bf16.mxu0 %v1053
    %2681 = vmatpush1.bf16.msra.mxu0 %v1052
    %2682 = vmatprep.subr.bf16.mxu0 %v1061
    %2683 = vmatpush1.bf16.msra.mxu0 %v1060
    %2684 = vmatprep.subr.bf16.mxu0 %v1069
    %2685 = vmatpush1.bf16.msra.mxu0 %v1068
    %2686 = vmatprep.mubr.bf16.mxu0 %v1602
    %2687 = vmatmul.mubr.bf16.gmra.mrb[0].mxu0 %v1601
    %v2688 = vpop.f32.mrb[0].mxu0
    %v2689 = vadd.f32 %v2648, %v2688
    %v2690 = vpop.f32.mrb[0].mxu0
    %v2691 = vadd.f32 %v2650, %v2690
    %v2692 = vpop.f32.mrb[0].mxu0
    %v2693 = vpop.f32.mrb[0].mxu0
    %2694 = vdwg.mxu0
    %2695 = vmatprep.subr.bf16.mxu0 %v1077
    %2696 = vmatpush1.bf16.msra.mxu0 %v1076
    %2697 = vmatprep.subr.bf16.mxu0 %v1085
    %2698 = vmatpush1.bf16.msra.mxu0 %v1084
    %2699 = vmatprep.subr.bf16.mxu0 %v1093
    %2700 = vmatpush1.bf16.msra.mxu0 %v1092
    %2701 = vmatprep.subr.bf16.mxu0 %v1101
    %2702 = vmatpush1.bf16.msra.mxu0 %v1100
    %2703 = vmatprep.subr.bf16.mxu0 %v1109
    %2704 = vmatpush1.bf16.msra.mxu0 %v1108
    %2705 = vmatprep.subr.bf16.mxu0 %v1117
    %2706 = vmatpush1.bf16.msra.mxu0 %v1116
    %2707 = vmatprep.subr.bf16.mxu0 %v1125
    %2708 = vmatpush1.bf16.msra.mxu0 %v1124
    %2709 = vmatprep.subr.bf16.mxu0 %v1133
    %2710 = vmatpush1.bf16.msra.mxu0 %v1132
    %2711 = vmatprep.subr.bf16.mxu0 %v1141
    %2712 = vmatpush1.bf16.msra.mxu0 %v1140
    %2713 = vmatprep.subr.bf16.mxu0 %v1149
    %2714 = vmatpush1.bf16.msra.mxu0 %v1148
    %2715 = vmatprep.subr.bf16.mxu0 %v1157
    %2716 = vmatpush1.bf16.msra.mxu0 %v1156
    %2717 = vmatprep.subr.bf16.mxu0 %v1165
    %2718 = vmatpush1.bf16.msra.mxu0 %v1164
    %2719 = vmatprep.subr.bf16.mxu0 %v1173
    %2720 = vmatpush1.bf16.msra.mxu0 %v1172
    %2721 = vmatprep.subr.bf16.mxu0 %v1181
    %2722 = vmatpush1.bf16.msra.mxu0 %v1180
    %2723 = vmatprep.subr.bf16.mxu0 %v1189
    %2724 = vmatpush1.bf16.msra.mxu0 %v1188
    %2725 = vmatprep.subr.bf16.mxu0 %v1197
    %2726 = vmatpush1.bf16.msra.mxu0 %v1196
    %2727 = vmatprep.mubr.bf16.mxu0 %v1604
    %2728 = vmatmul.mubr.bf16.gmra.mrb[0].mxu0 %v1603
    %v2729 = vpop.f32.mrb[0].mxu0
    %v2730 = vadd.f32 %v2689, %v2729
    %v2731 = vpop.f32.mrb[0].mxu0
    %v2732 = vadd.f32 %v2691, %v2731
    %v2733 = vpop.f32.mrb[0].mxu0
    %v2734 = vpop.f32.mrb[0].mxu0
    %2735 = vdwg.mxu0
    %2736 = vmatprep.subr.bf16.mxu0 %v1205
    %2737 = vmatpush1.bf16.msra.mxu0 %v1204
    %2738 = vmatprep.subr.bf16.mxu0 %v1213
    %2739 = vmatpush1.bf16.msra.mxu0 %v1212
    %2740 = vmatprep.subr.bf16.mxu0 %v1221
    %2741 = vmatpush1.bf16.msra.mxu0 %v1220
    %2742 = vmatprep.subr.bf16.mxu0 %v1229
    %2743 = vmatpush1.bf16.msra.mxu0 %v1228
    %2744 = vmatprep.subr.bf16.mxu0 %v1237
    %2745 = vmatpush1.bf16.msra.mxu0 %v1236
    %2746 = vmatprep.subr.bf16.mxu0 %v1245
    %2747 = vmatpush1.bf16.msra.mxu0 %v1244
    %2748 = vmatprep.subr.bf16.mxu0 %v1253
    %2749 = vmatpush1.bf16.msra.mxu0 %v1252
    %2750 = vmatprep.subr.bf16.mxu0 %v1261
    %2751 = vmatpush1.bf16.msra.mxu0 %v1260
    %2752 = vmatprep.subr.bf16.mxu0 %v1269
    %2753 = vmatpush1.bf16.msra.mxu0 %v1268
    %2754 = vmatprep.subr.bf16.mxu0 %v1277
    %2755 = vmatpush1.bf16.msra.mxu0 %v1276
    %2756 = vmatprep.subr.bf16.mxu0 %v1285
    %2757 = vmatpush1.bf16.msra.mxu0 %v1284
    %2758 = vmatprep.subr.bf16.mxu0 %v1293
    %2759 = vmatpush1.bf16.msra.mxu0 %v1292
    %2760 = vmatprep.subr.bf16.mxu0 %v1301
    %2761 = vmatpush1.bf16.msra.mxu0 %v1300
    %2762 = vmatprep.subr.bf16.mxu0 %v1309
    %2763 = vmatpush1.bf16.msra.mxu0 %v1308
    %2764 = vmatprep.subr.bf16.mxu0 %v1317
    %2765 = vmatpush1.bf16.msra.mxu0 %v1316
    %2766 = vmatprep.subr.bf16.mxu0 %v1325
    %2767 = vmatpush1.bf16.msra.mxu0 %v1324
    %2768 = vmatprep.mubr.bf16.mxu0 %v1606
    %2769 = vmatmul.mubr.bf16.gmra.mrb[0].mxu0 %v1605
    %v2770 = vpop.f32.mrb[0].mxu0
    %v2771 = vadd.f32 %v2730, %v2770
    %v2772 = vpop.f32.mrb[0].mxu0
    %v2773 = vadd.f32 %v2732, %v2772
    %v2774 = vpop.f32.mrb[0].mxu0
    %v2775 = vpop.f32.mrb[0].mxu0
    %2776 = vdwg.mxu0
    %2777 = vmatprep.subr.bf16.mxu0 %v1333
    %2778 = vmatpush1.bf16.msra.mxu0 %v1332
    %2779 = vmatprep.subr.bf16.mxu0 %v1341
    %2780 = vmatpush1.bf16.msra.mxu0 %v1340
    %2781 = vmatprep.subr.bf16.mxu0 %v1349
    %2782 = vmatpush1.bf16.msra.mxu0 %v1348
    %2783 = vmatprep.subr.bf16.mxu0 %v1357
    %2784 = vmatpush1.bf16.msra.mxu0 %v1356
    %2785 = vmatprep.subr.bf16.mxu0 %v1365
    %2786 = vmatpush1.bf16.msra.mxu0 %v1364
    %2787 = vmatprep.subr.bf16.mxu0 %v1373
    %2788 = vmatpush1.bf16.msra.mxu0 %v1372
    %2789 = vmatprep.subr.bf16.mxu0 %v1381
    %2790 = vmatpush1.bf16.msra.mxu0 %v1380
    %2791 = vmatprep.subr.bf16.mxu0 %v1389
    %2792 = vmatpush1.bf16.msra.mxu0 %v1388
    %2793 = vmatprep.subr.bf16.mxu0 %v1397
    %2794 = vmatpush1.bf16.msra.mxu0 %v1396
    %2795 = vmatprep.subr.bf16.mxu0 %v1405
    %2796 = vmatpush1.bf16.msra.mxu0 %v1404
    %2797 = vmatprep.subr.bf16.mxu0 %v1413
    %2798 = vmatpush1.bf16.msra.mxu0 %v1412
    %2799 = vmatprep.subr.bf16.mxu0 %v1421
    %2800 = vmatpush1.bf16.msra.mxu0 %v1420
    %2801 = vmatprep.subr.bf16.mxu0 %v1429
    %2802 = vmatpush1.bf16.msra.mxu0 %v1428
    %2803 = vmatprep.subr.bf16.mxu0 %v1437
    %2804 = vmatpush1.bf16.msra.mxu0 %v1436
    %2805 = vmatprep.subr.bf16.mxu0 %v1445
    %2806 = vmatpush1.bf16.msra.mxu0 %v1444
    %2807 = vmatprep.subr.bf16.mxu0 %v1453
    %2808 = vmatpush1.bf16.msra.mxu0 %v1452
    %2809 = vmatprep.mubr.bf16.mxu0 %v1608
    %2810 = vmatmul.mubr.bf16.gmra.mrb[0].mxu0 %v1607
    %v2811 = vpop.f32.mrb[0].mxu0
    %v2812 = vadd.f32 %v2771, %v2811
    %v2813 = vpop.f32.mrb[0].mxu0
    %v2814 = vadd.f32 %v2773, %v2813
    %v2815 = vpop.f32.mrb[0].mxu0
    %v2816 = vpop.f32.mrb[0].mxu0
    %2817 = vdwg.mxu0
    %2818 = vmatprep.subr.bf16.mxu0 %v1461
    %2819 = vmatpush1.bf16.msra.mxu0 %v1460
    %2820 = vmatprep.subr.bf16.mxu0 %v1469
    %2821 = vmatpush1.bf16.msra.mxu0 %v1468
    %2822 = vmatprep.subr.bf16.mxu0 %v1477
    %2823 = vmatpush1.bf16.msra.mxu0 %v1476
    %2824 = vmatprep.subr.bf16.mxu0 %v1485
    %2825 = vmatpush1.bf16.msra.mxu0 %v1484
    %2826 = vmatprep.subr.bf16.mxu0 %v1493
    %2827 = vmatpush1.bf16.msra.mxu0 %v1492
    %2828 = vmatprep.subr.bf16.mxu0 %v1501
    %2829 = vmatpush1.bf16.msra.mxu0 %v1500
    %2830 = vmatprep.subr.bf16.mxu0 %v1509
    %2831 = vmatpush1.bf16.msra.mxu0 %v1508
    %2832 = vmatprep.subr.bf16.mxu0 %v1517
    %2833 = vmatpush1.bf16.msra.mxu0 %v1516
    %2834 = vmatprep.subr.bf16.mxu0 0
    %2835 = vmatpush1.bf16.msra.mxu0 0
    %2836 = vmatprep.subr.bf16.mxu0 0
    %2837 = vmatpush1.bf16.msra.mxu0 0
    %2838 = vmatprep.subr.bf16.mxu0 0
    %2839 = vmatpush1.bf16.msra.mxu0 0
    %2840 = vmatprep.subr.bf16.mxu0 0
    %2841 = vmatpush1.bf16.msra.mxu0 0
    %2842 = vmatprep.subr.bf16.mxu0 0
    %2843 = vmatpush1.bf16.msra.mxu0 0
    %2844 = vmatprep.subr.bf16.mxu0 0
    %2845 = vmatpush1.bf16.msra.mxu0 0
    %2846 = vmatprep.subr.bf16.mxu0 0
    %2847 = vmatpush1.bf16.msra.mxu0 0
    %2848 = vmatprep.subr.bf16.mxu0 0
    %2849 = vmatpush1.bf16.msra.mxu0 0
    %2850 = vmatprep.mubr.bf16.mxu0 0
    %2851 = vmatmul.mubr.bf16.gmra.mrb[0].mxu0 %v1609
    %v2852 = vpop.f32.mrb[0].mxu0
    %v2853 = vadd.f32 %v2812, %v2852
    %v2854 = vpop.f32.mrb[0].mxu0
    %v2855 = vadd.f32 %v2814, %v2854
    %v2856 = vpop.f32.mrb[0].mxu0
    %v2857 = vpop.f32.mrb[0].mxu0
    %2858 = vdwg.mxu0
    %2859 = vmatprep.subr.bf16.mxu0 %v311
    %2860 = vmatpush1.bf16.msra.mxu0 %v310
    %2861 = vmatprep.subr.bf16.mxu0 %v319
    %2862 = vmatpush1.bf16.msra.mxu0 %v318
    %2863 = vmatprep.subr.bf16.mxu0 %v327
    %2864 = vmatpush1.bf16.msra.mxu0 %v326
    %2865 = vmatprep.subr.bf16.mxu0 %v335
    %2866 = vmatpush1.bf16.msra.mxu0 %v334
    %2867 = vmatprep.subr.bf16.mxu0 %v343
    %2868 = vmatpush1.bf16.msra.mxu0 %v342
    %2869 = vmatprep.subr.bf16.mxu0 %v351
    %2870 = vmatpush1.bf16.msra.mxu0 %v350
    %2871 = vmatprep.subr.bf16.mxu0 %v359
    %2872 = vmatpush1.bf16.msra.mxu0 %v358
    %2873 = vmatprep.subr.bf16.mxu0 %v367
    %2874 = vmatpush1.bf16.msra.mxu0 %v366
    %2875 = vmatprep.subr.bf16.mxu0 %v375
    %2876 = vmatpush1.bf16.msra.mxu0 %v374
    %2877 = vmatprep.subr.bf16.mxu0 %v383
    %2878 = vmatpush1.bf16.msra.mxu0 %v382
    %2879 = vmatprep.subr.bf16.mxu0 %v391
    %2880 = vmatpush1.bf16.msra.mxu0 %v390
    %2881 = vmatprep.subr.bf16.mxu0 %v399
    %2882 = vmatpush1.bf16.msra.mxu0 %v398
    %2883 = vmatprep.subr.bf16.mxu0 %v407
    %2884 = vmatpush1.bf16.msra.mxu0 %v406
    %2885 = vmatprep.subr.bf16.mxu0 %v415
    %2886 = vmatpush1.bf16.msra.mxu0 %v414
    %2887 = vmatprep.subr.bf16.mxu0 %v423
    %2888 = vmatpush1.bf16.msra.mxu0 %v422
    %2889 = vmatprep.subr.bf16.mxu0 %v431
    %2890 = vmatpush1.bf16.msra.mxu0 %v430
    %2891 = vmatprep.mubr.bf16.mxu0 %v1592
    %2892 = vmatmul.mubr.bf16.gmra.mrb[0].mxu0 %v1591
    %v2893 = vpop.f32.mrb[0].mxu0
    %v2894 = vadd.f32 %v1549, %v2893
    %v2895 = vpop.f32.mrb[0].mxu0
    %v2896 = vadd.f32 %v1553, %v2895
    %v2897 = vpop.f32.mrb[0].mxu0
    %v2898 = vpop.f32.mrb[0].mxu0
    %2899 = vdwg.mxu0
    %2900 = vmatprep.subr.bf16.mxu0 %v439
    %2901 = vmatpush1.bf16.msra.mxu0 %v438
    %2902 = vmatprep.subr.bf16.mxu0 %v447
    %2903 = vmatpush1.bf16.msra.mxu0 %v446
    %2904 = vmatprep.subr.bf16.mxu0 %v455
    %2905 = vmatpush1.bf16.msra.mxu0 %v454
    %2906 = vmatprep.subr.bf16.mxu0 %v463
    %2907 = vmatpush1.bf16.msra.mxu0 %v462
    %2908 = vmatprep.subr.bf16.mxu0 %v471
    %2909 = vmatpush1.bf16.msra.mxu0 %v470
    %2910 = vmatprep.subr.bf16.mxu0 %v479
    %2911 = vmatpush1.bf16.msra.mxu0 %v478
    %2912 = vmatprep.subr.bf16.mxu0 %v487
    %2913 = vmatpush1.bf16.msra.mxu0 %v486
    %2914 = vmatprep.subr.bf16.mxu0 %v495
    %2915 = vmatpush1.bf16.msra.mxu0 %v494
    %2916 = vmatprep.subr.bf16.mxu0 %v503
    %2917 = vmatpush1.bf16.msra.mxu0 %v502
    %2918 = vmatprep.subr.bf16.mxu0 %v511
    %2919 = vmatpush1.bf16.msra.mxu0 %v510
    %2920 = vmatprep.subr.bf16.mxu0 %v519
    %2921 = vmatpush1.bf16.msra.mxu0 %v518
    %2922 = vmatprep.subr.bf16.mxu0 %v527
    %2923 = vmatpush1.bf16.msra.mxu0 %v526
    %2924 = vmatprep.subr.bf16.mxu0 %v535
    %2925 = vmatpush1.bf16.msra.mxu0 %v534
    %2926 = vmatprep.subr.bf16.mxu0 %v543
    %2927 = vmatpush1.bf16.msra.mxu0 %v542
    %2928 = vmatprep.subr.bf16.mxu0 %v551
    %2929 = vmatpush1.bf16.msra.mxu0 %v550
    %2930 = vmatprep.subr.bf16.mxu0 %v559
    %2931 = vmatpush1.bf16.msra.mxu0 %v558
    %2932 = vmatprep.mubr.bf16.mxu0 %v1594
    %2933 = vmatmul.mubr.bf16.gmra.mrb[0].mxu0 %v1593
    %v2934 = vpop.f32.mrb[0].mxu0
    %v2935 = vadd.f32 %v2894, %v2934
    %v2936 = vpop.f32.mrb[0].mxu0
    %v2937 = vadd.f32 %v2896, %v2936
    %v2938 = vpop.f32.mrb[0].mxu0
    %v2939 = vpop.f32.mrb[0].mxu0
    %2940 = vdwg.mxu0
    %2941 = vmatprep.subr.bf16.mxu0 %v567
    %2942 = vmatpush1.bf16.msra.mxu0 %v566
    %2943 = vmatprep.subr.bf16.mxu0 %v575
    %2944 = vmatpush1.bf16.msra.mxu0 %v574
    %2945 = vmatprep.subr.bf16.mxu0 %v583
    %2946 = vmatpush1.bf16.msra.mxu0 %v582
    %2947 = vmatprep.subr.bf16.mxu0 %v591
    %2948 = vmatpush1.bf16.msra.mxu0 %v590
    %2949 = vmatprep.subr.bf16.mxu0 %v599
    %2950 = vmatpush1.bf16.msra.mxu0 %v598
    %2951 = vmatprep.subr.bf16.mxu0 %v607
    %2952 = vmatpush1.bf16.msra.mxu0 %v606
    %2953 = vmatprep.subr.bf16.mxu0 %v615
    %2954 = vmatpush1.bf16.msra.mxu0 %v614
    %2955 = vmatprep.subr.bf16.mxu0 %v623
    %2956 = vmatpush1.bf16.msra.mxu0 %v622
    %2957 = vmatprep.subr.bf16.mxu0 %v631
    %2958 = vmatpush1.bf16.msra.mxu0 %v630
    %2959 = vmatprep.subr.bf16.mxu0 %v639
    %2960 = vmatpush1.bf16.msra.mxu0 %v638
    %2961 = vmatprep.subr.bf16.mxu0 %v647
    %2962 = vmatpush1.bf16.msra.mxu0 %v646
    %2963 = vmatprep.subr.bf16.mxu0 %v655
    %2964 = vmatpush1.bf16.msra.mxu0 %v654
    %2965 = vmatprep.subr.bf16.mxu0 %v663
    %2966 = vmatpush1.bf16.msra.mxu0 %v662
    %2967 = vmatprep.subr.bf16.mxu0 %v671
    %2968 = vmatpush1.bf16.msra.mxu0 %v670
    %2969 = vmatprep.subr.bf16.mxu0 %v679
    %2970 = vmatpush1.bf16.msra.mxu0 %v678
    %2971 = vmatprep.subr.bf16.mxu0 %v687
    %2972 = vmatpush1.bf16.msra.mxu0 %v686
    %2973 = vmatprep.mubr.bf16.mxu0 %v1596
    %2974 = vmatmul.mubr.bf16.gmra.mrb[0].mxu0 %v1595
    %v2975 = vpop.f32.mrb[0].mxu0
    %v2976 = vadd.f32 %v2935, %v2975
    %v2977 = vpop.f32.mrb[0].mxu0
    %v2978 = vadd.f32 %v2937, %v2977
    %v2979 = vpop.f32.mrb[0].mxu0
    %v2980 = vpop.f32.mrb[0].mxu0
    %2981 = vdwg.mxu0
    %2982 = vmatprep.subr.bf16.mxu0 %v695
    %2983 = vmatpush1.bf16.msra.mxu0 %v694
    %2984 = vmatprep.subr.bf16.mxu0 %v703
    %2985 = vmatpush1.bf16.msra.mxu0 %v702
    %2986 = vmatprep.subr.bf16.mxu0 %v711
    %2987 = vmatpush1.bf16.msra.mxu0 %v710
    %2988 = vmatprep.subr.bf16.mxu0 %v719
    %2989 = vmatpush1.bf16.msra.mxu0 %v718
    %2990 = vmatprep.subr.bf16.mxu0 %v727
    %2991 = vmatpush1.bf16.msra.mxu0 %v726
    %2992 = vmatprep.subr.bf16.mxu0 %v735
    %2993 = vmatpush1.bf16.msra.mxu0 %v734
    %2994 = vmatprep.subr.bf16.mxu0 %v743
    %2995 = vmatpush1.bf16.msra.mxu0 %v742
    %2996 = vmatprep.subr.bf16.mxu0 %v751
    %2997 = vmatpush1.bf16.msra.mxu0 %v750
    %2998 = vmatprep.subr.bf16.mxu0 %v759
    %2999 = vmatpush1.bf16.msra.mxu0 %v758
    %3000 = vmatprep.subr.bf16.mxu0 %v767
    %3001 = vmatpush1.bf16.msra.mxu0 %v766
    %3002 = vmatprep.subr.bf16.mxu0 %v775
    %3003 = vmatpush1.bf16.msra.mxu0 %v774
    %3004 = vmatprep.subr.bf16.mxu0 %v783
    %3005 = vmatpush1.bf16.msra.mxu0 %v782
    %3006 = vmatprep.subr.bf16.mxu0 %v791
    %3007 = vmatpush1.bf16.msra.mxu0 %v790
    %3008 = vmatprep.subr.bf16.mxu0 %v799
    %3009 = vmatpush1.bf16.msra.mxu0 %v798
    %3010 = vmatprep.subr.bf16.mxu0 %v807
    %3011 = vmatpush1.bf16.msra.mxu0 %v806
    %3012 = vmatprep.subr.bf16.mxu0 %v815
    %3013 = vmatpush1.bf16.msra.mxu0 %v814
    %3014 = vmatprep.mubr.bf16.mxu0 %v1598
    %3015 = vmatmul.mubr.bf16.gmra.mrb[0].mxu0 %v1597
    %v3016 = vpop.f32.mrb[0].mxu0
    %v3017 = vadd.f32 %v2976, %v3016
    %v3018 = vpop.f32.mrb[0].mxu0
    %v3019 = vadd.f32 %v2978, %v3018
    %v3020 = vpop.f32.mrb[0].mxu0
    %v3021 = vpop.f32.mrb[0].mxu0
    %3022 = vdwg.mxu0
    %3023 = vmatprep.subr.bf16.mxu0 %v823
    %3024 = vmatpush1.bf16.msra.mxu0 %v822
    %3025 = vmatprep.subr.bf16.mxu0 %v831
    %3026 = vmatpush1.bf16.msra.mxu0 %v830
    %3027 = vmatprep.subr.bf16.mxu0 %v839
    %3028 = vmatpush1.bf16.msra.mxu0 %v838
    %3029 = vmatprep.subr.bf16.mxu0 %v847
    %3030 = vmatpush1.bf16.msra.mxu0 %v846
    %3031 = vmatprep.subr.bf16.mxu0 %v855
    %3032 = vmatpush1.bf16.msra.mxu0 %v854
    %3033 = vmatprep.subr.bf16.mxu0 %v863
    %3034 = vmatpush1.bf16.msra.mxu0 %v862
    %3035 = vmatprep.subr.bf16.mxu0 %v871
    %3036 = vmatpush1.bf16.msra.mxu0 %v870
    %3037 = vmatprep.subr.bf16.mxu0 %v879
    %3038 = vmatpush1.bf16.msra.mxu0 %v878
    %3039 = vmatprep.subr.bf16.mxu0 %v887
    %3040 = vmatpush1.bf16.msra.mxu0 %v886
    %3041 = vmatprep.subr.bf16.mxu0 %v895
    %3042 = vmatpush1.bf16.msra.mxu0 %v894
    %3043 = vmatprep.subr.bf16.mxu0 %v903
    %3044 = vmatpush1.bf16.msra.mxu0 %v902
    %3045 = vmatprep.subr.bf16.mxu0 %v911
    %3046 = vmatpush1.bf16.msra.mxu0 %v910
    %3047 = vmatprep.subr.bf16.mxu0 %v919
    %3048 = vmatpush1.bf16.msra.mxu0 %v918
    %3049 = vmatprep.subr.bf16.mxu0 %v927
    %3050 = vmatpush1.bf16.msra.mxu0 %v926
    %3051 = vmatprep.subr.bf16.mxu0 %v935
    %3052 = vmatpush1.bf16.msra.mxu0 %v934
    %3053 = vmatprep.subr.bf16.mxu0 %v943
    %3054 = vmatpush1.bf16.msra.mxu0 %v942
    %3055 = vmatprep.mubr.bf16.mxu0 %v1600
    %3056 = vmatmul.mubr.bf16.gmra.mrb[0].mxu0 %v1599
    %v3057 = vpop.f32.mrb[0].mxu0
    %v3058 = vadd.f32 %v3017, %v3057
    %v3059 = vpop.f32.mrb[0].mxu0
    %v3060 = vadd.f32 %v3019, %v3059
    %v3061 = vpop.f32.mrb[0].mxu0
    %v3062 = vpop.f32.mrb[0].mxu0
    %3063 = vdwg.mxu0
    %3064 = vmatprep.subr.bf16.mxu0 %v951
    %3065 = vmatpush1.bf16.msra.mxu0 %v950
    %3066 = vmatprep.subr.bf16.mxu0 %v959
    %3067 = vmatpush1.bf16.msra.mxu0 %v958
    %3068 = vmatprep.subr.bf16.mxu0 %v967
    %3069 = vmatpush1.bf16.msra.mxu0 %v966
    %3070 = vmatprep.subr.bf16.mxu0 %v975
    %3071 = vmatpush1.bf16.msra.mxu0 %v974
    %3072 = vmatprep.subr.bf16.mxu0 %v983
    %3073 = vmatpush1.bf16.msra.mxu0 %v982
    %3074 = vmatprep.subr.bf16.mxu0 %v991
    %3075 = vmatpush1.bf16.msra.mxu0 %v990
    %3076 = vmatprep.subr.bf16.mxu0 %v999
    %3077 = vmatpush1.bf16.msra.mxu0 %v998
    %3078 = vmatprep.subr.bf16.mxu0 %v1007
    %3079 = vmatpush1.bf16.msra.mxu0 %v1006
    %3080 = vmatprep.subr.bf16.mxu0 %v1015
    %3081 = vmatpush1.bf16.msra.mxu0 %v1014
    %3082 = vmatprep.subr.bf16.mxu0 %v1023
    %3083 = vmatpush1.bf16.msra.mxu0 %v1022
    %3084 = vmatprep.subr.bf16.mxu0 %v1031
    %3085 = vmatpush1.bf16.msra.mxu0 %v1030
    %3086 = vmatprep.subr.bf16.mxu0 %v1039
    %3087 = vmatpush1.bf16.msra.mxu0 %v1038
    %3088 = vmatprep.subr.bf16.mxu0 %v1047
    %3089 = vmatpush1.bf16.msra.mxu0 %v1046
    %3090 = vmatprep.subr.bf16.mxu0 %v1055
    %3091 = vmatpush1.bf16.msra.mxu0 %v1054
    %3092 = vmatprep.subr.bf16.mxu0 %v1063
    %3093 = vmatpush1.bf16.msra.mxu0 %v1062
    %3094 = vmatprep.subr.bf16.mxu0 %v1071
    %3095 = vmatpush1.bf16.msra.mxu0 %v1070
    %3096 = vmatprep.mubr.bf16.mxu0 %v1602
    %3097 = vmatmul.mubr.bf16.gmra.mrb[0].mxu0 %v1601
    %v3098 = vpop.f32.mrb[0].mxu0
    %v3099 = vadd.f32 %v3058, %v3098
    %v3100 = vpop.f32.mrb[0].mxu0
    %v3101 = vadd.f32 %v3060, %v3100
    %v3102 = vpop.f32.mrb[0].mxu0
    %v3103 = vpop.f32.mrb[0].mxu0
    %3104 = vdwg.mxu0
    %3105 = vmatprep.subr.bf16.mxu0 %v1079
    %3106 = vmatpush1.bf16.msra.mxu0 %v1078
    %3107 = vmatprep.subr.bf16.mxu0 %v1087
    %3108 = vmatpush1.bf16.msra.mxu0 %v1086
    %3109 = vmatprep.subr.bf16.mxu0 %v1095
    %3110 = vmatpush1.bf16.msra.mxu0 %v1094
    %3111 = vmatprep.subr.bf16.mxu0 %v1103
    %3112 = vmatpush1.bf16.msra.mxu0 %v1102
    %3113 = vmatprep.subr.bf16.mxu0 %v1111
    %3114 = vmatpush1.bf16.msra.mxu0 %v1110
    %3115 = vmatprep.subr.bf16.mxu0 %v1119
    %3116 = vmatpush1.bf16.msra.mxu0 %v1118
    %3117 = vmatprep.subr.bf16.mxu0 %v1127
    %3118 = vmatpush1.bf16.msra.mxu0 %v1126
    %3119 = vmatprep.subr.bf16.mxu0 %v1135
    %3120 = vmatpush1.bf16.msra.mxu0 %v1134
    %3121 = vmatprep.subr.bf16.mxu0 %v1143
    %3122 = vmatpush1.bf16.msra.mxu0 %v1142
    %3123 = vmatprep.subr.bf16.mxu0 %v1151
    %3124 = vmatpush1.bf16.msra.mxu0 %v1150
    %3125 = vmatprep.subr.bf16.mxu0 %v1159
    %3126 = vmatpush1.bf16.msra.mxu0 %v1158
    %3127 = vmatprep.subr.bf16.mxu0 %v1167
    %3128 = vmatpush1.bf16.msra.mxu0 %v1166
    %3129 = vmatprep.subr.bf16.mxu0 %v1175
    %3130 = vmatpush1.bf16.msra.mxu0 %v1174
    %3131 = vmatprep.subr.bf16.mxu0 %v1183
    %3132 = vmatpush1.bf16.msra.mxu0 %v1182
    %3133 = vmatprep.subr.bf16.mxu0 %v1191
    %3134 = vmatpush1.bf16.msra.mxu0 %v1190
    %3135 = vmatprep.subr.bf16.mxu0 %v1199
    %3136 = vmatpush1.bf16.msra.mxu0 %v1198
    %3137 = vmatprep.mubr.bf16.mxu0 %v1604
    %3138 = vmatmul.mubr.bf16.gmra.mrb[0].mxu0 %v1603
    %v3139 = vpop.f32.mrb[0].mxu0
    %v3140 = vadd.f32 %v3099, %v3139
    %v3141 = vpop.f32.mrb[0].mxu0
    %v3142 = vadd.f32 %v3101, %v3141
    %v3143 = vpop.f32.mrb[0].mxu0
    %v3144 = vpop.f32.mrb[0].mxu0
    %3145 = vdwg.mxu0
    %3146 = vmatprep.subr.bf16.mxu0 %v1207
    %3147 = vmatpush1.bf16.msra.mxu0 %v1206
    %3148 = vmatprep.subr.bf16.mxu0 %v1215
    %3149 = vmatpush1.bf16.msra.mxu0 %v1214
    %3150 = vmatprep.subr.bf16.mxu0 %v1223
    %3151 = vmatpush1.bf16.msra.mxu0 %v1222
    %3152 = vmatprep.subr.bf16.mxu0 %v1231
    %3153 = vmatpush1.bf16.msra.mxu0 %v1230
    %3154 = vmatprep.subr.bf16.mxu0 %v1239
    %3155 = vmatpush1.bf16.msra.mxu0 %v1238
    %3156 = vmatprep.subr.bf16.mxu0 %v1247
    %3157 = vmatpush1.bf16.msra.mxu0 %v1246
    %3158 = vmatprep.subr.bf16.mxu0 %v1255
    %3159 = vmatpush1.bf16.msra.mxu0 %v1254
    %3160 = vmatprep.subr.bf16.mxu0 %v1263
    %3161 = vmatpush1.bf16.msra.mxu0 %v1262
    %3162 = vmatprep.subr.bf16.mxu0 %v1271
    %3163 = vmatpush1.bf16.msra.mxu0 %v1270
    %3164 = vmatprep.subr.bf16.mxu0 %v1279
    %3165 = vmatpush1.bf16.msra.mxu0 %v1278
    %3166 = vmatprep.subr.bf16.mxu0 %v1287
    %3167 = vmatpush1.bf16.msra.mxu0 %v1286
    %3168 = vmatprep.subr.bf16.mxu0 %v1295
    %3169 = vmatpush1.bf16.msra.mxu0 %v1294
    %3170 = vmatprep.subr.bf16.mxu0 %v1303
    %3171 = vmatpush1.bf16.msra.mxu0 %v1302
    %3172 = vmatprep.subr.bf16.mxu0 %v1311
    %3173 = vmatpush1.bf16.msra.mxu0 %v1310
    %3174 = vmatprep.subr.bf16.mxu0 %v1319
    %3175 = vmatpush1.bf16.msra.mxu0 %v1318
    %3176 = vmatprep.subr.bf16.mxu0 %v1327
    %3177 = vmatpush1.bf16.msra.mxu0 %v1326
    %3178 = vmatprep.mubr.bf16.mxu0 %v1606
    %3179 = vmatmul.mubr.bf16.gmra.mrb[0].mxu0 %v1605
    %v3180 = vpop.f32.mrb[0].mxu0
    %v3181 = vadd.f32 %v3140, %v3180
    %v3182 = vpop.f32.mrb[0].mxu0
    %v3183 = vadd.f32 %v3142, %v3182
    %v3184 = vpop.f32.mrb[0].mxu0
    %v3185 = vpop.f32.mrb[0].mxu0
    %3186 = vdwg.mxu0
    %3187 = vmatprep.subr.bf16.mxu0 %v1335
    %3188 = vmatpush1.bf16.msra.mxu0 %v1334
    %3189 = vmatprep.subr.bf16.mxu0 %v1343
    %3190 = vmatpush1.bf16.msra.mxu0 %v1342
    %3191 = vmatprep.subr.bf16.mxu0 %v1351
    %3192 = vmatpush1.bf16.msra.mxu0 %v1350
    %3193 = vmatprep.subr.bf16.mxu0 %v1359
    %3194 = vmatpush1.bf16.msra.mxu0 %v1358
    %3195 = vmatprep.subr.bf16.mxu0 %v1367
    %3196 = vmatpush1.bf16.msra.mxu0 %v1366
    %3197 = vmatprep.subr.bf16.mxu0 %v1375
    %3198 = vmatpush1.bf16.msra.mxu0 %v1374
    %3199 = vmatprep.subr.bf16.mxu0 %v1383
    %3200 = vmatpush1.bf16.msra.mxu0 %v1382
    %3201 = vmatprep.subr.bf16.mxu0 %v1391
    %3202 = vmatpush1.bf16.msra.mxu0 %v1390
    %3203 = vmatprep.subr.bf16.mxu0 %v1399
    %3204 = vmatpush1.bf16.msra.mxu0 %v1398
    %3205 = vmatprep.subr.bf16.mxu0 %v1407
    %3206 = vmatpush1.bf16.msra.mxu0 %v1406
    %3207 = vmatprep.subr.bf16.mxu0 %v1415
    %3208 = vmatpush1.bf16.msra.mxu0 %v1414
    %3209 = vmatprep.subr.bf16.mxu0 %v1423
    %3210 = vmatpush1.bf16.msra.mxu0 %v1422
    %3211 = vmatprep.subr.bf16.mxu0 %v1431
    %3212 = vmatpush1.bf16.msra.mxu0 %v1430
    %3213 = vmatprep.subr.bf16.mxu0 %v1439
    %3214 = vmatpush1.bf16.msra.mxu0 %v1438
    %3215 = vmatprep.subr.bf16.mxu0 %v1447
    %3216 = vmatpush1.bf16.msra.mxu0 %v1446
    %3217 = vmatprep.subr.bf16.mxu0 %v1455
    %3218 = vmatpush1.bf16.msra.mxu0 %v1454
    %3219 = vmatprep.mubr.bf16.mxu0 %v1608
    %3220 = vmatmul.mubr.bf16.gmra.mrb[0].mxu0 %v1607
    %v3221 = vpop.f32.mrb[0].mxu0
    %v3222 = vadd.f32 %v3181, %v3221
    %v3223 = vpop.f32.mrb[0].mxu0
    %v3224 = vadd.f32 %v3183, %v3223
    %v3225 = vpop.f32.mrb[0].mxu0
    %v3226 = vpop.f32.mrb[0].mxu0
    %3227 = vdwg.mxu0
    %3228 = vmatprep.subr.bf16.mxu0 %v1463
    %3229 = vmatpush1.bf16.msra.mxu0 %v1462
    %3230 = vmatprep.subr.bf16.mxu0 %v1471
    %3231 = vmatpush1.bf16.msra.mxu0 %v1470
    %3232 = vmatprep.subr.bf16.mxu0 %v1479
    %3233 = vmatpush1.bf16.msra.mxu0 %v1478
    %3234 = vmatprep.subr.bf16.mxu0 %v1487
    %3235 = vmatpush1.bf16.msra.mxu0 %v1486
    %3236 = vmatprep.subr.bf16.mxu0 %v1495
    %3237 = vmatpush1.bf16.msra.mxu0 %v1494
    %3238 = vmatprep.subr.bf16.mxu0 %v1503
    %3239 = vmatpush1.bf16.msra.mxu0 %v1502
    %3240 = vmatprep.subr.bf16.mxu0 %v1511
    %3241 = vmatpush1.bf16.msra.mxu0 %v1510
    %3242 = vmatprep.subr.bf16.mxu0 %v1519
    %3243 = vmatpush1.bf16.msra.mxu0 %v1518
    %3244 = vmatprep.subr.bf16.mxu0 0
    %3245 = vmatpush1.bf16.msra.mxu0 0
    %3246 = vmatprep.subr.bf16.mxu0 0
    %3247 = vmatpush1.bf16.msra.mxu0 0
    %3248 = vmatprep.subr.bf16.mxu0 0
    %3249 = vmatpush1.bf16.msra.mxu0 0
    %3250 = vmatprep.subr.bf16.mxu0 0
    %3251 = vmatpush1.bf16.msra.mxu0 0
    %3252 = vmatprep.subr.bf16.mxu0 0
    %3253 = vmatpush1.bf16.msra.mxu0 0
    %3254 = vmatprep.subr.bf16.mxu0 0
    %3255 = vmatpush1.bf16.msra.mxu0 0
    %3256 = vmatprep.subr.bf16.mxu0 0
    %3257 = vmatpush1.bf16.msra.mxu0 0
    %3258 = vmatprep.subr.bf16.mxu0 0
    %3259 = vmatpush1.bf16.msra.mxu0 0
    %3260 = vmatprep.mubr.bf16.mxu0 0
    %3261 = vmatmul.mubr.bf16.gmra.mrb[0].mxu0 %v1609
    %v3262 = vpop.f32.mrb[0].mxu0
    %v3263 = vadd.f32 %v3222, %v3262
    %v3264 = vpop.f32.mrb[0].mxu0
    %v3265 = vadd.f32 %v3224, %v3264
    %v3266 = vpop.f32.mrb[0].mxu0
    %v3267 = vpop.f32.mrb[0].mxu0
    %3268 = vdwg.mxu0
    %v3269 = vmax.f32 %v2033, 0.0
    %v3270 = vmax.f32 %v2035, 0.0
    %v3271 = vmax.f32 %v2443, 0.0
    %v3272 = vmax.f32 %v2445, 0.0
    %v3273 = vmax.f32 %v2853, 0.0
    %v3274 = vmax.f32 %v2855, 0.0
    %v3275 = vmax.f32 %v3263, 0.0
    %v3276 = vmax.f32 %v3265, 0.0
    %s3277 = smul.u32 4, 128
    %s3278 = smul.u32 %s3277, 8
    %s3279 = sshll.u32 %s3278, 4
    %3280 = dma.done %s142, %s3279
    %v3281 = vpack.c.bf16 %v3269, %v3269
    %v3282 = vpack.c.bf16 %v3270, %v3270
    %v3283 = vpack.c.bf16 %v3271, %v3271
    %v3284 = vpack.c.bf16 %v3272, %v3272
    %v3285 = vpack.c.bf16 %v3273, %v3273
    %v3286 = vpack.c.bf16 %v3274, %v3274
    %v3287 = vpack.c.bf16 %v3275, %v3275
    %v3288 = vpack.c.bf16 %v3276, %v3276
    %v3289 = vld [vmem:[#allocation3] sm:$0xff]
    %v3290 = vld [vmem:[#allocation3 + $0x8] sm:$0xff]
    %v3291 = vld [vmem:[#allocation3 + $0x10] sm:$0xff]
    %v3292 = vld [vmem:[#allocation3 + $0x18] sm:$0xff]
    %v3293 = vld [vmem:[#allocation3 + $0x20] sm:$0xff]
    %v3294 = vld [vmem:[#allocation3 + $0x28] sm:$0xff]
    %v3295 = vld [vmem:[#allocation3 + $0x30] sm:$0xff]
    %v3296 = vld [vmem:[#allocation3 + $0x38] sm:$0xff]
    %v3297 = vld [vmem:[#allocation3 + $0x40] sm:$0xff]
    %v3298 = vld [vmem:[#allocation3 + $0x48] sm:$0xff]
    %v3299 = vld [vmem:[#allocation3 + $0x50] sm:$0xff]
    %v3300 = vld [vmem:[#allocation3 + $0x58] sm:$0xff]
    %v3301 = vld [vmem:[#allocation3 + $0x60] sm:$0xff]
    %v3302 = vld [vmem:[#allocation3 + $0x68] sm:$0xff]
    %v3303 = vld [vmem:[#allocation3 + $0x70] sm:$0xff]
    %v3304 = vld [vmem:[#allocation3 + $0x78] sm:$0xff]
    %v3305 = vld [vmem:[#allocation3 + $0x80] sm:$0xff]
    %v3306 = vld [vmem:[#allocation3 + $0x88] sm:$0xff]
    %v3307 = vld [vmem:[#allocation3 + $0x90] sm:$0xff]
    %v3308 = vld [vmem:[#allocation3 + $0x98] sm:$0xff]
    %v3309 = vld [vmem:[#allocation3 + $0xa0] sm:$0xff]
    %v3310 = vld [vmem:[#allocation3 + $0xa8] sm:$0xff]
    %v3311 = vld [vmem:[#allocation3 + $0xb0] sm:$0xff]
    %v3312 = vld [vmem:[#allocation3 + $0xb8] sm:$0xff]
    %v3313 = vld [vmem:[#allocation3 + $0xc0] sm:$0xff]
    %v3314 = vld [vmem:[#allocation3 + $0xc8] sm:$0xff]
    %v3315 = vld [vmem:[#allocation3 + $0xd0] sm:$0xff]
    %v3316 = vld [vmem:[#allocation3 + $0xd8] sm:$0xff]
    %v3317 = vld [vmem:[#allocation3 + $0xe0] sm:$0xff]
    %v3318 = vld [vmem:[#allocation3 + $0xe8] sm:$0xff]
    %v3319 = vld [vmem:[#allocation3 + $0xf0] sm:$0xff]
    %v3320 = vld [vmem:[#allocation3 + $0xf8] sm:$0xff]
    %v3321 = vld [vmem:[#allocation3 + $0x100] sm:$0xff]
    %v3322 = vld [vmem:[#allocation3 + $0x108] sm:$0xff]
    %v3323 = vld [vmem:[#allocation3 + $0x110] sm:$0xff]
    %v3324 = vld [vmem:[#allocation3 + $0x118] sm:$0xff]
    %v3325 = vld [vmem:[#allocation3 + $0x120] sm:$0xff]
    %v3326 = vld [vmem:[#allocation3 + $0x128] sm:$0xff]
    %v3327 = vld [vmem:[#allocation3 + $0x130] sm:$0xff]
    %v3328 = vld [vmem:[#allocation3 + $0x138] sm:$0xff]
    %v3329 = vld [vmem:[#allocation3 + $0x140] sm:$0xff]
    %v3330 = vld [vmem:[#allocation3 + $0x148] sm:$0xff]
    %v3331 = vld [vmem:[#allocation3 + $0x150] sm:$0xff]
    %v3332 = vld [vmem:[#allocation3 + $0x158] sm:$0xff]
    %v3333 = vld [vmem:[#allocation3 + $0x160] sm:$0xff]
    %v3334 = vld [vmem:[#allocation3 + $0x168] sm:$0xff]
    %v3335 = vld [vmem:[#allocation3 + $0x170] sm:$0xff]
    %v3336 = vld [vmem:[#allocation3 + $0x178] sm:$0xff]
    %v3337 = vld [vmem:[#allocation3 + $0x180] sm:$0xff]
    %v3338 = vld [vmem:[#allocation3 + $0x188] sm:$0xff]
    %v3339 = vld [vmem:[#allocation3 + $0x190] sm:$0xff]
    %v3340 = vld [vmem:[#allocation3 + $0x198] sm:$0xff]
    %v3341 = vld [vmem:[#allocation3 + $0x1a0] sm:$0xff]
    %v3342 = vld [vmem:[#allocation3 + $0x1a8] sm:$0xff]
    %v3343 = vld [vmem:[#allocation3 + $0x1b0] sm:$0xff]
    %v3344 = vld [vmem:[#allocation3 + $0x1b8] sm:$0xff]
    %v3345 = vld [vmem:[#allocation3 + $0x1c0] sm:$0xff]
    %v3346 = vld [vmem:[#allocation3 + $0x1c8] sm:$0xff]
    %v3347 = vld [vmem:[#allocation3 + $0x1d0] sm:$0xff]
    %v3348 = vld [vmem:[#allocation3 + $0x1d8] sm:$0xff]
    %v3349 = vld [vmem:[#allocation3 + $0x1e0] sm:$0xff]
    %v3350 = vld [vmem:[#allocation3 + $0x1e8] sm:$0xff]
    %v3351 = vld [vmem:[#allocation3 + $0x1f0] sm:$0xff]
    %v3352 = vld [vmem:[#allocation3 + $0x1f8] sm:$0xff]
    %v3353 = vld [vmem:[#allocation3 + $0x200] sm:$0xff]
    %v3354 = vld [vmem:[#allocation3 + $0x208] sm:$0xff]
    %v3355 = vld [vmem:[#allocation3 + $0x210] sm:$0xff]
    %v3356 = vld [vmem:[#allocation3 + $0x218] sm:$0xff]
    %v3357 = vld [vmem:[#allocation3 + $0x220] sm:$0xff]
    %v3358 = vld [vmem:[#allocation3 + $0x228] sm:$0xff]
    %v3359 = vld [vmem:[#allocation3 + $0x230] sm:$0xff]
    %v3360 = vld [vmem:[#allocation3 + $0x238] sm:$0xff]
    %v3361 = vld [vmem:[#allocation3 + $0x240] sm:$0xff]
    %v3362 = vld [vmem:[#allocation3 + $0x248] sm:$0xff]
    %v3363 = vld [vmem:[#allocation3 + $0x250] sm:$0xff]
    %v3364 = vld [vmem:[#allocation3 + $0x258] sm:$0xff]
    %v3365 = vld [vmem:[#allocation3 + $0x260] sm:$0xff]
    %v3366 = vld [vmem:[#allocation3 + $0x268] sm:$0xff]
    %v3367 = vld [vmem:[#allocation3 + $0x270] sm:$0xff]
    %v3368 = vld [vmem:[#allocation3 + $0x278] sm:$0xff]
    %v3369 = vld [vmem:[#allocation3 + $0x280] sm:$0xff]
    %v3370 = vld [vmem:[#allocation3 + $0x288] sm:$0xff]
    %v3371 = vld [vmem:[#allocation3 + $0x290] sm:$0xff]
    %v3372 = vld [vmem:[#allocation3 + $0x298] sm:$0xff]
    %v3373 = vld [vmem:[#allocation3 + $0x2a0] sm:$0xff]
    %v3374 = vld [vmem:[#allocation3 + $0x2a8] sm:$0xff]
    %v3375 = vld [vmem:[#allocation3 + $0x2b0] sm:$0xff]
    %v3376 = vld [vmem:[#allocation3 + $0x2b8] sm:$0xff]
    %v3377 = vld [vmem:[#allocation3 + $0x2c0] sm:$0xff]
    %v3378 = vld [vmem:[#allocation3 + $0x2c8] sm:$0xff]
    %v3379 = vld [vmem:[#allocation3 + $0x2d0] sm:$0xff]
    %v3380 = vld [vmem:[#allocation3 + $0x2d8] sm:$0xff]
    %v3381 = vld [vmem:[#allocation3 + $0x2e0] sm:$0xff]
    %v3382 = vld [vmem:[#allocation3 + $0x2e8] sm:$0xff]
    %v3383 = vld [vmem:[#allocation3 + $0x2f0] sm:$0xff]
    %v3384 = vld [vmem:[#allocation3 + $0x2f8] sm:$0xff]
    %v3385 = vld [vmem:[#allocation3 + $0x300] sm:$0xff]
    %v3386 = vld [vmem:[#allocation3 + $0x308] sm:$0xff]
    %v3387 = vld [vmem:[#allocation3 + $0x310] sm:$0xff]
    %v3388 = vld [vmem:[#allocation3 + $0x318] sm:$0xff]
    %v3389 = vld [vmem:[#allocation3 + $0x320] sm:$0xff]
    %v3390 = vld [vmem:[#allocation3 + $0x328] sm:$0xff]
    %v3391 = vld [vmem:[#allocation3 + $0x330] sm:$0xff]
    %v3392 = vld [vmem:[#allocation3 + $0x338] sm:$0xff]
    %v3393 = vld [vmem:[#allocation3 + $0x340] sm:$0xff]
    %v3394 = vld [vmem:[#allocation3 + $0x348] sm:$0xff]
    %v3395 = vld [vmem:[#allocation3 + $0x350] sm:$0xff]
    %v3396 = vld [vmem:[#allocation3 + $0x358] sm:$0xff]
    %v3397 = vld [vmem:[#allocation3 + $0x360] sm:$0xff]
    %v3398 = vld [vmem:[#allocation3 + $0x368] sm:$0xff]
    %v3399 = vld [vmem:[#allocation3 + $0x370] sm:$0xff]
    %v3400 = vld [vmem:[#allocation3 + $0x378] sm:$0xff]
    %v3401 = vld [vmem:[#allocation3 + $0x380] sm:$0xff]
    %v3402 = vld [vmem:[#allocation3 + $0x388] sm:$0xff]
    %v3403 = vld [vmem:[#allocation3 + $0x390] sm:$0xff]
    %v3404 = vld [vmem:[#allocation3 + $0x398] sm:$0xff]
    %v3405 = vld [vmem:[#allocation3 + $0x3a0] sm:$0xff]
    %v3406 = vld [vmem:[#allocation3 + $0x3a8] sm:$0xff]
    %v3407 = vld [vmem:[#allocation3 + $0x3b0] sm:$0xff]
    %v3408 = vld [vmem:[#allocation3 + $0x3b8] sm:$0xff]
    %v3409 = vld [vmem:[#allocation3 + $0x3c0] sm:$0xff]
    %v3410 = vld [vmem:[#allocation3 + $0x3c8] sm:$0xff]
    %v3411 = vld [vmem:[#allocation3 + $0x3d0] sm:$0xff]
    %v3412 = vld [vmem:[#allocation3 + $0x3d8] sm:$0xff]
    %v3413 = vld [vmem:[#allocation3 + $0x3e0] sm:$0xff]
    %v3414 = vld [vmem:[#allocation3 + $0x3e8] sm:$0xff]
    %v3415 = vld [vmem:[#allocation3 + $0x3f0] sm:$0xff]
    %v3416 = vld [vmem:[#allocation3 + $0x3f8] sm:$0xff]
    %v3417 = vld [vmem:[#allocation3 + $0x400] sm:$0xff]
    %v3418 = vld [vmem:[#allocation3 + $0x408] sm:$0xff]
    %v3419 = vld [vmem:[#allocation3 + $0x410] sm:$0xff]
    %v3420 = vld [vmem:[#allocation3 + $0x418] sm:$0xff]
    %v3421 = vld [vmem:[#allocation3 + $0x420] sm:$0xff]
    %v3422 = vld [vmem:[#allocation3 + $0x428] sm:$0xff]
    %v3423 = vld [vmem:[#allocation3 + $0x430] sm:$0xff]
    %v3424 = vld [vmem:[#allocation3 + $0x438] sm:$0xff]
    %v3425 = vld [vmem:[#allocation3 + $0x440] sm:$0xff]
    %v3426 = vld [vmem:[#allocation3 + $0x448] sm:$0xff]
    %v3427 = vld [vmem:[#allocation3 + $0x450] sm:$0xff]
    %v3428 = vld [vmem:[#allocation3 + $0x458] sm:$0xff]
    %v3429 = vld [vmem:[#allocation3 + $0x460] sm:$0xff]
    %v3430 = vld [vmem:[#allocation3 + $0x468] sm:$0xff]
    %v3431 = vld [vmem:[#allocation3 + $0x470] sm:$0xff]
    %v3432 = vld [vmem:[#allocation3 + $0x478] sm:$0xff]
    %v3433 = vld [vmem:[#allocation3 + $0x480] sm:$0xff]
    %v3434 = vld [vmem:[#allocation3 + $0x488] sm:$0xff]
    %v3435 = vld [vmem:[#allocation3 + $0x490] sm:$0xff]
    %v3436 = vld [vmem:[#allocation3 + $0x498] sm:$0xff]
    %v3437 = vld [vmem:[#allocation3 + $0x4a0] sm:$0xff]
    %v3438 = vld [vmem:[#allocation3 + $0x4a8] sm:$0xff]
    %v3439 = vld [vmem:[#allocation3 + $0x4b0] sm:$0xff]
    %v3440 = vld [vmem:[#allocation3 + $0x4b8] sm:$0xff]
    %v3441 = vld [vmem:[#allocation3 + $0x4c0] sm:$0xff]
    %v3442 = vld [vmem:[#allocation3 + $0x4c8] sm:$0xff]
    %v3443 = vld [vmem:[#allocation3 + $0x4d0] sm:$0xff]
    %v3444 = vld [vmem:[#allocation3 + $0x4d8] sm:$0xff]
    %v3445 = vld [vmem:[#allocation3 + $0x4e0] sm:$0xff]
    %v3446 = vld [vmem:[#allocation3 + $0x4e8] sm:$0xff]
    %v3447 = vld [vmem:[#allocation3 + $0x4f0] sm:$0xff]
    %v3448 = vld [vmem:[#allocation3 + $0x4f8] sm:$0xff]
    %v3449 = vld [vmem:[#allocation3 + $0x500] sm:$0xff]
    %v3450 = vld [vmem:[#allocation3 + $0x508] sm:$0xff]
    %v3451 = vld [vmem:[#allocation3 + $0x510] sm:$0xff]
    %v3452 = vld [vmem:[#allocation3 + $0x518] sm:$0xff]
    %v3453 = vld [vmem:[#allocation3 + $0x520] sm:$0xff]
    %v3454 = vld [vmem:[#allocation3 + $0x528] sm:$0xff]
    %v3455 = vld [vmem:[#allocation3 + $0x530] sm:$0xff]
    %v3456 = vld [vmem:[#allocation3 + $0x538] sm:$0xff]
    %v3457 = vld [vmem:[#allocation3 + $0x540] sm:$0xff]
    %v3458 = vld [vmem:[#allocation3 + $0x548] sm:$0xff]
    %v3459 = vld [vmem:[#allocation3 + $0x550] sm:$0xff]
    %v3460 = vld [vmem:[#allocation3 + $0x558] sm:$0xff]
    %v3461 = vld [vmem:[#allocation3 + $0x560] sm:$0xff]
    %v3462 = vld [vmem:[#allocation3 + $0x568] sm:$0xff]
    %v3463 = vld [vmem:[#allocation3 + $0x570] sm:$0xff]
    %v3464 = vld [vmem:[#allocation3 + $0x578] sm:$0xff]
    %v3465 = vld [vmem:[#allocation3 + $0x580] sm:$0xff]
    %v3466 = vld [vmem:[#allocation3 + $0x588] sm:$0xff]
    %v3467 = vld [vmem:[#allocation3 + $0x590] sm:$0xff]
    %v3468 = vld [vmem:[#allocation3 + $0x598] sm:$0xff]
    %v3469 = vld [vmem:[#allocation3 + $0x5a0] sm:$0xff]
    %v3470 = vld [vmem:[#allocation3 + $0x5a8] sm:$0xff]
    %v3471 = vld [vmem:[#allocation3 + $0x5b0] sm:$0xff]
    %v3472 = vld [vmem:[#allocation3 + $0x5b8] sm:$0xff]
    %v3473 = vld [vmem:[#allocation3 + $0x5c0] sm:$0xff]
    %v3474 = vld [vmem:[#allocation3 + $0x5c8] sm:$0xff]
    %v3475 = vld [vmem:[#allocation3 + $0x5d0] sm:$0xff]
    %v3476 = vld [vmem:[#allocation3 + $0x5d8] sm:$0xff]
    %v3477 = vld [vmem:[#allocation3 + $0x5e0] sm:$0xff]
    %v3478 = vld [vmem:[#allocation3 + $0x5e8] sm:$0xff]
    %v3479 = vld [vmem:[#allocation3 + $0x5f0] sm:$0xff]
    %v3480 = vld [vmem:[#allocation3 + $0x5f8] sm:$0xff]
    %v3481 = vld [vmem:[#allocation3 + $0x600] sm:$0xff]
    %v3482 = vld [vmem:[#allocation3 + $0x608] sm:$0xff]
    %v3483 = vld [vmem:[#allocation3 + $0x610] sm:$0xff]
    %v3484 = vld [vmem:[#allocation3 + $0x618] sm:$0xff]
    %v3485 = vld [vmem:[#allocation3 + $0x620] sm:$0xff]
    %v3486 = vld [vmem:[#allocation3 + $0x628] sm:$0xff]
    %v3487 = vld [vmem:[#allocation3 + $0x630] sm:$0xff]
    %v3488 = vld [vmem:[#allocation3 + $0x638] sm:$0xff]
    %v3489 = vld [vmem:[#allocation3 + $0x640] sm:$0xff]
    %v3490 = vld [vmem:[#allocation3 + $0x648] sm:$0xff]
    %v3491 = vld [vmem:[#allocation3 + $0x650] sm:$0xff]
    %v3492 = vld [vmem:[#allocation3 + $0x658] sm:$0xff]
    %v3493 = vld [vmem:[#allocation3 + $0x660] sm:$0xff]
    %v3494 = vld [vmem:[#allocation3 + $0x668] sm:$0xff]
    %v3495 = vld [vmem:[#allocation3 + $0x670] sm:$0xff]
    %v3496 = vld [vmem:[#allocation3 + $0x678] sm:$0xff]
    %v3497 = vld [vmem:[#allocation3 + $0x680] sm:$0xff]
    %v3498 = vld [vmem:[#allocation3 + $0x688] sm:$0xff]
    %v3499 = vld [vmem:[#allocation3 + $0x690] sm:$0xff]
    %v3500 = vld [vmem:[#allocation3 + $0x698] sm:$0xff]
    %v3501 = vld [vmem:[#allocation3 + $0x6a0] sm:$0xff]
    %v3502 = vld [vmem:[#allocation3 + $0x6a8] sm:$0xff]
    %v3503 = vld [vmem:[#allocation3 + $0x6b0] sm:$0xff]
    %v3504 = vld [vmem:[#allocation3 + $0x6b8] sm:$0xff]
    %v3505 = vld [vmem:[#allocation3 + $0x6c0] sm:$0xff]
    %v3506 = vld [vmem:[#allocation3 + $0x6c8] sm:$0xff]
    %v3507 = vld [vmem:[#allocation3 + $0x6d0] sm:$0xff]
    %v3508 = vld [vmem:[#allocation3 + $0x6d8] sm:$0xff]
    %v3509 = vld [vmem:[#allocation3 + $0x6e0] sm:$0xff]
    %v3510 = vld [vmem:[#allocation3 + $0x6e8] sm:$0xff]
    %v3511 = vld [vmem:[#allocation3 + $0x6f0] sm:$0xff]
    %v3512 = vld [vmem:[#allocation3 + $0x6f8] sm:$0xff]
    %v3513 = vld [vmem:[#allocation3 + $0x700] sm:$0xff]
    %v3514 = vld [vmem:[#allocation3 + $0x708] sm:$0xff]
    %v3515 = vld [vmem:[#allocation3 + $0x710] sm:$0xff]
    %v3516 = vld [vmem:[#allocation3 + $0x718] sm:$0xff]
    %v3517 = vld [vmem:[#allocation3 + $0x720] sm:$0xff]
    %v3518 = vld [vmem:[#allocation3 + $0x728] sm:$0xff]
    %v3519 = vld [vmem:[#allocation3 + $0x730] sm:$0xff]
    %v3520 = vld [vmem:[#allocation3 + $0x738] sm:$0xff]
    %v3521 = vld [vmem:[#allocation3 + $0x740] sm:$0xff]
    %v3522 = vld [vmem:[#allocation3 + $0x748] sm:$0xff]
    %v3523 = vld [vmem:[#allocation3 + $0x750] sm:$0xff]
    %v3524 = vld [vmem:[#allocation3 + $0x758] sm:$0xff]
    %v3525 = vld [vmem:[#allocation3 + $0x760] sm:$0xff]
    %v3526 = vld [vmem:[#allocation3 + $0x768] sm:$0xff]
    %v3527 = vld [vmem:[#allocation3 + $0x770] sm:$0xff]
    %v3528 = vld [vmem:[#allocation3 + $0x778] sm:$0xff]
    %v3529 = vld [vmem:[#allocation3 + $0x780] sm:$0xff]
    %v3530 = vld [vmem:[#allocation3 + $0x788] sm:$0xff]
    %v3531 = vld [vmem:[#allocation3 + $0x790] sm:$0xff]
    %v3532 = vld [vmem:[#allocation3 + $0x798] sm:$0xff]
    %v3533 = vld [vmem:[#allocation3 + $0x7a0] sm:$0xff]
    %v3534 = vld [vmem:[#allocation3 + $0x7a8] sm:$0xff]
    %v3535 = vld [vmem:[#allocation3 + $0x7b0] sm:$0xff]
    %v3536 = vld [vmem:[#allocation3 + $0x7b8] sm:$0xff]
    %v3537 = vld [vmem:[#allocation3 + $0x7c0] sm:$0xff]
    %v3538 = vld [vmem:[#allocation3 + $0x7c8] sm:$0xff]
    %v3539 = vld [vmem:[#allocation3 + $0x7d0] sm:$0xff]
    %v3540 = vld [vmem:[#allocation3 + $0x7d8] sm:$0xff]
    %v3541 = vld [vmem:[#allocation3 + $0x7e0] sm:$0xff]
    %v3542 = vld [vmem:[#allocation3 + $0x7e8] sm:$0xff]
    %v3543 = vld [vmem:[#allocation3 + $0x7f0] sm:$0xff]
    %v3544 = vld [vmem:[#allocation3 + $0x7f8] sm:$0xff]
    %v3545 = vld [vmem:[#allocation3 + $0x800] sm:$0xff]
    %v3546 = vld [vmem:[#allocation3 + $0x808] sm:$0xff]
    %v3547 = vld [vmem:[#allocation3 + $0x810] sm:$0xff]
    %v3548 = vld [vmem:[#allocation3 + $0x818] sm:$0xff]
    %v3549 = vld [vmem:[#allocation3 + $0x820] sm:$0xff]
    %v3550 = vld [vmem:[#allocation3 + $0x828] sm:$0xff]
    %v3551 = vld [vmem:[#allocation3 + $0x830] sm:$0xff]
    %v3552 = vld [vmem:[#allocation3 + $0x838] sm:$0xff]
    %v3553 = vld [vmem:[#allocation3 + $0x840] sm:$0xff]
    %v3554 = vld [vmem:[#allocation3 + $0x848] sm:$0xff]
    %v3555 = vld [vmem:[#allocation3 + $0x850] sm:$0xff]
    %v3556 = vld [vmem:[#allocation3 + $0x858] sm:$0xff]
    %v3557 = vld [vmem:[#allocation3 + $0x860] sm:$0xff]
    %v3558 = vld [vmem:[#allocation3 + $0x868] sm:$0xff]
    %v3559 = vld [vmem:[#allocation3 + $0x870] sm:$0xff]
    %v3560 = vld [vmem:[#allocation3 + $0x878] sm:$0xff]
    %v3561 = vld [vmem:[#allocation3 + $0x880] sm:$0xff]
    %v3562 = vld [vmem:[#allocation3 + $0x888] sm:$0xff]
    %v3563 = vld [vmem:[#allocation3 + $0x890] sm:$0xff]
    %v3564 = vld [vmem:[#allocation3 + $0x898] sm:$0xff]
    %v3565 = vld [vmem:[#allocation3 + $0x8a0] sm:$0xff]
    %v3566 = vld [vmem:[#allocation3 + $0x8a8] sm:$0xff]
    %v3567 = vld [vmem:[#allocation3 + $0x8b0] sm:$0xff]
    %v3568 = vld [vmem:[#allocation3 + $0x8b8] sm:$0xff]
    %v3569 = vld [vmem:[#allocation3 + $0x8c0] sm:$0xff]
    %v3570 = vld [vmem:[#allocation3 + $0x8c8] sm:$0xff]
    %v3571 = vld [vmem:[#allocation3 + $0x8d0] sm:$0xff]
    %v3572 = vld [vmem:[#allocation3 + $0x8d8] sm:$0xff]
    %v3573 = vld [vmem:[#allocation3 + $0x8e0] sm:$0xff]
    %v3574 = vld [vmem:[#allocation3 + $0x8e8] sm:$0xff]
    %v3575 = vld [vmem:[#allocation3 + $0x8f0] sm:$0xff]
    %v3576 = vld [vmem:[#allocation3 + $0x8f8] sm:$0xff]
    %v3577 = vld [vmem:[#allocation3 + $0x900] sm:$0xff]
    %v3578 = vld [vmem:[#allocation3 + $0x908] sm:$0xff]
    %v3579 = vld [vmem:[#allocation3 + $0x910] sm:$0xff]
    %v3580 = vld [vmem:[#allocation3 + $0x918] sm:$0xff]
    %v3581 = vld [vmem:[#allocation3 + $0x920] sm:$0xff]
    %v3582 = vld [vmem:[#allocation3 + $0x928] sm:$0xff]
    %v3583 = vld [vmem:[#allocation3 + $0x930] sm:$0xff]
    %v3584 = vld [vmem:[#allocation3 + $0x938] sm:$0xff]
    %v3585 = vld [vmem:[#allocation3 + $0x940] sm:$0xff]
    %v3586 = vld [vmem:[#allocation3 + $0x948] sm:$0xff]
    %v3587 = vld [vmem:[#allocation3 + $0x950] sm:$0xff]
    %v3588 = vld [vmem:[#allocation3 + $0x958] sm:$0xff]
    %v3589 = vld [vmem:[#allocation3 + $0x960] sm:$0xff]
    %v3590 = vld [vmem:[#allocation3 + $0x968] sm:$0xff]
    %v3591 = vld [vmem:[#allocation3 + $0x970] sm:$0xff]
    %v3592 = vld [vmem:[#allocation3 + $0x978] sm:$0xff]
    %v3593 = vld [vmem:[#allocation3 + $0x980] sm:$0xff]
    %v3594 = vld [vmem:[#allocation3 + $0x988] sm:$0xff]
    %v3595 = vld [vmem:[#allocation3 + $0x990] sm:$0xff]
    %v3596 = vld [vmem:[#allocation3 + $0x998] sm:$0xff]
    %v3597 = vld [vmem:[#allocation3 + $0x9a0] sm:$0xff]
    %v3598 = vld [vmem:[#allocation3 + $0x9a8] sm:$0xff]
    %v3599 = vld [vmem:[#allocation3 + $0x9b0] sm:$0xff]
    %v3600 = vld [vmem:[#allocation3 + $0x9b8] sm:$0xff]
    %v3601 = vld [vmem:[#allocation3 + $0x9c0] sm:$0xff]
    %v3602 = vld [vmem:[#allocation3 + $0x9c8] sm:$0xff]
    %v3603 = vld [vmem:[#allocation3 + $0x9d0] sm:$0xff]
    %v3604 = vld [vmem:[#allocation3 + $0x9d8] sm:$0xff]
    %v3605 = vld [vmem:[#allocation3 + $0x9e0] sm:$0xff]
    %v3606 = vld [vmem:[#allocation3 + $0x9e8] sm:$0xff]
    %v3607 = vld [vmem:[#allocation3 + $0x9f0] sm:$0xff]
    %v3608 = vld [vmem:[#allocation3 + $0x9f8] sm:$0xff]
    %v3609 = vld [vmem:[#allocation3 + $0xa00] sm:$0xff]
    %v3610 = vld [vmem:[#allocation3 + $0xa08] sm:$0xff]
    %v3611 = vld [vmem:[#allocation3 + $0xa10] sm:$0xff]
    %v3612 = vld [vmem:[#allocation3 + $0xa18] sm:$0xff]
    %v3613 = vld [vmem:[#allocation3 + $0xa20] sm:$0xff]
    %v3614 = vld [vmem:[#allocation3 + $0xa28] sm:$0xff]
    %v3615 = vld [vmem:[#allocation3 + $0xa30] sm:$0xff]
    %v3616 = vld [vmem:[#allocation3 + $0xa38] sm:$0xff]
    %v3617 = vld [vmem:[#allocation3 + $0xa40] sm:$0xff]
    %v3618 = vld [vmem:[#allocation3 + $0xa48] sm:$0xff]
    %v3619 = vld [vmem:[#allocation3 + $0xa50] sm:$0xff]
    %v3620 = vld [vmem:[#allocation3 + $0xa58] sm:$0xff]
    %v3621 = vld [vmem:[#allocation3 + $0xa60] sm:$0xff]
    %v3622 = vld [vmem:[#allocation3 + $0xa68] sm:$0xff]
    %v3623 = vld [vmem:[#allocation3 + $0xa70] sm:$0xff]
    %v3624 = vld [vmem:[#allocation3 + $0xa78] sm:$0xff]
    %v3625 = vld [vmem:[#allocation3 + $0xa80] sm:$0xff]
    %v3626 = vld [vmem:[#allocation3 + $0xa88] sm:$0xff]
    %v3627 = vld [vmem:[#allocation3 + $0xa90] sm:$0xff]
    %v3628 = vld [vmem:[#allocation3 + $0xa98] sm:$0xff]
    %v3629 = vld [vmem:[#allocation3 + $0xaa0] sm:$0xff]
    %v3630 = vld [vmem:[#allocation3 + $0xaa8] sm:$0xff]
    %v3631 = vld [vmem:[#allocation3 + $0xab0] sm:$0xff]
    %v3632 = vld [vmem:[#allocation3 + $0xab8] sm:$0xff]
    %v3633 = vld [vmem:[#allocation3 + $0xac0] sm:$0xff]
    %v3634 = vld [vmem:[#allocation3 + $0xac8] sm:$0xff]
    %v3635 = vld [vmem:[#allocation3 + $0xad0] sm:$0xff]
    %v3636 = vld [vmem:[#allocation3 + $0xad8] sm:$0xff]
    %v3637 = vld [vmem:[#allocation3 + $0xae0] sm:$0xff]
    %v3638 = vld [vmem:[#allocation3 + $0xae8] sm:$0xff]
    %v3639 = vld [vmem:[#allocation3 + $0xaf0] sm:$0xff]
    %v3640 = vld [vmem:[#allocation3 + $0xaf8] sm:$0xff]
    %v3641 = vld [vmem:[#allocation3 + $0xb00] sm:$0xff]
    %v3642 = vld [vmem:[#allocation3 + $0xb08] sm:$0xff]
    %v3643 = vld [vmem:[#allocation3 + $0xb10] sm:$0xff]
    %v3644 = vld [vmem:[#allocation3 + $0xb18] sm:$0xff]
    %v3645 = vld [vmem:[#allocation3 + $0xb20] sm:$0xff]
    %v3646 = vld [vmem:[#allocation3 + $0xb28] sm:$0xff]
    %v3647 = vld [vmem:[#allocation3 + $0xb30] sm:$0xff]
    %v3648 = vld [vmem:[#allocation3 + $0xb38] sm:$0xff]
    %v3649 = vld [vmem:[#allocation3 + $0xb40] sm:$0xff]
    %v3650 = vld [vmem:[#allocation3 + $0xb48] sm:$0xff]
    %v3651 = vld [vmem:[#allocation3 + $0xb50] sm:$0xff]
    %v3652 = vld [vmem:[#allocation3 + $0xb58] sm:$0xff]
    %v3653 = vld [vmem:[#allocation3 + $0xb60] sm:$0xff]
    %v3654 = vld [vmem:[#allocation3 + $0xb68] sm:$0xff]
    %v3655 = vld [vmem:[#allocation3 + $0xb70] sm:$0xff]
    %v3656 = vld [vmem:[#allocation3 + $0xb78] sm:$0xff]
    %v3657 = vld [vmem:[#allocation3 + $0xb80] sm:$0xff]
    %v3658 = vld [vmem:[#allocation3 + $0xb88] sm:$0xff]
    %v3659 = vld [vmem:[#allocation3 + $0xb90] sm:$0xff]
    %v3660 = vld [vmem:[#allocation3 + $0xb98] sm:$0xff]
    %v3661 = vld [vmem:[#allocation3 + $0xba0] sm:$0xff]
    %v3662 = vld [vmem:[#allocation3 + $0xba8] sm:$0xff]
    %v3663 = vld [vmem:[#allocation3 + $0xbb0] sm:$0xff]
    %v3664 = vld [vmem:[#allocation3 + $0xbb8] sm:$0xff]
    %v3665 = vld [vmem:[#allocation3 + $0xbc0] sm:$0xff]
    %v3666 = vld [vmem:[#allocation3 + $0xbc8] sm:$0xff]
    %v3667 = vld [vmem:[#allocation3 + $0xbd0] sm:$0xff]
    %v3668 = vld [vmem:[#allocation3 + $0xbd8] sm:$0xff]
    %v3669 = vld [vmem:[#allocation3 + $0xbe0] sm:$0xff]
    %v3670 = vld [vmem:[#allocation3 + $0xbe8] sm:$0xff]
    %v3671 = vld [vmem:[#allocation3 + $0xbf0] sm:$0xff]
    %v3672 = vld [vmem:[#allocation3 + $0xbf8] sm:$0xff]
    %v3673 = vld [vmem:[#allocation3 + $0xc00] sm:$0xff]
    %v3674 = vld [vmem:[#allocation3 + $0xc08] sm:$0xff]
    %v3675 = vld [vmem:[#allocation3 + $0xc10] sm:$0xff]
    %v3676 = vld [vmem:[#allocation3 + $0xc18] sm:$0xff]
    %v3677 = vld [vmem:[#allocation3 + $0xc20] sm:$0xff]
    %v3678 = vld [vmem:[#allocation3 + $0xc28] sm:$0xff]
    %v3679 = vld [vmem:[#allocation3 + $0xc30] sm:$0xff]
    %v3680 = vld [vmem:[#allocation3 + $0xc38] sm:$0xff]
    %v3681 = vld [vmem:[#allocation3 + $0xc40] sm:$0xff]
    %v3682 = vld [vmem:[#allocation3 + $0xc48] sm:$0xff]
    %v3683 = vld [vmem:[#allocation3 + $0xc50] sm:$0xff]
    %v3684 = vld [vmem:[#allocation3 + $0xc58] sm:$0xff]
    %v3685 = vld [vmem:[#allocation3 + $0xc60] sm:$0xff]
    %v3686 = vld [vmem:[#allocation3 + $0xc68] sm:$0xff]
    %v3687 = vld [vmem:[#allocation3 + $0xc70] sm:$0xff]
    %v3688 = vld [vmem:[#allocation3 + $0xc78] sm:$0xff]
    %v3689 = vld [vmem:[#allocation3 + $0xc80] sm:$0xff]
    %v3690 = vld [vmem:[#allocation3 + $0xc88] sm:$0xff]
    %v3691 = vld [vmem:[#allocation3 + $0xc90] sm:$0xff]
    %v3692 = vld [vmem:[#allocation3 + $0xc98] sm:$0xff]
    %v3693 = vld [vmem:[#allocation3 + $0xca0] sm:$0xff]
    %v3694 = vld [vmem:[#allocation3 + $0xca8] sm:$0xff]
    %v3695 = vld [vmem:[#allocation3 + $0xcb0] sm:$0xff]
    %v3696 = vld [vmem:[#allocation3 + $0xcb8] sm:$0xff]
    %v3697 = vld [vmem:[#allocation3 + $0xcc0] sm:$0xff]
    %v3698 = vld [vmem:[#allocation3 + $0xcc8] sm:$0xff]
    %v3699 = vld [vmem:[#allocation3 + $0xcd0] sm:$0xff]
    %v3700 = vld [vmem:[#allocation3 + $0xcd8] sm:$0xff]
    %v3701 = vld [vmem:[#allocation3 + $0xce0] sm:$0xff]
    %v3702 = vld [vmem:[#allocation3 + $0xce8] sm:$0xff]
    %v3703 = vld [vmem:[#allocation3 + $0xcf0] sm:$0xff]
    %v3704 = vld [vmem:[#allocation3 + $0xcf8] sm:$0xff]
    %v3705 = vld [vmem:[#allocation3 + $0xd00] sm:$0xff]
    %v3706 = vld [vmem:[#allocation3 + $0xd08] sm:$0xff]
    %v3707 = vld [vmem:[#allocation3 + $0xd10] sm:$0xff]
    %v3708 = vld [vmem:[#allocation3 + $0xd18] sm:$0xff]
    %v3709 = vld [vmem:[#allocation3 + $0xd20] sm:$0xff]
    %v3710 = vld [vmem:[#allocation3 + $0xd28] sm:$0xff]
    %v3711 = vld [vmem:[#allocation3 + $0xd30] sm:$0xff]
    %v3712 = vld [vmem:[#allocation3 + $0xd38] sm:$0xff]
    %v3713 = vld [vmem:[#allocation3 + $0xd40] sm:$0xff]
    %v3714 = vld [vmem:[#allocation3 + $0xd48] sm:$0xff]
    %v3715 = vld [vmem:[#allocation3 + $0xd50] sm:$0xff]
    %v3716 = vld [vmem:[#allocation3 + $0xd58] sm:$0xff]
    %v3717 = vld [vmem:[#allocation3 + $0xd60] sm:$0xff]
    %v3718 = vld [vmem:[#allocation3 + $0xd68] sm:$0xff]
    %v3719 = vld [vmem:[#allocation3 + $0xd70] sm:$0xff]
    %v3720 = vld [vmem:[#allocation3 + $0xd78] sm:$0xff]
    %v3721 = vld [vmem:[#allocation3 + $0xd80] sm:$0xff]
    %v3722 = vld [vmem:[#allocation3 + $0xd88] sm:$0xff]
    %v3723 = vld [vmem:[#allocation3 + $0xd90] sm:$0xff]
    %v3724 = vld [vmem:[#allocation3 + $0xd98] sm:$0xff]
    %v3725 = vld [vmem:[#allocation3 + $0xda0] sm:$0xff]
    %v3726 = vld [vmem:[#allocation3 + $0xda8] sm:$0xff]
    %v3727 = vld [vmem:[#allocation3 + $0xdb0] sm:$0xff]
    %v3728 = vld [vmem:[#allocation3 + $0xdb8] sm:$0xff]
    %v3729 = vld [vmem:[#allocation3 + $0xdc0] sm:$0xff]
    %v3730 = vld [vmem:[#allocation3 + $0xdc8] sm:$0xff]
    %v3731 = vld [vmem:[#allocation3 + $0xdd0] sm:$0xff]
    %v3732 = vld [vmem:[#allocation3 + $0xdd8] sm:$0xff]
    %v3733 = vld [vmem:[#allocation3 + $0xde0] sm:$0xff]
    %v3734 = vld [vmem:[#allocation3 + $0xde8] sm:$0xff]
    %v3735 = vld [vmem:[#allocation3 + $0xdf0] sm:$0xff]
    %v3736 = vld [vmem:[#allocation3 + $0xdf8] sm:$0xff]
    %v3737 = vld [vmem:[#allocation3 + $0xe00] sm:$0xff]
    %v3738 = vld [vmem:[#allocation3 + $0xe08] sm:$0xff]
    %v3739 = vld [vmem:[#allocation3 + $0xe10] sm:$0xff]
    %v3740 = vld [vmem:[#allocation3 + $0xe18] sm:$0xff]
    %v3741 = vld [vmem:[#allocation3 + $0xe20] sm:$0xff]
    %v3742 = vld [vmem:[#allocation3 + $0xe28] sm:$0xff]
    %v3743 = vld [vmem:[#allocation3 + $0xe30] sm:$0xff]
    %v3744 = vld [vmem:[#allocation3 + $0xe38] sm:$0xff]
    %v3745 = vld [vmem:[#allocation3 + $0xe40] sm:$0xff]
    %v3746 = vld [vmem:[#allocation3 + $0xe48] sm:$0xff]
    %v3747 = vld [vmem:[#allocation3 + $0xe50] sm:$0xff]
    %v3748 = vld [vmem:[#allocation3 + $0xe58] sm:$0xff]
    %v3749 = vld [vmem:[#allocation3 + $0xe60] sm:$0xff]
    %v3750 = vld [vmem:[#allocation3 + $0xe68] sm:$0xff]
    %v3751 = vld [vmem:[#allocation3 + $0xe70] sm:$0xff]
    %v3752 = vld [vmem:[#allocation3 + $0xe78] sm:$0xff]
    %v3753 = vld [vmem:[#allocation3 + $0xe80] sm:$0xff]
    %v3754 = vld [vmem:[#allocation3 + $0xe88] sm:$0xff]
    %v3755 = vld [vmem:[#allocation3 + $0xe90] sm:$0xff]
    %v3756 = vld [vmem:[#allocation3 + $0xe98] sm:$0xff]
    %v3757 = vld [vmem:[#allocation3 + $0xea0] sm:$0xff]
    %v3758 = vld [vmem:[#allocation3 + $0xea8] sm:$0xff]
    %v3759 = vld [vmem:[#allocation3 + $0xeb0] sm:$0xff]
    %v3760 = vld [vmem:[#allocation3 + $0xeb8] sm:$0xff]
    %v3761 = vld [vmem:[#allocation3 + $0xec0] sm:$0xff]
    %v3762 = vld [vmem:[#allocation3 + $0xec8] sm:$0xff]
    %v3763 = vld [vmem:[#allocation3 + $0xed0] sm:$0xff]
    %v3764 = vld [vmem:[#allocation3 + $0xed8] sm:$0xff]
    %v3765 = vld [vmem:[#allocation3 + $0xee0] sm:$0xff]
    %v3766 = vld [vmem:[#allocation3 + $0xee8] sm:$0xff]
    %v3767 = vld [vmem:[#allocation3 + $0xef0] sm:$0xff]
    %v3768 = vld [vmem:[#allocation3 + $0xef8] sm:$0xff]
    %v3769 = vld [vmem:[#allocation3 + $0xf00] sm:$0xff]
    %v3770 = vld [vmem:[#allocation3 + $0xf08] sm:$0xff]
    %v3771 = vld [vmem:[#allocation3 + $0xf10] sm:$0xff]
    %v3772 = vld [vmem:[#allocation3 + $0xf18] sm:$0xff]
    %v3773 = vld [vmem:[#allocation3 + $0xf20] sm:$0xff]
    %v3774 = vld [vmem:[#allocation3 + $0xf28] sm:$0xff]
    %v3775 = vld [vmem:[#allocation3 + $0xf30] sm:$0xff]
    %v3776 = vld [vmem:[#allocation3 + $0xf38] sm:$0xff]
    %v3777 = vld [vmem:[#allocation3 + $0xf40] sm:$0xff]
    %v3778 = vld [vmem:[#allocation3 + $0xf48] sm:$0xff]
    %v3779 = vld [vmem:[#allocation3 + $0xf50] sm:$0xff]
    %v3780 = vld [vmem:[#allocation3 + $0xf58] sm:$0xff]
    %v3781 = vld [vmem:[#allocation3 + $0xf60] sm:$0xff]
    %v3782 = vld [vmem:[#allocation3 + $0xf68] sm:$0xff]
    %v3783 = vld [vmem:[#allocation3 + $0xf70] sm:$0xff]
    %v3784 = vld [vmem:[#allocation3 + $0xf78] sm:$0xff]
    %v3785 = vld [vmem:[#allocation3 + $0xf80] sm:$0xff]
    %v3786 = vld [vmem:[#allocation3 + $0xf88] sm:$0xff]
    %v3787 = vld [vmem:[#allocation3 + $0xf90] sm:$0xff]
    %v3788 = vld [vmem:[#allocation3 + $0xf98] sm:$0xff]
    %v3789 = vld [vmem:[#allocation3 + $0xfa0] sm:$0xff]
    %v3790 = vld [vmem:[#allocation3 + $0xfa8] sm:$0xff]
    %v3791 = vld [vmem:[#allocation3 + $0xfb0] sm:$0xff]
    %v3792 = vld [vmem:[#allocation3 + $0xfb8] sm:$0xff]
    %v3793 = vld [vmem:[#allocation3 + $0xfc0] sm:$0xff]
    %v3794 = vld [vmem:[#allocation3 + $0xfc8] sm:$0xff]
    %v3795 = vld [vmem:[#allocation3 + $0xfd0] sm:$0xff]
    %v3796 = vld [vmem:[#allocation3 + $0xfd8] sm:$0xff]
    %v3797 = vld [vmem:[#allocation3 + $0xfe0] sm:$0xff]
    %v3798 = vld [vmem:[#allocation3 + $0xfe8] sm:$0xff]
    %v3799 = vld [vmem:[#allocation3 + $0xff0] sm:$0xff]
    %v3800 = vld [vmem:[#allocation3 + $0xff8] sm:$0xff]
    %v3801 = vld [vmem:[#allocation11] sm:$0xff]
    %v3803 = vlaneseq
    %v3804 = vshrl.u32 %v3803, 7
    %v3805 = vsub.s32 0, %v3804
    %v3806 = vrot.slane %v3801, %v3805
    %v3807 = vlaneseq
    %v3808 = vshrl.u32 %v3807, 7
    %v3809 = vsub.s32 1, %v3808
    %v3810 = vrot.slane %v3801, %v3809
    %v3811 = vlaneseq
    %v3812 = vshrl.u32 %v3811, 7
    %v3813 = vsub.s32 2, %v3812
    %v3814 = vrot.slane %v3801, %v3813
    %v3815 = vlaneseq
    %v3816 = vshrl.u32 %v3815, 7
    %v3817 = vsub.s32 3, %v3816
    %v3818 = vrot.slane %v3801, %v3817
    %v3819 = vlaneseq
    %v3820 = vshrl.u32 %v3819, 7
    %v3821 = vsub.s32 4, %v3820
    %v3822 = vrot.slane %v3801, %v3821
    %v3823 = vlaneseq
    %v3824 = vshrl.u32 %v3823, 7
    %v3825 = vsub.s32 5, %v3824
    %v3826 = vrot.slane %v3801, %v3825
    %v3827 = vlaneseq
    %v3828 = vshrl.u32 %v3827, 7
    %v3829 = vsub.s32 6, %v3828
    %v3830 = vrot.slane %v3801, %v3829
    %v3831 = vlaneseq
    %v3832 = vshrl.u32 %v3831, 7
    %v3833 = vsub.s32 7, %v3832
    %v3834 = vrot.slane %v3801, %v3833
    %3843 = vmatprep.subr.bf16.mxu0 %v3290
    %3844 = vmatpush1.bf16.msra.mxu0 %v3289
    %3845 = vmatprep.subr.bf16.mxu0 %v3298
    %3846 = vmatpush1.bf16.msra.mxu0 %v3297
    %3847 = vmatprep.subr.bf16.mxu0 %v3306
    %3848 = vmatpush1.bf16.msra.mxu0 %v3305
    %3849 = vmatprep.subr.bf16.mxu0 %v3314
    %3850 = vmatpush1.bf16.msra.mxu0 %v3313
    %3851 = vmatprep.subr.bf16.mxu0 %v3322
    %3852 = vmatpush1.bf16.msra.mxu0 %v3321
    %3853 = vmatprep.subr.bf16.mxu0 %v3330
    %3854 = vmatpush1.bf16.msra.mxu0 %v3329
    %3855 = vmatprep.subr.bf16.mxu0 %v3338
    %3856 = vmatpush1.bf16.msra.mxu0 %v3337
    %3857 = vmatprep.subr.bf16.mxu0 %v3346
    %3858 = vmatpush1.bf16.msra.mxu0 %v3345
    %3859 = vmatprep.subr.bf16.mxu0 %v3354
    %3860 = vmatpush1.bf16.msra.mxu0 %v3353
    %3861 = vmatprep.subr.bf16.mxu0 %v3362
    %3862 = vmatpush1.bf16.msra.mxu0 %v3361
    %3863 = vmatprep.subr.bf16.mxu0 %v3370
    %3864 = vmatpush1.bf16.msra.mxu0 %v3369
    %3865 = vmatprep.subr.bf16.mxu0 %v3378
    %3866 = vmatpush1.bf16.msra.mxu0 %v3377
    %3867 = vmatprep.subr.bf16.mxu0 %v3386
    %3868 = vmatpush1.bf16.msra.mxu0 %v3385
    %3869 = vmatprep.subr.bf16.mxu0 %v3394
    %3870 = vmatpush1.bf16.msra.mxu0 %v3393
    %3871 = vmatprep.subr.bf16.mxu0 %v3402
    %3872 = vmatpush1.bf16.msra.mxu0 %v3401
    %3873 = vmatprep.subr.bf16.mxu0 %v3410
    %3874 = vmatpush1.bf16.msra.mxu0 %v3409
    %3875 = vmatprep.mubr.bf16.mxu0 %v3282
    %3876 = vmatmul.mubr.bf16.gmra.mrb[0].mxu0 %v3281
    %v3877 = vpop.f32.mrb[0].mxu0
    %v3878 = vadd.f32 %v3806, %v3877
    %v3879 = vpop.f32.mrb[0].mxu0
    %v3880 = vadd.f32 %v3810, %v3879
    %v3881 = vpop.f32.mrb[0].mxu0
    %v3882 = vpop.f32.mrb[0].mxu0
    %3883 = vdwg.mxu0
    %3884 = vmatprep.subr.bf16.mxu0 %v3418
    %3885 = vmatpush1.bf16.msra.mxu0 %v3417
    %3886 = vmatprep.subr.bf16.mxu0 %v3426
    %3887 = vmatpush1.bf16.msra.mxu0 %v3425
    %3888 = vmatprep.subr.bf16.mxu0 %v3434
    %3889 = vmatpush1.bf16.msra.mxu0 %v3433
    %3890 = vmatprep.subr.bf16.mxu0 %v3442
    %3891 = vmatpush1.bf16.msra.mxu0 %v3441
    %3892 = vmatprep.subr.bf16.mxu0 %v3450
    %3893 = vmatpush1.bf16.msra.mxu0 %v3449
    %3894 = vmatprep.subr.bf16.mxu0 %v3458
    %3895 = vmatpush1.bf16.msra.mxu0 %v3457
    %3896 = vmatprep.subr.bf16.mxu0 %v3466
    %3897 = vmatpush1.bf16.msra.mxu0 %v3465
    %3898 = vmatprep.subr.bf16.mxu0 %v3474
    %3899 = vmatpush1.bf16.msra.mxu0 %v3473
    %3900 = vmatprep.subr.bf16.mxu0 %v3482
    %3901 = vmatpush1.bf16.msra.mxu0 %v3481
    %3902 = vmatprep.subr.bf16.mxu0 %v3490
    %3903 = vmatpush1.bf16.msra.mxu0 %v3489
    %3904 = vmatprep.subr.bf16.mxu0 %v3498
    %3905 = vmatpush1.bf16.msra.mxu0 %v3497
    %3906 = vmatprep.subr.bf16.mxu0 %v3506
    %3907 = vmatpush1.bf16.msra.mxu0 %v3505
    %3908 = vmatprep.subr.bf16.mxu0 %v3514
    %3909 = vmatpush1.bf16.msra.mxu0 %v3513
    %3910 = vmatprep.subr.bf16.mxu0 %v3522
    %3911 = vmatpush1.bf16.msra.mxu0 %v3521
    %3912 = vmatprep.subr.bf16.mxu0 %v3530
    %3913 = vmatpush1.bf16.msra.mxu0 %v3529
    %3914 = vmatprep.subr.bf16.mxu0 %v3538
    %3915 = vmatpush1.bf16.msra.mxu0 %v3537
    %3916 = vmatprep.mubr.bf16.mxu0 %v3284
    %3917 = vmatmul.mubr.bf16.gmra.mrb[0].mxu0 %v3283
    %v3918 = vpop.f32.mrb[0].mxu0
    %v3919 = vadd.f32 %v3878, %v3918
    %v3920 = vpop.f32.mrb[0].mxu0
    %v3921 = vadd.f32 %v3880, %v3920
    %v3922 = vpop.f32.mrb[0].mxu0
    %v3923 = vpop.f32.mrb[0].mxu0
    %3924 = vdwg.mxu0
    %3925 = vmatprep.subr.bf16.mxu0 %v3546
    %3926 = vmatpush1.bf16.msra.mxu0 %v3545
    %3927 = vmatprep.subr.bf16.mxu0 %v3554
    %3928 = vmatpush1.bf16.msra.mxu0 %v3553
    %3929 = vmatprep.subr.bf16.mxu0 %v3562
    %3930 = vmatpush1.bf16.msra.mxu0 %v3561
    %3931 = vmatprep.subr.bf16.mxu0 %v3570
    %3932 = vmatpush1.bf16.msra.mxu0 %v3569
    %3933 = vmatprep.subr.bf16.mxu0 %v3578
    %3934 = vmatpush1.bf16.msra.mxu0 %v3577
    %3935 = vmatprep.subr.bf16.mxu0 %v3586
    %3936 = vmatpush1.bf16.msra.mxu0 %v3585
    %3937 = vmatprep.subr.bf16.mxu0 %v3594
    %3938 = vmatpush1.bf16.msra.mxu0 %v3593
    %3939 = vmatprep.subr.bf16.mxu0 %v3602
    %3940 = vmatpush1.bf16.msra.mxu0 %v3601
    %3941 = vmatprep.subr.bf16.mxu0 %v3610
    %3942 = vmatpush1.bf16.msra.mxu0 %v3609
    %3943 = vmatprep.subr.bf16.mxu0 %v3618
    %3944 = vmatpush1.bf16.msra.mxu0 %v3617
    %3945 = vmatprep.subr.bf16.mxu0 %v3626
    %3946 = vmatpush1.bf16.msra.mxu0 %v3625
    %3947 = vmatprep.subr.bf16.mxu0 %v3634
    %3948 = vmatpush1.bf16.msra.mxu0 %v3633
    %3949 = vmatprep.subr.bf16.mxu0 %v3642
    %3950 = vmatpush1.bf16.msra.mxu0 %v3641
    %3951 = vmatprep.subr.bf16.mxu0 %v3650
    %3952 = vmatpush1.bf16.msra.mxu0 %v3649
    %3953 = vmatprep.subr.bf16.mxu0 %v3658
    %3954 = vmatpush1.bf16.msra.mxu0 %v3657
    %3955 = vmatprep.subr.bf16.mxu0 %v3666
    %3956 = vmatpush1.bf16.msra.mxu0 %v3665
    %3957 = vmatprep.mubr.bf16.mxu0 %v3286
    %3958 = vmatmul.mubr.bf16.gmra.mrb[0].mxu0 %v3285
    %v3959 = vpop.f32.mrb[0].mxu0
    %v3960 = vadd.f32 %v3919, %v3959
    %v3961 = vpop.f32.mrb[0].mxu0
    %v3962 = vadd.f32 %v3921, %v3961
    %v3963 = vpop.f32.mrb[0].mxu0
    %v3964 = vpop.f32.mrb[0].mxu0
    %3965 = vdwg.mxu0
    %3966 = vmatprep.subr.bf16.mxu0 %v3674
    %3967 = vmatpush1.bf16.msra.mxu0 %v3673
    %3968 = vmatprep.subr.bf16.mxu0 %v3682
    %3969 = vmatpush1.bf16.msra.mxu0 %v3681
    %3970 = vmatprep.subr.bf16.mxu0 %v3690
    %3971 = vmatpush1.bf16.msra.mxu0 %v3689
    %3972 = vmatprep.subr.bf16.mxu0 %v3698
    %3973 = vmatpush1.bf16.msra.mxu0 %v3697
    %3974 = vmatprep.subr.bf16.mxu0 %v3706
    %3975 = vmatpush1.bf16.msra.mxu0 %v3705
    %3976 = vmatprep.subr.bf16.mxu0 %v3714
    %3977 = vmatpush1.bf16.msra.mxu0 %v3713
    %3978 = vmatprep.subr.bf16.mxu0 %v3722
    %3979 = vmatpush1.bf16.msra.mxu0 %v3721
    %3980 = vmatprep.subr.bf16.mxu0 %v3730
    %3981 = vmatpush1.bf16.msra.mxu0 %v3729
    %3982 = vmatprep.subr.bf16.mxu0 %v3738
    %3983 = vmatpush1.bf16.msra.mxu0 %v3737
    %3984 = vmatprep.subr.bf16.mxu0 %v3746
    %3985 = vmatpush1.bf16.msra.mxu0 %v3745
    %3986 = vmatprep.subr.bf16.mxu0 %v3754
    %3987 = vmatpush1.bf16.msra.mxu0 %v3753
    %3988 = vmatprep.subr.bf16.mxu0 %v3762
    %3989 = vmatpush1.bf16.msra.mxu0 %v3761
    %3990 = vmatprep.subr.bf16.mxu0 %v3770
    %3991 = vmatpush1.bf16.msra.mxu0 %v3769
    %3992 = vmatprep.subr.bf16.mxu0 %v3778
    %3993 = vmatpush1.bf16.msra.mxu0 %v3777
    %3994 = vmatprep.subr.bf16.mxu0 %v3786
    %3995 = vmatpush1.bf16.msra.mxu0 %v3785
    %3996 = vmatprep.subr.bf16.mxu0 %v3794
    %3997 = vmatpush1.bf16.msra.mxu0 %v3793
    %3998 = vmatprep.mubr.bf16.mxu0 %v3288
    %3999 = vmatmul.mubr.bf16.gmra.mrb[0].mxu0 %v3287
    %v4000 = vpop.f32.mrb[0].mxu0
    %v4001 = vadd.f32 %v3960, %v4000
    %v4002 = vpop.f32.mrb[0].mxu0
    %v4003 = vadd.f32 %v3962, %v4002
    %v4004 = vpop.f32.mrb[0].mxu0
    %v4005 = vpop.f32.mrb[0].mxu0
    %4006 = vdwg.mxu0
    %4007 = vmatprep.subr.bf16.mxu0 %v3292
    %4008 = vmatpush1.bf16.msra.mxu0 %v3291
    %4009 = vmatprep.subr.bf16.mxu0 %v3300
    %4010 = vmatpush1.bf16.msra.mxu0 %v3299
    %4011 = vmatprep.subr.bf16.mxu0 %v3308
    %4012 = vmatpush1.bf16.msra.mxu0 %v3307
    %4013 = vmatprep.subr.bf16.mxu0 %v3316
    %4014 = vmatpush1.bf16.msra.mxu0 %v3315
    %4015 = vmatprep.subr.bf16.mxu0 %v3324
    %4016 = vmatpush1.bf16.msra.mxu0 %v3323
    %4017 = vmatprep.subr.bf16.mxu0 %v3332
    %4018 = vmatpush1.bf16.msra.mxu0 %v3331
    %4019 = vmatprep.subr.bf16.mxu0 %v3340
    %4020 = vmatpush1.bf16.msra.mxu0 %v3339
    %4021 = vmatprep.subr.bf16.mxu0 %v3348
    %4022 = vmatpush1.bf16.msra.mxu0 %v3347
    %4023 = vmatprep.subr.bf16.mxu0 %v3356
    %4024 = vmatpush1.bf16.msra.mxu0 %v3355
    %4025 = vmatprep.subr.bf16.mxu0 %v3364
    %4026 = vmatpush1.bf16.msra.mxu0 %v3363
    %4027 = vmatprep.subr.bf16.mxu0 %v3372
    %4028 = vmatpush1.bf16.msra.mxu0 %v3371
    %4029 = vmatprep.subr.bf16.mxu0 %v3380
    %4030 = vmatpush1.bf16.msra.mxu0 %v3379
    %4031 = vmatprep.subr.bf16.mxu0 %v3388
    %4032 = vmatpush1.bf16.msra.mxu0 %v3387
    %4033 = vmatprep.subr.bf16.mxu0 %v3396
    %4034 = vmatpush1.bf16.msra.mxu0 %v3395
    %4035 = vmatprep.subr.bf16.mxu0 %v3404
    %4036 = vmatpush1.bf16.msra.mxu0 %v3403
    %4037 = vmatprep.subr.bf16.mxu0 %v3412
    %4038 = vmatpush1.bf16.msra.mxu0 %v3411
    %4039 = vmatprep.mubr.bf16.mxu0 %v3282
    %4040 = vmatmul.mubr.bf16.gmra.mrb[0].mxu0 %v3281
    %v4041 = vpop.f32.mrb[0].mxu0
    %v4042 = vadd.f32 %v3814, %v4041
    %v4043 = vpop.f32.mrb[0].mxu0
    %v4044 = vadd.f32 %v3818, %v4043
    %v4045 = vpop.f32.mrb[0].mxu0
    %v4046 = vpop.f32.mrb[0].mxu0
    %4047 = vdwg.mxu0
    %4048 = vmatprep.subr.bf16.mxu0 %v3420
    %4049 = vmatpush1.bf16.msra.mxu0 %v3419
    %4050 = vmatprep.subr.bf16.mxu0 %v3428
    %4051 = vmatpush1.bf16.msra.mxu0 %v3427
    %4052 = vmatprep.subr.bf16.mxu0 %v3436
    %4053 = vmatpush1.bf16.msra.mxu0 %v3435
    %4054 = vmatprep.subr.bf16.mxu0 %v3444
    %4055 = vmatpush1.bf16.msra.mxu0 %v3443
    %4056 = vmatprep.subr.bf16.mxu0 %v3452
    %4057 = vmatpush1.bf16.msra.mxu0 %v3451
    %4058 = vmatprep.subr.bf16.mxu0 %v3460
    %4059 = vmatpush1.bf16.msra.mxu0 %v3459
    %4060 = vmatprep.subr.bf16.mxu0 %v3468
    %4061 = vmatpush1.bf16.msra.mxu0 %v3467
    %4062 = vmatprep.subr.bf16.mxu0 %v3476
    %4063 = vmatpush1.bf16.msra.mxu0 %v3475
    %4064 = vmatprep.subr.bf16.mxu0 %v3484
    %4065 = vmatpush1.bf16.msra.mxu0 %v3483
    %4066 = vmatprep.subr.bf16.mxu0 %v3492
    %4067 = vmatpush1.bf16.msra.mxu0 %v3491
    %4068 = vmatprep.subr.bf16.mxu0 %v3500
    %4069 = vmatpush1.bf16.msra.mxu0 %v3499
    %4070 = vmatprep.subr.bf16.mxu0 %v3508
    %4071 = vmatpush1.bf16.msra.mxu0 %v3507
    %4072 = vmatprep.subr.bf16.mxu0 %v3516
    %4073 = vmatpush1.bf16.msra.mxu0 %v3515
    %4074 = vmatprep.subr.bf16.mxu0 %v3524
    %4075 = vmatpush1.bf16.msra.mxu0 %v3523
    %4076 = vmatprep.subr.bf16.mxu0 %v3532
    %4077 = vmatpush1.bf16.msra.mxu0 %v3531
    %4078 = vmatprep.subr.bf16.mxu0 %v3540
    %4079 = vmatpush1.bf16.msra.mxu0 %v3539
    %4080 = vmatprep.mubr.bf16.mxu0 %v3284
    %4081 = vmatmul.mubr.bf16.gmra.mrb[0].mxu0 %v3283
    %v4082 = vpop.f32.mrb[0].mxu0
    %v4083 = vadd.f32 %v4042, %v4082
    %v4084 = vpop.f32.mrb[0].mxu0
    %v4085 = vadd.f32 %v4044, %v4084
    %v4086 = vpop.f32.mrb[0].mxu0
    %v4087 = vpop.f32.mrb[0].mxu0
    %4088 = vdwg.mxu0
    %4089 = vmatprep.subr.bf16.mxu0 %v3548
    %4090 = vmatpush1.bf16.msra.mxu0 %v3547
    %4091 = vmatprep.subr.bf16.mxu0 %v3556
    %4092 = vmatpush1.bf16.msra.mxu0 %v3555
    %4093 = vmatprep.subr.bf16.mxu0 %v3564
    %4094 = vmatpush1.bf16.msra.mxu0 %v3563
    %4095 = vmatprep.subr.bf16.mxu0 %v3572
    %4096 = vmatpush1.bf16.msra.mxu0 %v3571
    %4097 = vmatprep.subr.bf16.mxu0 %v3580
    %4098 = vmatpush1.bf16.msra.mxu0 %v3579
    %4099 = vmatprep.subr.bf16.mxu0 %v3588
    %4100 = vmatpush1.bf16.msra.mxu0 %v3587
    %4101 = vmatprep.subr.bf16.mxu0 %v3596
    %4102 = vmatpush1.bf16.msra.mxu0 %v3595
    %4103 = vmatprep.subr.bf16.mxu0 %v3604
    %4104 = vmatpush1.bf16.msra.mxu0 %v3603
    %4105 = vmatprep.subr.bf16.mxu0 %v3612
    %4106 = vmatpush1.bf16.msra.mxu0 %v3611
    %4107 = vmatprep.subr.bf16.mxu0 %v3620
    %4108 = vmatpush1.bf16.msra.mxu0 %v3619
    %4109 = vmatprep.subr.bf16.mxu0 %v3628
    %4110 = vmatpush1.bf16.msra.mxu0 %v3627
    %4111 = vmatprep.subr.bf16.mxu0 %v3636
    %4112 = vmatpush1.bf16.msra.mxu0 %v3635
    %4113 = vmatprep.subr.bf16.mxu0 %v3644
    %4114 = vmatpush1.bf16.msra.mxu0 %v3643
    %4115 = vmatprep.subr.bf16.mxu0 %v3652
    %4116 = vmatpush1.bf16.msra.mxu0 %v3651
    %4117 = vmatprep.subr.bf16.mxu0 %v3660
    %4118 = vmatpush1.bf16.msra.mxu0 %v3659
    %4119 = vmatprep.subr.bf16.mxu0 %v3668
    %4120 = vmatpush1.bf16.msra.mxu0 %v3667
    %4121 = vmatprep.mubr.bf16.mxu0 %v3286
    %4122 = vmatmul.mubr.bf16.gmra.mrb[0].mxu0 %v3285
    %v4123 = vpop.f32.mrb[0].mxu0
    %v4124 = vadd.f32 %v4083, %v4123
    %v4125 = vpop.f32.mrb[0].mxu0
    %v4126 = vadd.f32 %v4085, %v4125
    %v4127 = vpop.f32.mrb[0].mxu0
    %v4128 = vpop.f32.mrb[0].mxu0
    %4129 = vdwg.mxu0
    %4130 = vmatprep.subr.bf16.mxu0 %v3676
    %4131 = vmatpush1.bf16.msra.mxu0 %v3675
    %4132 = vmatprep.subr.bf16.mxu0 %v3684
    %4133 = vmatpush1.bf16.msra.mxu0 %v3683
    %4134 = vmatprep.subr.bf16.mxu0 %v3692
    %4135 = vmatpush1.bf16.msra.mxu0 %v3691
    %4136 = vmatprep.subr.bf16.mxu0 %v3700
    %4137 = vmatpush1.bf16.msra.mxu0 %v3699
    %4138 = vmatprep.subr.bf16.mxu0 %v3708
    %4139 = vmatpush1.bf16.msra.mxu0 %v3707
    %4140 = vmatprep.subr.bf16.mxu0 %v3716
    %4141 = vmatpush1.bf16.msra.mxu0 %v3715
    %4142 = vmatprep.subr.bf16.mxu0 %v3724
    %4143 = vmatpush1.bf16.msra.mxu0 %v3723
    %4144 = vmatprep.subr.bf16.mxu0 %v3732
    %4145 = vmatpush1.bf16.msra.mxu0 %v3731
    %4146 = vmatprep.subr.bf16.mxu0 %v3740
    %4147 = vmatpush1.bf16.msra.mxu0 %v3739
    %4148 = vmatprep.subr.bf16.mxu0 %v3748
    %4149 = vmatpush1.bf16.msra.mxu0 %v3747
    %4150 = vmatprep.subr.bf16.mxu0 %v3756
    %4151 = vmatpush1.bf16.msra.mxu0 %v3755
    %4152 = vmatprep.subr.bf16.mxu0 %v3764
    %4153 = vmatpush1.bf16.msra.mxu0 %v3763
    %4154 = vmatprep.subr.bf16.mxu0 %v3772
    %4155 = vmatpush1.bf16.msra.mxu0 %v3771
    %4156 = vmatprep.subr.bf16.mxu0 %v3780
    %4157 = vmatpush1.bf16.msra.mxu0 %v3779
    %4158 = vmatprep.subr.bf16.mxu0 %v3788
    %4159 = vmatpush1.bf16.msra.mxu0 %v3787
    %4160 = vmatprep.subr.bf16.mxu0 %v3796
    %4161 = vmatpush1.bf16.msra.mxu0 %v3795
    %4162 = vmatprep.mubr.bf16.mxu0 %v3288
    %4163 = vmatmul.mubr.bf16.gmra.mrb[0].mxu0 %v3287
    %v4164 = vpop.f32.mrb[0].mxu0
    %v4165 = vadd.f32 %v4124, %v4164
    %v4166 = vpop.f32.mrb[0].mxu0
    %v4167 = vadd.f32 %v4126, %v4166
    %v4168 = vpop.f32.mrb[0].mxu0
    %v4169 = vpop.f32.mrb[0].mxu0
    %4170 = vdwg.mxu0
    %4171 = vmatprep.subr.bf16.mxu0 %v3294
    %4172 = vmatpush1.bf16.msra.mxu0 %v3293
    %4173 = vmatprep.subr.bf16.mxu0 %v3302
    %4174 = vmatpush1.bf16.msra.mxu0 %v3301
    %4175 = vmatprep.subr.bf16.mxu0 %v3310
    %4176 = vmatpush1.bf16.msra.mxu0 %v3309
    %4177 = vmatprep.subr.bf16.mxu0 %v3318
    %4178 = vmatpush1.bf16.msra.mxu0 %v3317
    %4179 = vmatprep.subr.bf16.mxu0 %v3326
    %4180 = vmatpush1.bf16.msra.mxu0 %v3325
    %4181 = vmatprep.subr.bf16.mxu0 %v3334
    %4182 = vmatpush1.bf16.msra.mxu0 %v3333
    %4183 = vmatprep.subr.bf16.mxu0 %v3342
    %4184 = vmatpush1.bf16.msra.mxu0 %v3341
    %4185 = vmatprep.subr.bf16.mxu0 %v3350
    %4186 = vmatpush1.bf16.msra.mxu0 %v3349
    %4187 = vmatprep.subr.bf16.mxu0 %v3358
    %4188 = vmatpush1.bf16.msra.mxu0 %v3357
    %4189 = vmatprep.subr.bf16.mxu0 %v3366
    %4190 = vmatpush1.bf16.msra.mxu0 %v3365
    %4191 = vmatprep.subr.bf16.mxu0 %v3374
    %4192 = vmatpush1.bf16.msra.mxu0 %v3373
    %4193 = vmatprep.subr.bf16.mxu0 %v3382
    %4194 = vmatpush1.bf16.msra.mxu0 %v3381
    %4195 = vmatprep.subr.bf16.mxu0 %v3390
    %4196 = vmatpush1.bf16.msra.mxu0 %v3389
    %4197 = vmatprep.subr.bf16.mxu0 %v3398
    %4198 = vmatpush1.bf16.msra.mxu0 %v3397
    %4199 = vmatprep.subr.bf16.mxu0 %v3406
    %4200 = vmatpush1.bf16.msra.mxu0 %v3405
    %4201 = vmatprep.subr.bf16.mxu0 %v3414
    %4202 = vmatpush1.bf16.msra.mxu0 %v3413
    %4203 = vmatprep.mubr.bf16.mxu0 %v3282
    %4204 = vmatmul.mubr.bf16.gmra.mrb[0].mxu0 %v3281
    %v4205 = vpop.f32.mrb[0].mxu0
    %v4206 = vadd.f32 %v3822, %v4205
    %v4207 = vpop.f32.mrb[0].mxu0
    %v4208 = vadd.f32 %v3826, %v4207
    %v4209 = vpop.f32.mrb[0].mxu0
    %v4210 = vpop.f32.mrb[0].mxu0
    %4211 = vdwg.mxu0
    %4212 = vmatprep.subr.bf16.mxu0 %v3422
    %4213 = vmatpush1.bf16.msra.mxu0 %v3421
    %4214 = vmatprep.subr.bf16.mxu0 %v3430
    %4215 = vmatpush1.bf16.msra.mxu0 %v3429
    %4216 = vmatprep.subr.bf16.mxu0 %v3438
    %4217 = vmatpush1.bf16.msra.mxu0 %v3437
    %4218 = vmatprep.subr.bf16.mxu0 %v3446
    %4219 = vmatpush1.bf16.msra.mxu0 %v3445
    %4220 = vmatprep.subr.bf16.mxu0 %v3454
    %4221 = vmatpush1.bf16.msra.mxu0 %v3453
    %4222 = vmatprep.subr.bf16.mxu0 %v3462
    %4223 = vmatpush1.bf16.msra.mxu0 %v3461
    %4224 = vmatprep.subr.bf16.mxu0 %v3470
    %4225 = vmatpush1.bf16.msra.mxu0 %v3469
    %4226 = vmatprep.subr.bf16.mxu0 %v3478
    %4227 = vmatpush1.bf16.msra.mxu0 %v3477
    %4228 = vmatprep.subr.bf16.mxu0 %v3486
    %4229 = vmatpush1.bf16.msra.mxu0 %v3485
    %4230 = vmatprep.subr.bf16.mxu0 %v3494
    %4231 = vmatpush1.bf16.msra.mxu0 %v3493
    %4232 = vmatprep.subr.bf16.mxu0 %v3502
    %4233 = vmatpush1.bf16.msra.mxu0 %v3501
    %4234 = vmatprep.subr.bf16.mxu0 %v3510
    %4235 = vmatpush1.bf16.msra.mxu0 %v3509
    %4236 = vmatprep.subr.bf16.mxu0 %v3518
    %4237 = vmatpush1.bf16.msra.mxu0 %v3517
    %4238 = vmatprep.subr.bf16.mxu0 %v3526
    %4239 = vmatpush1.bf16.msra.mxu0 %v3525
    %4240 = vmatprep.subr.bf16.mxu0 %v3534
    %4241 = vmatpush1.bf16.msra.mxu0 %v3533
    %4242 = vmatprep.subr.bf16.mxu0 %v3542
    %4243 = vmatpush1.bf16.msra.mxu0 %v3541
    %4244 = vmatprep.mubr.bf16.mxu0 %v3284
    %4245 = vmatmul.mubr.bf16.gmra.mrb[0].mxu0 %v3283
    %v4246 = vpop.f32.mrb[0].mxu0
    %v4247 = vadd.f32 %v4206, %v4246
    %v4248 = vpop.f32.mrb[0].mxu0
    %v4249 = vadd.f32 %v4208, %v4248
    %v4250 = vpop.f32.mrb[0].mxu0
    %v4251 = vpop.f32.mrb[0].mxu0
    %4252 = vdwg.mxu0
    %4253 = vmatprep.subr.bf16.mxu0 %v3550
    %4254 = vmatpush1.bf16.msra.mxu0 %v3549
    %4255 = vmatprep.subr.bf16.mxu0 %v3558
    %4256 = vmatpush1.bf16.msra.mxu0 %v3557
    %4257 = vmatprep.subr.bf16.mxu0 %v3566
    %4258 = vmatpush1.bf16.msra.mxu0 %v3565
    %4259 = vmatprep.subr.bf16.mxu0 %v3574
    %4260 = vmatpush1.bf16.msra.mxu0 %v3573
    %4261 = vmatprep.subr.bf16.mxu0 %v3582
    %4262 = vmatpush1.bf16.msra.mxu0 %v3581
    %4263 = vmatprep.subr.bf16.mxu0 %v3590
    %4264 = vmatpush1.bf16.msra.mxu0 %v3589
    %4265 = vmatprep.subr.bf16.mxu0 %v3598
    %4266 = vmatpush1.bf16.msra.mxu0 %v3597
    %4267 = vmatprep.subr.bf16.mxu0 %v3606
    %4268 = vmatpush1.bf16.msra.mxu0 %v3605
    %4269 = vmatprep.subr.bf16.mxu0 %v3614
    %4270 = vmatpush1.bf16.msra.mxu0 %v3613
    %4271 = vmatprep.subr.bf16.mxu0 %v3622
    %4272 = vmatpush1.bf16.msra.mxu0 %v3621
    %4273 = vmatprep.subr.bf16.mxu0 %v3630
    %4274 = vmatpush1.bf16.msra.mxu0 %v3629
    %4275 = vmatprep.subr.bf16.mxu0 %v3638
    %4276 = vmatpush1.bf16.msra.mxu0 %v3637
    %4277 = vmatprep.subr.bf16.mxu0 %v3646
    %4278 = vmatpush1.bf16.msra.mxu0 %v3645
    %4279 = vmatprep.subr.bf16.mxu0 %v3654
    %4280 = vmatpush1.bf16.msra.mxu0 %v3653
    %4281 = vmatprep.subr.bf16.mxu0 %v3662
    %4282 = vmatpush1.bf16.msra.mxu0 %v3661
    %4283 = vmatprep.subr.bf16.mxu0 %v3670
    %4284 = vmatpush1.bf16.msra.mxu0 %v3669
    %4285 = vmatprep.mubr.bf16.mxu0 %v3286
    %4286 = vmatmul.mubr.bf16.gmra.mrb[0].mxu0 %v3285
    %v4287 = vpop.f32.mrb[0].mxu0
    %v4288 = vadd.f32 %v4247, %v4287
    %v4289 = vpop.f32.mrb[0].mxu0
    %v4290 = vadd.f32 %v4249, %v4289
    %v4291 = vpop.f32.mrb[0].mxu0
    %v4292 = vpop.f32.mrb[0].mxu0
    %4293 = vdwg.mxu0
    %4294 = vmatprep.subr.bf16.mxu0 %v3678
    %4295 = vmatpush1.bf16.msra.mxu0 %v3677
    %4296 = vmatprep.subr.bf16.mxu0 %v3686
    %4297 = vmatpush1.bf16.msra.mxu0 %v3685
    %4298 = vmatprep.subr.bf16.mxu0 %v3694
    %4299 = vmatpush1.bf16.msra.mxu0 %v3693
    %4300 = vmatprep.subr.bf16.mxu0 %v3702
    %4301 = vmatpush1.bf16.msra.mxu0 %v3701
    %4302 = vmatprep.subr.bf16.mxu0 %v3710
    %4303 = vmatpush1.bf16.msra.mxu0 %v3709
    %4304 = vmatprep.subr.bf16.mxu0 %v3718
    %4305 = vmatpush1.bf16.msra.mxu0 %v3717
    %4306 = vmatprep.subr.bf16.mxu0 %v3726
    %4307 = vmatpush1.bf16.msra.mxu0 %v3725
    %4308 = vmatprep.subr.bf16.mxu0 %v3734
    %4309 = vmatpush1.bf16.msra.mxu0 %v3733
    %4310 = vmatprep.subr.bf16.mxu0 %v3742
    %4311 = vmatpush1.bf16.msra.mxu0 %v3741
    %4312 = vmatprep.subr.bf16.mxu0 %v3750
    %4313 = vmatpush1.bf16.msra.mxu0 %v3749
    %4314 = vmatprep.subr.bf16.mxu0 %v3758
    %4315 = vmatpush1.bf16.msra.mxu0 %v3757
    %4316 = vmatprep.subr.bf16.mxu0 %v3766
    %4317 = vmatpush1.bf16.msra.mxu0 %v3765
    %4318 = vmatprep.subr.bf16.mxu0 %v3774
    %4319 = vmatpush1.bf16.msra.mxu0 %v3773
    %4320 = vmatprep.subr.bf16.mxu0 %v3782
    %4321 = vmatpush1.bf16.msra.mxu0 %v3781
    %4322 = vmatprep.subr.bf16.mxu0 %v3790
    %4323 = vmatpush1.bf16.msra.mxu0 %v3789
    %4324 = vmatprep.subr.bf16.mxu0 %v3798
    %4325 = vmatpush1.bf16.msra.mxu0 %v3797
    %4326 = vmatprep.mubr.bf16.mxu0 %v3288
    %4327 = vmatmul.mubr.bf16.gmra.mrb[0].mxu0 %v3287
    %v4328 = vpop.f32.mrb[0].mxu0
    %v4329 = vadd.f32 %v4288, %v4328
    %v4330 = vpop.f32.mrb[0].mxu0
    %v4331 = vadd.f32 %v4290, %v4330
    %v4332 = vpop.f32.mrb[0].mxu0
    %v4333 = vpop.f32.mrb[0].mxu0
    %4334 = vdwg.mxu0
    %4335 = vmatprep.subr.bf16.mxu0 %v3296
    %4336 = vmatpush1.bf16.msra.mxu0 %v3295
    %4337 = vmatprep.subr.bf16.mxu0 %v3304
    %4338 = vmatpush1.bf16.msra.mxu0 %v3303
    %4339 = vmatprep.subr.bf16.mxu0 %v3312
    %4340 = vmatpush1.bf16.msra.mxu0 %v3311
    %4341 = vmatprep.subr.bf16.mxu0 %v3320
    %4342 = vmatpush1.bf16.msra.mxu0 %v3319
    %4343 = vmatprep.subr.bf16.mxu0 %v3328
    %4344 = vmatpush1.bf16.msra.mxu0 %v3327
    %4345 = vmatprep.subr.bf16.mxu0 %v3336
    %4346 = vmatpush1.bf16.msra.mxu0 %v3335
    %4347 = vmatprep.subr.bf16.mxu0 %v3344
    %4348 = vmatpush1.bf16.msra.mxu0 %v3343
    %4349 = vmatprep.subr.bf16.mxu0 %v3352
    %4350 = vmatpush1.bf16.msra.mxu0 %v3351
    %4351 = vmatprep.subr.bf16.mxu0 %v3360
    %4352 = vmatpush1.bf16.msra.mxu0 %v3359
    %4353 = vmatprep.subr.bf16.mxu0 %v3368
    %4354 = vmatpush1.bf16.msra.mxu0 %v3367
    %4355 = vmatprep.subr.bf16.mxu0 %v3376
    %4356 = vmatpush1.bf16.msra.mxu0 %v3375
    %4357 = vmatprep.subr.bf16.mxu0 %v3384
    %4358 = vmatpush1.bf16.msra.mxu0 %v3383
    %4359 = vmatprep.subr.bf16.mxu0 %v3392
    %4360 = vmatpush1.bf16.msra.mxu0 %v3391
    %4361 = vmatprep.subr.bf16.mxu0 %v3400
    %4362 = vmatpush1.bf16.msra.mxu0 %v3399
    %4363 = vmatprep.subr.bf16.mxu0 %v3408
    %4364 = vmatpush1.bf16.msra.mxu0 %v3407
    %4365 = vmatprep.subr.bf16.mxu0 %v3416
    %4366 = vmatpush1.bf16.msra.mxu0 %v3415
    %4367 = vmatprep.mubr.bf16.mxu0 %v3282
    %4368 = vmatmul.mubr.bf16.gmra.mrb[0].mxu0 %v3281
    %v4369 = vpop.f32.mrb[0].mxu0
    %v4370 = vadd.f32 %v3830, %v4369
    %v4371 = vpop.f32.mrb[0].mxu0
    %v4372 = vadd.f32 %v3834, %v4371
    %v4373 = vpop.f32.mrb[0].mxu0
    %v4374 = vpop.f32.mrb[0].mxu0
    %4375 = vdwg.mxu0
    %4376 = vmatprep.subr.bf16.mxu0 %v3424
    %4377 = vmatpush1.bf16.msra.mxu0 %v3423
    %4378 = vmatprep.subr.bf16.mxu0 %v3432
    %4379 = vmatpush1.bf16.msra.mxu0 %v3431
    %4380 = vmatprep.subr.bf16.mxu0 %v3440
    %4381 = vmatpush1.bf16.msra.mxu0 %v3439
    %4382 = vmatprep.subr.bf16.mxu0 %v3448
    %4383 = vmatpush1.bf16.msra.mxu0 %v3447
    %4384 = vmatprep.subr.bf16.mxu0 %v3456
    %4385 = vmatpush1.bf16.msra.mxu0 %v3455
    %4386 = vmatprep.subr.bf16.mxu0 %v3464
    %4387 = vmatpush1.bf16.msra.mxu0 %v3463
    %4388 = vmatprep.subr.bf16.mxu0 %v3472
    %4389 = vmatpush1.bf16.msra.mxu0 %v3471
    %4390 = vmatprep.subr.bf16.mxu0 %v3480
    %4391 = vmatpush1.bf16.msra.mxu0 %v3479
    %4392 = vmatprep.subr.bf16.mxu0 %v3488
    %4393 = vmatpush1.bf16.msra.mxu0 %v3487
    %4394 = vmatprep.subr.bf16.mxu0 %v3496
    %4395 = vmatpush1.bf16.msra.mxu0 %v3495
    %4396 = vmatprep.subr.bf16.mxu0 %v3504
    %4397 = vmatpush1.bf16.msra.mxu0 %v3503
    %4398 = vmatprep.subr.bf16.mxu0 %v3512
    %4399 = vmatpush1.bf16.msra.mxu0 %v3511
    %4400 = vmatprep.subr.bf16.mxu0 %v3520
    %4401 = vmatpush1.bf16.msra.mxu0 %v3519
    %4402 = vmatprep.subr.bf16.mxu0 %v3528
    %4403 = vmatpush1.bf16.msra.mxu0 %v3527
    %4404 = vmatprep.subr.bf16.mxu0 %v3536
    %4405 = vmatpush1.bf16.msra.mxu0 %v3535
    %4406 = vmatprep.subr.bf16.mxu0 %v3544
    %4407 = vmatpush1.bf16.msra.mxu0 %v3543
    %4408 = vmatprep.mubr.bf16.mxu0 %v3284
    %4409 = vmatmul.mubr.bf16.gmra.mrb[0].mxu0 %v3283
    %v4410 = vpop.f32.mrb[0].mxu0
    %v4411 = vadd.f32 %v4370, %v4410
    %v4412 = vpop.f32.mrb[0].mxu0
    %v4413 = vadd.f32 %v4372, %v4412
    %v4414 = vpop.f32.mrb[0].mxu0
    %v4415 = vpop.f32.mrb[0].mxu0
    %4416 = vdwg.mxu0
    %4417 = vmatprep.subr.bf16.mxu0 %v3552
    %4418 = vmatpush1.bf16.msra.mxu0 %v3551
    %4419 = vmatprep.subr.bf16.mxu0 %v3560
    %4420 = vmatpush1.bf16.msra.mxu0 %v3559
    %4421 = vmatprep.subr.bf16.mxu0 %v3568
    %4422 = vmatpush1.bf16.msra.mxu0 %v3567
    %4423 = vmatprep.subr.bf16.mxu0 %v3576
    %4424 = vmatpush1.bf16.msra.mxu0 %v3575
    %4425 = vmatprep.subr.bf16.mxu0 %v3584
    %4426 = vmatpush1.bf16.msra.mxu0 %v3583
    %4427 = vmatprep.subr.bf16.mxu0 %v3592
    %4428 = vmatpush1.bf16.msra.mxu0 %v3591
    %4429 = vmatprep.subr.bf16.mxu0 %v3600
    %4430 = vmatpush1.bf16.msra.mxu0 %v3599
    %4431 = vmatprep.subr.bf16.mxu0 %v3608
    %4432 = vmatpush1.bf16.msra.mxu0 %v3607
    %4433 = vmatprep.subr.bf16.mxu0 %v3616
    %4434 = vmatpush1.bf16.msra.mxu0 %v3615
    %4435 = vmatprep.subr.bf16.mxu0 %v3624
    %4436 = vmatpush1.bf16.msra.mxu0 %v3623
    %4437 = vmatprep.subr.bf16.mxu0 %v3632
    %4438 = vmatpush1.bf16.msra.mxu0 %v3631
    %4439 = vmatprep.subr.bf16.mxu0 %v3640
    %4440 = vmatpush1.bf16.msra.mxu0 %v3639
    %4441 = vmatprep.subr.bf16.mxu0 %v3648
    %4442 = vmatpush1.bf16.msra.mxu0 %v3647
    %4443 = vmatprep.subr.bf16.mxu0 %v3656
    %4444 = vmatpush1.bf16.msra.mxu0 %v3655
    %4445 = vmatprep.subr.bf16.mxu0 %v3664
    %4446 = vmatpush1.bf16.msra.mxu0 %v3663
    %4447 = vmatprep.subr.bf16.mxu0 %v3672
    %4448 = vmatpush1.bf16.msra.mxu0 %v3671
    %4449 = vmatprep.mubr.bf16.mxu0 %v3286
    %4450 = vmatmul.mubr.bf16.gmra.mrb[0].mxu0 %v3285
    %v4451 = vpop.f32.mrb[0].mxu0
    %v4452 = vadd.f32 %v4411, %v4451
    %v4453 = vpop.f32.mrb[0].mxu0
    %v4454 = vadd.f32 %v4413, %v4453
    %v4455 = vpop.f32.mrb[0].mxu0
    %v4456 = vpop.f32.mrb[0].mxu0
    %4457 = vdwg.mxu0
    %4458 = vmatprep.subr.bf16.mxu0 %v3680
    %4459 = vmatpush1.bf16.msra.mxu0 %v3679
    %4460 = vmatprep.subr.bf16.mxu0 %v3688
    %4461 = vmatpush1.bf16.msra.mxu0 %v3687
    %4462 = vmatprep.subr.bf16.mxu0 %v3696
    %4463 = vmatpush1.bf16.msra.mxu0 %v3695
    %4464 = vmatprep.subr.bf16.mxu0 %v3704
    %4465 = vmatpush1.bf16.msra.mxu0 %v3703
    %4466 = vmatprep.subr.bf16.mxu0 %v3712
    %4467 = vmatpush1.bf16.msra.mxu0 %v3711
    %4468 = vmatprep.subr.bf16.mxu0 %v3720
    %4469 = vmatpush1.bf16.msra.mxu0 %v3719
    %4470 = vmatprep.subr.bf16.mxu0 %v3728
    %4471 = vmatpush1.bf16.msra.mxu0 %v3727
    %4472 = vmatprep.subr.bf16.mxu0 %v3736
    %4473 = vmatpush1.bf16.msra.mxu0 %v3735
    %4474 = vmatprep.subr.bf16.mxu0 %v3744
    %4475 = vmatpush1.bf16.msra.mxu0 %v3743
    %4476 = vmatprep.subr.bf16.mxu0 %v3752
    %4477 = vmatpush1.bf16.msra.mxu0 %v3751
    %4478 = vmatprep.subr.bf16.mxu0 %v3760
    %4479 = vmatpush1.bf16.msra.mxu0 %v3759
    %4480 = vmatprep.subr.bf16.mxu0 %v3768
    %4481 = vmatpush1.bf16.msra.mxu0 %v3767
    %4482 = vmatprep.subr.bf16.mxu0 %v3776
    %4483 = vmatpush1.bf16.msra.mxu0 %v3775
    %4484 = vmatprep.subr.bf16.mxu0 %v3784
    %4485 = vmatpush1.bf16.msra.mxu0 %v3783
    %4486 = vmatprep.subr.bf16.mxu0 %v3792
    %4487 = vmatpush1.bf16.msra.mxu0 %v3791
    %4488 = vmatprep.subr.bf16.mxu0 %v3800
    %4489 = vmatpush1.bf16.msra.mxu0 %v3799
    %4490 = vmatprep.mubr.bf16.mxu0 %v3288
    %4491 = vmatmul.mubr.bf16.gmra.mrb[0].mxu0 %v3287
    %v4492 = vpop.f32.mrb[0].mxu0
    %v4493 = vadd.f32 %v4452, %v4492
    %v4494 = vpop.f32.mrb[0].mxu0
    %v4495 = vadd.f32 %v4454, %v4494
    %v4496 = vpop.f32.mrb[0].mxu0
    %v4497 = vpop.f32.mrb[0].mxu0
    %4498 = vdwg.mxu0
    %v4499 = vmax.f32 %v4001, 0.0
    %v4500 = vmax.f32 %v4003, 0.0
    %v4501 = vmax.f32 %v4165, 0.0
    %v4502 = vmax.f32 %v4167, 0.0
    %v4503 = vmax.f32 %v4329, 0.0
    %v4504 = vmax.f32 %v4331, 0.0
    %v4505 = vmax.f32 %v4493, 0.0
    %v4506 = vmax.f32 %v4495, 0.0
    %s4507 = sshll.u32 %s3278, 4
    %4508 = dma.done %s177, %s4507
    %v4509 = vpack.c.bf16 %v4499, %v4499
    %v4510 = vpack.c.bf16 %v4500, %v4500
    %v4511 = vpack.c.bf16 %v4501, %v4501
    %v4512 = vpack.c.bf16 %v4502, %v4502
    %v4513 = vpack.c.bf16 %v4503, %v4503
    %v4514 = vpack.c.bf16 %v4504, %v4504
    %v4515 = vpack.c.bf16 %v4505, %v4505
    %v4516 = vpack.c.bf16 %v4506, %v4506
    %v4517 = vld [vmem:[#allocation4] sm:$0xff]
    %v4518 = vld [vmem:[#allocation4 + $0x8] sm:$0xff]
    %v4519 = vld [vmem:[#allocation4 + $0x10] sm:$0xff]
    %v4520 = vld [vmem:[#allocation4 + $0x18] sm:$0xff]
    %v4521 = vld [vmem:[#allocation4 + $0x20] sm:$0xff]
    %v4522 = vld [vmem:[#allocation4 + $0x28] sm:$0xff]
    %v4523 = vld [vmem:[#allocation4 + $0x30] sm:$0xff]
    %v4524 = vld [vmem:[#allocation4 + $0x38] sm:$0xff]
    %v4525 = vld [vmem:[#allocation4 + $0x40] sm:$0xff]
    %v4526 = vld [vmem:[#allocation4 + $0x48] sm:$0xff]
    %v4527 = vld [vmem:[#allocation4 + $0x50] sm:$0xff]
    %v4528 = vld [vmem:[#allocation4 + $0x58] sm:$0xff]
    %v4529 = vld [vmem:[#allocation4 + $0x60] sm:$0xff]
    %v4530 = vld [vmem:[#allocation4 + $0x68] sm:$0xff]
    %v4531 = vld [vmem:[#allocation4 + $0x70] sm:$0xff]
    %v4532 = vld [vmem:[#allocation4 + $0x78] sm:$0xff]
    %v4533 = vld [vmem:[#allocation4 + $0x80] sm:$0xff]
    %v4534 = vld [vmem:[#allocation4 + $0x88] sm:$0xff]
    %v4535 = vld [vmem:[#allocation4 + $0x90] sm:$0xff]
    %v4536 = vld [vmem:[#allocation4 + $0x98] sm:$0xff]
    %v4537 = vld [vmem:[#allocation4 + $0xa0] sm:$0xff]
    %v4538 = vld [vmem:[#allocation4 + $0xa8] sm:$0xff]
    %v4539 = vld [vmem:[#allocation4 + $0xb0] sm:$0xff]
    %v4540 = vld [vmem:[#allocation4 + $0xb8] sm:$0xff]
    %v4541 = vld [vmem:[#allocation4 + $0xc0] sm:$0xff]
    %v4542 = vld [vmem:[#allocation4 + $0xc8] sm:$0xff]
    %v4543 = vld [vmem:[#allocation4 + $0xd0] sm:$0xff]
    %v4544 = vld [vmem:[#allocation4 + $0xd8] sm:$0xff]
    %v4545 = vld [vmem:[#allocation4 + $0xe0] sm:$0xff]
    %v4546 = vld [vmem:[#allocation4 + $0xe8] sm:$0xff]
    %v4547 = vld [vmem:[#allocation4 + $0xf0] sm:$0xff]
    %v4548 = vld [vmem:[#allocation4 + $0xf8] sm:$0xff]
    %v4549 = vld [vmem:[#allocation4 + $0x100] sm:$0xff]
    %v4550 = vld [vmem:[#allocation4 + $0x108] sm:$0xff]
    %v4551 = vld [vmem:[#allocation4 + $0x110] sm:$0xff]
    %v4552 = vld [vmem:[#allocation4 + $0x118] sm:$0xff]
    %v4553 = vld [vmem:[#allocation4 + $0x120] sm:$0xff]
    %v4554 = vld [vmem:[#allocation4 + $0x128] sm:$0xff]
    %v4555 = vld [vmem:[#allocation4 + $0x130] sm:$0xff]
    %v4556 = vld [vmem:[#allocation4 + $0x138] sm:$0xff]
    %v4557 = vld [vmem:[#allocation4 + $0x140] sm:$0xff]
    %v4558 = vld [vmem:[#allocation4 + $0x148] sm:$0xff]
    %v4559 = vld [vmem:[#allocation4 + $0x150] sm:$0xff]
    %v4560 = vld [vmem:[#allocation4 + $0x158] sm:$0xff]
    %v4561 = vld [vmem:[#allocation4 + $0x160] sm:$0xff]
    %v4562 = vld [vmem:[#allocation4 + $0x168] sm:$0xff]
    %v4563 = vld [vmem:[#allocation4 + $0x170] sm:$0xff]
    %v4564 = vld [vmem:[#allocation4 + $0x178] sm:$0xff]
    %v4565 = vld [vmem:[#allocation4 + $0x180] sm:$0xff]
    %v4566 = vld [vmem:[#allocation4 + $0x188] sm:$0xff]
    %v4567 = vld [vmem:[#allocation4 + $0x190] sm:$0xff]
    %v4568 = vld [vmem:[#allocation4 + $0x198] sm:$0xff]
    %v4569 = vld [vmem:[#allocation4 + $0x1a0] sm:$0xff]
    %v4570 = vld [vmem:[#allocation4 + $0x1a8] sm:$0xff]
    %v4571 = vld [vmem:[#allocation4 + $0x1b0] sm:$0xff]
    %v4572 = vld [vmem:[#allocation4 + $0x1b8] sm:$0xff]
    %v4573 = vld [vmem:[#allocation4 + $0x1c0] sm:$0xff]
    %v4574 = vld [vmem:[#allocation4 + $0x1c8] sm:$0xff]
    %v4575 = vld [vmem:[#allocation4 + $0x1d0] sm:$0xff]
    %v4576 = vld [vmem:[#allocation4 + $0x1d8] sm:$0xff]
    %v4577 = vld [vmem:[#allocation4 + $0x1e0] sm:$0xff]
    %v4578 = vld [vmem:[#allocation4 + $0x1e8] sm:$0xff]
    %v4579 = vld [vmem:[#allocation4 + $0x1f0] sm:$0xff]
    %v4580 = vld [vmem:[#allocation4 + $0x1f8] sm:$0xff]
    %v4581 = vld [vmem:[#allocation4 + $0x200] sm:$0xff]
    %v4582 = vld [vmem:[#allocation4 + $0x208] sm:$0xff]
    %v4583 = vld [vmem:[#allocation4 + $0x210] sm:$0xff]
    %v4584 = vld [vmem:[#allocation4 + $0x218] sm:$0xff]
    %v4585 = vld [vmem:[#allocation4 + $0x220] sm:$0xff]
    %v4586 = vld [vmem:[#allocation4 + $0x228] sm:$0xff]
    %v4587 = vld [vmem:[#allocation4 + $0x230] sm:$0xff]
    %v4588 = vld [vmem:[#allocation4 + $0x238] sm:$0xff]
    %v4589 = vld [vmem:[#allocation4 + $0x240] sm:$0xff]
    %v4590 = vld [vmem:[#allocation4 + $0x248] sm:$0xff]
    %v4591 = vld [vmem:[#allocation4 + $0x250] sm:$0xff]
    %v4592 = vld [vmem:[#allocation4 + $0x258] sm:$0xff]
    %v4593 = vld [vmem:[#allocation4 + $0x260] sm:$0xff]
    %v4594 = vld [vmem:[#allocation4 + $0x268] sm:$0xff]
    %v4595 = vld [vmem:[#allocation4 + $0x270] sm:$0xff]
    %v4596 = vld [vmem:[#allocation4 + $0x278] sm:$0xff]
    %v4597 = vld [vmem:[#allocation4 + $0x280] sm:$0xff]
    %v4598 = vld [vmem:[#allocation4 + $0x288] sm:$0xff]
    %v4599 = vld [vmem:[#allocation4 + $0x290] sm:$0xff]
    %v4600 = vld [vmem:[#allocation4 + $0x298] sm:$0xff]
    %v4601 = vld [vmem:[#allocation4 + $0x2a0] sm:$0xff]
    %v4602 = vld [vmem:[#allocation4 + $0x2a8] sm:$0xff]
    %v4603 = vld [vmem:[#allocation4 + $0x2b0] sm:$0xff]
    %v4604 = vld [vmem:[#allocation4 + $0x2b8] sm:$0xff]
    %v4605 = vld [vmem:[#allocation4 + $0x2c0] sm:$0xff]
    %v4606 = vld [vmem:[#allocation4 + $0x2c8] sm:$0xff]
    %v4607 = vld [vmem:[#allocation4 + $0x2d0] sm:$0xff]
    %v4608 = vld [vmem:[#allocation4 + $0x2d8] sm:$0xff]
    %v4609 = vld [vmem:[#allocation4 + $0x2e0] sm:$0xff]
    %v4610 = vld [vmem:[#allocation4 + $0x2e8] sm:$0xff]
    %v4611 = vld [vmem:[#allocation4 + $0x2f0] sm:$0xff]
    %v4612 = vld [vmem:[#allocation4 + $0x2f8] sm:$0xff]
    %v4613 = vld [vmem:[#allocation4 + $0x300] sm:$0xff]
    %v4614 = vld [vmem:[#allocation4 + $0x308] sm:$0xff]
    %v4615 = vld [vmem:[#allocation4 + $0x310] sm:$0xff]
    %v4616 = vld [vmem:[#allocation4 + $0x318] sm:$0xff]
    %v4617 = vld [vmem:[#allocation4 + $0x320] sm:$0xff]
    %v4618 = vld [vmem:[#allocation4 + $0x328] sm:$0xff]
    %v4619 = vld [vmem:[#allocation4 + $0x330] sm:$0xff]
    %v4620 = vld [vmem:[#allocation4 + $0x338] sm:$0xff]
    %v4621 = vld [vmem:[#allocation4 + $0x340] sm:$0xff]
    %v4622 = vld [vmem:[#allocation4 + $0x348] sm:$0xff]
    %v4623 = vld [vmem:[#allocation4 + $0x350] sm:$0xff]
    %v4624 = vld [vmem:[#allocation4 + $0x358] sm:$0xff]
    %v4625 = vld [vmem:[#allocation4 + $0x360] sm:$0xff]
    %v4626 = vld [vmem:[#allocation4 + $0x368] sm:$0xff]
    %v4627 = vld [vmem:[#allocation4 + $0x370] sm:$0xff]
    %v4628 = vld [vmem:[#allocation4 + $0x378] sm:$0xff]
    %v4629 = vld [vmem:[#allocation4 + $0x380] sm:$0xff]
    %v4630 = vld [vmem:[#allocation4 + $0x388] sm:$0xff]
    %v4631 = vld [vmem:[#allocation4 + $0x390] sm:$0xff]
    %v4632 = vld [vmem:[#allocation4 + $0x398] sm:$0xff]
    %v4633 = vld [vmem:[#allocation4 + $0x3a0] sm:$0xff]
    %v4634 = vld [vmem:[#allocation4 + $0x3a8] sm:$0xff]
    %v4635 = vld [vmem:[#allocation4 + $0x3b0] sm:$0xff]
    %v4636 = vld [vmem:[#allocation4 + $0x3b8] sm:$0xff]
    %v4637 = vld [vmem:[#allocation4 + $0x3c0] sm:$0xff]
    %v4638 = vld [vmem:[#allocation4 + $0x3c8] sm:$0xff]
    %v4639 = vld [vmem:[#allocation4 + $0x3d0] sm:$0xff]
    %v4640 = vld [vmem:[#allocation4 + $0x3d8] sm:$0xff]
    %v4641 = vld [vmem:[#allocation4 + $0x3e0] sm:$0xff]
    %v4642 = vld [vmem:[#allocation4 + $0x3e8] sm:$0xff]
    %v4643 = vld [vmem:[#allocation4 + $0x3f0] sm:$0xff]
    %v4644 = vld [vmem:[#allocation4 + $0x3f8] sm:$0xff]
    %v4645 = vld [vmem:[#allocation4 + $0x400] sm:$0xff]
    %v4646 = vld [vmem:[#allocation4 + $0x408] sm:$0xff]
    %v4647 = vld [vmem:[#allocation4 + $0x410] sm:$0xff]
    %v4648 = vld [vmem:[#allocation4 + $0x418] sm:$0xff]
    %v4649 = vld [vmem:[#allocation4 + $0x420] sm:$0xff]
    %v4650 = vld [vmem:[#allocation4 + $0x428] sm:$0xff]
    %v4651 = vld [vmem:[#allocation4 + $0x430] sm:$0xff]
    %v4652 = vld [vmem:[#allocation4 + $0x438] sm:$0xff]
    %v4653 = vld [vmem:[#allocation4 + $0x440] sm:$0xff]
    %v4654 = vld [vmem:[#allocation4 + $0x448] sm:$0xff]
    %v4655 = vld [vmem:[#allocation4 + $0x450] sm:$0xff]
    %v4656 = vld [vmem:[#allocation4 + $0x458] sm:$0xff]
    %v4657 = vld [vmem:[#allocation4 + $0x460] sm:$0xff]
    %v4658 = vld [vmem:[#allocation4 + $0x468] sm:$0xff]
    %v4659 = vld [vmem:[#allocation4 + $0x470] sm:$0xff]
    %v4660 = vld [vmem:[#allocation4 + $0x478] sm:$0xff]
    %v4661 = vld [vmem:[#allocation4 + $0x480] sm:$0xff]
    %v4662 = vld [vmem:[#allocation4 + $0x488] sm:$0xff]
    %v4663 = vld [vmem:[#allocation4 + $0x490] sm:$0xff]
    %v4664 = vld [vmem:[#allocation4 + $0x498] sm:$0xff]
    %v4665 = vld [vmem:[#allocation4 + $0x4a0] sm:$0xff]
    %v4666 = vld [vmem:[#allocation4 + $0x4a8] sm:$0xff]
    %v4667 = vld [vmem:[#allocation4 + $0x4b0] sm:$0xff]
    %v4668 = vld [vmem:[#allocation4 + $0x4b8] sm:$0xff]
    %v4669 = vld [vmem:[#allocation4 + $0x4c0] sm:$0xff]
    %v4670 = vld [vmem:[#allocation4 + $0x4c8] sm:$0xff]
    %v4671 = vld [vmem:[#allocation4 + $0x4d0] sm:$0xff]
    %v4672 = vld [vmem:[#allocation4 + $0x4d8] sm:$0xff]
    %v4673 = vld [vmem:[#allocation4 + $0x4e0] sm:$0xff]
    %v4674 = vld [vmem:[#allocation4 + $0x4e8] sm:$0xff]
    %v4675 = vld [vmem:[#allocation4 + $0x4f0] sm:$0xff]
    %v4676 = vld [vmem:[#allocation4 + $0x4f8] sm:$0xff]
    %v4677 = vld [vmem:[#allocation4 + $0x500] sm:$0xff]
    %v4678 = vld [vmem:[#allocation4 + $0x508] sm:$0xff]
    %v4679 = vld [vmem:[#allocation4 + $0x510] sm:$0xff]
    %v4680 = vld [vmem:[#allocation4 + $0x518] sm:$0xff]
    %v4681 = vld [vmem:[#allocation4 + $0x520] sm:$0xff]
    %v4682 = vld [vmem:[#allocation4 + $0x528] sm:$0xff]
    %v4683 = vld [vmem:[#allocation4 + $0x530] sm:$0xff]
    %v4684 = vld [vmem:[#allocation4 + $0x538] sm:$0xff]
    %v4685 = vld [vmem:[#allocation4 + $0x540] sm:$0xff]
    %v4686 = vld [vmem:[#allocation4 + $0x548] sm:$0xff]
    %v4687 = vld [vmem:[#allocation4 + $0x550] sm:$0xff]
    %v4688 = vld [vmem:[#allocation4 + $0x558] sm:$0xff]
    %v4689 = vld [vmem:[#allocation4 + $0x560] sm:$0xff]
    %v4690 = vld [vmem:[#allocation4 + $0x568] sm:$0xff]
    %v4691 = vld [vmem:[#allocation4 + $0x570] sm:$0xff]
    %v4692 = vld [vmem:[#allocation4 + $0x578] sm:$0xff]
    %v4693 = vld [vmem:[#allocation4 + $0x580] sm:$0xff]
    %v4694 = vld [vmem:[#allocation4 + $0x588] sm:$0xff]
    %v4695 = vld [vmem:[#allocation4 + $0x590] sm:$0xff]
    %v4696 = vld [vmem:[#allocation4 + $0x598] sm:$0xff]
    %v4697 = vld [vmem:[#allocation4 + $0x5a0] sm:$0xff]
    %v4698 = vld [vmem:[#allocation4 + $0x5a8] sm:$0xff]
    %v4699 = vld [vmem:[#allocation4 + $0x5b0] sm:$0xff]
    %v4700 = vld [vmem:[#allocation4 + $0x5b8] sm:$0xff]
    %v4701 = vld [vmem:[#allocation4 + $0x5c0] sm:$0xff]
    %v4702 = vld [vmem:[#allocation4 + $0x5c8] sm:$0xff]
    %v4703 = vld [vmem:[#allocation4 + $0x5d0] sm:$0xff]
    %v4704 = vld [vmem:[#allocation4 + $0x5d8] sm:$0xff]
    %v4705 = vld [vmem:[#allocation4 + $0x5e0] sm:$0xff]
    %v4706 = vld [vmem:[#allocation4 + $0x5e8] sm:$0xff]
    %v4707 = vld [vmem:[#allocation4 + $0x5f0] sm:$0xff]
    %v4708 = vld [vmem:[#allocation4 + $0x5f8] sm:$0xff]
    %v4709 = vld [vmem:[#allocation4 + $0x600] sm:$0xff]
    %v4710 = vld [vmem:[#allocation4 + $0x608] sm:$0xff]
    %v4711 = vld [vmem:[#allocation4 + $0x610] sm:$0xff]
    %v4712 = vld [vmem:[#allocation4 + $0x618] sm:$0xff]
    %v4713 = vld [vmem:[#allocation4 + $0x620] sm:$0xff]
    %v4714 = vld [vmem:[#allocation4 + $0x628] sm:$0xff]
    %v4715 = vld [vmem:[#allocation4 + $0x630] sm:$0xff]
    %v4716 = vld [vmem:[#allocation4 + $0x638] sm:$0xff]
    %v4717 = vld [vmem:[#allocation4 + $0x640] sm:$0xff]
    %v4718 = vld [vmem:[#allocation4 + $0x648] sm:$0xff]
    %v4719 = vld [vmem:[#allocation4 + $0x650] sm:$0xff]
    %v4720 = vld [vmem:[#allocation4 + $0x658] sm:$0xff]
    %v4721 = vld [vmem:[#allocation4 + $0x660] sm:$0xff]
    %v4722 = vld [vmem:[#allocation4 + $0x668] sm:$0xff]
    %v4723 = vld [vmem:[#allocation4 + $0x670] sm:$0xff]
    %v4724 = vld [vmem:[#allocation4 + $0x678] sm:$0xff]
    %v4725 = vld [vmem:[#allocation4 + $0x680] sm:$0xff]
    %v4726 = vld [vmem:[#allocation4 + $0x688] sm:$0xff]
    %v4727 = vld [vmem:[#allocation4 + $0x690] sm:$0xff]
    %v4728 = vld [vmem:[#allocation4 + $0x698] sm:$0xff]
    %v4729 = vld [vmem:[#allocation4 + $0x6a0] sm:$0xff]
    %v4730 = vld [vmem:[#allocation4 + $0x6a8] sm:$0xff]
    %v4731 = vld [vmem:[#allocation4 + $0x6b0] sm:$0xff]
    %v4732 = vld [vmem:[#allocation4 + $0x6b8] sm:$0xff]
    %v4733 = vld [vmem:[#allocation4 + $0x6c0] sm:$0xff]
    %v4734 = vld [vmem:[#allocation4 + $0x6c8] sm:$0xff]
    %v4735 = vld [vmem:[#allocation4 + $0x6d0] sm:$0xff]
    %v4736 = vld [vmem:[#allocation4 + $0x6d8] sm:$0xff]
    %v4737 = vld [vmem:[#allocation4 + $0x6e0] sm:$0xff]
    %v4738 = vld [vmem:[#allocation4 + $0x6e8] sm:$0xff]
    %v4739 = vld [vmem:[#allocation4 + $0x6f0] sm:$0xff]
    %v4740 = vld [vmem:[#allocation4 + $0x6f8] sm:$0xff]
    %v4741 = vld [vmem:[#allocation4 + $0x700] sm:$0xff]
    %v4742 = vld [vmem:[#allocation4 + $0x708] sm:$0xff]
    %v4743 = vld [vmem:[#allocation4 + $0x710] sm:$0xff]
    %v4744 = vld [vmem:[#allocation4 + $0x718] sm:$0xff]
    %v4745 = vld [vmem:[#allocation4 + $0x720] sm:$0xff]
    %v4746 = vld [vmem:[#allocation4 + $0x728] sm:$0xff]
    %v4747 = vld [vmem:[#allocation4 + $0x730] sm:$0xff]
    %v4748 = vld [vmem:[#allocation4 + $0x738] sm:$0xff]
    %v4749 = vld [vmem:[#allocation4 + $0x740] sm:$0xff]
    %v4750 = vld [vmem:[#allocation4 + $0x748] sm:$0xff]
    %v4751 = vld [vmem:[#allocation4 + $0x750] sm:$0xff]
    %v4752 = vld [vmem:[#allocation4 + $0x758] sm:$0xff]
    %v4753 = vld [vmem:[#allocation4 + $0x760] sm:$0xff]
    %v4754 = vld [vmem:[#allocation4 + $0x768] sm:$0xff]
    %v4755 = vld [vmem:[#allocation4 + $0x770] sm:$0xff]
    %v4756 = vld [vmem:[#allocation4 + $0x778] sm:$0xff]
    %v4757 = vld [vmem:[#allocation4 + $0x780] sm:$0xff]
    %v4758 = vld [vmem:[#allocation4 + $0x788] sm:$0xff]
    %v4759 = vld [vmem:[#allocation4 + $0x790] sm:$0xff]
    %v4760 = vld [vmem:[#allocation4 + $0x798] sm:$0xff]
    %v4761 = vld [vmem:[#allocation4 + $0x7a0] sm:$0xff]
    %v4762 = vld [vmem:[#allocation4 + $0x7a8] sm:$0xff]
    %v4763 = vld [vmem:[#allocation4 + $0x7b0] sm:$0xff]
    %v4764 = vld [vmem:[#allocation4 + $0x7b8] sm:$0xff]
    %v4765 = vld [vmem:[#allocation4 + $0x7c0] sm:$0xff]
    %v4766 = vld [vmem:[#allocation4 + $0x7c8] sm:$0xff]
    %v4767 = vld [vmem:[#allocation4 + $0x7d0] sm:$0xff]
    %v4768 = vld [vmem:[#allocation4 + $0x7d8] sm:$0xff]
    %v4769 = vld [vmem:[#allocation4 + $0x7e0] sm:$0xff]
    %v4770 = vld [vmem:[#allocation4 + $0x7e8] sm:$0xff]
    %v4771 = vld [vmem:[#allocation4 + $0x7f0] sm:$0xff]
    %v4772 = vld [vmem:[#allocation4 + $0x7f8] sm:$0xff]
    %v4773 = vld [vmem:[#allocation4 + $0x800] sm:$0xff]
    %v4774 = vld [vmem:[#allocation4 + $0x808] sm:$0xff]
    %v4775 = vld [vmem:[#allocation4 + $0x810] sm:$0xff]
    %v4776 = vld [vmem:[#allocation4 + $0x818] sm:$0xff]
    %v4777 = vld [vmem:[#allocation4 + $0x820] sm:$0xff]
    %v4778 = vld [vmem:[#allocation4 + $0x828] sm:$0xff]
    %v4779 = vld [vmem:[#allocation4 + $0x830] sm:$0xff]
    %v4780 = vld [vmem:[#allocation4 + $0x838] sm:$0xff]
    %v4781 = vld [vmem:[#allocation4 + $0x840] sm:$0xff]
    %v4782 = vld [vmem:[#allocation4 + $0x848] sm:$0xff]
    %v4783 = vld [vmem:[#allocation4 + $0x850] sm:$0xff]
    %v4784 = vld [vmem:[#allocation4 + $0x858] sm:$0xff]
    %v4785 = vld [vmem:[#allocation4 + $0x860] sm:$0xff]
    %v4786 = vld [vmem:[#allocation4 + $0x868] sm:$0xff]
    %v4787 = vld [vmem:[#allocation4 + $0x870] sm:$0xff]
    %v4788 = vld [vmem:[#allocation4 + $0x878] sm:$0xff]
    %v4789 = vld [vmem:[#allocation4 + $0x880] sm:$0xff]
    %v4790 = vld [vmem:[#allocation4 + $0x888] sm:$0xff]
    %v4791 = vld [vmem:[#allocation4 + $0x890] sm:$0xff]
    %v4792 = vld [vmem:[#allocation4 + $0x898] sm:$0xff]
    %v4793 = vld [vmem:[#allocation4 + $0x8a0] sm:$0xff]
    %v4794 = vld [vmem:[#allocation4 + $0x8a8] sm:$0xff]
    %v4795 = vld [vmem:[#allocation4 + $0x8b0] sm:$0xff]
    %v4796 = vld [vmem:[#allocation4 + $0x8b8] sm:$0xff]
    %v4797 = vld [vmem:[#allocation4 + $0x8c0] sm:$0xff]
    %v4798 = vld [vmem:[#allocation4 + $0x8c8] sm:$0xff]
    %v4799 = vld [vmem:[#allocation4 + $0x8d0] sm:$0xff]
    %v4800 = vld [vmem:[#allocation4 + $0x8d8] sm:$0xff]
    %v4801 = vld [vmem:[#allocation4 + $0x8e0] sm:$0xff]
    %v4802 = vld [vmem:[#allocation4 + $0x8e8] sm:$0xff]
    %v4803 = vld [vmem:[#allocation4 + $0x8f0] sm:$0xff]
    %v4804 = vld [vmem:[#allocation4 + $0x8f8] sm:$0xff]
    %v4805 = vld [vmem:[#allocation4 + $0x900] sm:$0xff]
    %v4806 = vld [vmem:[#allocation4 + $0x908] sm:$0xff]
    %v4807 = vld [vmem:[#allocation4 + $0x910] sm:$0xff]
    %v4808 = vld [vmem:[#allocation4 + $0x918] sm:$0xff]
    %v4809 = vld [vmem:[#allocation4 + $0x920] sm:$0xff]
    %v4810 = vld [vmem:[#allocation4 + $0x928] sm:$0xff]
    %v4811 = vld [vmem:[#allocation4 + $0x930] sm:$0xff]
    %v4812 = vld [vmem:[#allocation4 + $0x938] sm:$0xff]
    %v4813 = vld [vmem:[#allocation4 + $0x940] sm:$0xff]
    %v4814 = vld [vmem:[#allocation4 + $0x948] sm:$0xff]
    %v4815 = vld [vmem:[#allocation4 + $0x950] sm:$0xff]
    %v4816 = vld [vmem:[#allocation4 + $0x958] sm:$0xff]
    %v4817 = vld [vmem:[#allocation4 + $0x960] sm:$0xff]
    %v4818 = vld [vmem:[#allocation4 + $0x968] sm:$0xff]
    %v4819 = vld [vmem:[#allocation4 + $0x970] sm:$0xff]
    %v4820 = vld [vmem:[#allocation4 + $0x978] sm:$0xff]
    %v4821 = vld [vmem:[#allocation4 + $0x980] sm:$0xff]
    %v4822 = vld [vmem:[#allocation4 + $0x988] sm:$0xff]
    %v4823 = vld [vmem:[#allocation4 + $0x990] sm:$0xff]
    %v4824 = vld [vmem:[#allocation4 + $0x998] sm:$0xff]
    %v4825 = vld [vmem:[#allocation4 + $0x9a0] sm:$0xff]
    %v4826 = vld [vmem:[#allocation4 + $0x9a8] sm:$0xff]
    %v4827 = vld [vmem:[#allocation4 + $0x9b0] sm:$0xff]
    %v4828 = vld [vmem:[#allocation4 + $0x9b8] sm:$0xff]
    %v4829 = vld [vmem:[#allocation4 + $0x9c0] sm:$0xff]
    %v4830 = vld [vmem:[#allocation4 + $0x9c8] sm:$0xff]
    %v4831 = vld [vmem:[#allocation4 + $0x9d0] sm:$0xff]
    %v4832 = vld [vmem:[#allocation4 + $0x9d8] sm:$0xff]
    %v4833 = vld [vmem:[#allocation4 + $0x9e0] sm:$0xff]
    %v4834 = vld [vmem:[#allocation4 + $0x9e8] sm:$0xff]
    %v4835 = vld [vmem:[#allocation4 + $0x9f0] sm:$0xff]
    %v4836 = vld [vmem:[#allocation4 + $0x9f8] sm:$0xff]
    %v4837 = vld [vmem:[#allocation4 + $0xa00] sm:$0xff]
    %v4838 = vld [vmem:[#allocation4 + $0xa08] sm:$0xff]
    %v4839 = vld [vmem:[#allocation4 + $0xa10] sm:$0xff]
    %v4840 = vld [vmem:[#allocation4 + $0xa18] sm:$0xff]
    %v4841 = vld [vmem:[#allocation4 + $0xa20] sm:$0xff]
    %v4842 = vld [vmem:[#allocation4 + $0xa28] sm:$0xff]
    %v4843 = vld [vmem:[#allocation4 + $0xa30] sm:$0xff]
    %v4844 = vld [vmem:[#allocation4 + $0xa38] sm:$0xff]
    %v4845 = vld [vmem:[#allocation4 + $0xa40] sm:$0xff]
    %v4846 = vld [vmem:[#allocation4 + $0xa48] sm:$0xff]
    %v4847 = vld [vmem:[#allocation4 + $0xa50] sm:$0xff]
    %v4848 = vld [vmem:[#allocation4 + $0xa58] sm:$0xff]
    %v4849 = vld [vmem:[#allocation4 + $0xa60] sm:$0xff]
    %v4850 = vld [vmem:[#allocation4 + $0xa68] sm:$0xff]
    %v4851 = vld [vmem:[#allocation4 + $0xa70] sm:$0xff]
    %v4852 = vld [vmem:[#allocation4 + $0xa78] sm:$0xff]
    %v4853 = vld [vmem:[#allocation4 + $0xa80] sm:$0xff]
    %v4854 = vld [vmem:[#allocation4 + $0xa88] sm:$0xff]
    %v4855 = vld [vmem:[#allocation4 + $0xa90] sm:$0xff]
    %v4856 = vld [vmem:[#allocation4 + $0xa98] sm:$0xff]
    %v4857 = vld [vmem:[#allocation4 + $0xaa0] sm:$0xff]
    %v4858 = vld [vmem:[#allocation4 + $0xaa8] sm:$0xff]
    %v4859 = vld [vmem:[#allocation4 + $0xab0] sm:$0xff]
    %v4860 = vld [vmem:[#allocation4 + $0xab8] sm:$0xff]
    %v4861 = vld [vmem:[#allocation4 + $0xac0] sm:$0xff]
    %v4862 = vld [vmem:[#allocation4 + $0xac8] sm:$0xff]
    %v4863 = vld [vmem:[#allocation4 + $0xad0] sm:$0xff]
    %v4864 = vld [vmem:[#allocation4 + $0xad8] sm:$0xff]
    %v4865 = vld [vmem:[#allocation4 + $0xae0] sm:$0xff]
    %v4866 = vld [vmem:[#allocation4 + $0xae8] sm:$0xff]
    %v4867 = vld [vmem:[#allocation4 + $0xaf0] sm:$0xff]
    %v4868 = vld [vmem:[#allocation4 + $0xaf8] sm:$0xff]
    %v4869 = vld [vmem:[#allocation4 + $0xb00] sm:$0xff]
    %v4870 = vld [vmem:[#allocation4 + $0xb08] sm:$0xff]
    %v4871 = vld [vmem:[#allocation4 + $0xb10] sm:$0xff]
    %v4872 = vld [vmem:[#allocation4 + $0xb18] sm:$0xff]
    %v4873 = vld [vmem:[#allocation4 + $0xb20] sm:$0xff]
    %v4874 = vld [vmem:[#allocation4 + $0xb28] sm:$0xff]
    %v4875 = vld [vmem:[#allocation4 + $0xb30] sm:$0xff]
    %v4876 = vld [vmem:[#allocation4 + $0xb38] sm:$0xff]
    %v4877 = vld [vmem:[#allocation4 + $0xb40] sm:$0xff]
    %v4878 = vld [vmem:[#allocation4 + $0xb48] sm:$0xff]
    %v4879 = vld [vmem:[#allocation4 + $0xb50] sm:$0xff]
    %v4880 = vld [vmem:[#allocation4 + $0xb58] sm:$0xff]
    %v4881 = vld [vmem:[#allocation4 + $0xb60] sm:$0xff]
    %v4882 = vld [vmem:[#allocation4 + $0xb68] sm:$0xff]
    %v4883 = vld [vmem:[#allocation4 + $0xb70] sm:$0xff]
    %v4884 = vld [vmem:[#allocation4 + $0xb78] sm:$0xff]
    %v4885 = vld [vmem:[#allocation4 + $0xb80] sm:$0xff]
    %v4886 = vld [vmem:[#allocation4 + $0xb88] sm:$0xff]
    %v4887 = vld [vmem:[#allocation4 + $0xb90] sm:$0xff]
    %v4888 = vld [vmem:[#allocation4 + $0xb98] sm:$0xff]
    %v4889 = vld [vmem:[#allocation4 + $0xba0] sm:$0xff]
    %v4890 = vld [vmem:[#allocation4 + $0xba8] sm:$0xff]
    %v4891 = vld [vmem:[#allocation4 + $0xbb0] sm:$0xff]
    %v4892 = vld [vmem:[#allocation4 + $0xbb8] sm:$0xff]
    %v4893 = vld [vmem:[#allocation4 + $0xbc0] sm:$0xff]
    %v4894 = vld [vmem:[#allocation4 + $0xbc8] sm:$0xff]
    %v4895 = vld [vmem:[#allocation4 + $0xbd0] sm:$0xff]
    %v4896 = vld [vmem:[#allocation4 + $0xbd8] sm:$0xff]
    %v4897 = vld [vmem:[#allocation4 + $0xbe0] sm:$0xff]
    %v4898 = vld [vmem:[#allocation4 + $0xbe8] sm:$0xff]
    %v4899 = vld [vmem:[#allocation4 + $0xbf0] sm:$0xff]
    %v4900 = vld [vmem:[#allocation4 + $0xbf8] sm:$0xff]
    %v4901 = vld [vmem:[#allocation4 + $0xc00] sm:$0xff]
    %v4902 = vld [vmem:[#allocation4 + $0xc08] sm:$0xff]
    %v4903 = vld [vmem:[#allocation4 + $0xc10] sm:$0xff]
    %v4904 = vld [vmem:[#allocation4 + $0xc18] sm:$0xff]
    %v4905 = vld [vmem:[#allocation4 + $0xc20] sm:$0xff]
    %v4906 = vld [vmem:[#allocation4 + $0xc28] sm:$0xff]
    %v4907 = vld [vmem:[#allocation4 + $0xc30] sm:$0xff]
    %v4908 = vld [vmem:[#allocation4 + $0xc38] sm:$0xff]
    %v4909 = vld [vmem:[#allocation4 + $0xc40] sm:$0xff]
    %v4910 = vld [vmem:[#allocation4 + $0xc48] sm:$0xff]
    %v4911 = vld [vmem:[#allocation4 + $0xc50] sm:$0xff]
    %v4912 = vld [vmem:[#allocation4 + $0xc58] sm:$0xff]
    %v4913 = vld [vmem:[#allocation4 + $0xc60] sm:$0xff]
    %v4914 = vld [vmem:[#allocation4 + $0xc68] sm:$0xff]
    %v4915 = vld [vmem:[#allocation4 + $0xc70] sm:$0xff]
    %v4916 = vld [vmem:[#allocation4 + $0xc78] sm:$0xff]
    %v4917 = vld [vmem:[#allocation4 + $0xc80] sm:$0xff]
    %v4918 = vld [vmem:[#allocation4 + $0xc88] sm:$0xff]
    %v4919 = vld [vmem:[#allocation4 + $0xc90] sm:$0xff]
    %v4920 = vld [vmem:[#allocation4 + $0xc98] sm:$0xff]
    %v4921 = vld [vmem:[#allocation4 + $0xca0] sm:$0xff]
    %v4922 = vld [vmem:[#allocation4 + $0xca8] sm:$0xff]
    %v4923 = vld [vmem:[#allocation4 + $0xcb0] sm:$0xff]
    %v4924 = vld [vmem:[#allocation4 + $0xcb8] sm:$0xff]
    %v4925 = vld [vmem:[#allocation4 + $0xcc0] sm:$0xff]
    %v4926 = vld [vmem:[#allocation4 + $0xcc8] sm:$0xff]
    %v4927 = vld [vmem:[#allocation4 + $0xcd0] sm:$0xff]
    %v4928 = vld [vmem:[#allocation4 + $0xcd8] sm:$0xff]
    %v4929 = vld [vmem:[#allocation4 + $0xce0] sm:$0xff]
    %v4930 = vld [vmem:[#allocation4 + $0xce8] sm:$0xff]
    %v4931 = vld [vmem:[#allocation4 + $0xcf0] sm:$0xff]
    %v4932 = vld [vmem:[#allocation4 + $0xcf8] sm:$0xff]
    %v4933 = vld [vmem:[#allocation4 + $0xd00] sm:$0xff]
    %v4934 = vld [vmem:[#allocation4 + $0xd08] sm:$0xff]
    %v4935 = vld [vmem:[#allocation4 + $0xd10] sm:$0xff]
    %v4936 = vld [vmem:[#allocation4 + $0xd18] sm:$0xff]
    %v4937 = vld [vmem:[#allocation4 + $0xd20] sm:$0xff]
    %v4938 = vld [vmem:[#allocation4 + $0xd28] sm:$0xff]
    %v4939 = vld [vmem:[#allocation4 + $0xd30] sm:$0xff]
    %v4940 = vld [vmem:[#allocation4 + $0xd38] sm:$0xff]
    %v4941 = vld [vmem:[#allocation4 + $0xd40] sm:$0xff]
    %v4942 = vld [vmem:[#allocation4 + $0xd48] sm:$0xff]
    %v4943 = vld [vmem:[#allocation4 + $0xd50] sm:$0xff]
    %v4944 = vld [vmem:[#allocation4 + $0xd58] sm:$0xff]
    %v4945 = vld [vmem:[#allocation4 + $0xd60] sm:$0xff]
    %v4946 = vld [vmem:[#allocation4 + $0xd68] sm:$0xff]
    %v4947 = vld [vmem:[#allocation4 + $0xd70] sm:$0xff]
    %v4948 = vld [vmem:[#allocation4 + $0xd78] sm:$0xff]
    %v4949 = vld [vmem:[#allocation4 + $0xd80] sm:$0xff]
    %v4950 = vld [vmem:[#allocation4 + $0xd88] sm:$0xff]
    %v4951 = vld [vmem:[#allocation4 + $0xd90] sm:$0xff]
    %v4952 = vld [vmem:[#allocation4 + $0xd98] sm:$0xff]
    %v4953 = vld [vmem:[#allocation4 + $0xda0] sm:$0xff]
    %v4954 = vld [vmem:[#allocation4 + $0xda8] sm:$0xff]
    %v4955 = vld [vmem:[#allocation4 + $0xdb0] sm:$0xff]
    %v4956 = vld [vmem:[#allocation4 + $0xdb8] sm:$0xff]
    %v4957 = vld [vmem:[#allocation4 + $0xdc0] sm:$0xff]
    %v4958 = vld [vmem:[#allocation4 + $0xdc8] sm:$0xff]
    %v4959 = vld [vmem:[#allocation4 + $0xdd0] sm:$0xff]
    %v4960 = vld [vmem:[#allocation4 + $0xdd8] sm:$0xff]
    %v4961 = vld [vmem:[#allocation4 + $0xde0] sm:$0xff]
    %v4962 = vld [vmem:[#allocation4 + $0xde8] sm:$0xff]
    %v4963 = vld [vmem:[#allocation4 + $0xdf0] sm:$0xff]
    %v4964 = vld [vmem:[#allocation4 + $0xdf8] sm:$0xff]
    %v4965 = vld [vmem:[#allocation4 + $0xe00] sm:$0xff]
    %v4966 = vld [vmem:[#allocation4 + $0xe08] sm:$0xff]
    %v4967 = vld [vmem:[#allocation4 + $0xe10] sm:$0xff]
    %v4968 = vld [vmem:[#allocation4 + $0xe18] sm:$0xff]
    %v4969 = vld [vmem:[#allocation4 + $0xe20] sm:$0xff]
    %v4970 = vld [vmem:[#allocation4 + $0xe28] sm:$0xff]
    %v4971 = vld [vmem:[#allocation4 + $0xe30] sm:$0xff]
    %v4972 = vld [vmem:[#allocation4 + $0xe38] sm:$0xff]
    %v4973 = vld [vmem:[#allocation4 + $0xe40] sm:$0xff]
    %v4974 = vld [vmem:[#allocation4 + $0xe48] sm:$0xff]
    %v4975 = vld [vmem:[#allocation4 + $0xe50] sm:$0xff]
    %v4976 = vld [vmem:[#allocation4 + $0xe58] sm:$0xff]
    %v4977 = vld [vmem:[#allocation4 + $0xe60] sm:$0xff]
    %v4978 = vld [vmem:[#allocation4 + $0xe68] sm:$0xff]
    %v4979 = vld [vmem:[#allocation4 + $0xe70] sm:$0xff]
    %v4980 = vld [vmem:[#allocation4 + $0xe78] sm:$0xff]
    %v4981 = vld [vmem:[#allocation4 + $0xe80] sm:$0xff]
    %v4982 = vld [vmem:[#allocation4 + $0xe88] sm:$0xff]
    %v4983 = vld [vmem:[#allocation4 + $0xe90] sm:$0xff]
    %v4984 = vld [vmem:[#allocation4 + $0xe98] sm:$0xff]
    %v4985 = vld [vmem:[#allocation4 + $0xea0] sm:$0xff]
    %v4986 = vld [vmem:[#allocation4 + $0xea8] sm:$0xff]
    %v4987 = vld [vmem:[#allocation4 + $0xeb0] sm:$0xff]
    %v4988 = vld [vmem:[#allocation4 + $0xeb8] sm:$0xff]
    %v4989 = vld [vmem:[#allocation4 + $0xec0] sm:$0xff]
    %v4990 = vld [vmem:[#allocation4 + $0xec8] sm:$0xff]
    %v4991 = vld [vmem:[#allocation4 + $0xed0] sm:$0xff]
    %v4992 = vld [vmem:[#allocation4 + $0xed8] sm:$0xff]
    %v4993 = vld [vmem:[#allocation4 + $0xee0] sm:$0xff]
    %v4994 = vld [vmem:[#allocation4 + $0xee8] sm:$0xff]
    %v4995 = vld [vmem:[#allocation4 + $0xef0] sm:$0xff]
    %v4996 = vld [vmem:[#allocation4 + $0xef8] sm:$0xff]
    %v4997 = vld [vmem:[#allocation4 + $0xf00] sm:$0xff]
    %v4998 = vld [vmem:[#allocation4 + $0xf08] sm:$0xff]
    %v4999 = vld [vmem:[#allocation4 + $0xf10] sm:$0xff]
    %v5000 = vld [vmem:[#allocation4 + $0xf18] sm:$0xff]
    %v5001 = vld [vmem:[#allocation4 + $0xf20] sm:$0xff]
    %v5002 = vld [vmem:[#allocation4 + $0xf28] sm:$0xff]
    %v5003 = vld [vmem:[#allocation4 + $0xf30] sm:$0xff]
    %v5004 = vld [vmem:[#allocation4 + $0xf38] sm:$0xff]
    %v5005 = vld [vmem:[#allocation4 + $0xf40] sm:$0xff]
    %v5006 = vld [vmem:[#allocation4 + $0xf48] sm:$0xff]
    %v5007 = vld [vmem:[#allocation4 + $0xf50] sm:$0xff]
    %v5008 = vld [vmem:[#allocation4 + $0xf58] sm:$0xff]
    %v5009 = vld [vmem:[#allocation4 + $0xf60] sm:$0xff]
    %v5010 = vld [vmem:[#allocation4 + $0xf68] sm:$0xff]
    %v5011 = vld [vmem:[#allocation4 + $0xf70] sm:$0xff]
    %v5012 = vld [vmem:[#allocation4 + $0xf78] sm:$0xff]
    %v5013 = vld [vmem:[#allocation4 + $0xf80] sm:$0xff]
    %v5014 = vld [vmem:[#allocation4 + $0xf88] sm:$0xff]
    %v5015 = vld [vmem:[#allocation4 + $0xf90] sm:$0xff]
    %v5016 = vld [vmem:[#allocation4 + $0xf98] sm:$0xff]
    %v5017 = vld [vmem:[#allocation4 + $0xfa0] sm:$0xff]
    %v5018 = vld [vmem:[#allocation4 + $0xfa8] sm:$0xff]
    %v5019 = vld [vmem:[#allocation4 + $0xfb0] sm:$0xff]
    %v5020 = vld [vmem:[#allocation4 + $0xfb8] sm:$0xff]
    %v5021 = vld [vmem:[#allocation4 + $0xfc0] sm:$0xff]
    %v5022 = vld [vmem:[#allocation4 + $0xfc8] sm:$0xff]
    %v5023 = vld [vmem:[#allocation4 + $0xfd0] sm:$0xff]
    %v5024 = vld [vmem:[#allocation4 + $0xfd8] sm:$0xff]
    %v5025 = vld [vmem:[#allocation4 + $0xfe0] sm:$0xff]
    %v5026 = vld [vmem:[#allocation4 + $0xfe8] sm:$0xff]
    %v5027 = vld [vmem:[#allocation4 + $0xff0] sm:$0xff]
    %v5028 = vld [vmem:[#allocation4 + $0xff8] sm:$0xff]
    %v5029 = vld [vmem:[#allocation13] sm:$0xff]
    %v5031 = vlaneseq
    %v5032 = vshrl.u32 %v5031, 7
    %v5033 = vsub.s32 0, %v5032
    %v5034 = vrot.slane %v5029, %v5033
    %v5035 = vlaneseq
    %v5036 = vshrl.u32 %v5035, 7
    %v5037 = vsub.s32 1, %v5036
    %v5038 = vrot.slane %v5029, %v5037
    %v5039 = vlaneseq
    %v5040 = vshrl.u32 %v5039, 7
    %v5041 = vsub.s32 2, %v5040
    %v5042 = vrot.slane %v5029, %v5041
    %v5043 = vlaneseq
    %v5044 = vshrl.u32 %v5043, 7
    %v5045 = vsub.s32 3, %v5044
    %v5046 = vrot.slane %v5029, %v5045
    %v5047 = vlaneseq
    %v5048 = vshrl.u32 %v5047, 7
    %v5049 = vsub.s32 4, %v5048
    %v5050 = vrot.slane %v5029, %v5049
    %v5051 = vlaneseq
    %v5052 = vshrl.u32 %v5051, 7
    %v5053 = vsub.s32 5, %v5052
    %v5054 = vrot.slane %v5029, %v5053
    %v5055 = vlaneseq
    %v5056 = vshrl.u32 %v5055, 7
    %v5057 = vsub.s32 6, %v5056
    %v5058 = vrot.slane %v5029, %v5057
    %v5059 = vlaneseq
    %v5060 = vshrl.u32 %v5059, 7
    %v5061 = vsub.s32 7, %v5060
    %v5062 = vrot.slane %v5029, %v5061
    %5071 = vmatprep.subr.bf16.mxu0 %v4518
    %5072 = vmatpush1.bf16.msra.mxu0 %v4517
    %5073 = vmatprep.subr.bf16.mxu0 %v4526
    %5074 = vmatpush1.bf16.msra.mxu0 %v4525
    %5075 = vmatprep.subr.bf16.mxu0 %v4534
    %5076 = vmatpush1.bf16.msra.mxu0 %v4533
    %5077 = vmatprep.subr.bf16.mxu0 %v4542
    %5078 = vmatpush1.bf16.msra.mxu0 %v4541
    %5079 = vmatprep.subr.bf16.mxu0 %v4550
    %5080 = vmatpush1.bf16.msra.mxu0 %v4549
    %5081 = vmatprep.subr.bf16.mxu0 %v4558
    %5082 = vmatpush1.bf16.msra.mxu0 %v4557
    %5083 = vmatprep.subr.bf16.mxu0 %v4566
    %5084 = vmatpush1.bf16.msra.mxu0 %v4565
    %5085 = vmatprep.subr.bf16.mxu0 %v4574
    %5086 = vmatpush1.bf16.msra.mxu0 %v4573
    %5087 = vmatprep.subr.bf16.mxu0 %v4582
    %5088 = vmatpush1.bf16.msra.mxu0 %v4581
    %5089 = vmatprep.subr.bf16.mxu0 %v4590
    %5090 = vmatpush1.bf16.msra.mxu0 %v4589
    %5091 = vmatprep.subr.bf16.mxu0 %v4598
    %5092 = vmatpush1.bf16.msra.mxu0 %v4597
    %5093 = vmatprep.subr.bf16.mxu0 %v4606
    %5094 = vmatpush1.bf16.msra.mxu0 %v4605
    %5095 = vmatprep.subr.bf16.mxu0 %v4614
    %5096 = vmatpush1.bf16.msra.mxu0 %v4613
    %5097 = vmatprep.subr.bf16.mxu0 %v4622
    %5098 = vmatpush1.bf16.msra.mxu0 %v4621
    %5099 = vmatprep.subr.bf16.mxu0 %v4630
    %5100 = vmatpush1.bf16.msra.mxu0 %v4629
    %5101 = vmatprep.subr.bf16.mxu0 %v4638
    %5102 = vmatpush1.bf16.msra.mxu0 %v4637
    %5103 = vmatprep.mubr.bf16.mxu0 %v4510
    %5104 = vmatmul.mubr.bf16.gmra.mrb[0].mxu0 %v4509
    %v5105 = vpop.f32.mrb[0].mxu0
    %v5106 = vadd.f32 %v5034, %v5105
    %v5107 = vpop.f32.mrb[0].mxu0
    %v5108 = vadd.f32 %v5038, %v5107
    %v5109 = vpop.f32.mrb[0].mxu0
    %v5110 = vpop.f32.mrb[0].mxu0
    %5111 = vdwg.mxu0
    %5112 = vmatprep.subr.bf16.mxu0 %v4646
    %5113 = vmatpush1.bf16.msra.mxu0 %v4645
    %5114 = vmatprep.subr.bf16.mxu0 %v4654
    %5115 = vmatpush1.bf16.msra.mxu0 %v4653
    %5116 = vmatprep.subr.bf16.mxu0 %v4662
    %5117 = vmatpush1.bf16.msra.mxu0 %v4661
    %5118 = vmatprep.subr.bf16.mxu0 %v4670
    %5119 = vmatpush1.bf16.msra.mxu0 %v4669
    %5120 = vmatprep.subr.bf16.mxu0 %v4678
    %5121 = vmatpush1.bf16.msra.mxu0 %v4677
    %5122 = vmatprep.subr.bf16.mxu0 %v4686
    %5123 = vmatpush1.bf16.msra.mxu0 %v4685
    %5124 = vmatprep.subr.bf16.mxu0 %v4694
    %5125 = vmatpush1.bf16.msra.mxu0 %v4693
    %5126 = vmatprep.subr.bf16.mxu0 %v4702
    %5127 = vmatpush1.bf16.msra.mxu0 %v4701
    %5128 = vmatprep.subr.bf16.mxu0 %v4710
    %5129 = vmatpush1.bf16.msra.mxu0 %v4709
    %5130 = vmatprep.subr.bf16.mxu0 %v4718
    %5131 = vmatpush1.bf16.msra.mxu0 %v4717
    %5132 = vmatprep.subr.bf16.mxu0 %v4726
    %5133 = vmatpush1.bf16.msra.mxu0 %v4725
    %5134 = vmatprep.subr.bf16.mxu0 %v4734
    %5135 = vmatpush1.bf16.msra.mxu0 %v4733
    %5136 = vmatprep.subr.bf16.mxu0 %v4742
    %5137 = vmatpush1.bf16.msra.mxu0 %v4741
    %5138 = vmatprep.subr.bf16.mxu0 %v4750
    %5139 = vmatpush1.bf16.msra.mxu0 %v4749
    %5140 = vmatprep.subr.bf16.mxu0 %v4758
    %5141 = vmatpush1.bf16.msra.mxu0 %v4757
    %5142 = vmatprep.subr.bf16.mxu0 %v4766
    %5143 = vmatpush1.bf16.msra.mxu0 %v4765
    %5144 = vmatprep.mubr.bf16.mxu0 %v4512
    %5145 = vmatmul.mubr.bf16.gmra.mrb[0].mxu0 %v4511
    %v5146 = vpop.f32.mrb[0].mxu0
    %v5147 = vadd.f32 %v5106, %v5146
    %v5148 = vpop.f32.mrb[0].mxu0
    %v5149 = vadd.f32 %v5108, %v5148
    %v5150 = vpop.f32.mrb[0].mxu0
    %v5151 = vpop.f32.mrb[0].mxu0
    %5152 = vdwg.mxu0
    %5153 = vmatprep.subr.bf16.mxu0 %v4774
    %5154 = vmatpush1.bf16.msra.mxu0 %v4773
    %5155 = vmatprep.subr.bf16.mxu0 %v4782
    %5156 = vmatpush1.bf16.msra.mxu0 %v4781
    %5157 = vmatprep.subr.bf16.mxu0 %v4790
    %5158 = vmatpush1.bf16.msra.mxu0 %v4789
    %5159 = vmatprep.subr.bf16.mxu0 %v4798
    %5160 = vmatpush1.bf16.msra.mxu0 %v4797
    %5161 = vmatprep.subr.bf16.mxu0 %v4806
    %5162 = vmatpush1.bf16.msra.mxu0 %v4805
    %5163 = vmatprep.subr.bf16.mxu0 %v4814
    %5164 = vmatpush1.bf16.msra.mxu0 %v4813
    %5165 = vmatprep.subr.bf16.mxu0 %v4822
    %5166 = vmatpush1.bf16.msra.mxu0 %v4821
    %5167 = vmatprep.subr.bf16.mxu0 %v4830
    %5168 = vmatpush1.bf16.msra.mxu0 %v4829
    %5169 = vmatprep.subr.bf16.mxu0 %v4838
    %5170 = vmatpush1.bf16.msra.mxu0 %v4837
    %5171 = vmatprep.subr.bf16.mxu0 %v4846
    %5172 = vmatpush1.bf16.msra.mxu0 %v4845
    %5173 = vmatprep.subr.bf16.mxu0 %v4854
    %5174 = vmatpush1.bf16.msra.mxu0 %v4853
    %5175 = vmatprep.subr.bf16.mxu0 %v4862
    %5176 = vmatpush1.bf16.msra.mxu0 %v4861
    %5177 = vmatprep.subr.bf16.mxu0 %v4870
    %5178 = vmatpush1.bf16.msra.mxu0 %v4869
    %5179 = vmatprep.subr.bf16.mxu0 %v4878
    %5180 = vmatpush1.bf16.msra.mxu0 %v4877
    %5181 = vmatprep.subr.bf16.mxu0 %v4886
    %5182 = vmatpush1.bf16.msra.mxu0 %v4885
    %5183 = vmatprep.subr.bf16.mxu0 %v4894
    %5184 = vmatpush1.bf16.msra.mxu0 %v4893
    %5185 = vmatprep.mubr.bf16.mxu0 %v4514
    %5186 = vmatmul.mubr.bf16.gmra.mrb[0].mxu0 %v4513
    %v5187 = vpop.f32.mrb[0].mxu0
    %v5188 = vadd.f32 %v5147, %v5187
    %v5189 = vpop.f32.mrb[0].mxu0
    %v5190 = vadd.f32 %v5149, %v5189
    %v5191 = vpop.f32.mrb[0].mxu0
    %v5192 = vpop.f32.mrb[0].mxu0
    %5193 = vdwg.mxu0
    %5194 = vmatprep.subr.bf16.mxu0 %v4902
    %5195 = vmatpush1.bf16.msra.mxu0 %v4901
    %5196 = vmatprep.subr.bf16.mxu0 %v4910
    %5197 = vmatpush1.bf16.msra.mxu0 %v4909
    %5198 = vmatprep.subr.bf16.mxu0 %v4918
    %5199 = vmatpush1.bf16.msra.mxu0 %v4917
    %5200 = vmatprep.subr.bf16.mxu0 %v4926
    %5201 = vmatpush1.bf16.msra.mxu0 %v4925
    %5202 = vmatprep.subr.bf16.mxu0 %v4934
    %5203 = vmatpush1.bf16.msra.mxu0 %v4933
    %5204 = vmatprep.subr.bf16.mxu0 %v4942
    %5205 = vmatpush1.bf16.msra.mxu0 %v4941
    %5206 = vmatprep.subr.bf16.mxu0 %v4950
    %5207 = vmatpush1.bf16.msra.mxu0 %v4949
    %5208 = vmatprep.subr.bf16.mxu0 %v4958
    %5209 = vmatpush1.bf16.msra.mxu0 %v4957
    %5210 = vmatprep.subr.bf16.mxu0 %v4966
    %5211 = vmatpush1.bf16.msra.mxu0 %v4965
    %5212 = vmatprep.subr.bf16.mxu0 %v4974
    %5213 = vmatpush1.bf16.msra.mxu0 %v4973
    %5214 = vmatprep.subr.bf16.mxu0 %v4982
    %5215 = vmatpush1.bf16.msra.mxu0 %v4981
    %5216 = vmatprep.subr.bf16.mxu0 %v4990
    %5217 = vmatpush1.bf16.msra.mxu0 %v4989
    %5218 = vmatprep.subr.bf16.mxu0 %v4998
    %5219 = vmatpush1.bf16.msra.mxu0 %v4997
    %5220 = vmatprep.subr.bf16.mxu0 %v5006
    %5221 = vmatpush1.bf16.msra.mxu0 %v5005
    %5222 = vmatprep.subr.bf16.mxu0 %v5014
    %5223 = vmatpush1.bf16.msra.mxu0 %v5013
    %5224 = vmatprep.subr.bf16.mxu0 %v5022
    %5225 = vmatpush1.bf16.msra.mxu0 %v5021
    %5226 = vmatprep.mubr.bf16.mxu0 %v4516
    %5227 = vmatmul.mubr.bf16.gmra.mrb[0].mxu0 %v4515
    %v5228 = vpop.f32.mrb[0].mxu0
    %v5229 = vadd.f32 %v5188, %v5228
    %v5230 = vpop.f32.mrb[0].mxu0
    %v5231 = vadd.f32 %v5190, %v5230
    %v5232 = vpop.f32.mrb[0].mxu0
    %v5233 = vpop.f32.mrb[0].mxu0
    %5234 = vdwg.mxu0
    %5235 = vmatprep.subr.bf16.mxu0 %v4520
    %5236 = vmatpush1.bf16.msra.mxu0 %v4519
    %5237 = vmatprep.subr.bf16.mxu0 %v4528
    %5238 = vmatpush1.bf16.msra.mxu0 %v4527
    %5239 = vmatprep.subr.bf16.mxu0 %v4536
    %5240 = vmatpush1.bf16.msra.mxu0 %v4535
    %5241 = vmatprep.subr.bf16.mxu0 %v4544
    %5242 = vmatpush1.bf16.msra.mxu0 %v4543
    %5243 = vmatprep.subr.bf16.mxu0 %v4552
    %5244 = vmatpush1.bf16.msra.mxu0 %v4551
    %5245 = vmatprep.subr.bf16.mxu0 %v4560
    %5246 = vmatpush1.bf16.msra.mxu0 %v4559
    %5247 = vmatprep.subr.bf16.mxu0 %v4568
    %5248 = vmatpush1.bf16.msra.mxu0 %v4567
    %5249 = vmatprep.subr.bf16.mxu0 %v4576
    %5250 = vmatpush1.bf16.msra.mxu0 %v4575
    %5251 = vmatprep.subr.bf16.mxu0 %v4584
    %5252 = vmatpush1.bf16.msra.mxu0 %v4583
    %5253 = vmatprep.subr.bf16.mxu0 %v4592
    %5254 = vmatpush1.bf16.msra.mxu0 %v4591
    %5255 = vmatprep.subr.bf16.mxu0 %v4600
    %5256 = vmatpush1.bf16.msra.mxu0 %v4599
    %5257 = vmatprep.subr.bf16.mxu0 %v4608
    %5258 = vmatpush1.bf16.msra.mxu0 %v4607
    %5259 = vmatprep.subr.bf16.mxu0 %v4616
    %5260 = vmatpush1.bf16.msra.mxu0 %v4615
    %5261 = vmatprep.subr.bf16.mxu0 %v4624
    %5262 = vmatpush1.bf16.msra.mxu0 %v4623
    %5263 = vmatprep.subr.bf16.mxu0 %v4632
    %5264 = vmatpush1.bf16.msra.mxu0 %v4631
    %5265 = vmatprep.subr.bf16.mxu0 %v4640
    %5266 = vmatpush1.bf16.msra.mxu0 %v4639
    %5267 = vmatprep.mubr.bf16.mxu0 %v4510
    %5268 = vmatmul.mubr.bf16.gmra.mrb[0].mxu0 %v4509
    %v5269 = vpop.f32.mrb[0].mxu0
    %v5270 = vadd.f32 %v5042, %v5269
    %v5271 = vpop.f32.mrb[0].mxu0
    %v5272 = vadd.f32 %v5046, %v5271
    %v5273 = vpop.f32.mrb[0].mxu0
    %v5274 = vpop.f32.mrb[0].mxu0
    %5275 = vdwg.mxu0
    %5276 = vmatprep.subr.bf16.mxu0 %v4648
    %5277 = vmatpush1.bf16.msra.mxu0 %v4647
    %5278 = vmatprep.subr.bf16.mxu0 %v4656
    %5279 = vmatpush1.bf16.msra.mxu0 %v4655
    %5280 = vmatprep.subr.bf16.mxu0 %v4664
    %5281 = vmatpush1.bf16.msra.mxu0 %v4663
    %5282 = vmatprep.subr.bf16.mxu0 %v4672
    %5283 = vmatpush1.bf16.msra.mxu0 %v4671
    %5284 = vmatprep.subr.bf16.mxu0 %v4680
    %5285 = vmatpush1.bf16.msra.mxu0 %v4679
    %5286 = vmatprep.subr.bf16.mxu0 %v4688
    %5287 = vmatpush1.bf16.msra.mxu0 %v4687
    %5288 = vmatprep.subr.bf16.mxu0 %v4696
    %5289 = vmatpush1.bf16.msra.mxu0 %v4695
    %5290 = vmatprep.subr.bf16.mxu0 %v4704
    %5291 = vmatpush1.bf16.msra.mxu0 %v4703
    %5292 = vmatprep.subr.bf16.mxu0 %v4712
    %5293 = vmatpush1.bf16.msra.mxu0 %v4711
    %5294 = vmatprep.subr.bf16.mxu0 %v4720
    %5295 = vmatpush1.bf16.msra.mxu0 %v4719
    %5296 = vmatprep.subr.bf16.mxu0 %v4728
    %5297 = vmatpush1.bf16.msra.mxu0 %v4727
    %5298 = vmatprep.subr.bf16.mxu0 %v4736
    %5299 = vmatpush1.bf16.msra.mxu0 %v4735
    %5300 = vmatprep.subr.bf16.mxu0 %v4744
    %5301 = vmatpush1.bf16.msra.mxu0 %v4743
    %5302 = vmatprep.subr.bf16.mxu0 %v4752
    %5303 = vmatpush1.bf16.msra.mxu0 %v4751
    %5304 = vmatprep.subr.bf16.mxu0 %v4760
    %5305 = vmatpush1.bf16.msra.mxu0 %v4759
    %5306 = vmatprep.subr.bf16.mxu0 %v4768
    %5307 = vmatpush1.bf16.msra.mxu0 %v4767
    %5308 = vmatprep.mubr.bf16.mxu0 %v4512
    %5309 = vmatmul.mubr.bf16.gmra.mrb[0].mxu0 %v4511
    %v5310 = vpop.f32.mrb[0].mxu0
    %v5311 = vadd.f32 %v5270, %v5310
    %v5312 = vpop.f32.mrb[0].mxu0
    %v5313 = vadd.f32 %v5272, %v5312
    %v5314 = vpop.f32.mrb[0].mxu0
    %v5315 = vpop.f32.mrb[0].mxu0
    %5316 = vdwg.mxu0
    %5317 = vmatprep.subr.bf16.mxu0 %v4776
    %5318 = vmatpush1.bf16.msra.mxu0 %v4775
    %5319 = vmatprep.subr.bf16.mxu0 %v4784
    %5320 = vmatpush1.bf16.msra.mxu0 %v4783
    %5321 = vmatprep.subr.bf16.mxu0 %v4792
    %5322 = vmatpush1.bf16.msra.mxu0 %v4791
    %5323 = vmatprep.subr.bf16.mxu0 %v4800
    %5324 = vmatpush1.bf16.msra.mxu0 %v4799
    %5325 = vmatprep.subr.bf16.mxu0 %v4808
    %5326 = vmatpush1.bf16.msra.mxu0 %v4807
    %5327 = vmatprep.subr.bf16.mxu0 %v4816
    %5328 = vmatpush1.bf16.msra.mxu0 %v4815
    %5329 = vmatprep.subr.bf16.mxu0 %v4824
    %5330 = vmatpush1.bf16.msra.mxu0 %v4823
    %5331 = vmatprep.subr.bf16.mxu0 %v4832
    %5332 = vmatpush1.bf16.msra.mxu0 %v4831
    %5333 = vmatprep.subr.bf16.mxu0 %v4840
    %5334 = vmatpush1.bf16.msra.mxu0 %v4839
    %5335 = vmatprep.subr.bf16.mxu0 %v4848
    %5336 = vmatpush1.bf16.msra.mxu0 %v4847
    %5337 = vmatprep.subr.bf16.mxu0 %v4856
    %5338 = vmatpush1.bf16.msra.mxu0 %v4855
    %5339 = vmatprep.subr.bf16.mxu0 %v4864
    %5340 = vmatpush1.bf16.msra.mxu0 %v4863
    %5341 = vmatprep.subr.bf16.mxu0 %v4872
    %5342 = vmatpush1.bf16.msra.mxu0 %v4871
    %5343 = vmatprep.subr.bf16.mxu0 %v4880
    %5344 = vmatpush1.bf16.msra.mxu0 %v4879
    %5345 = vmatprep.subr.bf16.mxu0 %v4888
    %5346 = vmatpush1.bf16.msra.mxu0 %v4887
    %5347 = vmatprep.subr.bf16.mxu0 %v4896
    %5348 = vmatpush1.bf16.msra.mxu0 %v4895
    %5349 = vmatprep.mubr.bf16.mxu0 %v4514
    %5350 = vmatmul.mubr.bf16.gmra.mrb[0].mxu0 %v4513
    %v5351 = vpop.f32.mrb[0].mxu0
    %v5352 = vadd.f32 %v5311, %v5351
    %v5353 = vpop.f32.mrb[0].mxu0
    %v5354 = vadd.f32 %v5313, %v5353
    %v5355 = vpop.f32.mrb[0].mxu0
    %v5356 = vpop.f32.mrb[0].mxu0
    %5357 = vdwg.mxu0
    %5358 = vmatprep.subr.bf16.mxu0 %v4904
    %5359 = vmatpush1.bf16.msra.mxu0 %v4903
    %5360 = vmatprep.subr.bf16.mxu0 %v4912
    %5361 = vmatpush1.bf16.msra.mxu0 %v4911
    %5362 = vmatprep.subr.bf16.mxu0 %v4920
    %5363 = vmatpush1.bf16.msra.mxu0 %v4919
    %5364 = vmatprep.subr.bf16.mxu0 %v4928
    %5365 = vmatpush1.bf16.msra.mxu0 %v4927
    %5366 = vmatprep.subr.bf16.mxu0 %v4936
    %5367 = vmatpush1.bf16.msra.mxu0 %v4935
    %5368 = vmatprep.subr.bf16.mxu0 %v4944
    %5369 = vmatpush1.bf16.msra.mxu0 %v4943
    %5370 = vmatprep.subr.bf16.mxu0 %v4952
    %5371 = vmatpush1.bf16.msra.mxu0 %v4951
    %5372 = vmatprep.subr.bf16.mxu0 %v4960
    %5373 = vmatpush1.bf16.msra.mxu0 %v4959
    %5374 = vmatprep.subr.bf16.mxu0 %v4968
    %5375 = vmatpush1.bf16.msra.mxu0 %v4967
    %5376 = vmatprep.subr.bf16.mxu0 %v4976
    %5377 = vmatpush1.bf16.msra.mxu0 %v4975
    %5378 = vmatprep.subr.bf16.mxu0 %v4984
    %5379 = vmatpush1.bf16.msra.mxu0 %v4983
    %5380 = vmatprep.subr.bf16.mxu0 %v4992
    %5381 = vmatpush1.bf16.msra.mxu0 %v4991
    %5382 = vmatprep.subr.bf16.mxu0 %v5000
    %5383 = vmatpush1.bf16.msra.mxu0 %v4999
    %5384 = vmatprep.subr.bf16.mxu0 %v5008
    %5385 = vmatpush1.bf16.msra.mxu0 %v5007
    %5386 = vmatprep.subr.bf16.mxu0 %v5016
    %5387 = vmatpush1.bf16.msra.mxu0 %v5015
    %5388 = vmatprep.subr.bf16.mxu0 %v5024
    %5389 = vmatpush1.bf16.msra.mxu0 %v5023
    %5390 = vmatprep.mubr.bf16.mxu0 %v4516
    %5391 = vmatmul.mubr.bf16.gmra.mrb[0].mxu0 %v4515
    %v5392 = vpop.f32.mrb[0].mxu0
    %v5393 = vadd.f32 %v5352, %v5392
    %v5394 = vpop.f32.mrb[0].mxu0
    %v5395 = vadd.f32 %v5354, %v5394
    %v5396 = vpop.f32.mrb[0].mxu0
    %v5397 = vpop.f32.mrb[0].mxu0
    %5398 = vdwg.mxu0
    %5399 = vmatprep.subr.bf16.mxu0 %v4522
    %5400 = vmatpush1.bf16.msra.mxu0 %v4521
    %5401 = vmatprep.subr.bf16.mxu0 %v4530
    %5402 = vmatpush1.bf16.msra.mxu0 %v4529
    %5403 = vmatprep.subr.bf16.mxu0 %v4538
    %5404 = vmatpush1.bf16.msra.mxu0 %v4537
    %5405 = vmatprep.subr.bf16.mxu0 %v4546
    %5406 = vmatpush1.bf16.msra.mxu0 %v4545
    %5407 = vmatprep.subr.bf16.mxu0 %v4554
    %5408 = vmatpush1.bf16.msra.mxu0 %v4553
    %5409 = vmatprep.subr.bf16.mxu0 %v4562
    %5410 = vmatpush1.bf16.msra.mxu0 %v4561
    %5411 = vmatprep.subr.bf16.mxu0 %v4570
    %5412 = vmatpush1.bf16.msra.mxu0 %v4569
    %5413 = vmatprep.subr.bf16.mxu0 %v4578
    %5414 = vmatpush1.bf16.msra.mxu0 %v4577
    %5415 = vmatprep.subr.bf16.mxu0 %v4586
    %5416 = vmatpush1.bf16.msra.mxu0 %v4585
    %5417 = vmatprep.subr.bf16.mxu0 %v4594
    %5418 = vmatpush1.bf16.msra.mxu0 %v4593
    %5419 = vmatprep.subr.bf16.mxu0 %v4602
    %5420 = vmatpush1.bf16.msra.mxu0 %v4601
    %5421 = vmatprep.subr.bf16.mxu0 %v4610
    %5422 = vmatpush1.bf16.msra.mxu0 %v4609
    %5423 = vmatprep.subr.bf16.mxu0 %v4618
    %5424 = vmatpush1.bf16.msra.mxu0 %v4617
    %5425 = vmatprep.subr.bf16.mxu0 %v4626
    %5426 = vmatpush1.bf16.msra.mxu0 %v4625
    %5427 = vmatprep.subr.bf16.mxu0 %v4634
    %5428 = vmatpush1.bf16.msra.mxu0 %v4633
    %5429 = vmatprep.subr.bf16.mxu0 %v4642
    %5430 = vmatpush1.bf16.msra.mxu0 %v4641
    %5431 = vmatprep.mubr.bf16.mxu0 %v4510
    %5432 = vmatmul.mubr.bf16.gmra.mrb[0].mxu0 %v4509
    %v5433 = vpop.f32.mrb[0].mxu0
    %v5434 = vadd.f32 %v5050, %v5433
    %v5435 = vpop.f32.mrb[0].mxu0
    %v5436 = vadd.f32 %v5054, %v5435
    %v5437 = vpop.f32.mrb[0].mxu0
    %v5438 = vpop.f32.mrb[0].mxu0
    %5439 = vdwg.mxu0
    %5440 = vmatprep.subr.bf16.mxu0 %v4650
    %5441 = vmatpush1.bf16.msra.mxu0 %v4649
    %5442 = vmatprep.subr.bf16.mxu0 %v4658
    %5443 = vmatpush1.bf16.msra.mxu0 %v4657
    %5444 = vmatprep.subr.bf16.mxu0 %v4666
    %5445 = vmatpush1.bf16.msra.mxu0 %v4665
    %5446 = vmatprep.subr.bf16.mxu0 %v4674
    %5447 = vmatpush1.bf16.msra.mxu0 %v4673
    %5448 = vmatprep.subr.bf16.mxu0 %v4682
    %5449 = vmatpush1.bf16.msra.mxu0 %v4681
    %5450 = vmatprep.subr.bf16.mxu0 %v4690
    %5451 = vmatpush1.bf16.msra.mxu0 %v4689
    %5452 = vmatprep.subr.bf16.mxu0 %v4698
    %5453 = vmatpush1.bf16.msra.mxu0 %v4697
    %5454 = vmatprep.subr.bf16.mxu0 %v4706
    %5455 = vmatpush1.bf16.msra.mxu0 %v4705
    %5456 = vmatprep.subr.bf16.mxu0 %v4714
    %5457 = vmatpush1.bf16.msra.mxu0 %v4713
    %5458 = vmatprep.subr.bf16.mxu0 %v4722
    %5459 = vmatpush1.bf16.msra.mxu0 %v4721
    %5460 = vmatprep.subr.bf16.mxu0 %v4730
    %5461 = vmatpush1.bf16.msra.mxu0 %v4729
    %5462 = vmatprep.subr.bf16.mxu0 %v4738
    %5463 = vmatpush1.bf16.msra.mxu0 %v4737
    %5464 = vmatprep.subr.bf16.mxu0 %v4746
    %5465 = vmatpush1.bf16.msra.mxu0 %v4745
    %5466 = vmatprep.subr.bf16.mxu0 %v4754
    %5467 = vmatpush1.bf16.msra.mxu0 %v4753
    %5468 = vmatprep.subr.bf16.mxu0 %v4762
    %5469 = vmatpush1.bf16.msra.mxu0 %v4761
    %5470 = vmatprep.subr.bf16.mxu0 %v4770
    %5471 = vmatpush1.bf16.msra.mxu0 %v4769
    %5472 = vmatprep.mubr.bf16.mxu0 %v4512
    %5473 = vmatmul.mubr.bf16.gmra.mrb[0].mxu0 %v4511
    %v5474 = vpop.f32.mrb[0].mxu0
    %v5475 = vadd.f32 %v5434, %v5474
    %v5476 = vpop.f32.mrb[0].mxu0
    %v5477 = vadd.f32 %v5436, %v5476
    %v5478 = vpop.f32.mrb[0].mxu0
    %v5479 = vpop.f32.mrb[0].mxu0
    %5480 = vdwg.mxu0
    %5481 = vmatprep.subr.bf16.mxu0 %v4778
    %5482 = vmatpush1.bf16.msra.mxu0 %v4777
    %5483 = vmatprep.subr.bf16.mxu0 %v4786
    %5484 = vmatpush1.bf16.msra.mxu0 %v4785
    %5485 = vmatprep.subr.bf16.mxu0 %v4794
    %5486 = vmatpush1.bf16.msra.mxu0 %v4793
    %5487 = vmatprep.subr.bf16.mxu0 %v4802
    %5488 = vmatpush1.bf16.msra.mxu0 %v4801
    %5489 = vmatprep.subr.bf16.mxu0 %v4810
    %5490 = vmatpush1.bf16.msra.mxu0 %v4809
    %5491 = vmatprep.subr.bf16.mxu0 %v4818
    %5492 = vmatpush1.bf16.msra.mxu0 %v4817
    %5493 = vmatprep.subr.bf16.mxu0 %v4826
    %5494 = vmatpush1.bf16.msra.mxu0 %v4825
    %5495 = vmatprep.subr.bf16.mxu0 %v4834
    %5496 = vmatpush1.bf16.msra.mxu0 %v4833
    %5497 = vmatprep.subr.bf16.mxu0 %v4842
    %5498 = vmatpush1.bf16.msra.mxu0 %v4841
    %5499 = vmatprep.subr.bf16.mxu0 %v4850
    %5500 = vmatpush1.bf16.msra.mxu0 %v4849
    %5501 = vmatprep.subr.bf16.mxu0 %v4858
    %5502 = vmatpush1.bf16.msra.mxu0 %v4857
    %5503 = vmatprep.subr.bf16.mxu0 %v4866
    %5504 = vmatpush1.bf16.msra.mxu0 %v4865
    %5505 = vmatprep.subr.bf16.mxu0 %v4874
    %5506 = vmatpush1.bf16.msra.mxu0 %v4873
    %5507 = vmatprep.subr.bf16.mxu0 %v4882
    %5508 = vmatpush1.bf16.msra.mxu0 %v4881
    %5509 = vmatprep.subr.bf16.mxu0 %v4890
    %5510 = vmatpush1.bf16.msra.mxu0 %v4889
    %5511 = vmatprep.subr.bf16.mxu0 %v4898
    %5512 = vmatpush1.bf16.msra.mxu0 %v4897
    %5513 = vmatprep.mubr.bf16.mxu0 %v4514
    %5514 = vmatmul.mubr.bf16.gmra.mrb[0].mxu0 %v4513
    %v5515 = vpop.f32.mrb[0].mxu0
    %v5516 = vadd.f32 %v5475, %v5515
    %v5517 = vpop.f32.mrb[0].mxu0
    %v5518 = vadd.f32 %v5477, %v5517
    %v5519 = vpop.f32.mrb[0].mxu0
    %v5520 = vpop.f32.mrb[0].mxu0
    %5521 = vdwg.mxu0
    %5522 = vmatprep.subr.bf16.mxu0 %v4906
    %5523 = vmatpush1.bf16.msra.mxu0 %v4905
    %5524 = vmatprep.subr.bf16.mxu0 %v4914
    %5525 = vmatpush1.bf16.msra.mxu0 %v4913
    %5526 = vmatprep.subr.bf16.mxu0 %v4922
    %5527 = vmatpush1.bf16.msra.mxu0 %v4921
    %5528 = vmatprep.subr.bf16.mxu0 %v4930
    %5529 = vmatpush1.bf16.msra.mxu0 %v4929
    %5530 = vmatprep.subr.bf16.mxu0 %v4938
    %5531 = vmatpush1.bf16.msra.mxu0 %v4937
    %5532 = vmatprep.subr.bf16.mxu0 %v4946
    %5533 = vmatpush1.bf16.msra.mxu0 %v4945
    %5534 = vmatprep.subr.bf16.mxu0 %v4954
    %5535 = vmatpush1.bf16.msra.mxu0 %v4953
    %5536 = vmatprep.subr.bf16.mxu0 %v4962
    %5537 = vmatpush1.bf16.msra.mxu0 %v4961
    %5538 = vmatprep.subr.bf16.mxu0 %v4970
    %5539 = vmatpush1.bf16.msra.mxu0 %v4969
    %5540 = vmatprep.subr.bf16.mxu0 %v4978
    %5541 = vmatpush1.bf16.msra.mxu0 %v4977
    %5542 = vmatprep.subr.bf16.mxu0 %v4986
    %5543 = vmatpush1.bf16.msra.mxu0 %v4985
    %5544 = vmatprep.subr.bf16.mxu0 %v4994
    %5545 = vmatpush1.bf16.msra.mxu0 %v4993
    %5546 = vmatprep.subr.bf16.mxu0 %v5002
    %5547 = vmatpush1.bf16.msra.mxu0 %v5001
    %5548 = vmatprep.subr.bf16.mxu0 %v5010
    %5549 = vmatpush1.bf16.msra.mxu0 %v5009
    %5550 = vmatprep.subr.bf16.mxu0 %v5018
    %5551 = vmatpush1.bf16.msra.mxu0 %v5017
    %5552 = vmatprep.subr.bf16.mxu0 %v5026
    %5553 = vmatpush1.bf16.msra.mxu0 %v5025
    %5554 = vmatprep.mubr.bf16.mxu0 %v4516
    %5555 = vmatmul.mubr.bf16.gmra.mrb[0].mxu0 %v4515
    %v5556 = vpop.f32.mrb[0].mxu0
    %v5557 = vadd.f32 %v5516, %v5556
    %v5558 = vpop.f32.mrb[0].mxu0
    %v5559 = vadd.f32 %v5518, %v5558
    %v5560 = vpop.f32.mrb[0].mxu0
    %v5561 = vpop.f32.mrb[0].mxu0
    %5562 = vdwg.mxu0
    %5563 = vmatprep.subr.bf16.mxu0 %v4524
    %5564 = vmatpush1.bf16.msra.mxu0 %v4523
    %5565 = vmatprep.subr.bf16.mxu0 %v4532
    %5566 = vmatpush1.bf16.msra.mxu0 %v4531
    %5567 = vmatprep.subr.bf16.mxu0 %v4540
    %5568 = vmatpush1.bf16.msra.mxu0 %v4539
    %5569 = vmatprep.subr.bf16.mxu0 %v4548
    %5570 = vmatpush1.bf16.msra.mxu0 %v4547
    %5571 = vmatprep.subr.bf16.mxu0 %v4556
    %5572 = vmatpush1.bf16.msra.mxu0 %v4555
    %5573 = vmatprep.subr.bf16.mxu0 %v4564
    %5574 = vmatpush1.bf16.msra.mxu0 %v4563
    %5575 = vmatprep.subr.bf16.mxu0 %v4572
    %5576 = vmatpush1.bf16.msra.mxu0 %v4571
    %5577 = vmatprep.subr.bf16.mxu0 %v4580
    %5578 = vmatpush1.bf16.msra.mxu0 %v4579
    %5579 = vmatprep.subr.bf16.mxu0 %v4588
    %5580 = vmatpush1.bf16.msra.mxu0 %v4587
    %5581 = vmatprep.subr.bf16.mxu0 %v4596
    %5582 = vmatpush1.bf16.msra.mxu0 %v4595
    %5583 = vmatprep.subr.bf16.mxu0 %v4604
    %5584 = vmatpush1.bf16.msra.mxu0 %v4603
    %5585 = vmatprep.subr.bf16.mxu0 %v4612
    %5586 = vmatpush1.bf16.msra.mxu0 %v4611
    %5587 = vmatprep.subr.bf16.mxu0 %v4620
    %5588 = vmatpush1.bf16.msra.mxu0 %v4619
    %5589 = vmatprep.subr.bf16.mxu0 %v4628
    %5590 = vmatpush1.bf16.msra.mxu0 %v4627
    %5591 = vmatprep.subr.bf16.mxu0 %v4636
    %5592 = vmatpush1.bf16.msra.mxu0 %v4635
    %5593 = vmatprep.subr.bf16.mxu0 %v4644
    %5594 = vmatpush1.bf16.msra.mxu0 %v4643
    %5595 = vmatprep.mubr.bf16.mxu0 %v4510
    %5596 = vmatmul.mubr.bf16.gmra.mrb[0].mxu0 %v4509
    %v5597 = vpop.f32.mrb[0].mxu0
    %v5598 = vadd.f32 %v5058, %v5597
    %v5599 = vpop.f32.mrb[0].mxu0
    %v5600 = vadd.f32 %v5062, %v5599
    %v5601 = vpop.f32.mrb[0].mxu0
    %v5602 = vpop.f32.mrb[0].mxu0
    %5603 = vdwg.mxu0
    %5604 = vmatprep.subr.bf16.mxu0 %v4652
    %5605 = vmatpush1.bf16.msra.mxu0 %v4651
    %5606 = vmatprep.subr.bf16.mxu0 %v4660
    %5607 = vmatpush1.bf16.msra.mxu0 %v4659
    %5608 = vmatprep.subr.bf16.mxu0 %v4668
    %5609 = vmatpush1.bf16.msra.mxu0 %v4667
    %5610 = vmatprep.subr.bf16.mxu0 %v4676
    %5611 = vmatpush1.bf16.msra.mxu0 %v4675
    %5612 = vmatprep.subr.bf16.mxu0 %v4684
    %5613 = vmatpush1.bf16.msra.mxu0 %v4683
    %5614 = vmatprep.subr.bf16.mxu0 %v4692
    %5615 = vmatpush1.bf16.msra.mxu0 %v4691
    %5616 = vmatprep.subr.bf16.mxu0 %v4700
    %5617 = vmatpush1.bf16.msra.mxu0 %v4699
    %5618 = vmatprep.subr.bf16.mxu0 %v4708
    %5619 = vmatpush1.bf16.msra.mxu0 %v4707
    %5620 = vmatprep.subr.bf16.mxu0 %v4716
    %5621 = vmatpush1.bf16.msra.mxu0 %v4715
    %5622 = vmatprep.subr.bf16.mxu0 %v4724
    %5623 = vmatpush1.bf16.msra.mxu0 %v4723
    %5624 = vmatprep.subr.bf16.mxu0 %v4732
    %5625 = vmatpush1.bf16.msra.mxu0 %v4731
    %5626 = vmatprep.subr.bf16.mxu0 %v4740
    %5627 = vmatpush1.bf16.msra.mxu0 %v4739
    %5628 = vmatprep.subr.bf16.mxu0 %v4748
    %5629 = vmatpush1.bf16.msra.mxu0 %v4747
    %5630 = vmatprep.subr.bf16.mxu0 %v4756
    %5631 = vmatpush1.bf16.msra.mxu0 %v4755
    %5632 = vmatprep.subr.bf16.mxu0 %v4764
    %5633 = vmatpush1.bf16.msra.mxu0 %v4763
    %5634 = vmatprep.subr.bf16.mxu0 %v4772
    %5635 = vmatpush1.bf16.msra.mxu0 %v4771
    %5636 = vmatprep.mubr.bf16.mxu0 %v4512
    %5637 = vmatmul.mubr.bf16.gmra.mrb[0].mxu0 %v4511
    %v5638 = vpop.f32.mrb[0].mxu0
    %v5639 = vadd.f32 %v5598, %v5638
    %v5640 = vpop.f32.mrb[0].mxu0
    %v5641 = vadd.f32 %v5600, %v5640
    %v5642 = vpop.f32.mrb[0].mxu0
    %v5643 = vpop.f32.mrb[0].mxu0
    %5644 = vdwg.mxu0
    %5645 = vmatprep.subr.bf16.mxu0 %v4780
    %5646 = vmatpush1.bf16.msra.mxu0 %v4779
    %5647 = vmatprep.subr.bf16.mxu0 %v4788
    %5648 = vmatpush1.bf16.msra.mxu0 %v4787
    %5649 = vmatprep.subr.bf16.mxu0 %v4796
    %5650 = vmatpush1.bf16.msra.mxu0 %v4795
    %5651 = vmatprep.subr.bf16.mxu0 %v4804
    %5652 = vmatpush1.bf16.msra.mxu0 %v4803
    %5653 = vmatprep.subr.bf16.mxu0 %v4812
    %5654 = vmatpush1.bf16.msra.mxu0 %v4811
    %5655 = vmatprep.subr.bf16.mxu0 %v4820
    %5656 = vmatpush1.bf16.msra.mxu0 %v4819
    %5657 = vmatprep.subr.bf16.mxu0 %v4828
    %5658 = vmatpush1.bf16.msra.mxu0 %v4827
    %5659 = vmatprep.subr.bf16.mxu0 %v4836
    %5660 = vmatpush1.bf16.msra.mxu0 %v4835
    %5661 = vmatprep.subr.bf16.mxu0 %v4844
    %5662 = vmatpush1.bf16.msra.mxu0 %v4843
    %5663 = vmatprep.subr.bf16.mxu0 %v4852
    %5664 = vmatpush1.bf16.msra.mxu0 %v4851
    %5665 = vmatprep.subr.bf16.mxu0 %v4860
    %5666 = vmatpush1.bf16.msra.mxu0 %v4859
    %5667 = vmatprep.subr.bf16.mxu0 %v4868
    %5668 = vmatpush1.bf16.msra.mxu0 %v4867
    %5669 = vmatprep.subr.bf16.mxu0 %v4876
    %5670 = vmatpush1.bf16.msra.mxu0 %v4875
    %5671 = vmatprep.subr.bf16.mxu0 %v4884
    %5672 = vmatpush1.bf16.msra.mxu0 %v4883
    %5673 = vmatprep.subr.bf16.mxu0 %v4892
    %5674 = vmatpush1.bf16.msra.mxu0 %v4891
    %5675 = vmatprep.subr.bf16.mxu0 %v4900
    %5676 = vmatpush1.bf16.msra.mxu0 %v4899
    %5677 = vmatprep.mubr.bf16.mxu0 %v4514
    %5678 = vmatmul.mubr.bf16.gmra.mrb[0].mxu0 %v4513
    %v5679 = vpop.f32.mrb[0].mxu0
    %v5680 = vadd.f32 %v5639, %v5679
    %v5681 = vpop.f32.mrb[0].mxu0
    %v5682 = vadd.f32 %v5641, %v5681
    %v5683 = vpop.f32.mrb[0].mxu0
    %v5684 = vpop.f32.mrb[0].mxu0
    %5685 = vdwg.mxu0
    %5686 = vmatprep.subr.bf16.mxu0 %v4908
    %5687 = vmatpush1.bf16.msra.mxu0 %v4907
    %5688 = vmatprep.subr.bf16.mxu0 %v4916
    %5689 = vmatpush1.bf16.msra.mxu0 %v4915
    %5690 = vmatprep.subr.bf16.mxu0 %v4924
    %5691 = vmatpush1.bf16.msra.mxu0 %v4923
    %5692 = vmatprep.subr.bf16.mxu0 %v4932
    %5693 = vmatpush1.bf16.msra.mxu0 %v4931
    %5694 = vmatprep.subr.bf16.mxu0 %v4940
    %5695 = vmatpush1.bf16.msra.mxu0 %v4939
    %5696 = vmatprep.subr.bf16.mxu0 %v4948
    %5697 = vmatpush1.bf16.msra.mxu0 %v4947
    %5698 = vmatprep.subr.bf16.mxu0 %v4956
    %5699 = vmatpush1.bf16.msra.mxu0 %v4955
    %5700 = vmatprep.subr.bf16.mxu0 %v4964
    %5701 = vmatpush1.bf16.msra.mxu0 %v4963
    %5702 = vmatprep.subr.bf16.mxu0 %v4972
    %5703 = vmatpush1.bf16.msra.mxu0 %v4971
    %5704 = vmatprep.subr.bf16.mxu0 %v4980
    %5705 = vmatpush1.bf16.msra.mxu0 %v4979
    %5706 = vmatprep.subr.bf16.mxu0 %v4988
    %5707 = vmatpush1.bf16.msra.mxu0 %v4987
    %5708 = vmatprep.subr.bf16.mxu0 %v4996
    %5709 = vmatpush1.bf16.msra.mxu0 %v4995
    %5710 = vmatprep.subr.bf16.mxu0 %v5004
    %5711 = vmatpush1.bf16.msra.mxu0 %v5003
    %5712 = vmatprep.subr.bf16.mxu0 %v5012
    %5713 = vmatpush1.bf16.msra.mxu0 %v5011
    %5714 = vmatprep.subr.bf16.mxu0 %v5020
    %5715 = vmatpush1.bf16.msra.mxu0 %v5019
    %5716 = vmatprep.subr.bf16.mxu0 %v5028
    %5717 = vmatpush1.bf16.msra.mxu0 %v5027
    %5718 = vmatprep.mubr.bf16.mxu0 %v4516
    %5719 = vmatmul.mubr.bf16.gmra.mrb[0].mxu0 %v4515
    %v5720 = vpop.f32.mrb[0].mxu0
    %v5721 = vadd.f32 %v5680, %v5720
    %v5722 = vpop.f32.mrb[0].mxu0
    %v5723 = vadd.f32 %v5682, %v5722
    %v5724 = vpop.f32.mrb[0].mxu0
    %v5725 = vpop.f32.mrb[0].mxu0
    %5726 = vdwg.mxu0
    %v5727 = vadd.f32 %v3269, %v5229
    %v5728 = vadd.f32 %v3270, %v5231
    %v5729 = vadd.f32 %v3271, %v5393
    %v5730 = vadd.f32 %v3272, %v5395
    %v5731 = vadd.f32 %v3273, %v5557
    %v5732 = vadd.f32 %v3274, %v5559
    %v5733 = vadd.f32 %v3275, %v5721
    %v5734 = vadd.f32 %v3276, %v5723
    %v5735 = vmax.f32 %v5727, 0.0
    %v5736 = vmax.f32 %v5728, 0.0
    %v5737 = vmax.f32 %v5729, 0.0
    %v5738 = vmax.f32 %v5730, 0.0
    %v5739 = vmax.f32 %v5731, 0.0
    %v5740 = vmax.f32 %v5732, 0.0
    %v5741 = vmax.f32 %v5733, 0.0
    %v5742 = vmax.f32 %v5734, 0.0
    %s5743 = sshll.u32 %s3278, 4
    %5744 = dma.done %s212, %s5743
    %v5745 = vpack.c.bf16 %v5735, %v5735
    %v5746 = vpack.c.bf16 %v5736, %v5736
    %v5747 = vpack.c.bf16 %v5737, %v5737
    %v5748 = vpack.c.bf16 %v5738, %v5738
    %v5749 = vpack.c.bf16 %v5739, %v5739
    %v5750 = vpack.c.bf16 %v5740, %v5740
    %v5751 = vpack.c.bf16 %v5741, %v5741
    %v5752 = vpack.c.bf16 %v5742, %v5742
    %v5753 = vld [vmem:[#allocation5] sm:$0xff]
    %v5754 = vld [vmem:[#allocation5 + $0x8] sm:$0xff]
    %v5755 = vld [vmem:[#allocation5 + $0x10] sm:$0xff]
    %v5756 = vld [vmem:[#allocation5 + $0x18] sm:$0xff]
    %v5757 = vld [vmem:[#allocation5 + $0x20] sm:$0xff]
    %v5758 = vld [vmem:[#allocation5 + $0x28] sm:$0xff]
    %v5759 = vld [vmem:[#allocation5 + $0x30] sm:$0xff]
    %v5760 = vld [vmem:[#allocation5 + $0x38] sm:$0xff]
    %v5761 = vld [vmem:[#allocation5 + $0x40] sm:$0xff]
    %v5762 = vld [vmem:[#allocation5 + $0x48] sm:$0xff]
    %v5763 = vld [vmem:[#allocation5 + $0x50] sm:$0xff]
    %v5764 = vld [vmem:[#allocation5 + $0x58] sm:$0xff]
    %v5765 = vld [vmem:[#allocation5 + $0x60] sm:$0xff]
    %v5766 = vld [vmem:[#allocation5 + $0x68] sm:$0xff]
    %v5767 = vld [vmem:[#allocation5 + $0x70] sm:$0xff]
    %v5768 = vld [vmem:[#allocation5 + $0x78] sm:$0xff]
    %v5769 = vld [vmem:[#allocation5 + $0x80] sm:$0xff]
    %v5770 = vld [vmem:[#allocation5 + $0x88] sm:$0xff]
    %v5771 = vld [vmem:[#allocation5 + $0x90] sm:$0xff]
    %v5772 = vld [vmem:[#allocation5 + $0x98] sm:$0xff]
    %v5773 = vld [vmem:[#allocation5 + $0xa0] sm:$0xff]
    %v5774 = vld [vmem:[#allocation5 + $0xa8] sm:$0xff]
    %v5775 = vld [vmem:[#allocation5 + $0xb0] sm:$0xff]
    %v5776 = vld [vmem:[#allocation5 + $0xb8] sm:$0xff]
    %v5777 = vld [vmem:[#allocation5 + $0xc0] sm:$0xff]
    %v5778 = vld [vmem:[#allocation5 + $0xc8] sm:$0xff]
    %v5779 = vld [vmem:[#allocation5 + $0xd0] sm:$0xff]
    %v5780 = vld [vmem:[#allocation5 + $0xd8] sm:$0xff]
    %v5781 = vld [vmem:[#allocation5 + $0xe0] sm:$0xff]
    %v5782 = vld [vmem:[#allocation5 + $0xe8] sm:$0xff]
    %v5783 = vld [vmem:[#allocation5 + $0xf0] sm:$0xff]
    %v5784 = vld [vmem:[#allocation5 + $0xf8] sm:$0xff]
    %v5785 = vld [vmem:[#allocation5 + $0x100] sm:$0xff]
    %v5786 = vld [vmem:[#allocation5 + $0x108] sm:$0xff]
    %v5787 = vld [vmem:[#allocation5 + $0x110] sm:$0xff]
    %v5788 = vld [vmem:[#allocation5 + $0x118] sm:$0xff]
    %v5789 = vld [vmem:[#allocation5 + $0x120] sm:$0xff]
    %v5790 = vld [vmem:[#allocation5 + $0x128] sm:$0xff]
    %v5791 = vld [vmem:[#allocation5 + $0x130] sm:$0xff]
    %v5792 = vld [vmem:[#allocation5 + $0x138] sm:$0xff]
    %v5793 = vld [vmem:[#allocation5 + $0x140] sm:$0xff]
    %v5794 = vld [vmem:[#allocation5 + $0x148] sm:$0xff]
    %v5795 = vld [vmem:[#allocation5 + $0x150] sm:$0xff]
    %v5796 = vld [vmem:[#allocation5 + $0x158] sm:$0xff]
    %v5797 = vld [vmem:[#allocation5 + $0x160] sm:$0xff]
    %v5798 = vld [vmem:[#allocation5 + $0x168] sm:$0xff]
    %v5799 = vld [vmem:[#allocation5 + $0x170] sm:$0xff]
    %v5800 = vld [vmem:[#allocation5 + $0x178] sm:$0xff]
    %v5801 = vld [vmem:[#allocation5 + $0x180] sm:$0xff]
    %v5802 = vld [vmem:[#allocation5 + $0x188] sm:$0xff]
    %v5803 = vld [vmem:[#allocation5 + $0x190] sm:$0xff]
    %v5804 = vld [vmem:[#allocation5 + $0x198] sm:$0xff]
    %v5805 = vld [vmem:[#allocation5 + $0x1a0] sm:$0xff]
    %v5806 = vld [vmem:[#allocation5 + $0x1a8] sm:$0xff]
    %v5807 = vld [vmem:[#allocation5 + $0x1b0] sm:$0xff]
    %v5808 = vld [vmem:[#allocation5 + $0x1b8] sm:$0xff]
    %v5809 = vld [vmem:[#allocation5 + $0x1c0] sm:$0xff]
    %v5810 = vld [vmem:[#allocation5 + $0x1c8] sm:$0xff]
    %v5811 = vld [vmem:[#allocation5 + $0x1d0] sm:$0xff]
    %v5812 = vld [vmem:[#allocation5 + $0x1d8] sm:$0xff]
    %v5813 = vld [vmem:[#allocation5 + $0x1e0] sm:$0xff]
    %v5814 = vld [vmem:[#allocation5 + $0x1e8] sm:$0xff]
    %v5815 = vld [vmem:[#allocation5 + $0x1f0] sm:$0xff]
    %v5816 = vld [vmem:[#allocation5 + $0x1f8] sm:$0xff]
    %v5817 = vld [vmem:[#allocation5 + $0x200] sm:$0xff]
    %v5818 = vld [vmem:[#allocation5 + $0x208] sm:$0xff]
    %v5819 = vld [vmem:[#allocation5 + $0x210] sm:$0xff]
    %v5820 = vld [vmem:[#allocation5 + $0x218] sm:$0xff]
    %v5821 = vld [vmem:[#allocation5 + $0x220] sm:$0xff]
    %v5822 = vld [vmem:[#allocation5 + $0x228] sm:$0xff]
    %v5823 = vld [vmem:[#allocation5 + $0x230] sm:$0xff]
    %v5824 = vld [vmem:[#allocation5 + $0x238] sm:$0xff]
    %v5825 = vld [vmem:[#allocation5 + $0x240] sm:$0xff]
    %v5826 = vld [vmem:[#allocation5 + $0x248] sm:$0xff]
    %v5827 = vld [vmem:[#allocation5 + $0x250] sm:$0xff]
    %v5828 = vld [vmem:[#allocation5 + $0x258] sm:$0xff]
    %v5829 = vld [vmem:[#allocation5 + $0x260] sm:$0xff]
    %v5830 = vld [vmem:[#allocation5 + $0x268] sm:$0xff]
    %v5831 = vld [vmem:[#allocation5 + $0x270] sm:$0xff]
    %v5832 = vld [vmem:[#allocation5 + $0x278] sm:$0xff]
    %v5833 = vld [vmem:[#allocation5 + $0x280] sm:$0xff]
    %v5834 = vld [vmem:[#allocation5 + $0x288] sm:$0xff]
    %v5835 = vld [vmem:[#allocation5 + $0x290] sm:$0xff]
    %v5836 = vld [vmem:[#allocation5 + $0x298] sm:$0xff]
    %v5837 = vld [vmem:[#allocation5 + $0x2a0] sm:$0xff]
    %v5838 = vld [vmem:[#allocation5 + $0x2a8] sm:$0xff]
    %v5839 = vld [vmem:[#allocation5 + $0x2b0] sm:$0xff]
    %v5840 = vld [vmem:[#allocation5 + $0x2b8] sm:$0xff]
    %v5841 = vld [vmem:[#allocation5 + $0x2c0] sm:$0xff]
    %v5842 = vld [vmem:[#allocation5 + $0x2c8] sm:$0xff]
    %v5843 = vld [vmem:[#allocation5 + $0x2d0] sm:$0xff]
    %v5844 = vld [vmem:[#allocation5 + $0x2d8] sm:$0xff]
    %v5845 = vld [vmem:[#allocation5 + $0x2e0] sm:$0xff]
    %v5846 = vld [vmem:[#allocation5 + $0x2e8] sm:$0xff]
    %v5847 = vld [vmem:[#allocation5 + $0x2f0] sm:$0xff]
    %v5848 = vld [vmem:[#allocation5 + $0x2f8] sm:$0xff]
    %v5849 = vld [vmem:[#allocation5 + $0x300] sm:$0xff]
    %v5850 = vld [vmem:[#allocation5 + $0x308] sm:$0xff]
    %v5851 = vld [vmem:[#allocation5 + $0x310] sm:$0xff]
    %v5852 = vld [vmem:[#allocation5 + $0x318] sm:$0xff]
    %v5853 = vld [vmem:[#allocation5 + $0x320] sm:$0xff]
    %v5854 = vld [vmem:[#allocation5 + $0x328] sm:$0xff]
    %v5855 = vld [vmem:[#allocation5 + $0x330] sm:$0xff]
    %v5856 = vld [vmem:[#allocation5 + $0x338] sm:$0xff]
    %v5857 = vld [vmem:[#allocation5 + $0x340] sm:$0xff]
    %v5858 = vld [vmem:[#allocation5 + $0x348] sm:$0xff]
    %v5859 = vld [vmem:[#allocation5 + $0x350] sm:$0xff]
    %v5860 = vld [vmem:[#allocation5 + $0x358] sm:$0xff]
    %v5861 = vld [vmem:[#allocation5 + $0x360] sm:$0xff]
    %v5862 = vld [vmem:[#allocation5 + $0x368] sm:$0xff]
    %v5863 = vld [vmem:[#allocation5 + $0x370] sm:$0xff]
    %v5864 = vld [vmem:[#allocation5 + $0x378] sm:$0xff]
    %v5865 = vld [vmem:[#allocation5 + $0x380] sm:$0xff]
    %v5866 = vld [vmem:[#allocation5 + $0x388] sm:$0xff]
    %v5867 = vld [vmem:[#allocation5 + $0x390] sm:$0xff]
    %v5868 = vld [vmem:[#allocation5 + $0x398] sm:$0xff]
    %v5869 = vld [vmem:[#allocation5 + $0x3a0] sm:$0xff]
    %v5870 = vld [vmem:[#allocation5 + $0x3a8] sm:$0xff]
    %v5871 = vld [vmem:[#allocation5 + $0x3b0] sm:$0xff]
    %v5872 = vld [vmem:[#allocation5 + $0x3b8] sm:$0xff]
    %v5873 = vld [vmem:[#allocation5 + $0x3c0] sm:$0xff]
    %v5874 = vld [vmem:[#allocation5 + $0x3c8] sm:$0xff]
    %v5875 = vld [vmem:[#allocation5 + $0x3d0] sm:$0xff]
    %v5876 = vld [vmem:[#allocation5 + $0x3d8] sm:$0xff]
    %v5877 = vld [vmem:[#allocation5 + $0x3e0] sm:$0xff]
    %v5878 = vld [vmem:[#allocation5 + $0x3e8] sm:$0xff]
    %v5879 = vld [vmem:[#allocation5 + $0x3f0] sm:$0xff]
    %v5880 = vld [vmem:[#allocation5 + $0x3f8] sm:$0xff]
    %v5881 = vld [vmem:[#allocation5 + $0x400] sm:$0xff]
    %v5882 = vld [vmem:[#allocation5 + $0x408] sm:$0xff]
    %v5883 = vld [vmem:[#allocation5 + $0x410] sm:$0xff]
    %v5884 = vld [vmem:[#allocation5 + $0x418] sm:$0xff]
    %v5885 = vld [vmem:[#allocation5 + $0x420] sm:$0xff]
    %v5886 = vld [vmem:[#allocation5 + $0x428] sm:$0xff]
    %v5887 = vld [vmem:[#allocation5 + $0x430] sm:$0xff]
    %v5888 = vld [vmem:[#allocation5 + $0x438] sm:$0xff]
    %v5889 = vld [vmem:[#allocation5 + $0x440] sm:$0xff]
    %v5890 = vld [vmem:[#allocation5 + $0x448] sm:$0xff]
    %v5891 = vld [vmem:[#allocation5 + $0x450] sm:$0xff]
    %v5892 = vld [vmem:[#allocation5 + $0x458] sm:$0xff]
    %v5893 = vld [vmem:[#allocation5 + $0x460] sm:$0xff]
    %v5894 = vld [vmem:[#allocation5 + $0x468] sm:$0xff]
    %v5895 = vld [vmem:[#allocation5 + $0x470] sm:$0xff]
    %v5896 = vld [vmem:[#allocation5 + $0x478] sm:$0xff]
    %v5897 = vld [vmem:[#allocation5 + $0x480] sm:$0xff]
    %v5898 = vld [vmem:[#allocation5 + $0x488] sm:$0xff]
    %v5899 = vld [vmem:[#allocation5 + $0x490] sm:$0xff]
    %v5900 = vld [vmem:[#allocation5 + $0x498] sm:$0xff]
    %v5901 = vld [vmem:[#allocation5 + $0x4a0] sm:$0xff]
    %v5902 = vld [vmem:[#allocation5 + $0x4a8] sm:$0xff]
    %v5903 = vld [vmem:[#allocation5 + $0x4b0] sm:$0xff]
    %v5904 = vld [vmem:[#allocation5 + $0x4b8] sm:$0xff]
    %v5905 = vld [vmem:[#allocation5 + $0x4c0] sm:$0xff]
    %v5906 = vld [vmem:[#allocation5 + $0x4c8] sm:$0xff]
    %v5907 = vld [vmem:[#allocation5 + $0x4d0] sm:$0xff]
    %v5908 = vld [vmem:[#allocation5 + $0x4d8] sm:$0xff]
    %v5909 = vld [vmem:[#allocation5 + $0x4e0] sm:$0xff]
    %v5910 = vld [vmem:[#allocation5 + $0x4e8] sm:$0xff]
    %v5911 = vld [vmem:[#allocation5 + $0x4f0] sm:$0xff]
    %v5912 = vld [vmem:[#allocation5 + $0x4f8] sm:$0xff]
    %v5913 = vld [vmem:[#allocation5 + $0x500] sm:$0xff]
    %v5914 = vld [vmem:[#allocation5 + $0x508] sm:$0xff]
    %v5915 = vld [vmem:[#allocation5 + $0x510] sm:$0xff]
    %v5916 = vld [vmem:[#allocation5 + $0x518] sm:$0xff]
    %v5917 = vld [vmem:[#allocation5 + $0x520] sm:$0xff]
    %v5918 = vld [vmem:[#allocation5 + $0x528] sm:$0xff]
    %v5919 = vld [vmem:[#allocation5 + $0x530] sm:$0xff]
    %v5920 = vld [vmem:[#allocation5 + $0x538] sm:$0xff]
    %v5921 = vld [vmem:[#allocation5 + $0x540] sm:$0xff]
    %v5922 = vld [vmem:[#allocation5 + $0x548] sm:$0xff]
    %v5923 = vld [vmem:[#allocation5 + $0x550] sm:$0xff]
    %v5924 = vld [vmem:[#allocation5 + $0x558] sm:$0xff]
    %v5925 = vld [vmem:[#allocation5 + $0x560] sm:$0xff]
    %v5926 = vld [vmem:[#allocation5 + $0x568] sm:$0xff]
    %v5927 = vld [vmem:[#allocation5 + $0x570] sm:$0xff]
    %v5928 = vld [vmem:[#allocation5 + $0x578] sm:$0xff]
    %v5929 = vld [vmem:[#allocation5 + $0x580] sm:$0xff]
    %v5930 = vld [vmem:[#allocation5 + $0x588] sm:$0xff]
    %v5931 = vld [vmem:[#allocation5 + $0x590] sm:$0xff]
    %v5932 = vld [vmem:[#allocation5 + $0x598] sm:$0xff]
    %v5933 = vld [vmem:[#allocation5 + $0x5a0] sm:$0xff]
    %v5934 = vld [vmem:[#allocation5 + $0x5a8] sm:$0xff]
    %v5935 = vld [vmem:[#allocation5 + $0x5b0] sm:$0xff]
    %v5936 = vld [vmem:[#allocation5 + $0x5b8] sm:$0xff]
    %v5937 = vld [vmem:[#allocation5 + $0x5c0] sm:$0xff]
    %v5938 = vld [vmem:[#allocation5 + $0x5c8] sm:$0xff]
    %v5939 = vld [vmem:[#allocation5 + $0x5d0] sm:$0xff]
    %v5940 = vld [vmem:[#allocation5 + $0x5d8] sm:$0xff]
    %v5941 = vld [vmem:[#allocation5 + $0x5e0] sm:$0xff]
    %v5942 = vld [vmem:[#allocation5 + $0x5e8] sm:$0xff]
    %v5943 = vld [vmem:[#allocation5 + $0x5f0] sm:$0xff]
    %v5944 = vld [vmem:[#allocation5 + $0x5f8] sm:$0xff]
    %v5945 = vld [vmem:[#allocation5 + $0x600] sm:$0xff]
    %v5946 = vld [vmem:[#allocation5 + $0x608] sm:$0xff]
    %v5947 = vld [vmem:[#allocation5 + $0x610] sm:$0xff]
    %v5948 = vld [vmem:[#allocation5 + $0x618] sm:$0xff]
    %v5949 = vld [vmem:[#allocation5 + $0x620] sm:$0xff]
    %v5950 = vld [vmem:[#allocation5 + $0x628] sm:$0xff]
    %v5951 = vld [vmem:[#allocation5 + $0x630] sm:$0xff]
    %v5952 = vld [vmem:[#allocation5 + $0x638] sm:$0xff]
    %v5953 = vld [vmem:[#allocation5 + $0x640] sm:$0xff]
    %v5954 = vld [vmem:[#allocation5 + $0x648] sm:$0xff]
    %v5955 = vld [vmem:[#allocation5 + $0x650] sm:$0xff]
    %v5956 = vld [vmem:[#allocation5 + $0x658] sm:$0xff]
    %v5957 = vld [vmem:[#allocation5 + $0x660] sm:$0xff]
    %v5958 = vld [vmem:[#allocation5 + $0x668] sm:$0xff]
    %v5959 = vld [vmem:[#allocation5 + $0x670] sm:$0xff]
    %v5960 = vld [vmem:[#allocation5 + $0x678] sm:$0xff]
    %v5961 = vld [vmem:[#allocation5 + $0x680] sm:$0xff]
    %v5962 = vld [vmem:[#allocation5 + $0x688] sm:$0xff]
    %v5963 = vld [vmem:[#allocation5 + $0x690] sm:$0xff]
    %v5964 = vld [vmem:[#allocation5 + $0x698] sm:$0xff]
    %v5965 = vld [vmem:[#allocation5 + $0x6a0] sm:$0xff]
    %v5966 = vld [vmem:[#allocation5 + $0x6a8] sm:$0xff]
    %v5967 = vld [vmem:[#allocation5 + $0x6b0] sm:$0xff]
    %v5968 = vld [vmem:[#allocation5 + $0x6b8] sm:$0xff]
    %v5969 = vld [vmem:[#allocation5 + $0x6c0] sm:$0xff]
    %v5970 = vld [vmem:[#allocation5 + $0x6c8] sm:$0xff]
    %v5971 = vld [vmem:[#allocation5 + $0x6d0] sm:$0xff]
    %v5972 = vld [vmem:[#allocation5 + $0x6d8] sm:$0xff]
    %v5973 = vld [vmem:[#allocation5 + $0x6e0] sm:$0xff]
    %v5974 = vld [vmem:[#allocation5 + $0x6e8] sm:$0xff]
    %v5975 = vld [vmem:[#allocation5 + $0x6f0] sm:$0xff]
    %v5976 = vld [vmem:[#allocation5 + $0x6f8] sm:$0xff]
    %v5977 = vld [vmem:[#allocation5 + $0x700] sm:$0xff]
    %v5978 = vld [vmem:[#allocation5 + $0x708] sm:$0xff]
    %v5979 = vld [vmem:[#allocation5 + $0x710] sm:$0xff]
    %v5980 = vld [vmem:[#allocation5 + $0x718] sm:$0xff]
    %v5981 = vld [vmem:[#allocation5 + $0x720] sm:$0xff]
    %v5982 = vld [vmem:[#allocation5 + $0x728] sm:$0xff]
    %v5983 = vld [vmem:[#allocation5 + $0x730] sm:$0xff]
    %v5984 = vld [vmem:[#allocation5 + $0x738] sm:$0xff]
    %v5985 = vld [vmem:[#allocation5 + $0x740] sm:$0xff]
    %v5986 = vld [vmem:[#allocation5 + $0x748] sm:$0xff]
    %v5987 = vld [vmem:[#allocation5 + $0x750] sm:$0xff]
    %v5988 = vld [vmem:[#allocation5 + $0x758] sm:$0xff]
    %v5989 = vld [vmem:[#allocation5 + $0x760] sm:$0xff]
    %v5990 = vld [vmem:[#allocation5 + $0x768] sm:$0xff]
    %v5991 = vld [vmem:[#allocation5 + $0x770] sm:$0xff]
    %v5992 = vld [vmem:[#allocation5 + $0x778] sm:$0xff]
    %v5993 = vld [vmem:[#allocation5 + $0x780] sm:$0xff]
    %v5994 = vld [vmem:[#allocation5 + $0x788] sm:$0xff]
    %v5995 = vld [vmem:[#allocation5 + $0x790] sm:$0xff]
    %v5996 = vld [vmem:[#allocation5 + $0x798] sm:$0xff]
    %v5997 = vld [vmem:[#allocation5 + $0x7a0] sm:$0xff]
    %v5998 = vld [vmem:[#allocation5 + $0x7a8] sm:$0xff]
    %v5999 = vld [vmem:[#allocation5 + $0x7b0] sm:$0xff]
    %v6000 = vld [vmem:[#allocation5 + $0x7b8] sm:$0xff]
    %v6001 = vld [vmem:[#allocation5 + $0x7c0] sm:$0xff]
    %v6002 = vld [vmem:[#allocation5 + $0x7c8] sm:$0xff]
    %v6003 = vld [vmem:[#allocation5 + $0x7d0] sm:$0xff]
    %v6004 = vld [vmem:[#allocation5 + $0x7d8] sm:$0xff]
    %v6005 = vld [vmem:[#allocation5 + $0x7e0] sm:$0xff]
    %v6006 = vld [vmem:[#allocation5 + $0x7e8] sm:$0xff]
    %v6007 = vld [vmem:[#allocation5 + $0x7f0] sm:$0xff]
    %v6008 = vld [vmem:[#allocation5 + $0x7f8] sm:$0xff]
    %v6009 = vld [vmem:[#allocation5 + $0x800] sm:$0xff]
    %v6010 = vld [vmem:[#allocation5 + $0x808] sm:$0xff]
    %v6011 = vld [vmem:[#allocation5 + $0x810] sm:$0xff]
    %v6012 = vld [vmem:[#allocation5 + $0x818] sm:$0xff]
    %v6013 = vld [vmem:[#allocation5 + $0x820] sm:$0xff]
    %v6014 = vld [vmem:[#allocation5 + $0x828] sm:$0xff]
    %v6015 = vld [vmem:[#allocation5 + $0x830] sm:$0xff]
    %v6016 = vld [vmem:[#allocation5 + $0x838] sm:$0xff]
    %v6017 = vld [vmem:[#allocation5 + $0x840] sm:$0xff]
    %v6018 = vld [vmem:[#allocation5 + $0x848] sm:$0xff]
    %v6019 = vld [vmem:[#allocation5 + $0x850] sm:$0xff]
    %v6020 = vld [vmem:[#allocation5 + $0x858] sm:$0xff]
    %v6021 = vld [vmem:[#allocation5 + $0x860] sm:$0xff]
    %v6022 = vld [vmem:[#allocation5 + $0x868] sm:$0xff]
    %v6023 = vld [vmem:[#allocation5 + $0x870] sm:$0xff]
    %v6024 = vld [vmem:[#allocation5 + $0x878] sm:$0xff]
    %v6025 = vld [vmem:[#allocation5 + $0x880] sm:$0xff]
    %v6026 = vld [vmem:[#allocation5 + $0x888] sm:$0xff]
    %v6027 = vld [vmem:[#allocation5 + $0x890] sm:$0xff]
    %v6028 = vld [vmem:[#allocation5 + $0x898] sm:$0xff]
    %v6029 = vld [vmem:[#allocation5 + $0x8a0] sm:$0xff]
    %v6030 = vld [vmem:[#allocation5 + $0x8a8] sm:$0xff]
    %v6031 = vld [vmem:[#allocation5 + $0x8b0] sm:$0xff]
    %v6032 = vld [vmem:[#allocation5 + $0x8b8] sm:$0xff]
    %v6033 = vld [vmem:[#allocation5 + $0x8c0] sm:$0xff]
    %v6034 = vld [vmem:[#allocation5 + $0x8c8] sm:$0xff]
    %v6035 = vld [vmem:[#allocation5 + $0x8d0] sm:$0xff]
    %v6036 = vld [vmem:[#allocation5 + $0x8d8] sm:$0xff]
    %v6037 = vld [vmem:[#allocation5 + $0x8e0] sm:$0xff]
    %v6038 = vld [vmem:[#allocation5 + $0x8e8] sm:$0xff]
    %v6039 = vld [vmem:[#allocation5 + $0x8f0] sm:$0xff]
    %v6040 = vld [vmem:[#allocation5 + $0x8f8] sm:$0xff]
    %v6041 = vld [vmem:[#allocation5 + $0x900] sm:$0xff]
    %v6042 = vld [vmem:[#allocation5 + $0x908] sm:$0xff]
    %v6043 = vld [vmem:[#allocation5 + $0x910] sm:$0xff]
    %v6044 = vld [vmem:[#allocation5 + $0x918] sm:$0xff]
    %v6045 = vld [vmem:[#allocation5 + $0x920] sm:$0xff]
    %v6046 = vld [vmem:[#allocation5 + $0x928] sm:$0xff]
    %v6047 = vld [vmem:[#allocation5 + $0x930] sm:$0xff]
    %v6048 = vld [vmem:[#allocation5 + $0x938] sm:$0xff]
    %v6049 = vld [vmem:[#allocation5 + $0x940] sm:$0xff]
    %v6050 = vld [vmem:[#allocation5 + $0x948] sm:$0xff]
    %v6051 = vld [vmem:[#allocation5 + $0x950] sm:$0xff]
    %v6052 = vld [vmem:[#allocation5 + $0x958] sm:$0xff]
    %v6053 = vld [vmem:[#allocation5 + $0x960] sm:$0xff]
    %v6054 = vld [vmem:[#allocation5 + $0x968] sm:$0xff]
    %v6055 = vld [vmem:[#allocation5 + $0x970] sm:$0xff]
    %v6056 = vld [vmem:[#allocation5 + $0x978] sm:$0xff]
    %v6057 = vld [vmem:[#allocation5 + $0x980] sm:$0xff]
    %v6058 = vld [vmem:[#allocation5 + $0x988] sm:$0xff]
    %v6059 = vld [vmem:[#allocation5 + $0x990] sm:$0xff]
    %v6060 = vld [vmem:[#allocation5 + $0x998] sm:$0xff]
    %v6061 = vld [vmem:[#allocation5 + $0x9a0] sm:$0xff]
    %v6062 = vld [vmem:[#allocation5 + $0x9a8] sm:$0xff]
    %v6063 = vld [vmem:[#allocation5 + $0x9b0] sm:$0xff]
    %v6064 = vld [vmem:[#allocation5 + $0x9b8] sm:$0xff]
    %v6065 = vld [vmem:[#allocation5 + $0x9c0] sm:$0xff]
    %v6066 = vld [vmem:[#allocation5 + $0x9c8] sm:$0xff]
    %v6067 = vld [vmem:[#allocation5 + $0x9d0] sm:$0xff]
    %v6068 = vld [vmem:[#allocation5 + $0x9d8] sm:$0xff]
    %v6069 = vld [vmem:[#allocation5 + $0x9e0] sm:$0xff]
    %v6070 = vld [vmem:[#allocation5 + $0x9e8] sm:$0xff]
    %v6071 = vld [vmem:[#allocation5 + $0x9f0] sm:$0xff]
    %v6072 = vld [vmem:[#allocation5 + $0x9f8] sm:$0xff]
    %v6073 = vld [vmem:[#allocation5 + $0xa00] sm:$0xff]
    %v6074 = vld [vmem:[#allocation5 + $0xa08] sm:$0xff]
    %v6075 = vld [vmem:[#allocation5 + $0xa10] sm:$0xff]
    %v6076 = vld [vmem:[#allocation5 + $0xa18] sm:$0xff]
    %v6077 = vld [vmem:[#allocation5 + $0xa20] sm:$0xff]
    %v6078 = vld [vmem:[#allocation5 + $0xa28] sm:$0xff]
    %v6079 = vld [vmem:[#allocation5 + $0xa30] sm:$0xff]
    %v6080 = vld [vmem:[#allocation5 + $0xa38] sm:$0xff]
    %v6081 = vld [vmem:[#allocation5 + $0xa40] sm:$0xff]
    %v6082 = vld [vmem:[#allocation5 + $0xa48] sm:$0xff]
    %v6083 = vld [vmem:[#allocation5 + $0xa50] sm:$0xff]
    %v6084 = vld [vmem:[#allocation5 + $0xa58] sm:$0xff]
    %v6085 = vld [vmem:[#allocation5 + $0xa60] sm:$0xff]
    %v6086 = vld [vmem:[#allocation5 + $0xa68] sm:$0xff]
    %v6087 = vld [vmem:[#allocation5 + $0xa70] sm:$0xff]
    %v6088 = vld [vmem:[#allocation5 + $0xa78] sm:$0xff]
    %v6089 = vld [vmem:[#allocation5 + $0xa80] sm:$0xff]
    %v6090 = vld [vmem:[#allocation5 + $0xa88] sm:$0xff]
    %v6091 = vld [vmem:[#allocation5 + $0xa90] sm:$0xff]
    %v6092 = vld [vmem:[#allocation5 + $0xa98] sm:$0xff]
    %v6093 = vld [vmem:[#allocation5 + $0xaa0] sm:$0xff]
    %v6094 = vld [vmem:[#allocation5 + $0xaa8] sm:$0xff]
    %v6095 = vld [vmem:[#allocation5 + $0xab0] sm:$0xff]
    %v6096 = vld [vmem:[#allocation5 + $0xab8] sm:$0xff]
    %v6097 = vld [vmem:[#allocation5 + $0xac0] sm:$0xff]
    %v6098 = vld [vmem:[#allocation5 + $0xac8] sm:$0xff]
    %v6099 = vld [vmem:[#allocation5 + $0xad0] sm:$0xff]
    %v6100 = vld [vmem:[#allocation5 + $0xad8] sm:$0xff]
    %v6101 = vld [vmem:[#allocation5 + $0xae0] sm:$0xff]
    %v6102 = vld [vmem:[#allocation5 + $0xae8] sm:$0xff]
    %v6103 = vld [vmem:[#allocation5 + $0xaf0] sm:$0xff]
    %v6104 = vld [vmem:[#allocation5 + $0xaf8] sm:$0xff]
    %v6105 = vld [vmem:[#allocation5 + $0xb00] sm:$0xff]
    %v6106 = vld [vmem:[#allocation5 + $0xb08] sm:$0xff]
    %v6107 = vld [vmem:[#allocation5 + $0xb10] sm:$0xff]
    %v6108 = vld [vmem:[#allocation5 + $0xb18] sm:$0xff]
    %v6109 = vld [vmem:[#allocation5 + $0xb20] sm:$0xff]
    %v6110 = vld [vmem:[#allocation5 + $0xb28] sm:$0xff]
    %v6111 = vld [vmem:[#allocation5 + $0xb30] sm:$0xff]
    %v6112 = vld [vmem:[#allocation5 + $0xb38] sm:$0xff]
    %v6113 = vld [vmem:[#allocation5 + $0xb40] sm:$0xff]
    %v6114 = vld [vmem:[#allocation5 + $0xb48] sm:$0xff]
    %v6115 = vld [vmem:[#allocation5 + $0xb50] sm:$0xff]
    %v6116 = vld [vmem:[#allocation5 + $0xb58] sm:$0xff]
    %v6117 = vld [vmem:[#allocation5 + $0xb60] sm:$0xff]
    %v6118 = vld [vmem:[#allocation5 + $0xb68] sm:$0xff]
    %v6119 = vld [vmem:[#allocation5 + $0xb70] sm:$0xff]
    %v6120 = vld [vmem:[#allocation5 + $0xb78] sm:$0xff]
    %v6121 = vld [vmem:[#allocation5 + $0xb80] sm:$0xff]
    %v6122 = vld [vmem:[#allocation5 + $0xb88] sm:$0xff]
    %v6123 = vld [vmem:[#allocation5 + $0xb90] sm:$0xff]
    %v6124 = vld [vmem:[#allocation5 + $0xb98] sm:$0xff]
    %v6125 = vld [vmem:[#allocation5 + $0xba0] sm:$0xff]
    %v6126 = vld [vmem:[#allocation5 + $0xba8] sm:$0xff]
    %v6127 = vld [vmem:[#allocation5 + $0xbb0] sm:$0xff]
    %v6128 = vld [vmem:[#allocation5 + $0xbb8] sm:$0xff]
    %v6129 = vld [vmem:[#allocation5 + $0xbc0] sm:$0xff]
    %v6130 = vld [vmem:[#allocation5 + $0xbc8] sm:$0xff]
    %v6131 = vld [vmem:[#allocation5 + $0xbd0] sm:$0xff]
    %v6132 = vld [vmem:[#allocation5 + $0xbd8] sm:$0xff]
    %v6133 = vld [vmem:[#allocation5 + $0xbe0] sm:$0xff]
    %v6134 = vld [vmem:[#allocation5 + $0xbe8] sm:$0xff]
    %v6135 = vld [vmem:[#allocation5 + $0xbf0] sm:$0xff]
    %v6136 = vld [vmem:[#allocation5 + $0xbf8] sm:$0xff]
    %v6137 = vld [vmem:[#allocation5 + $0xc00] sm:$0xff]
    %v6138 = vld [vmem:[#allocation5 + $0xc08] sm:$0xff]
    %v6139 = vld [vmem:[#allocation5 + $0xc10] sm:$0xff]
    %v6140 = vld [vmem:[#allocation5 + $0xc18] sm:$0xff]
    %v6141 = vld [vmem:[#allocation5 + $0xc20] sm:$0xff]
    %v6142 = vld [vmem:[#allocation5 + $0xc28] sm:$0xff]
    %v6143 = vld [vmem:[#allocation5 + $0xc30] sm:$0xff]
    %v6144 = vld [vmem:[#allocation5 + $0xc38] sm:$0xff]
    %v6145 = vld [vmem:[#allocation5 + $0xc40] sm:$0xff]
    %v6146 = vld [vmem:[#allocation5 + $0xc48] sm:$0xff]
    %v6147 = vld [vmem:[#allocation5 + $0xc50] sm:$0xff]
    %v6148 = vld [vmem:[#allocation5 + $0xc58] sm:$0xff]
    %v6149 = vld [vmem:[#allocation5 + $0xc60] sm:$0xff]
    %v6150 = vld [vmem:[#allocation5 + $0xc68] sm:$0xff]
    %v6151 = vld [vmem:[#allocation5 + $0xc70] sm:$0xff]
    %v6152 = vld [vmem:[#allocation5 + $0xc78] sm:$0xff]
    %v6153 = vld [vmem:[#allocation5 + $0xc80] sm:$0xff]
    %v6154 = vld [vmem:[#allocation5 + $0xc88] sm:$0xff]
    %v6155 = vld [vmem:[#allocation5 + $0xc90] sm:$0xff]
    %v6156 = vld [vmem:[#allocation5 + $0xc98] sm:$0xff]
    %v6157 = vld [vmem:[#allocation5 + $0xca0] sm:$0xff]
    %v6158 = vld [vmem:[#allocation5 + $0xca8] sm:$0xff]
    %v6159 = vld [vmem:[#allocation5 + $0xcb0] sm:$0xff]
    %v6160 = vld [vmem:[#allocation5 + $0xcb8] sm:$0xff]
    %v6161 = vld [vmem:[#allocation5 + $0xcc0] sm:$0xff]
    %v6162 = vld [vmem:[#allocation5 + $0xcc8] sm:$0xff]
    %v6163 = vld [vmem:[#allocation5 + $0xcd0] sm:$0xff]
    %v6164 = vld [vmem:[#allocation5 + $0xcd8] sm:$0xff]
    %v6165 = vld [vmem:[#allocation5 + $0xce0] sm:$0xff]
    %v6166 = vld [vmem:[#allocation5 + $0xce8] sm:$0xff]
    %v6167 = vld [vmem:[#allocation5 + $0xcf0] sm:$0xff]
    %v6168 = vld [vmem:[#allocation5 + $0xcf8] sm:$0xff]
    %v6169 = vld [vmem:[#allocation5 + $0xd00] sm:$0xff]
    %v6170 = vld [vmem:[#allocation5 + $0xd08] sm:$0xff]
    %v6171 = vld [vmem:[#allocation5 + $0xd10] sm:$0xff]
    %v6172 = vld [vmem:[#allocation5 + $0xd18] sm:$0xff]
    %v6173 = vld [vmem:[#allocation5 + $0xd20] sm:$0xff]
    %v6174 = vld [vmem:[#allocation5 + $0xd28] sm:$0xff]
    %v6175 = vld [vmem:[#allocation5 + $0xd30] sm:$0xff]
    %v6176 = vld [vmem:[#allocation5 + $0xd38] sm:$0xff]
    %v6177 = vld [vmem:[#allocation5 + $0xd40] sm:$0xff]
    %v6178 = vld [vmem:[#allocation5 + $0xd48] sm:$0xff]
    %v6179 = vld [vmem:[#allocation5 + $0xd50] sm:$0xff]
    %v6180 = vld [vmem:[#allocation5 + $0xd58] sm:$0xff]
    %v6181 = vld [vmem:[#allocation5 + $0xd60] sm:$0xff]
    %v6182 = vld [vmem:[#allocation5 + $0xd68] sm:$0xff]
    %v6183 = vld [vmem:[#allocation5 + $0xd70] sm:$0xff]
    %v6184 = vld [vmem:[#allocation5 + $0xd78] sm:$0xff]
    %v6185 = vld [vmem:[#allocation5 + $0xd80] sm:$0xff]
    %v6186 = vld [vmem:[#allocation5 + $0xd88] sm:$0xff]
    %v6187 = vld [vmem:[#allocation5 + $0xd90] sm:$0xff]
    %v6188 = vld [vmem:[#allocation5 + $0xd98] sm:$0xff]
    %v6189 = vld [vmem:[#allocation5 + $0xda0] sm:$0xff]
    %v6190 = vld [vmem:[#allocation5 + $0xda8] sm:$0xff]
    %v6191 = vld [vmem:[#allocation5 + $0xdb0] sm:$0xff]
    %v6192 = vld [vmem:[#allocation5 + $0xdb8] sm:$0xff]
    %v6193 = vld [vmem:[#allocation5 + $0xdc0] sm:$0xff]
    %v6194 = vld [vmem:[#allocation5 + $0xdc8] sm:$0xff]
    %v6195 = vld [vmem:[#allocation5 + $0xdd0] sm:$0xff]
    %v6196 = vld [vmem:[#allocation5 + $0xdd8] sm:$0xff]
    %v6197 = vld [vmem:[#allocation5 + $0xde0] sm:$0xff]
    %v6198 = vld [vmem:[#allocation5 + $0xde8] sm:$0xff]
    %v6199 = vld [vmem:[#allocation5 + $0xdf0] sm:$0xff]
    %v6200 = vld [vmem:[#allocation5 + $0xdf8] sm:$0xff]
    %v6201 = vld [vmem:[#allocation5 + $0xe00] sm:$0xff]
    %v6202 = vld [vmem:[#allocation5 + $0xe08] sm:$0xff]
    %v6203 = vld [vmem:[#allocation5 + $0xe10] sm:$0xff]
    %v6204 = vld [vmem:[#allocation5 + $0xe18] sm:$0xff]
    %v6205 = vld [vmem:[#allocation5 + $0xe20] sm:$0xff]
    %v6206 = vld [vmem:[#allocation5 + $0xe28] sm:$0xff]
    %v6207 = vld [vmem:[#allocation5 + $0xe30] sm:$0xff]
    %v6208 = vld [vmem:[#allocation5 + $0xe38] sm:$0xff]
    %v6209 = vld [vmem:[#allocation5 + $0xe40] sm:$0xff]
    %v6210 = vld [vmem:[#allocation5 + $0xe48] sm:$0xff]
    %v6211 = vld [vmem:[#allocation5 + $0xe50] sm:$0xff]
    %v6212 = vld [vmem:[#allocation5 + $0xe58] sm:$0xff]
    %v6213 = vld [vmem:[#allocation5 + $0xe60] sm:$0xff]
    %v6214 = vld [vmem:[#allocation5 + $0xe68] sm:$0xff]
    %v6215 = vld [vmem:[#allocation5 + $0xe70] sm:$0xff]
    %v6216 = vld [vmem:[#allocation5 + $0xe78] sm:$0xff]
    %v6217 = vld [vmem:[#allocation5 + $0xe80] sm:$0xff]
    %v6218 = vld [vmem:[#allocation5 + $0xe88] sm:$0xff]
    %v6219 = vld [vmem:[#allocation5 + $0xe90] sm:$0xff]
    %v6220 = vld [vmem:[#allocation5 + $0xe98] sm:$0xff]
    %v6221 = vld [vmem:[#allocation5 + $0xea0] sm:$0xff]
    %v6222 = vld [vmem:[#allocation5 + $0xea8] sm:$0xff]
    %v6223 = vld [vmem:[#allocation5 + $0xeb0] sm:$0xff]
    %v6224 = vld [vmem:[#allocation5 + $0xeb8] sm:$0xff]
    %v6225 = vld [vmem:[#allocation5 + $0xec0] sm:$0xff]
    %v6226 = vld [vmem:[#allocation5 + $0xec8] sm:$0xff]
    %v6227 = vld [vmem:[#allocation5 + $0xed0] sm:$0xff]
    %v6228 = vld [vmem:[#allocation5 + $0xed8] sm:$0xff]
    %v6229 = vld [vmem:[#allocation5 + $0xee0] sm:$0xff]
    %v6230 = vld [vmem:[#allocation5 + $0xee8] sm:$0xff]
    %v6231 = vld [vmem:[#allocation5 + $0xef0] sm:$0xff]
    %v6232 = vld [vmem:[#allocation5 + $0xef8] sm:$0xff]
    %v6233 = vld [vmem:[#allocation5 + $0xf00] sm:$0xff]
    %v6234 = vld [vmem:[#allocation5 + $0xf08] sm:$0xff]
    %v6235 = vld [vmem:[#allocation5 + $0xf10] sm:$0xff]
    %v6236 = vld [vmem:[#allocation5 + $0xf18] sm:$0xff]
    %v6237 = vld [vmem:[#allocation5 + $0xf20] sm:$0xff]
    %v6238 = vld [vmem:[#allocation5 + $0xf28] sm:$0xff]
    %v6239 = vld [vmem:[#allocation5 + $0xf30] sm:$0xff]
    %v6240 = vld [vmem:[#allocation5 + $0xf38] sm:$0xff]
    %v6241 = vld [vmem:[#allocation5 + $0xf40] sm:$0xff]
    %v6242 = vld [vmem:[#allocation5 + $0xf48] sm:$0xff]
    %v6243 = vld [vmem:[#allocation5 + $0xf50] sm:$0xff]
    %v6244 = vld [vmem:[#allocation5 + $0xf58] sm:$0xff]
    %v6245 = vld [vmem:[#allocation5 + $0xf60] sm:$0xff]
    %v6246 = vld [vmem:[#allocation5 + $0xf68] sm:$0xff]
    %v6247 = vld [vmem:[#allocation5 + $0xf70] sm:$0xff]
    %v6248 = vld [vmem:[#allocation5 + $0xf78] sm:$0xff]
    %v6249 = vld [vmem:[#allocation5 + $0xf80] sm:$0xff]
    %v6250 = vld [vmem:[#allocation5 + $0xf88] sm:$0xff]
    %v6251 = vld [vmem:[#allocation5 + $0xf90] sm:$0xff]
    %v6252 = vld [vmem:[#allocation5 + $0xf98] sm:$0xff]
    %v6253 = vld [vmem:[#allocation5 + $0xfa0] sm:$0xff]
    %v6254 = vld [vmem:[#allocation5 + $0xfa8] sm:$0xff]
    %v6255 = vld [vmem:[#allocation5 + $0xfb0] sm:$0xff]
    %v6256 = vld [vmem:[#allocation5 + $0xfb8] sm:$0xff]
    %v6257 = vld [vmem:[#allocation5 + $0xfc0] sm:$0xff]
    %v6258 = vld [vmem:[#allocation5 + $0xfc8] sm:$0xff]
    %v6259 = vld [vmem:[#allocation5 + $0xfd0] sm:$0xff]
    %v6260 = vld [vmem:[#allocation5 + $0xfd8] sm:$0xff]
    %v6261 = vld [vmem:[#allocation5 + $0xfe0] sm:$0xff]
    %v6262 = vld [vmem:[#allocation5 + $0xfe8] sm:$0xff]
    %v6263 = vld [vmem:[#allocation5 + $0xff0] sm:$0xff]
    %v6264 = vld [vmem:[#allocation5 + $0xff8] sm:$0xff]
    %v6265 = vld [vmem:[#allocation14] sm:$0xff]
    %v6267 = vlaneseq
    %v6268 = vshrl.u32 %v6267, 7
    %v6269 = vsub.s32 0, %v6268
    %v6270 = vrot.slane %v6265, %v6269
    %v6271 = vlaneseq
    %v6272 = vshrl.u32 %v6271, 7
    %v6273 = vsub.s32 1, %v6272
    %v6274 = vrot.slane %v6265, %v6273
    %v6275 = vlaneseq
    %v6276 = vshrl.u32 %v6275, 7
    %v6277 = vsub.s32 2, %v6276
    %v6278 = vrot.slane %v6265, %v6277
    %v6279 = vlaneseq
    %v6280 = vshrl.u32 %v6279, 7
    %v6281 = vsub.s32 3, %v6280
    %v6282 = vrot.slane %v6265, %v6281
    %v6283 = vlaneseq
    %v6284 = vshrl.u32 %v6283, 7
    %v6285 = vsub.s32 4, %v6284
    %v6286 = vrot.slane %v6265, %v6285
    %v6287 = vlaneseq
    %v6288 = vshrl.u32 %v6287, 7
    %v6289 = vsub.s32 5, %v6288
    %v6290 = vrot.slane %v6265, %v6289
    %v6291 = vlaneseq
    %v6292 = vshrl.u32 %v6291, 7
    %v6293 = vsub.s32 6, %v6292
    %v6294 = vrot.slane %v6265, %v6293
    %v6295 = vlaneseq
    %v6296 = vshrl.u32 %v6295, 7
    %v6297 = vsub.s32 7, %v6296
    %v6298 = vrot.slane %v6265, %v6297
    %6307 = vmatprep.subr.bf16.mxu0 %v5754
    %6308 = vmatpush1.bf16.msra.mxu0 %v5753
    %6309 = vmatprep.subr.bf16.mxu0 %v5762
    %6310 = vmatpush1.bf16.msra.mxu0 %v5761
    %6311 = vmatprep.subr.bf16.mxu0 %v5770
    %6312 = vmatpush1.bf16.msra.mxu0 %v5769
    %6313 = vmatprep.subr.bf16.mxu0 %v5778
    %6314 = vmatpush1.bf16.msra.mxu0 %v5777
    %6315 = vmatprep.subr.bf16.mxu0 %v5786
    %6316 = vmatpush1.bf16.msra.mxu0 %v5785
    %6317 = vmatprep.subr.bf16.mxu0 %v5794
    %6318 = vmatpush1.bf16.msra.mxu0 %v5793
    %6319 = vmatprep.subr.bf16.mxu0 %v5802
    %6320 = vmatpush1.bf16.msra.mxu0 %v5801
    %6321 = vmatprep.subr.bf16.mxu0 %v5810
    %6322 = vmatpush1.bf16.msra.mxu0 %v5809
    %6323 = vmatprep.subr.bf16.mxu0 %v5818
    %6324 = vmatpush1.bf16.msra.mxu0 %v5817
    %6325 = vmatprep.subr.bf16.mxu0 %v5826
    %6326 = vmatpush1.bf16.msra.mxu0 %v5825
    %6327 = vmatprep.subr.bf16.mxu0 %v5834
    %6328 = vmatpush1.bf16.msra.mxu0 %v5833
    %6329 = vmatprep.subr.bf16.mxu0 %v5842
    %6330 = vmatpush1.bf16.msra.mxu0 %v5841
    %6331 = vmatprep.subr.bf16.mxu0 %v5850
    %6332 = vmatpush1.bf16.msra.mxu0 %v5849
    %6333 = vmatprep.subr.bf16.mxu0 %v5858
    %6334 = vmatpush1.bf16.msra.mxu0 %v5857
    %6335 = vmatprep.subr.bf16.mxu0 %v5866
    %6336 = vmatpush1.bf16.msra.mxu0 %v5865
    %6337 = vmatprep.subr.bf16.mxu0 %v5874
    %6338 = vmatpush1.bf16.msra.mxu0 %v5873
    %6339 = vmatprep.mubr.bf16.mxu0 %v5746
    %6340 = vmatmul.mubr.bf16.gmra.mrb[0].mxu0 %v5745
    %v6341 = vpop.f32.mrb[0].mxu0
    %v6342 = vadd.f32 %v6270, %v6341
    %v6343 = vpop.f32.mrb[0].mxu0
    %v6344 = vadd.f32 %v6274, %v6343
    %v6345 = vpop.f32.mrb[0].mxu0
    %v6346 = vpop.f32.mrb[0].mxu0
    %6347 = vdwg.mxu0
    %6348 = vmatprep.subr.bf16.mxu0 %v5882
    %6349 = vmatpush1.bf16.msra.mxu0 %v5881
    %6350 = vmatprep.subr.bf16.mxu0 %v5890
    %6351 = vmatpush1.bf16.msra.mxu0 %v5889
    %6352 = vmatprep.subr.bf16.mxu0 %v5898
    %6353 = vmatpush1.bf16.msra.mxu0 %v5897
    %6354 = vmatprep.subr.bf16.mxu0 %v5906
    %6355 = vmatpush1.bf16.msra.mxu0 %v5905
    %6356 = vmatprep.subr.bf16.mxu0 %v5914
    %6357 = vmatpush1.bf16.msra.mxu0 %v5913
    %6358 = vmatprep.subr.bf16.mxu0 %v5922
    %6359 = vmatpush1.bf16.msra.mxu0 %v5921
    %6360 = vmatprep.subr.bf16.mxu0 %v5930
    %6361 = vmatpush1.bf16.msra.mxu0 %v5929
    %6362 = vmatprep.subr.bf16.mxu0 %v5938
    %6363 = vmatpush1.bf16.msra.mxu0 %v5937
    %6364 = vmatprep.subr.bf16.mxu0 %v5946
    %6365 = vmatpush1.bf16.msra.mxu0 %v5945
    %6366 = vmatprep.subr.bf16.mxu0 %v5954
    %6367 = vmatpush1.bf16.msra.mxu0 %v5953
    %6368 = vmatprep.subr.bf16.mxu0 %v5962
    %6369 = vmatpush1.bf16.msra.mxu0 %v5961
    %6370 = vmatprep.subr.bf16.mxu0 %v5970
    %6371 = vmatpush1.bf16.msra.mxu0 %v5969
    %6372 = vmatprep.subr.bf16.mxu0 %v5978
    %6373 = vmatpush1.bf16.msra.mxu0 %v5977
    %6374 = vmatprep.subr.bf16.mxu0 %v5986
    %6375 = vmatpush1.bf16.msra.mxu0 %v5985
    %6376 = vmatprep.subr.bf16.mxu0 %v5994
    %6377 = vmatpush1.bf16.msra.mxu0 %v5993
    %6378 = vmatprep.subr.bf16.mxu0 %v6002
    %6379 = vmatpush1.bf16.msra.mxu0 %v6001
    %6380 = vmatprep.mubr.bf16.mxu0 %v5748
    %6381 = vmatmul.mubr.bf16.gmra.mrb[0].mxu0 %v5747
    %v6382 = vpop.f32.mrb[0].mxu0
    %v6383 = vadd.f32 %v6342, %v6382
    %v6384 = vpop.f32.mrb[0].mxu0
    %v6385 = vadd.f32 %v6344, %v6384
    %v6386 = vpop.f32.mrb[0].mxu0
    %v6387 = vpop.f32.mrb[0].mxu0
    %6388 = vdwg.mxu0
    %6389 = vmatprep.subr.bf16.mxu0 %v6010
    %6390 = vmatpush1.bf16.msra.mxu0 %v6009
    %6391 = vmatprep.subr.bf16.mxu0 %v6018
    %6392 = vmatpush1.bf16.msra.mxu0 %v6017
    %6393 = vmatprep.subr.bf16.mxu0 %v6026
    %6394 = vmatpush1.bf16.msra.mxu0 %v6025
    %6395 = vmatprep.subr.bf16.mxu0 %v6034
    %6396 = vmatpush1.bf16.msra.mxu0 %v6033
    %6397 = vmatprep.subr.bf16.mxu0 %v6042
    %6398 = vmatpush1.bf16.msra.mxu0 %v6041
    %6399 = vmatprep.subr.bf16.mxu0 %v6050
    %6400 = vmatpush1.bf16.msra.mxu0 %v6049
    %6401 = vmatprep.subr.bf16.mxu0 %v6058
    %6402 = vmatpush1.bf16.msra.mxu0 %v6057
    %6403 = vmatprep.subr.bf16.mxu0 %v6066
    %6404 = vmatpush1.bf16.msra.mxu0 %v6065
    %6405 = vmatprep.subr.bf16.mxu0 %v6074
    %6406 = vmatpush1.bf16.msra.mxu0 %v6073
    %6407 = vmatprep.subr.bf16.mxu0 %v6082
    %6408 = vmatpush1.bf16.msra.mxu0 %v6081
    %6409 = vmatprep.subr.bf16.mxu0 %v6090
    %6410 = vmatpush1.bf16.msra.mxu0 %v6089
    %6411 = vmatprep.subr.bf16.mxu0 %v6098
    %6412 = vmatpush1.bf16.msra.mxu0 %v6097
    %6413 = vmatprep.subr.bf16.mxu0 %v6106
    %6414 = vmatpush1.bf16.msra.mxu0 %v6105
    %6415 = vmatprep.subr.bf16.mxu0 %v6114
    %6416 = vmatpush1.bf16.msra.mxu0 %v6113
    %6417 = vmatprep.subr.bf16.mxu0 %v6122
    %6418 = vmatpush1.bf16.msra.mxu0 %v6121
    %6419 = vmatprep.subr.bf16.mxu0 %v6130
    %6420 = vmatpush1.bf16.msra.mxu0 %v6129
    %6421 = vmatprep.mubr.bf16.mxu0 %v5750
    %6422 = vmatmul.mubr.bf16.gmra.mrb[0].mxu0 %v5749
    %v6423 = vpop.f32.mrb[0].mxu0
    %v6424 = vadd.f32 %v6383, %v6423
    %v6425 = vpop.f32.mrb[0].mxu0
    %v6426 = vadd.f32 %v6385, %v6425
    %v6427 = vpop.f32.mrb[0].mxu0
    %v6428 = vpop.f32.mrb[0].mxu0
    %6429 = vdwg.mxu0
    %6430 = vmatprep.subr.bf16.mxu0 %v6138
    %6431 = vmatpush1.bf16.msra.mxu0 %v6137
    %6432 = vmatprep.subr.bf16.mxu0 %v6146
    %6433 = vmatpush1.bf16.msra.mxu0 %v6145
    %6434 = vmatprep.subr.bf16.mxu0 %v6154
    %6435 = vmatpush1.bf16.msra.mxu0 %v6153
    %6436 = vmatprep.subr.bf16.mxu0 %v6162
    %6437 = vmatpush1.bf16.msra.mxu0 %v6161
    %6438 = vmatprep.subr.bf16.mxu0 %v6170
    %6439 = vmatpush1.bf16.msra.mxu0 %v6169
    %6440 = vmatprep.subr.bf16.mxu0 %v6178
    %6441 = vmatpush1.bf16.msra.mxu0 %v6177
    %6442 = vmatprep.subr.bf16.mxu0 %v6186
    %6443 = vmatpush1.bf16.msra.mxu0 %v6185
    %6444 = vmatprep.subr.bf16.mxu0 %v6194
    %6445 = vmatpush1.bf16.msra.mxu0 %v6193
    %6446 = vmatprep.subr.bf16.mxu0 %v6202
    %6447 = vmatpush1.bf16.msra.mxu0 %v6201
    %6448 = vmatprep.subr.bf16.mxu0 %v6210
    %6449 = vmatpush1.bf16.msra.mxu0 %v6209
    %6450 = vmatprep.subr.bf16.mxu0 %v6218
    %6451 = vmatpush1.bf16.msra.mxu0 %v6217
    %6452 = vmatprep.subr.bf16.mxu0 %v6226
    %6453 = vmatpush1.bf16.msra.mxu0 %v6225
    %6454 = vmatprep.subr.bf16.mxu0 %v6234
    %6455 = vmatpush1.bf16.msra.mxu0 %v6233
    %6456 = vmatprep.subr.bf16.mxu0 %v6242
    %6457 = vmatpush1.bf16.msra.mxu0 %v6241
    %6458 = vmatprep.subr.bf16.mxu0 %v6250
    %6459 = vmatpush1.bf16.msra.mxu0 %v6249
    %6460 = vmatprep.subr.bf16.mxu0 %v6258
    %6461 = vmatpush1.bf16.msra.mxu0 %v6257
    %6462 = vmatprep.mubr.bf16.mxu0 %v5752
    %6463 = vmatmul.mubr.bf16.gmra.mrb[0].mxu0 %v5751
    %v6464 = vpop.f32.mrb[0].mxu0
    %v6465 = vadd.f32 %v6424, %v6464
    %v6466 = vpop.f32.mrb[0].mxu0
    %v6467 = vadd.f32 %v6426, %v6466
    %v6468 = vpop.f32.mrb[0].mxu0
    %v6469 = vpop.f32.mrb[0].mxu0
    %6470 = vdwg.mxu0
    %6471 = vmatprep.subr.bf16.mxu0 %v5756
    %6472 = vmatpush1.bf16.msra.mxu0 %v5755
    %6473 = vmatprep.subr.bf16.mxu0 %v5764
    %6474 = vmatpush1.bf16.msra.mxu0 %v5763
    %6475 = vmatprep.subr.bf16.mxu0 %v5772
    %6476 = vmatpush1.bf16.msra.mxu0 %v5771
    %6477 = vmatprep.subr.bf16.mxu0 %v5780
    %6478 = vmatpush1.bf16.msra.mxu0 %v5779
    %6479 = vmatprep.subr.bf16.mxu0 %v5788
    %6480 = vmatpush1.bf16.msra.mxu0 %v5787
    %6481 = vmatprep.subr.bf16.mxu0 %v5796
    %6482 = vmatpush1.bf16.msra.mxu0 %v5795
    %6483 = vmatprep.subr.bf16.mxu0 %v5804
    %6484 = vmatpush1.bf16.msra.mxu0 %v5803
    %6485 = vmatprep.subr.bf16.mxu0 %v5812
    %6486 = vmatpush1.bf16.msra.mxu0 %v5811
    %6487 = vmatprep.subr.bf16.mxu0 %v5820
    %6488 = vmatpush1.bf16.msra.mxu0 %v5819
    %6489 = vmatprep.subr.bf16.mxu0 %v5828
    %6490 = vmatpush1.bf16.msra.mxu0 %v5827
    %6491 = vmatprep.subr.bf16.mxu0 %v5836
    %6492 = vmatpush1.bf16.msra.mxu0 %v5835
    %6493 = vmatprep.subr.bf16.mxu0 %v5844
    %6494 = vmatpush1.bf16.msra.mxu0 %v5843
    %6495 = vmatprep.subr.bf16.mxu0 %v5852
    %6496 = vmatpush1.bf16.msra.mxu0 %v5851
    %6497 = vmatprep.subr.bf16.mxu0 %v5860
    %6498 = vmatpush1.bf16.msra.mxu0 %v5859
    %6499 = vmatprep.subr.bf16.mxu0 %v5868
    %6500 = vmatpush1.bf16.msra.mxu0 %v5867
    %6501 = vmatprep.subr.bf16.mxu0 %v5876
    %6502 = vmatpush1.bf16.msra.mxu0 %v5875
    %6503 = vmatprep.mubr.bf16.mxu0 %v5746
    %6504 = vmatmul.mubr.bf16.gmra.mrb[0].mxu0 %v5745
    %v6505 = vpop.f32.mrb[0].mxu0
    %v6506 = vadd.f32 %v6278, %v6505
    %v6507 = vpop.f32.mrb[0].mxu0
    %v6508 = vadd.f32 %v6282, %v6507
    %v6509 = vpop.f32.mrb[0].mxu0
    %v6510 = vpop.f32.mrb[0].mxu0
    %6511 = vdwg.mxu0
    %6512 = vmatprep.subr.bf16.mxu0 %v5884
    %6513 = vmatpush1.bf16.msra.mxu0 %v5883
    %6514 = vmatprep.subr.bf16.mxu0 %v5892
    %6515 = vmatpush1.bf16.msra.mxu0 %v5891
    %6516 = vmatprep.subr.bf16.mxu0 %v5900
    %6517 = vmatpush1.bf16.msra.mxu0 %v5899
    %6518 = vmatprep.subr.bf16.mxu0 %v5908
    %6519 = vmatpush1.bf16.msra.mxu0 %v5907
    %6520 = vmatprep.subr.bf16.mxu0 %v5916
    %6521 = vmatpush1.bf16.msra.mxu0 %v5915
    %6522 = vmatprep.subr.bf16.mxu0 %v5924
    %6523 = vmatpush1.bf16.msra.mxu0 %v5923
    %6524 = vmatprep.subr.bf16.mxu0 %v5932
    %6525 = vmatpush1.bf16.msra.mxu0 %v5931
    %6526 = vmatprep.subr.bf16.mxu0 %v5940
    %6527 = vmatpush1.bf16.msra.mxu0 %v5939
    %6528 = vmatprep.subr.bf16.mxu0 %v5948
    %6529 = vmatpush1.bf16.msra.mxu0 %v5947
    %6530 = vmatprep.subr.bf16.mxu0 %v5956
    %6531 = vmatpush1.bf16.msra.mxu0 %v5955
    %6532 = vmatprep.subr.bf16.mxu0 %v5964
    %6533 = vmatpush1.bf16.msra.mxu0 %v5963
    %6534 = vmatprep.subr.bf16.mxu0 %v5972
    %6535 = vmatpush1.bf16.msra.mxu0 %v5971
    %6536 = vmatprep.subr.bf16.mxu0 %v5980
    %6537 = vmatpush1.bf16.msra.mxu0 %v5979
    %6538 = vmatprep.subr.bf16.mxu0 %v5988
    %6539 = vmatpush1.bf16.msra.mxu0 %v5987
    %6540 = vmatprep.subr.bf16.mxu0 %v5996
    %6541 = vmatpush1.bf16.msra.mxu0 %v5995
    %6542 = vmatprep.subr.bf16.mxu0 %v6004
    %6543 = vmatpush1.bf16.msra.mxu0 %v6003
    %6544 = vmatprep.mubr.bf16.mxu0 %v5748
    %6545 = vmatmul.mubr.bf16.gmra.mrb[0].mxu0 %v5747
    %v6546 = vpop.f32.mrb[0].mxu0
    %v6547 = vadd.f32 %v6506, %v6546
    %v6548 = vpop.f32.mrb[0].mxu0
    %v6549 = vadd.f32 %v6508, %v6548
    %v6550 = vpop.f32.mrb[0].mxu0
    %v6551 = vpop.f32.mrb[0].mxu0
    %6552 = vdwg.mxu0
    %6553 = vmatprep.subr.bf16.mxu0 %v6012
    %6554 = vmatpush1.bf16.msra.mxu0 %v6011
    %6555 = vmatprep.subr.bf16.mxu0 %v6020
    %6556 = vmatpush1.bf16.msra.mxu0 %v6019
    %6557 = vmatprep.subr.bf16.mxu0 %v6028
    %6558 = vmatpush1.bf16.msra.mxu0 %v6027
    %6559 = vmatprep.subr.bf16.mxu0 %v6036
    %6560 = vmatpush1.bf16.msra.mxu0 %v6035
    %6561 = vmatprep.subr.bf16.mxu0 %v6044
    %6562 = vmatpush1.bf16.msra.mxu0 %v6043
    %6563 = vmatprep.subr.bf16.mxu0 %v6052
    %6564 = vmatpush1.bf16.msra.mxu0 %v6051
    %6565 = vmatprep.subr.bf16.mxu0 %v6060
    %6566 = vmatpush1.bf16.msra.mxu0 %v6059
    %6567 = vmatprep.subr.bf16.mxu0 %v6068
    %6568 = vmatpush1.bf16.msra.mxu0 %v6067
    %6569 = vmatprep.subr.bf16.mxu0 %v6076
    %6570 = vmatpush1.bf16.msra.mxu0 %v6075
    %6571 = vmatprep.subr.bf16.mxu0 %v6084
    %6572 = vmatpush1.bf16.msra.mxu0 %v6083
    %6573 = vmatprep.subr.bf16.mxu0 %v6092
    %6574 = vmatpush1.bf16.msra.mxu0 %v6091
    %6575 = vmatprep.subr.bf16.mxu0 %v6100
    %6576 = vmatpush1.bf16.msra.mxu0 %v6099
    %6577 = vmatprep.subr.bf16.mxu0 %v6108
    %6578 = vmatpush1.bf16.msra.mxu0 %v6107
    %6579 = vmatprep.subr.bf16.mxu0 %v6116
    %6580 = vmatpush1.bf16.msra.mxu0 %v6115
    %6581 = vmatprep.subr.bf16.mxu0 %v6124
    %6582 = vmatpush1.bf16.msra.mxu0 %v6123
    %6583 = vmatprep.subr.bf16.mxu0 %v6132
    %6584 = vmatpush1.bf16.msra.mxu0 %v6131
    %6585 = vmatprep.mubr.bf16.mxu0 %v5750
    %6586 = vmatmul.mubr.bf16.gmra.mrb[0].mxu0 %v5749
    %v6587 = vpop.f32.mrb[0].mxu0
    %v6588 = vadd.f32 %v6547, %v6587
    %v6589 = vpop.f32.mrb[0].mxu0
    %v6590 = vadd.f32 %v6549, %v6589
    %v6591 = vpop.f32.mrb[0].mxu0
    %v6592 = vpop.f32.mrb[0].mxu0
    %6593 = vdwg.mxu0
    %6594 = vmatprep.subr.bf16.mxu0 %v6140
    %6595 = vmatpush1.bf16.msra.mxu0 %v6139
    %6596 = vmatprep.subr.bf16.mxu0 %v6148
    %6597 = vmatpush1.bf16.msra.mxu0 %v6147
    %6598 = vmatprep.subr.bf16.mxu0 %v6156
    %6599 = vmatpush1.bf16.msra.mxu0 %v6155
    %6600 = vmatprep.subr.bf16.mxu0 %v6164
    %6601 = vmatpush1.bf16.msra.mxu0 %v6163
    %6602 = vmatprep.subr.bf16.mxu0 %v6172
    %6603 = vmatpush1.bf16.msra.mxu0 %v6171
    %6604 = vmatprep.subr.bf16.mxu0 %v6180
    %6605 = vmatpush1.bf16.msra.mxu0 %v6179
    %6606 = vmatprep.subr.bf16.mxu0 %v6188
    %6607 = vmatpush1.bf16.msra.mxu0 %v6187
    %6608 = vmatprep.subr.bf16.mxu0 %v6196
    %6609 = vmatpush1.bf16.msra.mxu0 %v6195
    %6610 = vmatprep.subr.bf16.mxu0 %v6204
    %6611 = vmatpush1.bf16.msra.mxu0 %v6203
    %6612 = vmatprep.subr.bf16.mxu0 %v6212
    %6613 = vmatpush1.bf16.msra.mxu0 %v6211
    %6614 = vmatprep.subr.bf16.mxu0 %v6220
    %6615 = vmatpush1.bf16.msra.mxu0 %v6219
    %6616 = vmatprep.subr.bf16.mxu0 %v6228
    %6617 = vmatpush1.bf16.msra.mxu0 %v6227
    %6618 = vmatprep.subr.bf16.mxu0 %v6236
    %6619 = vmatpush1.bf16.msra.mxu0 %v6235
    %6620 = vmatprep.subr.bf16.mxu0 %v6244
    %6621 = vmatpush1.bf16.msra.mxu0 %v6243
    %6622 = vmatprep.subr.bf16.mxu0 %v6252
    %6623 = vmatpush1.bf16.msra.mxu0 %v6251
    %6624 = vmatprep.subr.bf16.mxu0 %v6260
    %6625 = vmatpush1.bf16.msra.mxu0 %v6259
    %6626 = vmatprep.mubr.bf16.mxu0 %v5752
    %6627 = vmatmul.mubr.bf16.gmra.mrb[0].mxu0 %v5751
    %v6628 = vpop.f32.mrb[0].mxu0
    %v6629 = vadd.f32 %v6588, %v6628
    %v6630 = vpop.f32.mrb[0].mxu0
    %v6631 = vadd.f32 %v6590, %v6630
    %v6632 = vpop.f32.mrb[0].mxu0
    %v6633 = vpop.f32.mrb[0].mxu0
    %6634 = vdwg.mxu0
    %6635 = vmatprep.subr.bf16.mxu0 %v5758
    %6636 = vmatpush1.bf16.msra.mxu0 %v5757
    %6637 = vmatprep.subr.bf16.mxu0 %v5766
    %6638 = vmatpush1.bf16.msra.mxu0 %v5765
    %6639 = vmatprep.subr.bf16.mxu0 %v5774
    %6640 = vmatpush1.bf16.msra.mxu0 %v5773
    %6641 = vmatprep.subr.bf16.mxu0 %v5782
    %6642 = vmatpush1.bf16.msra.mxu0 %v5781
    %6643 = vmatprep.subr.bf16.mxu0 %v5790
    %6644 = vmatpush1.bf16.msra.mxu0 %v5789
    %6645 = vmatprep.subr.bf16.mxu0 %v5798
    %6646 = vmatpush1.bf16.msra.mxu0 %v5797
    %6647 = vmatprep.subr.bf16.mxu0 %v5806
    %6648 = vmatpush1.bf16.msra.mxu0 %v5805
    %6649 = vmatprep.subr.bf16.mxu0 %v5814
    %6650 = vmatpush1.bf16.msra.mxu0 %v5813
    %6651 = vmatprep.subr.bf16.mxu0 %v5822
    %6652 = vmatpush1.bf16.msra.mxu0 %v5821
    %6653 = vmatprep.subr.bf16.mxu0 %v5830
    %6654 = vmatpush1.bf16.msra.mxu0 %v5829
    %6655 = vmatprep.subr.bf16.mxu0 %v5838
    %6656 = vmatpush1.bf16.msra.mxu0 %v5837
    %6657 = vmatprep.subr.bf16.mxu0 %v5846
    %6658 = vmatpush1.bf16.msra.mxu0 %v5845
    %6659 = vmatprep.subr.bf16.mxu0 %v5854
    %6660 = vmatpush1.bf16.msra.mxu0 %v5853
    %6661 = vmatprep.subr.bf16.mxu0 %v5862
    %6662 = vmatpush1.bf16.msra.mxu0 %v5861
    %6663 = vmatprep.subr.bf16.mxu0 %v5870
    %6664 = vmatpush1.bf16.msra.mxu0 %v5869
    %6665 = vmatprep.subr.bf16.mxu0 %v5878
    %6666 = vmatpush1.bf16.msra.mxu0 %v5877
    %6667 = vmatprep.mubr.bf16.mxu0 %v5746
    %6668 = vmatmul.mubr.bf16.gmra.mrb[0].mxu0 %v5745
    %v6669 = vpop.f32.mrb[0].mxu0
    %v6670 = vadd.f32 %v6286, %v6669
    %v6671 = vpop.f32.mrb[0].mxu0
    %v6672 = vadd.f32 %v6290, %v6671
    %v6673 = vpop.f32.mrb[0].mxu0
    %v6674 = vpop.f32.mrb[0].mxu0
    %6675 = vdwg.mxu0
    %6676 = vmatprep.subr.bf16.mxu0 %v5886
    %6677 = vmatpush1.bf16.msra.mxu0 %v5885
    %6678 = vmatprep.subr.bf16.mxu0 %v5894
    %6679 = vmatpush1.bf16.msra.mxu0 %v5893
    %6680 = vmatprep.subr.bf16.mxu0 %v5902
    %6681 = vmatpush1.bf16.msra.mxu0 %v5901
    %6682 = vmatprep.subr.bf16.mxu0 %v5910
    %6683 = vmatpush1.bf16.msra.mxu0 %v5909
    %6684 = vmatprep.subr.bf16.mxu0 %v5918
    %6685 = vmatpush1.bf16.msra.mxu0 %v5917
    %6686 = vmatprep.subr.bf16.mxu0 %v5926
    %6687 = vmatpush1.bf16.msra.mxu0 %v5925
    %6688 = vmatprep.subr.bf16.mxu0 %v5934
    %6689 = vmatpush1.bf16.msra.mxu0 %v5933
    %6690 = vmatprep.subr.bf16.mxu0 %v5942
    %6691 = vmatpush1.bf16.msra.mxu0 %v5941
    %6692 = vmatprep.subr.bf16.mxu0 %v5950
    %6693 = vmatpush1.bf16.msra.mxu0 %v5949
    %6694 = vmatprep.subr.bf16.mxu0 %v5958
    %6695 = vmatpush1.bf16.msra.mxu0 %v5957
    %6696 = vmatprep.subr.bf16.mxu0 %v5966
    %6697 = vmatpush1.bf16.msra.mxu0 %v5965
    %6698 = vmatprep.subr.bf16.mxu0 %v5974
    %6699 = vmatpush1.bf16.msra.mxu0 %v5973
    %6700 = vmatprep.subr.bf16.mxu0 %v5982
    %6701 = vmatpush1.bf16.msra.mxu0 %v5981
    %6702 = vmatprep.subr.bf16.mxu0 %v5990
    %6703 = vmatpush1.bf16.msra.mxu0 %v5989
    %6704 = vmatprep.subr.bf16.mxu0 %v5998
    %6705 = vmatpush1.bf16.msra.mxu0 %v5997
    %6706 = vmatprep.subr.bf16.mxu0 %v6006
    %6707 = vmatpush1.bf16.msra.mxu0 %v6005
    %6708 = vmatprep.mubr.bf16.mxu0 %v5748
    %6709 = vmatmul.mubr.bf16.gmra.mrb[0].mxu0 %v5747
    %v6710 = vpop.f32.mrb[0].mxu0
    %v6711 = vadd.f32 %v6670, %v6710
    %v6712 = vpop.f32.mrb[0].mxu0
    %v6713 = vadd.f32 %v6672, %v6712
    %v6714 = vpop.f32.mrb[0].mxu0
    %v6715 = vpop.f32.mrb[0].mxu0
    %6716 = vdwg.mxu0
    %6717 = vmatprep.subr.bf16.mxu0 %v6014
    %6718 = vmatpush1.bf16.msra.mxu0 %v6013
    %6719 = vmatprep.subr.bf16.mxu0 %v6022
    %6720 = vmatpush1.bf16.msra.mxu0 %v6021
    %6721 = vmatprep.subr.bf16.mxu0 %v6030
    %6722 = vmatpush1.bf16.msra.mxu0 %v6029
    %6723 = vmatprep.subr.bf16.mxu0 %v6038
    %6724 = vmatpush1.bf16.msra.mxu0 %v6037
    %6725 = vmatprep.subr.bf16.mxu0 %v6046
    %6726 = vmatpush1.bf16.msra.mxu0 %v6045
    %6727 = vmatprep.subr.bf16.mxu0 %v6054
    %6728 = vmatpush1.bf16.msra.mxu0 %v6053
    %6729 = vmatprep.subr.bf16.mxu0 %v6062
    %6730 = vmatpush1.bf16.msra.mxu0 %v6061
    %6731 = vmatprep.subr.bf16.mxu0 %v6070
    %6732 = vmatpush1.bf16.msra.mxu0 %v6069
    %6733 = vmatprep.subr.bf16.mxu0 %v6078
    %6734 = vmatpush1.bf16.msra.mxu0 %v6077
    %6735 = vmatprep.subr.bf16.mxu0 %v6086
    %6736 = vmatpush1.bf16.msra.mxu0 %v6085
    %6737 = vmatprep.subr.bf16.mxu0 %v6094
    %6738 = vmatpush1.bf16.msra.mxu0 %v6093
    %6739 = vmatprep.subr.bf16.mxu0 %v6102
    %6740 = vmatpush1.bf16.msra.mxu0 %v6101
    %6741 = vmatprep.subr.bf16.mxu0 %v6110
    %6742 = vmatpush1.bf16.msra.mxu0 %v6109
    %6743 = vmatprep.subr.bf16.mxu0 %v6118
    %6744 = vmatpush1.bf16.msra.mxu0 %v6117
    %6745 = vmatprep.subr.bf16.mxu0 %v6126
    %6746 = vmatpush1.bf16.msra.mxu0 %v6125
    %6747 = vmatprep.subr.bf16.mxu0 %v6134
    %6748 = vmatpush1.bf16.msra.mxu0 %v6133
    %6749 = vmatprep.mubr.bf16.mxu0 %v5750
    %6750 = vmatmul.mubr.bf16.gmra.mrb[0].mxu0 %v5749
    %v6751 = vpop.f32.mrb[0].mxu0
    %v6752 = vadd.f32 %v6711, %v6751
    %v6753 = vpop.f32.mrb[0].mxu0
    %v6754 = vadd.f32 %v6713, %v6753
    %v6755 = vpop.f32.mrb[0].mxu0
    %v6756 = vpop.f32.mrb[0].mxu0
    %6757 = vdwg.mxu0
    %6758 = vmatprep.subr.bf16.mxu0 %v6142
    %6759 = vmatpush1.bf16.msra.mxu0 %v6141
    %6760 = vmatprep.subr.bf16.mxu0 %v6150
    %6761 = vmatpush1.bf16.msra.mxu0 %v6149
    %6762 = vmatprep.subr.bf16.mxu0 %v6158
    %6763 = vmatpush1.bf16.msra.mxu0 %v6157
    %6764 = vmatprep.subr.bf16.mxu0 %v6166
    %6765 = vmatpush1.bf16.msra.mxu0 %v6165
    %6766 = vmatprep.subr.bf16.mxu0 %v6174
    %6767 = vmatpush1.bf16.msra.mxu0 %v6173
    %6768 = vmatprep.subr.bf16.mxu0 %v6182
    %6769 = vmatpush1.bf16.msra.mxu0 %v6181
    %6770 = vmatprep.subr.bf16.mxu0 %v6190
    %6771 = vmatpush1.bf16.msra.mxu0 %v6189
    %6772 = vmatprep.subr.bf16.mxu0 %v6198
    %6773 = vmatpush1.bf16.msra.mxu0 %v6197
    %6774 = vmatprep.subr.bf16.mxu0 %v6206
    %6775 = vmatpush1.bf16.msra.mxu0 %v6205
    %6776 = vmatprep.subr.bf16.mxu0 %v6214
    %6777 = vmatpush1.bf16.msra.mxu0 %v6213
    %6778 = vmatprep.subr.bf16.mxu0 %v6222
    %6779 = vmatpush1.bf16.msra.mxu0 %v6221
    %6780 = vmatprep.subr.bf16.mxu0 %v6230
    %6781 = vmatpush1.bf16.msra.mxu0 %v6229
    %6782 = vmatprep.subr.bf16.mxu0 %v6238
    %6783 = vmatpush1.bf16.msra.mxu0 %v6237
    %6784 = vmatprep.subr.bf16.mxu0 %v6246
    %6785 = vmatpush1.bf16.msra.mxu0 %v6245
    %6786 = vmatprep.subr.bf16.mxu0 %v6254
    %6787 = vmatpush1.bf16.msra.mxu0 %v6253
    %6788 = vmatprep.subr.bf16.mxu0 %v6262
    %6789 = vmatpush1.bf16.msra.mxu0 %v6261
    %6790 = vmatprep.mubr.bf16.mxu0 %v5752
    %6791 = vmatmul.mubr.bf16.gmra.mrb[0].mxu0 %v5751
    %v6792 = vpop.f32.mrb[0].mxu0
    %v6793 = vadd.f32 %v6752, %v6792
    %v6794 = vpop.f32.mrb[0].mxu0
    %v6795 = vadd.f32 %v6754, %v6794
    %v6796 = vpop.f32.mrb[0].mxu0
    %v6797 = vpop.f32.mrb[0].mxu0
    %6798 = vdwg.mxu0
    %6799 = vmatprep.subr.bf16.mxu0 %v5760
    %6800 = vmatpush1.bf16.msra.mxu0 %v5759
    %6801 = vmatprep.subr.bf16.mxu0 %v5768
    %6802 = vmatpush1.bf16.msra.mxu0 %v5767
    %6803 = vmatprep.subr.bf16.mxu0 %v5776
    %6804 = vmatpush1.bf16.msra.mxu0 %v5775
    %6805 = vmatprep.subr.bf16.mxu0 %v5784
    %6806 = vmatpush1.bf16.msra.mxu0 %v5783
    %6807 = vmatprep.subr.bf16.mxu0 %v5792
    %6808 = vmatpush1.bf16.msra.mxu0 %v5791
    %6809 = vmatprep.subr.bf16.mxu0 %v5800
    %6810 = vmatpush1.bf16.msra.mxu0 %v5799
    %6811 = vmatprep.subr.bf16.mxu0 %v5808
    %6812 = vmatpush1.bf16.msra.mxu0 %v5807
    %6813 = vmatprep.subr.bf16.mxu0 %v5816
    %6814 = vmatpush1.bf16.msra.mxu0 %v5815
    %6815 = vmatprep.subr.bf16.mxu0 %v5824
    %6816 = vmatpush1.bf16.msra.mxu0 %v5823
    %6817 = vmatprep.subr.bf16.mxu0 %v5832
    %6818 = vmatpush1.bf16.msra.mxu0 %v5831
    %6819 = vmatprep.subr.bf16.mxu0 %v5840
    %6820 = vmatpush1.bf16.msra.mxu0 %v5839
    %6821 = vmatprep.subr.bf16.mxu0 %v5848
    %6822 = vmatpush1.bf16.msra.mxu0 %v5847
    %6823 = vmatprep.subr.bf16.mxu0 %v5856
    %6824 = vmatpush1.bf16.msra.mxu0 %v5855
    %6825 = vmatprep.subr.bf16.mxu0 %v5864
    %6826 = vmatpush1.bf16.msra.mxu0 %v5863
    %6827 = vmatprep.subr.bf16.mxu0 %v5872
    %6828 = vmatpush1.bf16.msra.mxu0 %v5871
    %6829 = vmatprep.subr.bf16.mxu0 %v5880
    %6830 = vmatpush1.bf16.msra.mxu0 %v5879
    %6831 = vmatprep.mubr.bf16.mxu0 %v5746
    %6832 = vmatmul.mubr.bf16.gmra.mrb[0].mxu0 %v5745
    %v6833 = vpop.f32.mrb[0].mxu0
    %v6834 = vadd.f32 %v6294, %v6833
    %v6835 = vpop.f32.mrb[0].mxu0
    %v6836 = vadd.f32 %v6298, %v6835
    %v6837 = vpop.f32.mrb[0].mxu0
    %v6838 = vpop.f32.mrb[0].mxu0
    %6839 = vdwg.mxu0
    %6840 = vmatprep.subr.bf16.mxu0 %v5888
    %6841 = vmatpush1.bf16.msra.mxu0 %v5887
    %6842 = vmatprep.subr.bf16.mxu0 %v5896
    %6843 = vmatpush1.bf16.msra.mxu0 %v5895
    %6844 = vmatprep.subr.bf16.mxu0 %v5904
    %6845 = vmatpush1.bf16.msra.mxu0 %v5903
    %6846 = vmatprep.subr.bf16.mxu0 %v5912
    %6847 = vmatpush1.bf16.msra.mxu0 %v5911
    %6848 = vmatprep.subr.bf16.mxu0 %v5920
    %6849 = vmatpush1.bf16.msra.mxu0 %v5919
    %6850 = vmatprep.subr.bf16.mxu0 %v5928
    %6851 = vmatpush1.bf16.msra.mxu0 %v5927
    %6852 = vmatprep.subr.bf16.mxu0 %v5936
    %6853 = vmatpush1.bf16.msra.mxu0 %v5935
    %6854 = vmatprep.subr.bf16.mxu0 %v5944
    %6855 = vmatpush1.bf16.msra.mxu0 %v5943
    %6856 = vmatprep.subr.bf16.mxu0 %v5952
    %6857 = vmatpush1.bf16.msra.mxu0 %v5951
    %6858 = vmatprep.subr.bf16.mxu0 %v5960
    %6859 = vmatpush1.bf16.msra.mxu0 %v5959
    %6860 = vmatprep.subr.bf16.mxu0 %v5968
    %6861 = vmatpush1.bf16.msra.mxu0 %v5967
    %6862 = vmatprep.subr.bf16.mxu0 %v5976
    %6863 = vmatpush1.bf16.msra.mxu0 %v5975
    %6864 = vmatprep.subr.bf16.mxu0 %v5984
    %6865 = vmatpush1.bf16.msra.mxu0 %v5983
    %6866 = vmatprep.subr.bf16.mxu0 %v5992
    %6867 = vmatpush1.bf16.msra.mxu0 %v5991
    %6868 = vmatprep.subr.bf16.mxu0 %v6000
    %6869 = vmatpush1.bf16.msra.mxu0 %v5999
    %6870 = vmatprep.subr.bf16.mxu0 %v6008
    %6871 = vmatpush1.bf16.msra.mxu0 %v6007
    %6872 = vmatprep.mubr.bf16.mxu0 %v5748
    %6873 = vmatmul.mubr.bf16.gmra.mrb[0].mxu0 %v5747
    %v6874 = vpop.f32.mrb[0].mxu0
    %v6875 = vadd.f32 %v6834, %v6874
    %v6876 = vpop.f32.mrb[0].mxu0
    %v6877 = vadd.f32 %v6836, %v6876
    %v6878 = vpop.f32.mrb[0].mxu0
    %v6879 = vpop.f32.mrb[0].mxu0
    %6880 = vdwg.mxu0
    %6881 = vmatprep.subr.bf16.mxu0 %v6016
    %6882 = vmatpush1.bf16.msra.mxu0 %v6015
    %6883 = vmatprep.subr.bf16.mxu0 %v6024
    %6884 = vmatpush1.bf16.msra.mxu0 %v6023
    %6885 = vmatprep.subr.bf16.mxu0 %v6032
    %6886 = vmatpush1.bf16.msra.mxu0 %v6031
    %6887 = vmatprep.subr.bf16.mxu0 %v6040
    %6888 = vmatpush1.bf16.msra.mxu0 %v6039
    %6889 = vmatprep.subr.bf16.mxu0 %v6048
    %6890 = vmatpush1.bf16.msra.mxu0 %v6047
    %6891 = vmatprep.subr.bf16.mxu0 %v6056
    %6892 = vmatpush1.bf16.msra.mxu0 %v6055
    %6893 = vmatprep.subr.bf16.mxu0 %v6064
    %6894 = vmatpush1.bf16.msra.mxu0 %v6063
    %6895 = vmatprep.subr.bf16.mxu0 %v6072
    %6896 = vmatpush1.bf16.msra.mxu0 %v6071
    %6897 = vmatprep.subr.bf16.mxu0 %v6080
    %6898 = vmatpush1.bf16.msra.mxu0 %v6079
    %6899 = vmatprep.subr.bf16.mxu0 %v6088
    %6900 = vmatpush1.bf16.msra.mxu0 %v6087
    %6901 = vmatprep.subr.bf16.mxu0 %v6096
    %6902 = vmatpush1.bf16.msra.mxu0 %v6095
    %6903 = vmatprep.subr.bf16.mxu0 %v6104
    %6904 = vmatpush1.bf16.msra.mxu0 %v6103
    %6905 = vmatprep.subr.bf16.mxu0 %v6112
    %6906 = vmatpush1.bf16.msra.mxu0 %v6111
    %6907 = vmatprep.subr.bf16.mxu0 %v6120
    %6908 = vmatpush1.bf16.msra.mxu0 %v6119
    %6909 = vmatprep.subr.bf16.mxu0 %v6128
    %6910 = vmatpush1.bf16.msra.mxu0 %v6127
    %6911 = vmatprep.subr.bf16.mxu0 %v6136
    %6912 = vmatpush1.bf16.msra.mxu0 %v6135
    %6913 = vmatprep.mubr.bf16.mxu0 %v5750
    %6914 = vmatmul.mubr.bf16.gmra.mrb[0].mxu0 %v5749
    %v6915 = vpop.f32.mrb[0].mxu0
    %v6916 = vadd.f32 %v6875, %v6915
    %v6917 = vpop.f32.mrb[0].mxu0
    %v6918 = vadd.f32 %v6877, %v6917
    %v6919 = vpop.f32.mrb[0].mxu0
    %v6920 = vpop.f32.mrb[0].mxu0
    %6921 = vdwg.mxu0
    %6922 = vmatprep.subr.bf16.mxu0 %v6144
    %6923 = vmatpush1.bf16.msra.mxu0 %v6143
    %6924 = vmatprep.subr.bf16.mxu0 %v6152
    %6925 = vmatpush1.bf16.msra.mxu0 %v6151
    %6926 = vmatprep.subr.bf16.mxu0 %v6160
    %6927 = vmatpush1.bf16.msra.mxu0 %v6159
    %6928 = vmatprep.subr.bf16.mxu0 %v6168
    %6929 = vmatpush1.bf16.msra.mxu0 %v6167
    %6930 = vmatprep.subr.bf16.mxu0 %v6176
    %6931 = vmatpush1.bf16.msra.mxu0 %v6175
    %6932 = vmatprep.subr.bf16.mxu0 %v6184
    %6933 = vmatpush1.bf16.msra.mxu0 %v6183
    %6934 = vmatprep.subr.bf16.mxu0 %v6192
    %6935 = vmatpush1.bf16.msra.mxu0 %v6191
    %6936 = vmatprep.subr.bf16.mxu0 %v6200
    %6937 = vmatpush1.bf16.msra.mxu0 %v6199
    %6938 = vmatprep.subr.bf16.mxu0 %v6208
    %6939 = vmatpush1.bf16.msra.mxu0 %v6207
    %6940 = vmatprep.subr.bf16.mxu0 %v6216
    %6941 = vmatpush1.bf16.msra.mxu0 %v6215
    %6942 = vmatprep.subr.bf16.mxu0 %v6224
    %6943 = vmatpush1.bf16.msra.mxu0 %v6223
    %6944 = vmatprep.subr.bf16.mxu0 %v6232
    %6945 = vmatpush1.bf16.msra.mxu0 %v6231
    %6946 = vmatprep.subr.bf16.mxu0 %v6240
    %6947 = vmatpush1.bf16.msra.mxu0 %v6239
    %6948 = vmatprep.subr.bf16.mxu0 %v6248
    %6949 = vmatpush1.bf16.msra.mxu0 %v6247
    %6950 = vmatprep.subr.bf16.mxu0 %v6256
    %6951 = vmatpush1.bf16.msra.mxu0 %v6255
    %6952 = vmatprep.subr.bf16.mxu0 %v6264
    %6953 = vmatpush1.bf16.msra.mxu0 %v6263
    %6954 = vmatprep.mubr.bf16.mxu0 %v5752
    %6955 = vmatmul.mubr.bf16.gmra.mrb[0].mxu0 %v5751
    %v6956 = vpop.f32.mrb[0].mxu0
    %v6957 = vadd.f32 %v6916, %v6956
    %v6958 = vpop.f32.mrb[0].mxu0
    %v6959 = vadd.f32 %v6918, %v6958
    %v6960 = vpop.f32.mrb[0].mxu0
    %v6961 = vpop.f32.mrb[0].mxu0
    %6962 = vdwg.mxu0
    %v6963 = vmax.f32 %v6465, 0.0
    %v6964 = vmax.f32 %v6467, 0.0
    %v6965 = vmax.f32 %v6629, 0.0
    %v6966 = vmax.f32 %v6631, 0.0
    %v6967 = vmax.f32 %v6793, 0.0
    %v6968 = vmax.f32 %v6795, 0.0
    %v6969 = vmax.f32 %v6957, 0.0
    %v6970 = vmax.f32 %v6959, 0.0
    %s6971 = sshll.u32 %s3278, 4
    %6972 = dma.done %s247, %s6971
    %v6973 = vpack.c.bf16 %v6963, %v6963
    %v6974 = vpack.c.bf16 %v6964, %v6964
    %v6975 = vpack.c.bf16 %v6965, %v6965
    %v6976 = vpack.c.bf16 %v6966, %v6966
    %v6977 = vpack.c.bf16 %v6967, %v6967
    %v6978 = vpack.c.bf16 %v6968, %v6968
    %v6979 = vpack.c.bf16 %v6969, %v6969
    %v6980 = vpack.c.bf16 %v6970, %v6970
    %v6981 = vld [vmem:[#allocation6] sm:$0xff]
    %v6982 = vld [vmem:[#allocation6 + $0x8] sm:$0xff]
    %v6983 = vld [vmem:[#allocation6 + $0x10] sm:$0xff]
    %v6984 = vld [vmem:[#allocation6 + $0x18] sm:$0xff]
    %v6985 = vld [vmem:[#allocation6 + $0x20] sm:$0xff]
    %v6986 = vld [vmem:[#allocation6 + $0x28] sm:$0xff]
    %v6987 = vld [vmem:[#allocation6 + $0x30] sm:$0xff]
    %v6988 = vld [vmem:[#allocation6 + $0x38] sm:$0xff]
    %v6989 = vld [vmem:[#allocation6 + $0x40] sm:$0xff]
    %v6990 = vld [vmem:[#allocation6 + $0x48] sm:$0xff]
    %v6991 = vld [vmem:[#allocation6 + $0x50] sm:$0xff]
    %v6992 = vld [vmem:[#allocation6 + $0x58] sm:$0xff]
    %v6993 = vld [vmem:[#allocation6 + $0x60] sm:$0xff]
    %v6994 = vld [vmem:[#allocation6 + $0x68] sm:$0xff]
    %v6995 = vld [vmem:[#allocation6 + $0x70] sm:$0xff]
    %v6996 = vld [vmem:[#allocation6 + $0x78] sm:$0xff]
    %v6997 = vld [vmem:[#allocation6 + $0x80] sm:$0xff]
    %v6998 = vld [vmem:[#allocation6 + $0x88] sm:$0xff]
    %v6999 = vld [vmem:[#allocation6 + $0x90] sm:$0xff]
    %v7000 = vld [vmem:[#allocation6 + $0x98] sm:$0xff]
    %v7001 = vld [vmem:[#allocation6 + $0xa0] sm:$0xff]
    %v7002 = vld [vmem:[#allocation6 + $0xa8] sm:$0xff]
    %v7003 = vld [vmem:[#allocation6 + $0xb0] sm:$0xff]
    %v7004 = vld [vmem:[#allocation6 + $0xb8] sm:$0xff]
    %v7005 = vld [vmem:[#allocation6 + $0xc0] sm:$0xff]
    %v7006 = vld [vmem:[#allocation6 + $0xc8] sm:$0xff]
    %v7007 = vld [vmem:[#allocation6 + $0xd0] sm:$0xff]
    %v7008 = vld [vmem:[#allocation6 + $0xd8] sm:$0xff]
    %v7009 = vld [vmem:[#allocation6 + $0xe0] sm:$0xff]
    %v7010 = vld [vmem:[#allocation6 + $0xe8] sm:$0xff]
    %v7011 = vld [vmem:[#allocation6 + $0xf0] sm:$0xff]
    %v7012 = vld [vmem:[#allocation6 + $0xf8] sm:$0xff]
    %v7013 = vld [vmem:[#allocation6 + $0x100] sm:$0xff]
    %v7014 = vld [vmem:[#allocation6 + $0x108] sm:$0xff]
    %v7015 = vld [vmem:[#allocation6 + $0x110] sm:$0xff]
    %v7016 = vld [vmem:[#allocation6 + $0x118] sm:$0xff]
    %v7017 = vld [vmem:[#allocation6 + $0x120] sm:$0xff]
    %v7018 = vld [vmem:[#allocation6 + $0x128] sm:$0xff]
    %v7019 = vld [vmem:[#allocation6 + $0x130] sm:$0xff]
    %v7020 = vld [vmem:[#allocation6 + $0x138] sm:$0xff]
    %v7021 = vld [vmem:[#allocation6 + $0x140] sm:$0xff]
    %v7022 = vld [vmem:[#allocation6 + $0x148] sm:$0xff]
    %v7023 = vld [vmem:[#allocation6 + $0x150] sm:$0xff]
    %v7024 = vld [vmem:[#allocation6 + $0x158] sm:$0xff]
    %v7025 = vld [vmem:[#allocation6 + $0x160] sm:$0xff]
    %v7026 = vld [vmem:[#allocation6 + $0x168] sm:$0xff]
    %v7027 = vld [vmem:[#allocation6 + $0x170] sm:$0xff]
    %v7028 = vld [vmem:[#allocation6 + $0x178] sm:$0xff]
    %v7029 = vld [vmem:[#allocation6 + $0x180] sm:$0xff]
    %v7030 = vld [vmem:[#allocation6 + $0x188] sm:$0xff]
    %v7031 = vld [vmem:[#allocation6 + $0x190] sm:$0xff]
    %v7032 = vld [vmem:[#allocation6 + $0x198] sm:$0xff]
    %v7033 = vld [vmem:[#allocation6 + $0x1a0] sm:$0xff]
    %v7034 = vld [vmem:[#allocation6 + $0x1a8] sm:$0xff]
    %v7035 = vld [vmem:[#allocation6 + $0x1b0] sm:$0xff]
    %v7036 = vld [vmem:[#allocation6 + $0x1b8] sm:$0xff]
    %v7037 = vld [vmem:[#allocation6 + $0x1c0] sm:$0xff]
    %v7038 = vld [vmem:[#allocation6 + $0x1c8] sm:$0xff]
    %v7039 = vld [vmem:[#allocation6 + $0x1d0] sm:$0xff]
    %v7040 = vld [vmem:[#allocation6 + $0x1d8] sm:$0xff]
    %v7041 = vld [vmem:[#allocation6 + $0x1e0] sm:$0xff]
    %v7042 = vld [vmem:[#allocation6 + $0x1e8] sm:$0xff]
    %v7043 = vld [vmem:[#allocation6 + $0x1f0] sm:$0xff]
    %v7044 = vld [vmem:[#allocation6 + $0x1f8] sm:$0xff]
    %v7045 = vld [vmem:[#allocation6 + $0x200] sm:$0xff]
    %v7046 = vld [vmem:[#allocation6 + $0x208] sm:$0xff]
    %v7047 = vld [vmem:[#allocation6 + $0x210] sm:$0xff]
    %v7048 = vld [vmem:[#allocation6 + $0x218] sm:$0xff]
    %v7049 = vld [vmem:[#allocation6 + $0x220] sm:$0xff]
    %v7050 = vld [vmem:[#allocation6 + $0x228] sm:$0xff]
    %v7051 = vld [vmem:[#allocation6 + $0x230] sm:$0xff]
    %v7052 = vld [vmem:[#allocation6 + $0x238] sm:$0xff]
    %v7053 = vld [vmem:[#allocation6 + $0x240] sm:$0xff]
    %v7054 = vld [vmem:[#allocation6 + $0x248] sm:$0xff]
    %v7055 = vld [vmem:[#allocation6 + $0x250] sm:$0xff]
    %v7056 = vld [vmem:[#allocation6 + $0x258] sm:$0xff]
    %v7057 = vld [vmem:[#allocation6 + $0x260] sm:$0xff]
    %v7058 = vld [vmem:[#allocation6 + $0x268] sm:$0xff]
    %v7059 = vld [vmem:[#allocation6 + $0x270] sm:$0xff]
    %v7060 = vld [vmem:[#allocation6 + $0x278] sm:$0xff]
    %v7061 = vld [vmem:[#allocation6 + $0x280] sm:$0xff]
    %v7062 = vld [vmem:[#allocation6 + $0x288] sm:$0xff]
    %v7063 = vld [vmem:[#allocation6 + $0x290] sm:$0xff]
    %v7064 = vld [vmem:[#allocation6 + $0x298] sm:$0xff]
    %v7065 = vld [vmem:[#allocation6 + $0x2a0] sm:$0xff]
    %v7066 = vld [vmem:[#allocation6 + $0x2a8] sm:$0xff]
    %v7067 = vld [vmem:[#allocation6 + $0x2b0] sm:$0xff]
    %v7068 = vld [vmem:[#allocation6 + $0x2b8] sm:$0xff]
    %v7069 = vld [vmem:[#allocation6 + $0x2c0] sm:$0xff]
    %v7070 = vld [vmem:[#allocation6 + $0x2c8] sm:$0xff]
    %v7071 = vld [vmem:[#allocation6 + $0x2d0] sm:$0xff]
    %v7072 = vld [vmem:[#allocation6 + $0x2d8] sm:$0xff]
    %v7073 = vld [vmem:[#allocation6 + $0x2e0] sm:$0xff]
    %v7074 = vld [vmem:[#allocation6 + $0x2e8] sm:$0xff]
    %v7075 = vld [vmem:[#allocation6 + $0x2f0] sm:$0xff]
    %v7076 = vld [vmem:[#allocation6 + $0x2f8] sm:$0xff]
    %v7077 = vld [vmem:[#allocation6 + $0x300] sm:$0xff]
    %v7078 = vld [vmem:[#allocation6 + $0x308] sm:$0xff]
    %v7079 = vld [vmem:[#allocation6 + $0x310] sm:$0xff]
    %v7080 = vld [vmem:[#allocation6 + $0x318] sm:$0xff]
    %v7081 = vld [vmem:[#allocation6 + $0x320] sm:$0xff]
    %v7082 = vld [vmem:[#allocation6 + $0x328] sm:$0xff]
    %v7083 = vld [vmem:[#allocation6 + $0x330] sm:$0xff]
    %v7084 = vld [vmem:[#allocation6 + $0x338] sm:$0xff]
    %v7085 = vld [vmem:[#allocation6 + $0x340] sm:$0xff]
    %v7086 = vld [vmem:[#allocation6 + $0x348] sm:$0xff]
    %v7087 = vld [vmem:[#allocation6 + $0x350] sm:$0xff]
    %v7088 = vld [vmem:[#allocation6 + $0x358] sm:$0xff]
    %v7089 = vld [vmem:[#allocation6 + $0x360] sm:$0xff]
    %v7090 = vld [vmem:[#allocation6 + $0x368] sm:$0xff]
    %v7091 = vld [vmem:[#allocation6 + $0x370] sm:$0xff]
    %v7092 = vld [vmem:[#allocation6 + $0x378] sm:$0xff]
    %v7093 = vld [vmem:[#allocation6 + $0x380] sm:$0xff]
    %v7094 = vld [vmem:[#allocation6 + $0x388] sm:$0xff]
    %v7095 = vld [vmem:[#allocation6 + $0x390] sm:$0xff]
    %v7096 = vld [vmem:[#allocation6 + $0x398] sm:$0xff]
    %v7097 = vld [vmem:[#allocation6 + $0x3a0] sm:$0xff]
    %v7098 = vld [vmem:[#allocation6 + $0x3a8] sm:$0xff]
    %v7099 = vld [vmem:[#allocation6 + $0x3b0] sm:$0xff]
    %v7100 = vld [vmem:[#allocation6 + $0x3b8] sm:$0xff]
    %v7101 = vld [vmem:[#allocation6 + $0x3c0] sm:$0xff]
    %v7102 = vld [vmem:[#allocation6 + $0x3c8] sm:$0xff]
    %v7103 = vld [vmem:[#allocation6 + $0x3d0] sm:$0xff]
    %v7104 = vld [vmem:[#allocation6 + $0x3d8] sm:$0xff]
    %v7105 = vld [vmem:[#allocation6 + $0x3e0] sm:$0xff]
    %v7106 = vld [vmem:[#allocation6 + $0x3e8] sm:$0xff]
    %v7107 = vld [vmem:[#allocation6 + $0x3f0] sm:$0xff]
    %v7108 = vld [vmem:[#allocation6 + $0x3f8] sm:$0xff]
    %v7109 = vld [vmem:[#allocation6 + $0x400] sm:$0xff]
    %v7110 = vld [vmem:[#allocation6 + $0x408] sm:$0xff]
    %v7111 = vld [vmem:[#allocation6 + $0x410] sm:$0xff]
    %v7112 = vld [vmem:[#allocation6 + $0x418] sm:$0xff]
    %v7113 = vld [vmem:[#allocation6 + $0x420] sm:$0xff]
    %v7114 = vld [vmem:[#allocation6 + $0x428] sm:$0xff]
    %v7115 = vld [vmem:[#allocation6 + $0x430] sm:$0xff]
    %v7116 = vld [vmem:[#allocation6 + $0x438] sm:$0xff]
    %v7117 = vld [vmem:[#allocation6 + $0x440] sm:$0xff]
    %v7118 = vld [vmem:[#allocation6 + $0x448] sm:$0xff]
    %v7119 = vld [vmem:[#allocation6 + $0x450] sm:$0xff]
    %v7120 = vld [vmem:[#allocation6 + $0x458] sm:$0xff]
    %v7121 = vld [vmem:[#allocation6 + $0x460] sm:$0xff]
    %v7122 = vld [vmem:[#allocation6 + $0x468] sm:$0xff]
    %v7123 = vld [vmem:[#allocation6 + $0x470] sm:$0xff]
    %v7124 = vld [vmem:[#allocation6 + $0x478] sm:$0xff]
    %v7125 = vld [vmem:[#allocation6 + $0x480] sm:$0xff]
    %v7126 = vld [vmem:[#allocation6 + $0x488] sm:$0xff]
    %v7127 = vld [vmem:[#allocation6 + $0x490] sm:$0xff]
    %v7128 = vld [vmem:[#allocation6 + $0x498] sm:$0xff]
    %v7129 = vld [vmem:[#allocation6 + $0x4a0] sm:$0xff]
    %v7130 = vld [vmem:[#allocation6 + $0x4a8] sm:$0xff]
    %v7131 = vld [vmem:[#allocation6 + $0x4b0] sm:$0xff]
    %v7132 = vld [vmem:[#allocation6 + $0x4b8] sm:$0xff]
    %v7133 = vld [vmem:[#allocation6 + $0x4c0] sm:$0xff]
    %v7134 = vld [vmem:[#allocation6 + $0x4c8] sm:$0xff]
    %v7135 = vld [vmem:[#allocation6 + $0x4d0] sm:$0xff]
    %v7136 = vld [vmem:[#allocation6 + $0x4d8] sm:$0xff]
    %v7137 = vld [vmem:[#allocation6 + $0x4e0] sm:$0xff]
    %v7138 = vld [vmem:[#allocation6 + $0x4e8] sm:$0xff]
    %v7139 = vld [vmem:[#allocation6 + $0x4f0] sm:$0xff]
    %v7140 = vld [vmem:[#allocation6 + $0x4f8] sm:$0xff]
    %v7141 = vld [vmem:[#allocation6 + $0x500] sm:$0xff]
    %v7142 = vld [vmem:[#allocation6 + $0x508] sm:$0xff]
    %v7143 = vld [vmem:[#allocation6 + $0x510] sm:$0xff]
    %v7144 = vld [vmem:[#allocation6 + $0x518] sm:$0xff]
    %v7145 = vld [vmem:[#allocation6 + $0x520] sm:$0xff]
    %v7146 = vld [vmem:[#allocation6 + $0x528] sm:$0xff]
    %v7147 = vld [vmem:[#allocation6 + $0x530] sm:$0xff]
    %v7148 = vld [vmem:[#allocation6 + $0x538] sm:$0xff]
    %v7149 = vld [vmem:[#allocation6 + $0x540] sm:$0xff]
    %v7150 = vld [vmem:[#allocation6 + $0x548] sm:$0xff]
    %v7151 = vld [vmem:[#allocation6 + $0x550] sm:$0xff]
    %v7152 = vld [vmem:[#allocation6 + $0x558] sm:$0xff]
    %v7153 = vld [vmem:[#allocation6 + $0x560] sm:$0xff]
    %v7154 = vld [vmem:[#allocation6 + $0x568] sm:$0xff]
    %v7155 = vld [vmem:[#allocation6 + $0x570] sm:$0xff]
    %v7156 = vld [vmem:[#allocation6 + $0x578] sm:$0xff]
    %v7157 = vld [vmem:[#allocation6 + $0x580] sm:$0xff]
    %v7158 = vld [vmem:[#allocation6 + $0x588] sm:$0xff]
    %v7159 = vld [vmem:[#allocation6 + $0x590] sm:$0xff]
    %v7160 = vld [vmem:[#allocation6 + $0x598] sm:$0xff]
    %v7161 = vld [vmem:[#allocation6 + $0x5a0] sm:$0xff]
    %v7162 = vld [vmem:[#allocation6 + $0x5a8] sm:$0xff]
    %v7163 = vld [vmem:[#allocation6 + $0x5b0] sm:$0xff]
    %v7164 = vld [vmem:[#allocation6 + $0x5b8] sm:$0xff]
    %v7165 = vld [vmem:[#allocation6 + $0x5c0] sm:$0xff]
    %v7166 = vld [vmem:[#allocation6 + $0x5c8] sm:$0xff]
    %v7167 = vld [vmem:[#allocation6 + $0x5d0] sm:$0xff]
    %v7168 = vld [vmem:[#allocation6 + $0x5d8] sm:$0xff]
    %v7169 = vld [vmem:[#allocation6 + $0x5e0] sm:$0xff]
    %v7170 = vld [vmem:[#allocation6 + $0x5e8] sm:$0xff]
    %v7171 = vld [vmem:[#allocation6 + $0x5f0] sm:$0xff]
    %v7172 = vld [vmem:[#allocation6 + $0x5f8] sm:$0xff]
    %v7173 = vld [vmem:[#allocation6 + $0x600] sm:$0xff]
    %v7174 = vld [vmem:[#allocation6 + $0x608] sm:$0xff]
    %v7175 = vld [vmem:[#allocation6 + $0x610] sm:$0xff]
    %v7176 = vld [vmem:[#allocation6 + $0x618] sm:$0xff]
    %v7177 = vld [vmem:[#allocation6 + $0x620] sm:$0xff]
    %v7178 = vld [vmem:[#allocation6 + $0x628] sm:$0xff]
    %v7179 = vld [vmem:[#allocation6 + $0x630] sm:$0xff]
    %v7180 = vld [vmem:[#allocation6 + $0x638] sm:$0xff]
    %v7181 = vld [vmem:[#allocation6 + $0x640] sm:$0xff]
    %v7182 = vld [vmem:[#allocation6 + $0x648] sm:$0xff]
    %v7183 = vld [vmem:[#allocation6 + $0x650] sm:$0xff]
    %v7184 = vld [vmem:[#allocation6 + $0x658] sm:$0xff]
    %v7185 = vld [vmem:[#allocation6 + $0x660] sm:$0xff]
    %v7186 = vld [vmem:[#allocation6 + $0x668] sm:$0xff]
    %v7187 = vld [vmem:[#allocation6 + $0x670] sm:$0xff]
    %v7188 = vld [vmem:[#allocation6 + $0x678] sm:$0xff]
    %v7189 = vld [vmem:[#allocation6 + $0x680] sm:$0xff]
    %v7190 = vld [vmem:[#allocation6 + $0x688] sm:$0xff]
    %v7191 = vld [vmem:[#allocation6 + $0x690] sm:$0xff]
    %v7192 = vld [vmem:[#allocation6 + $0x698] sm:$0xff]
    %v7193 = vld [vmem:[#allocation6 + $0x6a0] sm:$0xff]
    %v7194 = vld [vmem:[#allocation6 + $0x6a8] sm:$0xff]
    %v7195 = vld [vmem:[#allocation6 + $0x6b0] sm:$0xff]
    %v7196 = vld [vmem:[#allocation6 + $0x6b8] sm:$0xff]
    %v7197 = vld [vmem:[#allocation6 + $0x6c0] sm:$0xff]
    %v7198 = vld [vmem:[#allocation6 + $0x6c8] sm:$0xff]
    %v7199 = vld [vmem:[#allocation6 + $0x6d0] sm:$0xff]
    %v7200 = vld [vmem:[#allocation6 + $0x6d8] sm:$0xff]
    %v7201 = vld [vmem:[#allocation6 + $0x6e0] sm:$0xff]
    %v7202 = vld [vmem:[#allocation6 + $0x6e8] sm:$0xff]
    %v7203 = vld [vmem:[#allocation6 + $0x6f0] sm:$0xff]
    %v7204 = vld [vmem:[#allocation6 + $0x6f8] sm:$0xff]
    %v7205 = vld [vmem:[#allocation6 + $0x700] sm:$0xff]
    %v7206 = vld [vmem:[#allocation6 + $0x708] sm:$0xff]
    %v7207 = vld [vmem:[#allocation6 + $0x710] sm:$0xff]
    %v7208 = vld [vmem:[#allocation6 + $0x718] sm:$0xff]
    %v7209 = vld [vmem:[#allocation6 + $0x720] sm:$0xff]
    %v7210 = vld [vmem:[#allocation6 + $0x728] sm:$0xff]
    %v7211 = vld [vmem:[#allocation6 + $0x730] sm:$0xff]
    %v7212 = vld [vmem:[#allocation6 + $0x738] sm:$0xff]
    %v7213 = vld [vmem:[#allocation6 + $0x740] sm:$0xff]
    %v7214 = vld [vmem:[#allocation6 + $0x748] sm:$0xff]
    %v7215 = vld [vmem:[#allocation6 + $0x750] sm:$0xff]
    %v7216 = vld [vmem:[#allocation6 + $0x758] sm:$0xff]
    %v7217 = vld [vmem:[#allocation6 + $0x760] sm:$0xff]
    %v7218 = vld [vmem:[#allocation6 + $0x768] sm:$0xff]
    %v7219 = vld [vmem:[#allocation6 + $0x770] sm:$0xff]
    %v7220 = vld [vmem:[#allocation6 + $0x778] sm:$0xff]
    %v7221 = vld [vmem:[#allocation6 + $0x780] sm:$0xff]
    %v7222 = vld [vmem:[#allocation6 + $0x788] sm:$0xff]
    %v7223 = vld [vmem:[#allocation6 + $0x790] sm:$0xff]
    %v7224 = vld [vmem:[#allocation6 + $0x798] sm:$0xff]
    %v7225 = vld [vmem:[#allocation6 + $0x7a0] sm:$0xff]
    %v7226 = vld [vmem:[#allocation6 + $0x7a8] sm:$0xff]
    %v7227 = vld [vmem:[#allocation6 + $0x7b0] sm:$0xff]
    %v7228 = vld [vmem:[#allocation6 + $0x7b8] sm:$0xff]
    %v7229 = vld [vmem:[#allocation6 + $0x7c0] sm:$0xff]
    %v7230 = vld [vmem:[#allocation6 + $0x7c8] sm:$0xff]
    %v7231 = vld [vmem:[#allocation6 + $0x7d0] sm:$0xff]
    %v7232 = vld [vmem:[#allocation6 + $0x7d8] sm:$0xff]
    %v7233 = vld [vmem:[#allocation6 + $0x7e0] sm:$0xff]
    %v7234 = vld [vmem:[#allocation6 + $0x7e8] sm:$0xff]
    %v7235 = vld [vmem:[#allocation6 + $0x7f0] sm:$0xff]
    %v7236 = vld [vmem:[#allocation6 + $0x7f8] sm:$0xff]
    %v7237 = vld [vmem:[#allocation6 + $0x800] sm:$0xff]
    %v7238 = vld [vmem:[#allocation6 + $0x808] sm:$0xff]
    %v7239 = vld [vmem:[#allocation6 + $0x810] sm:$0xff]
    %v7240 = vld [vmem:[#allocation6 + $0x818] sm:$0xff]
    %v7241 = vld [vmem:[#allocation6 + $0x820] sm:$0xff]
    %v7242 = vld [vmem:[#allocation6 + $0x828] sm:$0xff]
    %v7243 = vld [vmem:[#allocation6 + $0x830] sm:$0xff]
    %v7244 = vld [vmem:[#allocation6 + $0x838] sm:$0xff]
    %v7245 = vld [vmem:[#allocation6 + $0x840] sm:$0xff]
    %v7246 = vld [vmem:[#allocation6 + $0x848] sm:$0xff]
    %v7247 = vld [vmem:[#allocation6 + $0x850] sm:$0xff]
    %v7248 = vld [vmem:[#allocation6 + $0x858] sm:$0xff]
    %v7249 = vld [vmem:[#allocation6 + $0x860] sm:$0xff]
    %v7250 = vld [vmem:[#allocation6 + $0x868] sm:$0xff]
    %v7251 = vld [vmem:[#allocation6 + $0x870] sm:$0xff]
    %v7252 = vld [vmem:[#allocation6 + $0x878] sm:$0xff]
    %v7253 = vld [vmem:[#allocation6 + $0x880] sm:$0xff]
    %v7254 = vld [vmem:[#allocation6 + $0x888] sm:$0xff]
    %v7255 = vld [vmem:[#allocation6 + $0x890] sm:$0xff]
    %v7256 = vld [vmem:[#allocation6 + $0x898] sm:$0xff]
    %v7257 = vld [vmem:[#allocation6 + $0x8a0] sm:$0xff]
    %v7258 = vld [vmem:[#allocation6 + $0x8a8] sm:$0xff]
    %v7259 = vld [vmem:[#allocation6 + $0x8b0] sm:$0xff]
    %v7260 = vld [vmem:[#allocation6 + $0x8b8] sm:$0xff]
    %v7261 = vld [vmem:[#allocation6 + $0x8c0] sm:$0xff]
    %v7262 = vld [vmem:[#allocation6 + $0x8c8] sm:$0xff]
    %v7263 = vld [vmem:[#allocation6 + $0x8d0] sm:$0xff]
    %v7264 = vld [vmem:[#allocation6 + $0x8d8] sm:$0xff]
    %v7265 = vld [vmem:[#allocation6 + $0x8e0] sm:$0xff]
    %v7266 = vld [vmem:[#allocation6 + $0x8e8] sm:$0xff]
    %v7267 = vld [vmem:[#allocation6 + $0x8f0] sm:$0xff]
    %v7268 = vld [vmem:[#allocation6 + $0x8f8] sm:$0xff]
    %v7269 = vld [vmem:[#allocation6 + $0x900] sm:$0xff]
    %v7270 = vld [vmem:[#allocation6 + $0x908] sm:$0xff]
    %v7271 = vld [vmem:[#allocation6 + $0x910] sm:$0xff]
    %v7272 = vld [vmem:[#allocation6 + $0x918] sm:$0xff]
    %v7273 = vld [vmem:[#allocation6 + $0x920] sm:$0xff]
    %v7274 = vld [vmem:[#allocation6 + $0x928] sm:$0xff]
    %v7275 = vld [vmem:[#allocation6 + $0x930] sm:$0xff]
    %v7276 = vld [vmem:[#allocation6 + $0x938] sm:$0xff]
    %v7277 = vld [vmem:[#allocation6 + $0x940] sm:$0xff]
    %v7278 = vld [vmem:[#allocation6 + $0x948] sm:$0xff]
    %v7279 = vld [vmem:[#allocation6 + $0x950] sm:$0xff]
    %v7280 = vld [vmem:[#allocation6 + $0x958] sm:$0xff]
    %v7281 = vld [vmem:[#allocation6 + $0x960] sm:$0xff]
    %v7282 = vld [vmem:[#allocation6 + $0x968] sm:$0xff]
    %v7283 = vld [vmem:[#allocation6 + $0x970] sm:$0xff]
    %v7284 = vld [vmem:[#allocation6 + $0x978] sm:$0xff]
    %v7285 = vld [vmem:[#allocation6 + $0x980] sm:$0xff]
    %v7286 = vld [vmem:[#allocation6 + $0x988] sm:$0xff]
    %v7287 = vld [vmem:[#allocation6 + $0x990] sm:$0xff]
    %v7288 = vld [vmem:[#allocation6 + $0x998] sm:$0xff]
    %v7289 = vld [vmem:[#allocation6 + $0x9a0] sm:$0xff]
    %v7290 = vld [vmem:[#allocation6 + $0x9a8] sm:$0xff]
    %v7291 = vld [vmem:[#allocation6 + $0x9b0] sm:$0xff]
    %v7292 = vld [vmem:[#allocation6 + $0x9b8] sm:$0xff]
    %v7293 = vld [vmem:[#allocation6 + $0x9c0] sm:$0xff]
    %v7294 = vld [vmem:[#allocation6 + $0x9c8] sm:$0xff]
    %v7295 = vld [vmem:[#allocation6 + $0x9d0] sm:$0xff]
    %v7296 = vld [vmem:[#allocation6 + $0x9d8] sm:$0xff]
    %v7297 = vld [vmem:[#allocation6 + $0x9e0] sm:$0xff]
    %v7298 = vld [vmem:[#allocation6 + $0x9e8] sm:$0xff]
    %v7299 = vld [vmem:[#allocation6 + $0x9f0] sm:$0xff]
    %v7300 = vld [vmem:[#allocation6 + $0x9f8] sm:$0xff]
    %v7301 = vld [vmem:[#allocation6 + $0xa00] sm:$0xff]
    %v7302 = vld [vmem:[#allocation6 + $0xa08] sm:$0xff]
    %v7303 = vld [vmem:[#allocation6 + $0xa10] sm:$0xff]
    %v7304 = vld [vmem:[#allocation6 + $0xa18] sm:$0xff]
    %v7305 = vld [vmem:[#allocation6 + $0xa20] sm:$0xff]
    %v7306 = vld [vmem:[#allocation6 + $0xa28] sm:$0xff]
    %v7307 = vld [vmem:[#allocation6 + $0xa30] sm:$0xff]
    %v7308 = vld [vmem:[#allocation6 + $0xa38] sm:$0xff]
    %v7309 = vld [vmem:[#allocation6 + $0xa40] sm:$0xff]
    %v7310 = vld [vmem:[#allocation6 + $0xa48] sm:$0xff]
    %v7311 = vld [vmem:[#allocation6 + $0xa50] sm:$0xff]
    %v7312 = vld [vmem:[#allocation6 + $0xa58] sm:$0xff]
    %v7313 = vld [vmem:[#allocation6 + $0xa60] sm:$0xff]
    %v7314 = vld [vmem:[#allocation6 + $0xa68] sm:$0xff]
    %v7315 = vld [vmem:[#allocation6 + $0xa70] sm:$0xff]
    %v7316 = vld [vmem:[#allocation6 + $0xa78] sm:$0xff]
    %v7317 = vld [vmem:[#allocation6 + $0xa80] sm:$0xff]
    %v7318 = vld [vmem:[#allocation6 + $0xa88] sm:$0xff]
    %v7319 = vld [vmem:[#allocation6 + $0xa90] sm:$0xff]
    %v7320 = vld [vmem:[#allocation6 + $0xa98] sm:$0xff]
    %v7321 = vld [vmem:[#allocation6 + $0xaa0] sm:$0xff]
    %v7322 = vld [vmem:[#allocation6 + $0xaa8] sm:$0xff]
    %v7323 = vld [vmem:[#allocation6 + $0xab0] sm:$0xff]
    %v7324 = vld [vmem:[#allocation6 + $0xab8] sm:$0xff]
    %v7325 = vld [vmem:[#allocation6 + $0xac0] sm:$0xff]
    %v7326 = vld [vmem:[#allocation6 + $0xac8] sm:$0xff]
    %v7327 = vld [vmem:[#allocation6 + $0xad0] sm:$0xff]
    %v7328 = vld [vmem:[#allocation6 + $0xad8] sm:$0xff]
    %v7329 = vld [vmem:[#allocation6 + $0xae0] sm:$0xff]
    %v7330 = vld [vmem:[#allocation6 + $0xae8] sm:$0xff]
    %v7331 = vld [vmem:[#allocation6 + $0xaf0] sm:$0xff]
    %v7332 = vld [vmem:[#allocation6 + $0xaf8] sm:$0xff]
    %v7333 = vld [vmem:[#allocation6 + $0xb00] sm:$0xff]
    %v7334 = vld [vmem:[#allocation6 + $0xb08] sm:$0xff]
    %v7335 = vld [vmem:[#allocation6 + $0xb10] sm:$0xff]
    %v7336 = vld [vmem:[#allocation6 + $0xb18] sm:$0xff]
    %v7337 = vld [vmem:[#allocation6 + $0xb20] sm:$0xff]
    %v7338 = vld [vmem:[#allocation6 + $0xb28] sm:$0xff]
    %v7339 = vld [vmem:[#allocation6 + $0xb30] sm:$0xff]
    %v7340 = vld [vmem:[#allocation6 + $0xb38] sm:$0xff]
    %v7341 = vld [vmem:[#allocation6 + $0xb40] sm:$0xff]
    %v7342 = vld [vmem:[#allocation6 + $0xb48] sm:$0xff]
    %v7343 = vld [vmem:[#allocation6 + $0xb50] sm:$0xff]
    %v7344 = vld [vmem:[#allocation6 + $0xb58] sm:$0xff]
    %v7345 = vld [vmem:[#allocation6 + $0xb60] sm:$0xff]
    %v7346 = vld [vmem:[#allocation6 + $0xb68] sm:$0xff]
    %v7347 = vld [vmem:[#allocation6 + $0xb70] sm:$0xff]
    %v7348 = vld [vmem:[#allocation6 + $0xb78] sm:$0xff]
    %v7349 = vld [vmem:[#allocation6 + $0xb80] sm:$0xff]
    %v7350 = vld [vmem:[#allocation6 + $0xb88] sm:$0xff]
    %v7351 = vld [vmem:[#allocation6 + $0xb90] sm:$0xff]
    %v7352 = vld [vmem:[#allocation6 + $0xb98] sm:$0xff]
    %v7353 = vld [vmem:[#allocation6 + $0xba0] sm:$0xff]
    %v7354 = vld [vmem:[#allocation6 + $0xba8] sm:$0xff]
    %v7355 = vld [vmem:[#allocation6 + $0xbb0] sm:$0xff]
    %v7356 = vld [vmem:[#allocation6 + $0xbb8] sm:$0xff]
    %v7357 = vld [vmem:[#allocation6 + $0xbc0] sm:$0xff]
    %v7358 = vld [vmem:[#allocation6 + $0xbc8] sm:$0xff]
    %v7359 = vld [vmem:[#allocation6 + $0xbd0] sm:$0xff]
    %v7360 = vld [vmem:[#allocation6 + $0xbd8] sm:$0xff]
    %v7361 = vld [vmem:[#allocation6 + $0xbe0] sm:$0xff]
    %v7362 = vld [vmem:[#allocation6 + $0xbe8] sm:$0xff]
    %v7363 = vld [vmem:[#allocation6 + $0xbf0] sm:$0xff]
    %v7364 = vld [vmem:[#allocation6 + $0xbf8] sm:$0xff]
    %v7365 = vld [vmem:[#allocation6 + $0xc00] sm:$0xff]
    %v7366 = vld [vmem:[#allocation6 + $0xc08] sm:$0xff]
    %v7367 = vld [vmem:[#allocation6 + $0xc10] sm:$0xff]
    %v7368 = vld [vmem:[#allocation6 + $0xc18] sm:$0xff]
    %v7369 = vld [vmem:[#allocation6 + $0xc20] sm:$0xff]
    %v7370 = vld [vmem:[#allocation6 + $0xc28] sm:$0xff]
    %v7371 = vld [vmem:[#allocation6 + $0xc30] sm:$0xff]
    %v7372 = vld [vmem:[#allocation6 + $0xc38] sm:$0xff]
    %v7373 = vld [vmem:[#allocation6 + $0xc40] sm:$0xff]
    %v7374 = vld [vmem:[#allocation6 + $0xc48] sm:$0xff]
    %v7375 = vld [vmem:[#allocation6 + $0xc50] sm:$0xff]
    %v7376 = vld [vmem:[#allocation6 + $0xc58] sm:$0xff]
    %v7377 = vld [vmem:[#allocation6 + $0xc60] sm:$0xff]
    %v7378 = vld [vmem:[#allocation6 + $0xc68] sm:$0xff]
    %v7379 = vld [vmem:[#allocation6 + $0xc70] sm:$0xff]
    %v7380 = vld [vmem:[#allocation6 + $0xc78] sm:$0xff]
    %v7381 = vld [vmem:[#allocation6 + $0xc80] sm:$0xff]
    %v7382 = vld [vmem:[#allocation6 + $0xc88] sm:$0xff]
    %v7383 = vld [vmem:[#allocation6 + $0xc90] sm:$0xff]
    %v7384 = vld [vmem:[#allocation6 + $0xc98] sm:$0xff]
    %v7385 = vld [vmem:[#allocation6 + $0xca0] sm:$0xff]
    %v7386 = vld [vmem:[#allocation6 + $0xca8] sm:$0xff]
    %v7387 = vld [vmem:[#allocation6 + $0xcb0] sm:$0xff]
    %v7388 = vld [vmem:[#allocation6 + $0xcb8] sm:$0xff]
    %v7389 = vld [vmem:[#allocation6 + $0xcc0] sm:$0xff]
    %v7390 = vld [vmem:[#allocation6 + $0xcc8] sm:$0xff]
    %v7391 = vld [vmem:[#allocation6 + $0xcd0] sm:$0xff]
    %v7392 = vld [vmem:[#allocation6 + $0xcd8] sm:$0xff]
    %v7393 = vld [vmem:[#allocation6 + $0xce0] sm:$0xff]
    %v7394 = vld [vmem:[#allocation6 + $0xce8] sm:$0xff]
    %v7395 = vld [vmem:[#allocation6 + $0xcf0] sm:$0xff]
    %v7396 = vld [vmem:[#allocation6 + $0xcf8] sm:$0xff]
    %v7397 = vld [vmem:[#allocation6 + $0xd00] sm:$0xff]
    %v7398 = vld [vmem:[#allocation6 + $0xd08] sm:$0xff]
    %v7399 = vld [vmem:[#allocation6 + $0xd10] sm:$0xff]
    %v7400 = vld [vmem:[#allocation6 + $0xd18] sm:$0xff]
    %v7401 = vld [vmem:[#allocation6 + $0xd20] sm:$0xff]
    %v7402 = vld [vmem:[#allocation6 + $0xd28] sm:$0xff]
    %v7403 = vld [vmem:[#allocation6 + $0xd30] sm:$0xff]
    %v7404 = vld [vmem:[#allocation6 + $0xd38] sm:$0xff]
    %v7405 = vld [vmem:[#allocation6 + $0xd40] sm:$0xff]
    %v7406 = vld [vmem:[#allocation6 + $0xd48] sm:$0xff]
    %v7407 = vld [vmem:[#allocation6 + $0xd50] sm:$0xff]
    %v7408 = vld [vmem:[#allocation6 + $0xd58] sm:$0xff]
    %v7409 = vld [vmem:[#allocation6 + $0xd60] sm:$0xff]
    %v7410 = vld [vmem:[#allocation6 + $0xd68] sm:$0xff]
    %v7411 = vld [vmem:[#allocation6 + $0xd70] sm:$0xff]
    %v7412 = vld [vmem:[#allocation6 + $0xd78] sm:$0xff]
    %v7413 = vld [vmem:[#allocation6 + $0xd80] sm:$0xff]
    %v7414 = vld [vmem:[#allocation6 + $0xd88] sm:$0xff]
    %v7415 = vld [vmem:[#allocation6 + $0xd90] sm:$0xff]
    %v7416 = vld [vmem:[#allocation6 + $0xd98] sm:$0xff]
    %v7417 = vld [vmem:[#allocation6 + $0xda0] sm:$0xff]
    %v7418 = vld [vmem:[#allocation6 + $0xda8] sm:$0xff]
    %v7419 = vld [vmem:[#allocation6 + $0xdb0] sm:$0xff]
    %v7420 = vld [vmem:[#allocation6 + $0xdb8] sm:$0xff]
    %v7421 = vld [vmem:[#allocation6 + $0xdc0] sm:$0xff]
    %v7422 = vld [vmem:[#allocation6 + $0xdc8] sm:$0xff]
    %v7423 = vld [vmem:[#allocation6 + $0xdd0] sm:$0xff]
    %v7424 = vld [vmem:[#allocation6 + $0xdd8] sm:$0xff]
    %v7425 = vld [vmem:[#allocation6 + $0xde0] sm:$0xff]
    %v7426 = vld [vmem:[#allocation6 + $0xde8] sm:$0xff]
    %v7427 = vld [vmem:[#allocation6 + $0xdf0] sm:$0xff]
    %v7428 = vld [vmem:[#allocation6 + $0xdf8] sm:$0xff]
    %v7429 = vld [vmem:[#allocation6 + $0xe00] sm:$0xff]
    %v7430 = vld [vmem:[#allocation6 + $0xe08] sm:$0xff]
    %v7431 = vld [vmem:[#allocation6 + $0xe10] sm:$0xff]
    %v7432 = vld [vmem:[#allocation6 + $0xe18] sm:$0xff]
    %v7433 = vld [vmem:[#allocation6 + $0xe20] sm:$0xff]
    %v7434 = vld [vmem:[#allocation6 + $0xe28] sm:$0xff]
    %v7435 = vld [vmem:[#allocation6 + $0xe30] sm:$0xff]
    %v7436 = vld [vmem:[#allocation6 + $0xe38] sm:$0xff]
    %v7437 = vld [vmem:[#allocation6 + $0xe40] sm:$0xff]
    %v7438 = vld [vmem:[#allocation6 + $0xe48] sm:$0xff]
    %v7439 = vld [vmem:[#allocation6 + $0xe50] sm:$0xff]
    %v7440 = vld [vmem:[#allocation6 + $0xe58] sm:$0xff]
    %v7441 = vld [vmem:[#allocation6 + $0xe60] sm:$0xff]
    %v7442 = vld [vmem:[#allocation6 + $0xe68] sm:$0xff]
    %v7443 = vld [vmem:[#allocation6 + $0xe70] sm:$0xff]
    %v7444 = vld [vmem:[#allocation6 + $0xe78] sm:$0xff]
    %v7445 = vld [vmem:[#allocation6 + $0xe80] sm:$0xff]
    %v7446 = vld [vmem:[#allocation6 + $0xe88] sm:$0xff]
    %v7447 = vld [vmem:[#allocation6 + $0xe90] sm:$0xff]
    %v7448 = vld [vmem:[#allocation6 + $0xe98] sm:$0xff]
    %v7449 = vld [vmem:[#allocation6 + $0xea0] sm:$0xff]
    %v7450 = vld [vmem:[#allocation6 + $0xea8] sm:$0xff]
    %v7451 = vld [vmem:[#allocation6 + $0xeb0] sm:$0xff]
    %v7452 = vld [vmem:[#allocation6 + $0xeb8] sm:$0xff]
    %v7453 = vld [vmem:[#allocation6 + $0xec0] sm:$0xff]
    %v7454 = vld [vmem:[#allocation6 + $0xec8] sm:$0xff]
    %v7455 = vld [vmem:[#allocation6 + $0xed0] sm:$0xff]
    %v7456 = vld [vmem:[#allocation6 + $0xed8] sm:$0xff]
    %v7457 = vld [vmem:[#allocation6 + $0xee0] sm:$0xff]
    %v7458 = vld [vmem:[#allocation6 + $0xee8] sm:$0xff]
    %v7459 = vld [vmem:[#allocation6 + $0xef0] sm:$0xff]
    %v7460 = vld [vmem:[#allocation6 + $0xef8] sm:$0xff]
    %v7461 = vld [vmem:[#allocation6 + $0xf00] sm:$0xff]
    %v7462 = vld [vmem:[#allocation6 + $0xf08] sm:$0xff]
    %v7463 = vld [vmem:[#allocation6 + $0xf10] sm:$0xff]
    %v7464 = vld [vmem:[#allocation6 + $0xf18] sm:$0xff]
    %v7465 = vld [vmem:[#allocation6 + $0xf20] sm:$0xff]
    %v7466 = vld [vmem:[#allocation6 + $0xf28] sm:$0xff]
    %v7467 = vld [vmem:[#allocation6 + $0xf30] sm:$0xff]
    %v7468 = vld [vmem:[#allocation6 + $0xf38] sm:$0xff]
    %v7469 = vld [vmem:[#allocation6 + $0xf40] sm:$0xff]
    %v7470 = vld [vmem:[#allocation6 + $0xf48] sm:$0xff]
    %v7471 = vld [vmem:[#allocation6 + $0xf50] sm:$0xff]
    %v7472 = vld [vmem:[#allocation6 + $0xf58] sm:$0xff]
    %v7473 = vld [vmem:[#allocation6 + $0xf60] sm:$0xff]
    %v7474 = vld [vmem:[#allocation6 + $0xf68] sm:$0xff]
    %v7475 = vld [vmem:[#allocation6 + $0xf70] sm:$0xff]
    %v7476 = vld [vmem:[#allocation6 + $0xf78] sm:$0xff]
    %v7477 = vld [vmem:[#allocation6 + $0xf80] sm:$0xff]
    %v7478 = vld [vmem:[#allocation6 + $0xf88] sm:$0xff]
    %v7479 = vld [vmem:[#allocation6 + $0xf90] sm:$0xff]
    %v7480 = vld [vmem:[#allocation6 + $0xf98] sm:$0xff]
    %v7481 = vld [vmem:[#allocation6 + $0xfa0] sm:$0xff]
    %v7482 = vld [vmem:[#allocation6 + $0xfa8] sm:$0xff]
    %v7483 = vld [vmem:[#allocation6 + $0xfb0] sm:$0xff]
    %v7484 = vld [vmem:[#allocation6 + $0xfb8] sm:$0xff]
    %v7485 = vld [vmem:[#allocation6 + $0xfc0] sm:$0xff]
    %v7486 = vld [vmem:[#allocation6 + $0xfc8] sm:$0xff]
    %v7487 = vld [vmem:[#allocation6 + $0xfd0] sm:$0xff]
    %v7488 = vld [vmem:[#allocation6 + $0xfd8] sm:$0xff]
    %v7489 = vld [vmem:[#allocation6 + $0xfe0] sm:$0xff]
    %v7490 = vld [vmem:[#allocation6 + $0xfe8] sm:$0xff]
    %v7491 = vld [vmem:[#allocation6 + $0xff0] sm:$0xff]
    %v7492 = vld [vmem:[#allocation6 + $0xff8] sm:$0xff]
    %v7493 = vld [vmem:[#allocation16] sm:$0xff]
    %v7495 = vlaneseq
    %v7496 = vshrl.u32 %v7495, 7
    %v7497 = vsub.s32 0, %v7496
    %v7498 = vrot.slane %v7493, %v7497
    %v7499 = vlaneseq
    %v7500 = vshrl.u32 %v7499, 7
    %v7501 = vsub.s32 1, %v7500
    %v7502 = vrot.slane %v7493, %v7501
    %v7503 = vlaneseq
    %v7504 = vshrl.u32 %v7503, 7
    %v7505 = vsub.s32 2, %v7504
    %v7506 = vrot.slane %v7493, %v7505
    %v7507 = vlaneseq
    %v7508 = vshrl.u32 %v7507, 7
    %v7509 = vsub.s32 3, %v7508
    %v7510 = vrot.slane %v7493, %v7509
    %v7511 = vlaneseq
    %v7512 = vshrl.u32 %v7511, 7
    %v7513 = vsub.s32 4, %v7512
    %v7514 = vrot.slane %v7493, %v7513
    %v7515 = vlaneseq
    %v7516 = vshrl.u32 %v7515, 7
    %v7517 = vsub.s32 5, %v7516
    %v7518 = vrot.slane %v7493, %v7517
    %v7519 = vlaneseq
    %v7520 = vshrl.u32 %v7519, 7
    %v7521 = vsub.s32 6, %v7520
    %v7522 = vrot.slane %v7493, %v7521
    %v7523 = vlaneseq
    %v7524 = vshrl.u32 %v7523, 7
    %v7525 = vsub.s32 7, %v7524
    %v7526 = vrot.slane %v7493, %v7525
    %7535 = vmatprep.subr.bf16.mxu0 %v6982
    %7536 = vmatpush1.bf16.msra.mxu0 %v6981
    %7537 = vmatprep.subr.bf16.mxu0 %v6990
    %7538 = vmatpush1.bf16.msra.mxu0 %v6989
    %7539 = vmatprep.subr.bf16.mxu0 %v6998
    %7540 = vmatpush1.bf16.msra.mxu0 %v6997
    %7541 = vmatprep.subr.bf16.mxu0 %v7006
    %7542 = vmatpush1.bf16.msra.mxu0 %v7005
    %7543 = vmatprep.subr.bf16.mxu0 %v7014
    %7544 = vmatpush1.bf16.msra.mxu0 %v7013
    %7545 = vmatprep.subr.bf16.mxu0 %v7022
    %7546 = vmatpush1.bf16.msra.mxu0 %v7021
    %7547 = vmatprep.subr.bf16.mxu0 %v7030
    %7548 = vmatpush1.bf16.msra.mxu0 %v7029
    %7549 = vmatprep.subr.bf16.mxu0 %v7038
    %7550 = vmatpush1.bf16.msra.mxu0 %v7037
    %7551 = vmatprep.subr.bf16.mxu0 %v7046
    %7552 = vmatpush1.bf16.msra.mxu0 %v7045
    %7553 = vmatprep.subr.bf16.mxu0 %v7054
    %7554 = vmatpush1.bf16.msra.mxu0 %v7053
    %7555 = vmatprep.subr.bf16.mxu0 %v7062
    %7556 = vmatpush1.bf16.msra.mxu0 %v7061
    %7557 = vmatprep.subr.bf16.mxu0 %v7070
    %7558 = vmatpush1.bf16.msra.mxu0 %v7069
    %7559 = vmatprep.subr.bf16.mxu0 %v7078
    %7560 = vmatpush1.bf16.msra.mxu0 %v7077
    %7561 = vmatprep.subr.bf16.mxu0 %v7086
    %7562 = vmatpush1.bf16.msra.mxu0 %v7085
    %7563 = vmatprep.subr.bf16.mxu0 %v7094
    %7564 = vmatpush1.bf16.msra.mxu0 %v7093
    %7565 = vmatprep.subr.bf16.mxu0 %v7102
    %7566 = vmatpush1.bf16.msra.mxu0 %v7101
    %7567 = vmatprep.mubr.bf16.mxu0 %v6974
    %7568 = vmatmul.mubr.bf16.gmra.mrb[0].mxu0 %v6973
    %v7569 = vpop.f32.mrb[0].mxu0
    %v7570 = vadd.f32 %v7498, %v7569
    %v7571 = vpop.f32.mrb[0].mxu0
    %v7572 = vadd.f32 %v7502, %v7571
    %v7573 = vpop.f32.mrb[0].mxu0
    %v7574 = vpop.f32.mrb[0].mxu0
    %7575 = vdwg.mxu0
    %7576 = vmatprep.subr.bf16.mxu0 %v7110
    %7577 = vmatpush1.bf16.msra.mxu0 %v7109
    %7578 = vmatprep.subr.bf16.mxu0 %v7118
    %7579 = vmatpush1.bf16.msra.mxu0 %v7117
    %7580 = vmatprep.subr.bf16.mxu0 %v7126
    %7581 = vmatpush1.bf16.msra.mxu0 %v7125
    %7582 = vmatprep.subr.bf16.mxu0 %v7134
    %7583 = vmatpush1.bf16.msra.mxu0 %v7133
    %7584 = vmatprep.subr.bf16.mxu0 %v7142
    %7585 = vmatpush1.bf16.msra.mxu0 %v7141
    %7586 = vmatprep.subr.bf16.mxu0 %v7150
    %7587 = vmatpush1.bf16.msra.mxu0 %v7149
    %7588 = vmatprep.subr.bf16.mxu0 %v7158
    %7589 = vmatpush1.bf16.msra.mxu0 %v7157
    %7590 = vmatprep.subr.bf16.mxu0 %v7166
    %7591 = vmatpush1.bf16.msra.mxu0 %v7165
    %7592 = vmatprep.subr.bf16.mxu0 %v7174
    %7593 = vmatpush1.bf16.msra.mxu0 %v7173
    %7594 = vmatprep.subr.bf16.mxu0 %v7182
    %7595 = vmatpush1.bf16.msra.mxu0 %v7181
    %7596 = vmatprep.subr.bf16.mxu0 %v7190
    %7597 = vmatpush1.bf16.msra.mxu0 %v7189
    %7598 = vmatprep.subr.bf16.mxu0 %v7198
    %7599 = vmatpush1.bf16.msra.mxu0 %v7197
    %7600 = vmatprep.subr.bf16.mxu0 %v7206
    %7601 = vmatpush1.bf16.msra.mxu0 %v7205
    %7602 = vmatprep.subr.bf16.mxu0 %v7214
    %7603 = vmatpush1.bf16.msra.mxu0 %v7213
    %7604 = vmatprep.subr.bf16.mxu0 %v7222
    %7605 = vmatpush1.bf16.msra.mxu0 %v7221
    %7606 = vmatprep.subr.bf16.mxu0 %v7230
    %7607 = vmatpush1.bf16.msra.mxu0 %v7229
    %7608 = vmatprep.mubr.bf16.mxu0 %v6976
    %7609 = vmatmul.mubr.bf16.gmra.mrb[0].mxu0 %v6975
    %v7610 = vpop.f32.mrb[0].mxu0
    %v7611 = vadd.f32 %v7570, %v7610
    %v7612 = vpop.f32.mrb[0].mxu0
    %v7613 = vadd.f32 %v7572, %v7612
    %v7614 = vpop.f32.mrb[0].mxu0
    %v7615 = vpop.f32.mrb[0].mxu0
    %7616 = vdwg.mxu0
    %7617 = vmatprep.subr.bf16.mxu0 %v7238
    %7618 = vmatpush1.bf16.msra.mxu0 %v7237
    %7619 = vmatprep.subr.bf16.mxu0 %v7246
    %7620 = vmatpush1.bf16.msra.mxu0 %v7245
    %7621 = vmatprep.subr.bf16.mxu0 %v7254
    %7622 = vmatpush1.bf16.msra.mxu0 %v7253
    %7623 = vmatprep.subr.bf16.mxu0 %v7262
    %7624 = vmatpush1.bf16.msra.mxu0 %v7261
    %7625 = vmatprep.subr.bf16.mxu0 %v7270
    %7626 = vmatpush1.bf16.msra.mxu0 %v7269
    %7627 = vmatprep.subr.bf16.mxu0 %v7278
    %7628 = vmatpush1.bf16.msra.mxu0 %v7277
    %7629 = vmatprep.subr.bf16.mxu0 %v7286
    %7630 = vmatpush1.bf16.msra.mxu0 %v7285
    %7631 = vmatprep.subr.bf16.mxu0 %v7294
    %7632 = vmatpush1.bf16.msra.mxu0 %v7293
    %7633 = vmatprep.subr.bf16.mxu0 %v7302
    %7634 = vmatpush1.bf16.msra.mxu0 %v7301
    %7635 = vmatprep.subr.bf16.mxu0 %v7310
    %7636 = vmatpush1.bf16.msra.mxu0 %v7309
    %7637 = vmatprep.subr.bf16.mxu0 %v7318
    %7638 = vmatpush1.bf16.msra.mxu0 %v7317
    %7639 = vmatprep.subr.bf16.mxu0 %v7326
    %7640 = vmatpush1.bf16.msra.mxu0 %v7325
    %7641 = vmatprep.subr.bf16.mxu0 %v7334
    %7642 = vmatpush1.bf16.msra.mxu0 %v7333
    %7643 = vmatprep.subr.bf16.mxu0 %v7342
    %7644 = vmatpush1.bf16.msra.mxu0 %v7341
    %7645 = vmatprep.subr.bf16.mxu0 %v7350
    %7646 = vmatpush1.bf16.msra.mxu0 %v7349
    %7647 = vmatprep.subr.bf16.mxu0 %v7358
    %7648 = vmatpush1.bf16.msra.mxu0 %v7357
    %7649 = vmatprep.mubr.bf16.mxu0 %v6978
    %7650 = vmatmul.mubr.bf16.gmra.mrb[0].mxu0 %v6977
    %v7651 = vpop.f32.mrb[0].mxu0
    %v7652 = vadd.f32 %v7611, %v7651
    %v7653 = vpop.f32.mrb[0].mxu0
    %v7654 = vadd.f32 %v7613, %v7653
    %v7655 = vpop.f32.mrb[0].mxu0
    %v7656 = vpop.f32.mrb[0].mxu0
    %7657 = vdwg.mxu0
    %7658 = vmatprep.subr.bf16.mxu0 %v7366
    %7659 = vmatpush1.bf16.msra.mxu0 %v7365
    %7660 = vmatprep.subr.bf16.mxu0 %v7374
    %7661 = vmatpush1.bf16.msra.mxu0 %v7373
    %7662 = vmatprep.subr.bf16.mxu0 %v7382
    %7663 = vmatpush1.bf16.msra.mxu0 %v7381
    %7664 = vmatprep.subr.bf16.mxu0 %v7390
    %7665 = vmatpush1.bf16.msra.mxu0 %v7389
    %7666 = vmatprep.subr.bf16.mxu0 %v7398
    %7667 = vmatpush1.bf16.msra.mxu0 %v7397
    %7668 = vmatprep.subr.bf16.mxu0 %v7406
    %7669 = vmatpush1.bf16.msra.mxu0 %v7405
    %7670 = vmatprep.subr.bf16.mxu0 %v7414
    %7671 = vmatpush1.bf16.msra.mxu0 %v7413
    %7672 = vmatprep.subr.bf16.mxu0 %v7422
    %7673 = vmatpush1.bf16.msra.mxu0 %v7421
    %7674 = vmatprep.subr.bf16.mxu0 %v7430
    %7675 = vmatpush1.bf16.msra.mxu0 %v7429
    %7676 = vmatprep.subr.bf16.mxu0 %v7438
    %7677 = vmatpush1.bf16.msra.mxu0 %v7437
    %7678 = vmatprep.subr.bf16.mxu0 %v7446
    %7679 = vmatpush1.bf16.msra.mxu0 %v7445
    %7680 = vmatprep.subr.bf16.mxu0 %v7454
    %7681 = vmatpush1.bf16.msra.mxu0 %v7453
    %7682 = vmatprep.subr.bf16.mxu0 %v7462
    %7683 = vmatpush1.bf16.msra.mxu0 %v7461
    %7684 = vmatprep.subr.bf16.mxu0 %v7470
    %7685 = vmatpush1.bf16.msra.mxu0 %v7469
    %7686 = vmatprep.subr.bf16.mxu0 %v7478
    %7687 = vmatpush1.bf16.msra.mxu0 %v7477
    %7688 = vmatprep.subr.bf16.mxu0 %v7486
    %7689 = vmatpush1.bf16.msra.mxu0 %v7485
    %7690 = vmatprep.mubr.bf16.mxu0 %v6980
    %7691 = vmatmul.mubr.bf16.gmra.mrb[0].mxu0 %v6979
    %v7692 = vpop.f32.mrb[0].mxu0
    %v7693 = vadd.f32 %v7652, %v7692
    %v7694 = vpop.f32.mrb[0].mxu0
    %v7695 = vadd.f32 %v7654, %v7694
    %v7696 = vpop.f32.mrb[0].mxu0
    %v7697 = vpop.f32.mrb[0].mxu0
    %7698 = vdwg.mxu0
    %7699 = vmatprep.subr.bf16.mxu0 %v6984
    %7700 = vmatpush1.bf16.msra.mxu0 %v6983
    %7701 = vmatprep.subr.bf16.mxu0 %v6992
    %7702 = vmatpush1.bf16.msra.mxu0 %v6991
    %7703 = vmatprep.subr.bf16.mxu0 %v7000
    %7704 = vmatpush1.bf16.msra.mxu0 %v6999
    %7705 = vmatprep.subr.bf16.mxu0 %v7008
    %7706 = vmatpush1.bf16.msra.mxu0 %v7007
    %7707 = vmatprep.subr.bf16.mxu0 %v7016
    %7708 = vmatpush1.bf16.msra.mxu0 %v7015
    %7709 = vmatprep.subr.bf16.mxu0 %v7024
    %7710 = vmatpush1.bf16.msra.mxu0 %v7023
    %7711 = vmatprep.subr.bf16.mxu0 %v7032
    %7712 = vmatpush1.bf16.msra.mxu0 %v7031
    %7713 = vmatprep.subr.bf16.mxu0 %v7040
    %7714 = vmatpush1.bf16.msra.mxu0 %v7039
    %7715 = vmatprep.subr.bf16.mxu0 %v7048
    %7716 = vmatpush1.bf16.msra.mxu0 %v7047
    %7717 = vmatprep.subr.bf16.mxu0 %v7056
    %7718 = vmatpush1.bf16.msra.mxu0 %v7055
    %7719 = vmatprep.subr.bf16.mxu0 %v7064
    %7720 = vmatpush1.bf16.msra.mxu0 %v7063
    %7721 = vmatprep.subr.bf16.mxu0 %v7072
    %7722 = vmatpush1.bf16.msra.mxu0 %v7071
    %7723 = vmatprep.subr.bf16.mxu0 %v7080
    %7724 = vmatpush1.bf16.msra.mxu0 %v7079
    %7725 = vmatprep.subr.bf16.mxu0 %v7088
    %7726 = vmatpush1.bf16.msra.mxu0 %v7087
    %7727 = vmatprep.subr.bf16.mxu0 %v7096
    %7728 = vmatpush1.bf16.msra.mxu0 %v7095
    %7729 = vmatprep.subr.bf16.mxu0 %v7104
    %7730 = vmatpush1.bf16.msra.mxu0 %v7103
    %7731 = vmatprep.mubr.bf16.mxu0 %v6974
    %7732 = vmatmul.mubr.bf16.gmra.mrb[0].mxu0 %v6973
    %v7733 = vpop.f32.mrb[0].mxu0
    %v7734 = vadd.f32 %v7506, %v7733
    %v7735 = vpop.f32.mrb[0].mxu0
    %v7736 = vadd.f32 %v7510, %v7735
    %v7737 = vpop.f32.mrb[0].mxu0
    %v7738 = vpop.f32.mrb[0].mxu0
    %7739 = vdwg.mxu0
    %7740 = vmatprep.subr.bf16.mxu0 %v7112
    %7741 = vmatpush1.bf16.msra.mxu0 %v7111
    %7742 = vmatprep.subr.bf16.mxu0 %v7120
    %7743 = vmatpush1.bf16.msra.mxu0 %v7119
    %7744 = vmatprep.subr.bf16.mxu0 %v7128
    %7745 = vmatpush1.bf16.msra.mxu0 %v7127
    %7746 = vmatprep.subr.bf16.mxu0 %v7136
    %7747 = vmatpush1.bf16.msra.mxu0 %v7135
    %7748 = vmatprep.subr.bf16.mxu0 %v7144
    %7749 = vmatpush1.bf16.msra.mxu0 %v7143
    %7750 = vmatprep.subr.bf16.mxu0 %v7152
    %7751 = vmatpush1.bf16.msra.mxu0 %v7151
    %7752 = vmatprep.subr.bf16.mxu0 %v7160
    %7753 = vmatpush1.bf16.msra.mxu0 %v7159
    %7754 = vmatprep.subr.bf16.mxu0 %v7168
    %7755 = vmatpush1.bf16.msra.mxu0 %v7167
    %7756 = vmatprep.subr.bf16.mxu0 %v7176
    %7757 = vmatpush1.bf16.msra.mxu0 %v7175
    %7758 = vmatprep.subr.bf16.mxu0 %v7184
    %7759 = vmatpush1.bf16.msra.mxu0 %v7183
    %7760 = vmatprep.subr.bf16.mxu0 %v7192
    %7761 = vmatpush1.bf16.msra.mxu0 %v7191
    %7762 = vmatprep.subr.bf16.mxu0 %v7200
    %7763 = vmatpush1.bf16.msra.mxu0 %v7199
    %7764 = vmatprep.subr.bf16.mxu0 %v7208
    %7765 = vmatpush1.bf16.msra.mxu0 %v7207
    %7766 = vmatprep.subr.bf16.mxu0 %v7216
    %7767 = vmatpush1.bf16.msra.mxu0 %v7215
    %7768 = vmatprep.subr.bf16.mxu0 %v7224
    %7769 = vmatpush1.bf16.msra.mxu0 %v7223
    %7770 = vmatprep.subr.bf16.mxu0 %v7232
    %7771 = vmatpush1.bf16.msra.mxu0 %v7231
    %7772 = vmatprep.mubr.bf16.mxu0 %v6976
    %7773 = vmatmul.mubr.bf16.gmra.mrb[0].mxu0 %v6975
    %v7774 = vpop.f32.mrb[0].mxu0
    %v7775 = vadd.f32 %v7734, %v7774
    %v7776 = vpop.f32.mrb[0].mxu0
    %v7777 = vadd.f32 %v7736, %v7776
    %v7778 = vpop.f32.mrb[0].mxu0
    %v7779 = vpop.f32.mrb[0].mxu0
    %7780 = vdwg.mxu0
    %7781 = vmatprep.subr.bf16.mxu0 %v7240
    %7782 = vmatpush1.bf16.msra.mxu0 %v7239
    %7783 = vmatprep.subr.bf16.mxu0 %v7248
    %7784 = vmatpush1.bf16.msra.mxu0 %v7247
    %7785 = vmatprep.subr.bf16.mxu0 %v7256
    %7786 = vmatpush1.bf16.msra.mxu0 %v7255
    %7787 = vmatprep.subr.bf16.mxu0 %v7264
    %7788 = vmatpush1.bf16.msra.mxu0 %v7263
    %7789 = vmatprep.subr.bf16.mxu0 %v7272
    %7790 = vmatpush1.bf16.msra.mxu0 %v7271
    %7791 = vmatprep.subr.bf16.mxu0 %v7280
    %7792 = vmatpush1.bf16.msra.mxu0 %v7279
    %7793 = vmatprep.subr.bf16.mxu0 %v7288
    %7794 = vmatpush1.bf16.msra.mxu0 %v7287
    %7795 = vmatprep.subr.bf16.mxu0 %v7296
    %7796 = vmatpush1.bf16.msra.mxu0 %v7295
    %7797 = vmatprep.subr.bf16.mxu0 %v7304
    %7798 = vmatpush1.bf16.msra.mxu0 %v7303
    %7799 = vmatprep.subr.bf16.mxu0 %v7312
    %7800 = vmatpush1.bf16.msra.mxu0 %v7311
    %7801 = vmatprep.subr.bf16.mxu0 %v7320
    %7802 = vmatpush1.bf16.msra.mxu0 %v7319
    %7803 = vmatprep.subr.bf16.mxu0 %v7328
    %7804 = vmatpush1.bf16.msra.mxu0 %v7327
    %7805 = vmatprep.subr.bf16.mxu0 %v7336
    %7806 = vmatpush1.bf16.msra.mxu0 %v7335
    %7807 = vmatprep.subr.bf16.mxu0 %v7344
    %7808 = vmatpush1.bf16.msra.mxu0 %v7343
    %7809 = vmatprep.subr.bf16.mxu0 %v7352
    %7810 = vmatpush1.bf16.msra.mxu0 %v7351
    %7811 = vmatprep.subr.bf16.mxu0 %v7360
    %7812 = vmatpush1.bf16.msra.mxu0 %v7359
    %7813 = vmatprep.mubr.bf16.mxu0 %v6978
    %7814 = vmatmul.mubr.bf16.gmra.mrb[0].mxu0 %v6977
    %v7815 = vpop.f32.mrb[0].mxu0
    %v7816 = vadd.f32 %v7775, %v7815
    %v7817 = vpop.f32.mrb[0].mxu0
    %v7818 = vadd.f32 %v7777, %v7817
    %v7819 = vpop.f32.mrb[0].mxu0
    %v7820 = vpop.f32.mrb[0].mxu0
    %7821 = vdwg.mxu0
    %7822 = vmatprep.subr.bf16.mxu0 %v7368
    %7823 = vmatpush1.bf16.msra.mxu0 %v7367
    %7824 = vmatprep.subr.bf16.mxu0 %v7376
    %7825 = vmatpush1.bf16.msra.mxu0 %v7375
    %7826 = vmatprep.subr.bf16.mxu0 %v7384
    %7827 = vmatpush1.bf16.msra.mxu0 %v7383
    %7828 = vmatprep.subr.bf16.mxu0 %v7392
    %7829 = vmatpush1.bf16.msra.mxu0 %v7391
    %7830 = vmatprep.subr.bf16.mxu0 %v7400
    %7831 = vmatpush1.bf16.msra.mxu0 %v7399
    %7832 = vmatprep.subr.bf16.mxu0 %v7408
    %7833 = vmatpush1.bf16.msra.mxu0 %v7407
    %7834 = vmatprep.subr.bf16.mxu0 %v7416
    %7835 = vmatpush1.bf16.msra.mxu0 %v7415
    %7836 = vmatprep.subr.bf16.mxu0 %v7424
    %7837 = vmatpush1.bf16.msra.mxu0 %v7423
    %7838 = vmatprep.subr.bf16.mxu0 %v7432
    %7839 = vmatpush1.bf16.msra.mxu0 %v7431
    %7840 = vmatprep.subr.bf16.mxu0 %v7440
    %7841 = vmatpush1.bf16.msra.mxu0 %v7439
    %7842 = vmatprep.subr.bf16.mxu0 %v7448
    %7843 = vmatpush1.bf16.msra.mxu0 %v7447
    %7844 = vmatprep.subr.bf16.mxu0 %v7456
    %7845 = vmatpush1.bf16.msra.mxu0 %v7455
    %7846 = vmatprep.subr.bf16.mxu0 %v7464
    %7847 = vmatpush1.bf16.msra.mxu0 %v7463
    %7848 = vmatprep.subr.bf16.mxu0 %v7472
    %7849 = vmatpush1.bf16.msra.mxu0 %v7471
    %7850 = vmatprep.subr.bf16.mxu0 %v7480
    %7851 = vmatpush1.bf16.msra.mxu0 %v7479
    %7852 = vmatprep.subr.bf16.mxu0 %v7488
    %7853 = vmatpush1.bf16.msra.mxu0 %v7487
    %7854 = vmatprep.mubr.bf16.mxu0 %v6980
    %7855 = vmatmul.mubr.bf16.gmra.mrb[0].mxu0 %v6979
    %v7856 = vpop.f32.mrb[0].mxu0
    %v7857 = vadd.f32 %v7816, %v7856
    %v7858 = vpop.f32.mrb[0].mxu0
    %v7859 = vadd.f32 %v7818, %v7858
    %v7860 = vpop.f32.mrb[0].mxu0
    %v7861 = vpop.f32.mrb[0].mxu0
    %7862 = vdwg.mxu0
    %7863 = vmatprep.subr.bf16.mxu0 %v6986
    %7864 = vmatpush1.bf16.msra.mxu0 %v6985
    %7865 = vmatprep.subr.bf16.mxu0 %v6994
    %7866 = vmatpush1.bf16.msra.mxu0 %v6993
    %7867 = vmatprep.subr.bf16.mxu0 %v7002
    %7868 = vmatpush1.bf16.msra.mxu0 %v7001
    %7869 = vmatprep.subr.bf16.mxu0 %v7010
    %7870 = vmatpush1.bf16.msra.mxu0 %v7009
    %7871 = vmatprep.subr.bf16.mxu0 %v7018
    %7872 = vmatpush1.bf16.msra.mxu0 %v7017
    %7873 = vmatprep.subr.bf16.mxu0 %v7026
    %7874 = vmatpush1.bf16.msra.mxu0 %v7025
    %7875 = vmatprep.subr.bf16.mxu0 %v7034
    %7876 = vmatpush1.bf16.msra.mxu0 %v7033
    %7877 = vmatprep.subr.bf16.mxu0 %v7042
    %7878 = vmatpush1.bf16.msra.mxu0 %v7041
    %7879 = vmatprep.subr.bf16.mxu0 %v7050
    %7880 = vmatpush1.bf16.msra.mxu0 %v7049
    %7881 = vmatprep.subr.bf16.mxu0 %v7058
    %7882 = vmatpush1.bf16.msra.mxu0 %v7057
    %7883 = vmatprep.subr.bf16.mxu0 %v7066
    %7884 = vmatpush1.bf16.msra.mxu0 %v7065
    %7885 = vmatprep.subr.bf16.mxu0 %v7074
    %7886 = vmatpush1.bf16.msra.mxu0 %v7073
    %7887 = vmatprep.subr.bf16.mxu0 %v7082
    %7888 = vmatpush1.bf16.msra.mxu0 %v7081
    %7889 = vmatprep.subr.bf16.mxu0 %v7090
    %7890 = vmatpush1.bf16.msra.mxu0 %v7089
    %7891 = vmatprep.subr.bf16.mxu0 %v7098
    %7892 = vmatpush1.bf16.msra.mxu0 %v7097
    %7893 = vmatprep.subr.bf16.mxu0 %v7106
    %7894 = vmatpush1.bf16.msra.mxu0 %v7105
    %7895 = vmatprep.mubr.bf16.mxu0 %v6974
    %7896 = vmatmul.mubr.bf16.gmra.mrb[0].mxu0 %v6973
    %v7897 = vpop.f32.mrb[0].mxu0
    %v7898 = vadd.f32 %v7514, %v7897
    %v7899 = vpop.f32.mrb[0].mxu0
    %v7900 = vadd.f32 %v7518, %v7899
    %v7901 = vpop.f32.mrb[0].mxu0
    %v7902 = vpop.f32.mrb[0].mxu0
    %7903 = vdwg.mxu0
    %7904 = vmatprep.subr.bf16.mxu0 %v7114
    %7905 = vmatpush1.bf16.msra.mxu0 %v7113
    %7906 = vmatprep.subr.bf16.mxu0 %v7122
    %7907 = vmatpush1.bf16.msra.mxu0 %v7121
    %7908 = vmatprep.subr.bf16.mxu0 %v7130
    %7909 = vmatpush1.bf16.msra.mxu0 %v7129
    %7910 = vmatprep.subr.bf16.mxu0 %v7138
    %7911 = vmatpush1.bf16.msra.mxu0 %v7137
    %7912 = vmatprep.subr.bf16.mxu0 %v7146
    %7913 = vmatpush1.bf16.msra.mxu0 %v7145
    %7914 = vmatprep.subr.bf16.mxu0 %v7154
    %7915 = vmatpush1.bf16.msra.mxu0 %v7153
    %7916 = vmatprep.subr.bf16.mxu0 %v7162
    %7917 = vmatpush1.bf16.msra.mxu0 %v7161
    %7918 = vmatprep.subr.bf16.mxu0 %v7170
    %7919 = vmatpush1.bf16.msra.mxu0 %v7169
    %7920 = vmatprep.subr.bf16.mxu0 %v7178
    %7921 = vmatpush1.bf16.msra.mxu0 %v7177
    %7922 = vmatprep.subr.bf16.mxu0 %v7186
    %7923 = vmatpush1.bf16.msra.mxu0 %v7185
    %7924 = vmatprep.subr.bf16.mxu0 %v7194
    %7925 = vmatpush1.bf16.msra.mxu0 %v7193
    %7926 = vmatprep.subr.bf16.mxu0 %v7202
    %7927 = vmatpush1.bf16.msra.mxu0 %v7201
    %7928 = vmatprep.subr.bf16.mxu0 %v7210
    %7929 = vmatpush1.bf16.msra.mxu0 %v7209
    %7930 = vmatprep.subr.bf16.mxu0 %v7218
    %7931 = vmatpush1.bf16.msra.mxu0 %v7217
    %7932 = vmatprep.subr.bf16.mxu0 %v7226
    %7933 = vmatpush1.bf16.msra.mxu0 %v7225
    %7934 = vmatprep.subr.bf16.mxu0 %v7234
    %7935 = vmatpush1.bf16.msra.mxu0 %v7233
    %7936 = vmatprep.mubr.bf16.mxu0 %v6976
    %7937 = vmatmul.mubr.bf16.gmra.mrb[0].mxu0 %v6975
    %v7938 = vpop.f32.mrb[0].mxu0
    %v7939 = vadd.f32 %v7898, %v7938
    %v7940 = vpop.f32.mrb[0].mxu0
    %v7941 = vadd.f32 %v7900, %v7940
    %v7942 = vpop.f32.mrb[0].mxu0
    %v7943 = vpop.f32.mrb[0].mxu0
    %7944 = vdwg.mxu0
    %7945 = vmatprep.subr.bf16.mxu0 %v7242
    %7946 = vmatpush1.bf16.msra.mxu0 %v7241
    %7947 = vmatprep.subr.bf16.mxu0 %v7250
    %7948 = vmatpush1.bf16.msra.mxu0 %v7249
    %7949 = vmatprep.subr.bf16.mxu0 %v7258
    %7950 = vmatpush1.bf16.msra.mxu0 %v7257
    %7951 = vmatprep.subr.bf16.mxu0 %v7266
    %7952 = vmatpush1.bf16.msra.mxu0 %v7265
    %7953 = vmatprep.subr.bf16.mxu0 %v7274
    %7954 = vmatpush1.bf16.msra.mxu0 %v7273
    %7955 = vmatprep.subr.bf16.mxu0 %v7282
    %7956 = vmatpush1.bf16.msra.mxu0 %v7281
    %7957 = vmatprep.subr.bf16.mxu0 %v7290
    %7958 = vmatpush1.bf16.msra.mxu0 %v7289
    %7959 = vmatprep.subr.bf16.mxu0 %v7298
    %7960 = vmatpush1.bf16.msra.mxu0 %v7297
    %7961 = vmatprep.subr.bf16.mxu0 %v7306
    %7962 = vmatpush1.bf16.msra.mxu0 %v7305
    %7963 = vmatprep.subr.bf16.mxu0 %v7314
    %7964 = vmatpush1.bf16.msra.mxu0 %v7313
    %7965 = vmatprep.subr.bf16.mxu0 %v7322
    %7966 = vmatpush1.bf16.msra.mxu0 %v7321
    %7967 = vmatprep.subr.bf16.mxu0 %v7330
    %7968 = vmatpush1.bf16.msra.mxu0 %v7329
    %7969 = vmatprep.subr.bf16.mxu0 %v7338
    %7970 = vmatpush1.bf16.msra.mxu0 %v7337
    %7971 = vmatprep.subr.bf16.mxu0 %v7346
    %7972 = vmatpush1.bf16.msra.mxu0 %v7345
    %7973 = vmatprep.subr.bf16.mxu0 %v7354
    %7974 = vmatpush1.bf16.msra.mxu0 %v7353
    %7975 = vmatprep.subr.bf16.mxu0 %v7362
    %7976 = vmatpush1.bf16.msra.mxu0 %v7361
    %7977 = vmatprep.mubr.bf16.mxu0 %v6978
    %7978 = vmatmul.mubr.bf16.gmra.mrb[0].mxu0 %v6977
    %v7979 = vpop.f32.mrb[0].mxu0
    %v7980 = vadd.f32 %v7939, %v7979
    %v7981 = vpop.f32.mrb[0].mxu0
    %v7982 = vadd.f32 %v7941, %v7981
    %v7983 = vpop.f32.mrb[0].mxu0
    %v7984 = vpop.f32.mrb[0].mxu0
    %7985 = vdwg.mxu0
    %7986 = vmatprep.subr.bf16.mxu0 %v7370
    %7987 = vmatpush1.bf16.msra.mxu0 %v7369
    %7988 = vmatprep.subr.bf16.mxu0 %v7378
    %7989 = vmatpush1.bf16.msra.mxu0 %v7377
    %7990 = vmatprep.subr.bf16.mxu0 %v7386
    %7991 = vmatpush1.bf16.msra.mxu0 %v7385
    %7992 = vmatprep.subr.bf16.mxu0 %v7394
    %7993 = vmatpush1.bf16.msra.mxu0 %v7393
    %7994 = vmatprep.subr.bf16.mxu0 %v7402
    %7995 = vmatpush1.bf16.msra.mxu0 %v7401
    %7996 = vmatprep.subr.bf16.mxu0 %v7410
    %7997 = vmatpush1.bf16.msra.mxu0 %v7409
    %7998 = vmatprep.subr.bf16.mxu0 %v7418
    %7999 = vmatpush1.bf16.msra.mxu0 %v7417
    %8000 = vmatprep.subr.bf16.mxu0 %v7426
    %8001 = vmatpush1.bf16.msra.mxu0 %v7425
    %8002 = vmatprep.subr.bf16.mxu0 %v7434
    %8003 = vmatpush1.bf16.msra.mxu0 %v7433
    %8004 = vmatprep.subr.bf16.mxu0 %v7442
    %8005 = vmatpush1.bf16.msra.mxu0 %v7441
    %8006 = vmatprep.subr.bf16.mxu0 %v7450
    %8007 = vmatpush1.bf16.msra.mxu0 %v7449
    %8008 = vmatprep.subr.bf16.mxu0 %v7458
    %8009 = vmatpush1.bf16.msra.mxu0 %v7457
    %8010 = vmatprep.subr.bf16.mxu0 %v7466
    %8011 = vmatpush1.bf16.msra.mxu0 %v7465
    %8012 = vmatprep.subr.bf16.mxu0 %v7474
    %8013 = vmatpush1.bf16.msra.mxu0 %v7473
    %8014 = vmatprep.subr.bf16.mxu0 %v7482
    %8015 = vmatpush1.bf16.msra.mxu0 %v7481
    %8016 = vmatprep.subr.bf16.mxu0 %v7490
    %8017 = vmatpush1.bf16.msra.mxu0 %v7489
    %8018 = vmatprep.mubr.bf16.mxu0 %v6980
    %8019 = vmatmul.mubr.bf16.gmra.mrb[0].mxu0 %v6979
    %v8020 = vpop.f32.mrb[0].mxu0
    %v8021 = vadd.f32 %v7980, %v8020
    %v8022 = vpop.f32.mrb[0].mxu0
    %v8023 = vadd.f32 %v7982, %v8022
    %v8024 = vpop.f32.mrb[0].mxu0
    %v8025 = vpop.f32.mrb[0].mxu0
    %8026 = vdwg.mxu0
    %8027 = vmatprep.subr.bf16.mxu0 %v6988
    %8028 = vmatpush1.bf16.msra.mxu0 %v6987
    %8029 = vmatprep.subr.bf16.mxu0 %v6996
    %8030 = vmatpush1.bf16.msra.mxu0 %v6995
    %8031 = vmatprep.subr.bf16.mxu0 %v7004
    %8032 = vmatpush1.bf16.msra.mxu0 %v7003
    %8033 = vmatprep.subr.bf16.mxu0 %v7012
    %8034 = vmatpush1.bf16.msra.mxu0 %v7011
    %8035 = vmatprep.subr.bf16.mxu0 %v7020
    %8036 = vmatpush1.bf16.msra.mxu0 %v7019
    %8037 = vmatprep.subr.bf16.mxu0 %v7028
    %8038 = vmatpush1.bf16.msra.mxu0 %v7027
    %8039 = vmatprep.subr.bf16.mxu0 %v7036
    %8040 = vmatpush1.bf16.msra.mxu0 %v7035
    %8041 = vmatprep.subr.bf16.mxu0 %v7044
    %8042 = vmatpush1.bf16.msra.mxu0 %v7043
    %8043 = vmatprep.subr.bf16.mxu0 %v7052
    %8044 = vmatpush1.bf16.msra.mxu0 %v7051
    %8045 = vmatprep.subr.bf16.mxu0 %v7060
    %8046 = vmatpush1.bf16.msra.mxu0 %v7059
    %8047 = vmatprep.subr.bf16.mxu0 %v7068
    %8048 = vmatpush1.bf16.msra.mxu0 %v7067
    %8049 = vmatprep.subr.bf16.mxu0 %v7076
    %8050 = vmatpush1.bf16.msra.mxu0 %v7075
    %8051 = vmatprep.subr.bf16.mxu0 %v7084
    %8052 = vmatpush1.bf16.msra.mxu0 %v7083
    %8053 = vmatprep.subr.bf16.mxu0 %v7092
    %8054 = vmatpush1.bf16.msra.mxu0 %v7091
    %8055 = vmatprep.subr.bf16.mxu0 %v7100
    %8056 = vmatpush1.bf16.msra.mxu0 %v7099
    %8057 = vmatprep.subr.bf16.mxu0 %v7108
    %8058 = vmatpush1.bf16.msra.mxu0 %v7107
    %8059 = vmatprep.mubr.bf16.mxu0 %v6974
    %8060 = vmatmul.mubr.bf16.gmra.mrb[0].mxu0 %v6973
    %v8061 = vpop.f32.mrb[0].mxu0
    %v8062 = vadd.f32 %v7522, %v8061
    %v8063 = vpop.f32.mrb[0].mxu0
    %v8064 = vadd.f32 %v7526, %v8063
    %v8065 = vpop.f32.mrb[0].mxu0
    %v8066 = vpop.f32.mrb[0].mxu0
    %8067 = vdwg.mxu0
    %8068 = vmatprep.subr.bf16.mxu0 %v7116
    %8069 = vmatpush1.bf16.msra.mxu0 %v7115
    %8070 = vmatprep.subr.bf16.mxu0 %v7124
    %8071 = vmatpush1.bf16.msra.mxu0 %v7123
    %8072 = vmatprep.subr.bf16.mxu0 %v7132
    %8073 = vmatpush1.bf16.msra.mxu0 %v7131
    %8074 = vmatprep.subr.bf16.mxu0 %v7140
    %8075 = vmatpush1.bf16.msra.mxu0 %v7139
    %8076 = vmatprep.subr.bf16.mxu0 %v7148
    %8077 = vmatpush1.bf16.msra.mxu0 %v7147
    %8078 = vmatprep.subr.bf16.mxu0 %v7156
    %8079 = vmatpush1.bf16.msra.mxu0 %v7155
    %8080 = vmatprep.subr.bf16.mxu0 %v7164
    %8081 = vmatpush1.bf16.msra.mxu0 %v7163
    %8082 = vmatprep.subr.bf16.mxu0 %v7172
    %8083 = vmatpush1.bf16.msra.mxu0 %v7171
    %8084 = vmatprep.subr.bf16.mxu0 %v7180
    %8085 = vmatpush1.bf16.msra.mxu0 %v7179
    %8086 = vmatprep.subr.bf16.mxu0 %v7188
    %8087 = vmatpush1.bf16.msra.mxu0 %v7187
    %8088 = vmatprep.subr.bf16.mxu0 %v7196
    %8089 = vmatpush1.bf16.msra.mxu0 %v7195
    %8090 = vmatprep.subr.bf16.mxu0 %v7204
    %8091 = vmatpush1.bf16.msra.mxu0 %v7203
    %8092 = vmatprep.subr.bf16.mxu0 %v7212
    %8093 = vmatpush1.bf16.msra.mxu0 %v7211
    %8094 = vmatprep.subr.bf16.mxu0 %v7220
    %8095 = vmatpush1.bf16.msra.mxu0 %v7219
    %8096 = vmatprep.subr.bf16.mxu0 %v7228
    %8097 = vmatpush1.bf16.msra.mxu0 %v7227
    %8098 = vmatprep.subr.bf16.mxu0 %v7236
    %8099 = vmatpush1.bf16.msra.mxu0 %v7235
    %8100 = vmatprep.mubr.bf16.mxu0 %v6976
    %8101 = vmatmul.mubr.bf16.gmra.mrb[0].mxu0 %v6975
    %v8102 = vpop.f32.mrb[0].mxu0
    %v8103 = vadd.f32 %v8062, %v8102
    %v8104 = vpop.f32.mrb[0].mxu0
    %v8105 = vadd.f32 %v8064, %v8104
    %v8106 = vpop.f32.mrb[0].mxu0
    %v8107 = vpop.f32.mrb[0].mxu0
    %8108 = vdwg.mxu0
    %8109 = vmatprep.subr.bf16.mxu0 %v7244
    %8110 = vmatpush1.bf16.msra.mxu0 %v7243
    %8111 = vmatprep.subr.bf16.mxu0 %v7252
    %8112 = vmatpush1.bf16.msra.mxu0 %v7251
    %8113 = vmatprep.subr.bf16.mxu0 %v7260
    %8114 = vmatpush1.bf16.msra.mxu0 %v7259
    %8115 = vmatprep.subr.bf16.mxu0 %v7268
    %8116 = vmatpush1.bf16.msra.mxu0 %v7267
    %8117 = vmatprep.subr.bf16.mxu0 %v7276
    %8118 = vmatpush1.bf16.msra.mxu0 %v7275
    %8119 = vmatprep.subr.bf16.mxu0 %v7284
    %8120 = vmatpush1.bf16.msra.mxu0 %v7283
    %8121 = vmatprep.subr.bf16.mxu0 %v7292
    %8122 = vmatpush1.bf16.msra.mxu0 %v7291
    %8123 = vmatprep.subr.bf16.mxu0 %v7300
    %8124 = vmatpush1.bf16.msra.mxu0 %v7299
    %8125 = vmatprep.subr.bf16.mxu0 %v7308
    %8126 = vmatpush1.bf16.msra.mxu0 %v7307
    %8127 = vmatprep.subr.bf16.mxu0 %v7316
    %8128 = vmatpush1.bf16.msra.mxu0 %v7315
    %8129 = vmatprep.subr.bf16.mxu0 %v7324
    %8130 = vmatpush1.bf16.msra.mxu0 %v7323
    %8131 = vmatprep.subr.bf16.mxu0 %v7332
    %8132 = vmatpush1.bf16.msra.mxu0 %v7331
    %8133 = vmatprep.subr.bf16.mxu0 %v7340
    %8134 = vmatpush1.bf16.msra.mxu0 %v7339
    %8135 = vmatprep.subr.bf16.mxu0 %v7348
    %8136 = vmatpush1.bf16.msra.mxu0 %v7347
    %8137 = vmatprep.subr.bf16.mxu0 %v7356
    %8138 = vmatpush1.bf16.msra.mxu0 %v7355
    %8139 = vmatprep.subr.bf16.mxu0 %v7364
    %8140 = vmatpush1.bf16.msra.mxu0 %v7363
    %8141 = vmatprep.mubr.bf16.mxu0 %v6978
    %8142 = vmatmul.mubr.bf16.gmra.mrb[0].mxu0 %v6977
    %v8143 = vpop.f32.mrb[0].mxu0
    %v8144 = vadd.f32 %v8103, %v8143
    %v8145 = vpop.f32.mrb[0].mxu0
    %v8146 = vadd.f32 %v8105, %v8145
    %v8147 = vpop.f32.mrb[0].mxu0
    %v8148 = vpop.f32.mrb[0].mxu0
    %8149 = vdwg.mxu0
    %8150 = vmatprep.subr.bf16.mxu0 %v7372
    %8151 = vmatpush1.bf16.msra.mxu0 %v7371
    %8152 = vmatprep.subr.bf16.mxu0 %v7380
    %8153 = vmatpush1.bf16.msra.mxu0 %v7379
    %8154 = vmatprep.subr.bf16.mxu0 %v7388
    %8155 = vmatpush1.bf16.msra.mxu0 %v7387
    %8156 = vmatprep.subr.bf16.mxu0 %v7396
    %8157 = vmatpush1.bf16.msra.mxu0 %v7395
    %8158 = vmatprep.subr.bf16.mxu0 %v7404
    %8159 = vmatpush1.bf16.msra.mxu0 %v7403
    %8160 = vmatprep.subr.bf16.mxu0 %v7412
    %8161 = vmatpush1.bf16.msra.mxu0 %v7411
    %8162 = vmatprep.subr.bf16.mxu0 %v7420
    %8163 = vmatpush1.bf16.msra.mxu0 %v7419
    %8164 = vmatprep.subr.bf16.mxu0 %v7428
    %8165 = vmatpush1.bf16.msra.mxu0 %v7427
    %8166 = vmatprep.subr.bf16.mxu0 %v7436
    %8167 = vmatpush1.bf16.msra.mxu0 %v7435
    %8168 = vmatprep.subr.bf16.mxu0 %v7444
    %8169 = vmatpush1.bf16.msra.mxu0 %v7443
    %8170 = vmatprep.subr.bf16.mxu0 %v7452
    %8171 = vmatpush1.bf16.msra.mxu0 %v7451
    %8172 = vmatprep.subr.bf16.mxu0 %v7460
    %8173 = vmatpush1.bf16.msra.mxu0 %v7459
    %8174 = vmatprep.subr.bf16.mxu0 %v7468
    %8175 = vmatpush1.bf16.msra.mxu0 %v7467
    %8176 = vmatprep.subr.bf16.mxu0 %v7476
    %8177 = vmatpush1.bf16.msra.mxu0 %v7475
    %8178 = vmatprep.subr.bf16.mxu0 %v7484
    %8179 = vmatpush1.bf16.msra.mxu0 %v7483
    %8180 = vmatprep.subr.bf16.mxu0 %v7492
    %8181 = vmatpush1.bf16.msra.mxu0 %v7491
    %8182 = vmatprep.mubr.bf16.mxu0 %v6980
    %8183 = vmatmul.mubr.bf16.gmra.mrb[0].mxu0 %v6979
    %v8184 = vpop.f32.mrb[0].mxu0
    %v8185 = vadd.f32 %v8144, %v8184
    %v8186 = vpop.f32.mrb[0].mxu0
    %v8187 = vadd.f32 %v8146, %v8186
    %v8188 = vpop.f32.mrb[0].mxu0
    %v8189 = vpop.f32.mrb[0].mxu0
    %8190 = vdwg.mxu0
    %v8191 = vadd.f32 %v5735, %v7693
    %v8192 = vadd.f32 %v5736, %v7695
    %v8193 = vadd.f32 %v5737, %v7857
    %v8194 = vadd.f32 %v5738, %v7859
    %v8195 = vadd.f32 %v5739, %v8021
    %v8196 = vadd.f32 %v5740, %v8023
    %v8197 = vadd.f32 %v5741, %v8185
    %v8198 = vadd.f32 %v5742, %v8187
    %v8199 = vmax.f32 %v8191, 0.0
    %v8200 = vmax.f32 %v8192, 0.0
    %v8201 = vmax.f32 %v8193, 0.0
    %v8202 = vmax.f32 %v8194, 0.0
    %v8203 = vmax.f32 %v8195, 0.0
    %v8204 = vmax.f32 %v8196, 0.0
    %v8205 = vmax.f32 %v8197, 0.0
    %v8206 = vmax.f32 %v8198, 0.0
    %s8207 = smul.u32 %s3277, 1
    %s8208 = sshll.u32 %s8207, 4
    %8209 = dma.done %s282, %s8208
    %v8210 = vpack.c.bf16 %v8199, %v8199
    %v8211 = vpack.c.bf16 %v8200, %v8200
    %v8212 = vpack.c.bf16 %v8201, %v8201
    %v8213 = vpack.c.bf16 %v8202, %v8202
    %v8214 = vpack.c.bf16 %v8203, %v8203
    %v8215 = vpack.c.bf16 %v8204, %v8204
    %v8216 = vpack.c.bf16 %v8205, %v8205
    %v8217 = vpack.c.bf16 %v8206, %v8206
    %v8218 = vld [vmem:[#allocation7] sm:$0xff]
    %v8219 = vld [vmem:[#allocation7 + $0x8] sm:$0xff]
    %v8220 = vld [vmem:[#allocation7 + $0x10] sm:$0xff]
    %v8221 = vld [vmem:[#allocation7 + $0x18] sm:$0xff]
    %v8222 = vld [vmem:[#allocation7 + $0x20] sm:$0xff]
    %v8223 = vld [vmem:[#allocation7 + $0x28] sm:$0xff]
    %v8224 = vld [vmem:[#allocation7 + $0x30] sm:$0xff]
    %v8225 = vld [vmem:[#allocation7 + $0x38] sm:$0xff]
    %v8226 = vld [vmem:[#allocation7 + $0x40] sm:$0xff]
    %v8227 = vld [vmem:[#allocation7 + $0x48] sm:$0xff]
    %v8228 = vld [vmem:[#allocation7 + $0x50] sm:$0xff]
    %v8229 = vld [vmem:[#allocation7 + $0x58] sm:$0xff]
    %v8230 = vld [vmem:[#allocation7 + $0x60] sm:$0xff]
    %v8231 = vld [vmem:[#allocation7 + $0x68] sm:$0xff]
    %v8232 = vld [vmem:[#allocation7 + $0x70] sm:$0xff]
    %v8233 = vld [vmem:[#allocation7 + $0x78] sm:$0xff]
    %v8234 = vld [vmem:[#allocation7 + $0x80] sm:$0xff]
    %v8235 = vld [vmem:[#allocation7 + $0x88] sm:$0xff]
    %v8236 = vld [vmem:[#allocation7 + $0x90] sm:$0xff]
    %v8237 = vld [vmem:[#allocation7 + $0x98] sm:$0xff]
    %v8238 = vld [vmem:[#allocation7 + $0xa0] sm:$0xff]
    %v8239 = vld [vmem:[#allocation7 + $0xa8] sm:$0xff]
    %v8240 = vld [vmem:[#allocation7 + $0xb0] sm:$0xff]
    %v8241 = vld [vmem:[#allocation7 + $0xb8] sm:$0xff]
    %v8242 = vld [vmem:[#allocation7 + $0xc0] sm:$0xff]
    %v8243 = vld [vmem:[#allocation7 + $0xc8] sm:$0xff]
    %v8244 = vld [vmem:[#allocation7 + $0xd0] sm:$0xff]
    %v8245 = vld [vmem:[#allocation7 + $0xd8] sm:$0xff]
    %v8246 = vld [vmem:[#allocation7 + $0xe0] sm:$0xff]
    %v8247 = vld [vmem:[#allocation7 + $0xe8] sm:$0xff]
    %v8248 = vld [vmem:[#allocation7 + $0xf0] sm:$0xff]
    %v8249 = vld [vmem:[#allocation7 + $0xf8] sm:$0xff]
    %v8250 = vld [vmem:[#allocation7 + $0x100] sm:$0xff]
    %v8251 = vld [vmem:[#allocation7 + $0x108] sm:$0xff]
    %v8252 = vld [vmem:[#allocation7 + $0x110] sm:$0xff]
    %v8253 = vld [vmem:[#allocation7 + $0x118] sm:$0xff]
    %v8254 = vld [vmem:[#allocation7 + $0x120] sm:$0xff]
    %v8255 = vld [vmem:[#allocation7 + $0x128] sm:$0xff]
    %v8256 = vld [vmem:[#allocation7 + $0x130] sm:$0xff]
    %v8257 = vld [vmem:[#allocation7 + $0x138] sm:$0xff]
    %v8258 = vld [vmem:[#allocation7 + $0x140] sm:$0xff]
    %v8259 = vld [vmem:[#allocation7 + $0x148] sm:$0xff]
    %v8260 = vld [vmem:[#allocation7 + $0x150] sm:$0xff]
    %v8261 = vld [vmem:[#allocation7 + $0x158] sm:$0xff]
    %v8262 = vld [vmem:[#allocation7 + $0x160] sm:$0xff]
    %v8263 = vld [vmem:[#allocation7 + $0x168] sm:$0xff]
    %v8264 = vld [vmem:[#allocation7 + $0x170] sm:$0xff]
    %v8265 = vld [vmem:[#allocation7 + $0x178] sm:$0xff]
    %v8266 = vld [vmem:[#allocation7 + $0x180] sm:$0xff]
    %v8267 = vld [vmem:[#allocation7 + $0x188] sm:$0xff]
    %v8268 = vld [vmem:[#allocation7 + $0x190] sm:$0xff]
    %v8269 = vld [vmem:[#allocation7 + $0x198] sm:$0xff]
    %v8270 = vld [vmem:[#allocation7 + $0x1a0] sm:$0xff]
    %v8271 = vld [vmem:[#allocation7 + $0x1a8] sm:$0xff]
    %v8272 = vld [vmem:[#allocation7 + $0x1b0] sm:$0xff]
    %v8273 = vld [vmem:[#allocation7 + $0x1b8] sm:$0xff]
    %v8274 = vld [vmem:[#allocation7 + $0x1c0] sm:$0xff]
    %v8275 = vld [vmem:[#allocation7 + $0x1c8] sm:$0xff]
    %v8276 = vld [vmem:[#allocation7 + $0x1d0] sm:$0xff]
    %v8277 = vld [vmem:[#allocation7 + $0x1d8] sm:$0xff]
    %v8278 = vld [vmem:[#allocation7 + $0x1e0] sm:$0xff]
    %v8279 = vld [vmem:[#allocation7 + $0x1e8] sm:$0xff]
    %v8280 = vld [vmem:[#allocation7 + $0x1f0] sm:$0xff]
    %v8281 = vld [vmem:[#allocation7 + $0x1f8] sm:$0xff]
    %v8282 = vld [vmem:[#allocation17] sm:$0x1]
    %v8284 = vlaneseq
    %v8285 = vshrl.u32 %v8284, 7
    %v8286 = vsub.s32 0, %v8285
    %v8287 = vrot.slane %v8282, %v8286
    %8289 = vmatprep.subr.bf16.mxu0 0
    %8290 = vmatpush1.bf16.msra.mxu0 %v8218
    %8291 = vmatprep.subr.bf16.mxu0 0
    %8292 = vmatpush1.bf16.msra.mxu0 %v8219
    %8293 = vmatprep.subr.bf16.mxu0 0
    %8294 = vmatpush1.bf16.msra.mxu0 %v8220
    %8295 = vmatprep.subr.bf16.mxu0 0
    %8296 = vmatpush1.bf16.msra.mxu0 %v8221
    %8297 = vmatprep.subr.bf16.mxu0 0
    %8298 = vmatpush1.bf16.msra.mxu0 %v8222
    %8299 = vmatprep.subr.bf16.mxu0 0
    %8300 = vmatpush1.bf16.msra.mxu0 %v8223
    %8301 = vmatprep.subr.bf16.mxu0 0
    %8302 = vmatpush1.bf16.msra.mxu0 %v8224
    %8303 = vmatprep.subr.bf16.mxu0 0
    %8304 = vmatpush1.bf16.msra.mxu0 %v8225
    %8305 = vmatprep.subr.bf16.mxu0 0
    %8306 = vmatpush1.bf16.msra.mxu0 %v8226
    %8307 = vmatprep.subr.bf16.mxu0 0
    %8308 = vmatpush1.bf16.msra.mxu0 %v8227
    %8309 = vmatprep.subr.bf16.mxu0 0
    %8310 = vmatpush1.bf16.msra.mxu0 %v8228
    %8311 = vmatprep.subr.bf16.mxu0 0
    %8312 = vmatpush1.bf16.msra.mxu0 %v8229
    %8313 = vmatprep.subr.bf16.mxu0 0
    %8314 = vmatpush1.bf16.msra.mxu0 %v8230
    %8315 = vmatprep.subr.bf16.mxu0 0
    %8316 = vmatpush1.bf16.msra.mxu0 %v8231
    %8317 = vmatprep.subr.bf16.mxu0 0
    %8318 = vmatpush1.bf16.msra.mxu0 %v8232
    %8319 = vmatprep.subr.bf16.mxu0 0
    %8320 = vmatpush1.bf16.msra.mxu0 %v8233
    %8321 = vmatprep.mubr.bf16.mxu0 %v8211
    %8322 = vmatmul.mubr.bf16.gmra.mrb[0].mxu0 %v8210
    %v8323 = vpop.f32.mrb[0].mxu0
    %v8324 = vadd.f32 %v8287, %v8323
    %v8325 = vpop.f32.mrb[0].mxu0
    %v8326 = vpop.f32.mrb[0].mxu0
    %v8327 = vpop.f32.mrb[0].mxu0
    %8328 = vdwg.mxu0
    %8329 = vmatprep.subr.bf16.mxu0 0
    %8330 = vmatpush1.bf16.msra.mxu0 %v8234
    %8331 = vmatprep.subr.bf16.mxu0 0
    %8332 = vmatpush1.bf16.msra.mxu0 %v8235
    %8333 = vmatprep.subr.bf16.mxu0 0
    %8334 = vmatpush1.bf16.msra.mxu0 %v8236
    %8335 = vmatprep.subr.bf16.mxu0 0
    %8336 = vmatpush1.bf16.msra.mxu0 %v8237
    %8337 = vmatprep.subr.bf16.mxu0 0
    %8338 = vmatpush1.bf16.msra.mxu0 %v8238
    %8339 = vmatprep.subr.bf16.mxu0 0
    %8340 = vmatpush1.bf16.msra.mxu0 %v8239
    %8341 = vmatprep.subr.bf16.mxu0 0
    %8342 = vmatpush1.bf16.msra.mxu0 %v8240
    %8343 = vmatprep.subr.bf16.mxu0 0
    %8344 = vmatpush1.bf16.msra.mxu0 %v8241
    %8345 = vmatprep.subr.bf16.mxu0 0
    %8346 = vmatpush1.bf16.msra.mxu0 %v8242
    %8347 = vmatprep.subr.bf16.mxu0 0
    %8348 = vmatpush1.bf16.msra.mxu0 %v8243
    %8349 = vmatprep.subr.bf16.mxu0 0
    %8350 = vmatpush1.bf16.msra.mxu0 %v8244
    %8351 = vmatprep.subr.bf16.mxu0 0
    %8352 = vmatpush1.bf16.msra.mxu0 %v8245
    %8353 = vmatprep.subr.bf16.mxu0 0
    %8354 = vmatpush1.bf16.msra.mxu0 %v8246
    %8355 = vmatprep.subr.bf16.mxu0 0
    %8356 = vmatpush1.bf16.msra.mxu0 %v8247
    %8357 = vmatprep.subr.bf16.mxu0 0
    %8358 = vmatpush1.bf16.msra.mxu0 %v8248
    %8359 = vmatprep.subr.bf16.mxu0 0
    %8360 = vmatpush1.bf16.msra.mxu0 %v8249
    %8361 = vmatprep.mubr.bf16.mxu0 %v8213
    %8362 = vmatmul.mubr.bf16.gmra.mrb[0].mxu0 %v8212
    %v8363 = vpop.f32.mrb[0].mxu0
    %v8364 = vadd.f32 %v8324, %v8363
    %v8365 = vpop.f32.mrb[0].mxu0
    %v8366 = vpop.f32.mrb[0].mxu0
    %v8367 = vpop.f32.mrb[0].mxu0
    %8368 = vdwg.mxu0
    %8369 = vmatprep.subr.bf16.mxu0 0
    %8370 = vmatpush1.bf16.msra.mxu0 %v8250
    %8371 = vmatprep.subr.bf16.mxu0 0
    %8372 = vmatpush1.bf16.msra.mxu0 %v8251
    %8373 = vmatprep.subr.bf16.mxu0 0
    %8374 = vmatpush1.bf16.msra.mxu0 %v8252
    %8375 = vmatprep.subr.bf16.mxu0 0
    %8376 = vmatpush1.bf16.msra.mxu0 %v8253
    %8377 = vmatprep.subr.bf16.mxu0 0
    %8378 = vmatpush1.bf16.msra.mxu0 %v8254
    %8379 = vmatprep.subr.bf16.mxu0 0
    %8380 = vmatpush1.bf16.msra.mxu0 %v8255
    %8381 = vmatprep.subr.bf16.mxu0 0
    %8382 = vmatpush1.bf16.msra.mxu0 %v8256
    %8383 = vmatprep.subr.bf16.mxu0 0
    %8384 = vmatpush1.bf16.msra.mxu0 %v8257
    %8385 = vmatprep.subr.bf16.mxu0 0
    %8386 = vmatpush1.bf16.msra.mxu0 %v8258
    %8387 = vmatprep.subr.bf16.mxu0 0
    %8388 = vmatpush1.bf16.msra.mxu0 %v8259
    %8389 = vmatprep.subr.bf16.mxu0 0
    %8390 = vmatpush1.bf16.msra.mxu0 %v8260
    %8391 = vmatprep.subr.bf16.mxu0 0
    %8392 = vmatpush1.bf16.msra.mxu0 %v8261
    %8393 = vmatprep.subr.bf16.mxu0 0
    %8394 = vmatpush1.bf16.msra.mxu0 %v8262
    %8395 = vmatprep.subr.bf16.mxu0 0
    %8396 = vmatpush1.bf16.msra.mxu0 %v8263
    %8397 = vmatprep.subr.bf16.mxu0 0
    %8398 = vmatpush1.bf16.msra.mxu0 %v8264
    %8399 = vmatprep.subr.bf16.mxu0 0
    %8400 = vmatpush1.bf16.msra.mxu0 %v8265
    %8401 = vmatprep.mubr.bf16.mxu0 %v8215
    %8402 = vmatmul.mubr.bf16.gmra.mrb[0].mxu0 %v8214
    %v8403 = vpop.f32.mrb[0].mxu0
    %v8404 = vadd.f32 %v8364, %v8403
    %v8405 = vpop.f32.mrb[0].mxu0
    %v8406 = vpop.f32.mrb[0].mxu0
    %v8407 = vpop.f32.mrb[0].mxu0
    %8408 = vdwg.mxu0
    %8409 = vmatprep.subr.bf16.mxu0 0
    %8410 = vmatpush1.bf16.msra.mxu0 %v8266
    %8411 = vmatprep.subr.bf16.mxu0 0
    %8412 = vmatpush1.bf16.msra.mxu0 %v8267
    %8413 = vmatprep.subr.bf16.mxu0 0
    %8414 = vmatpush1.bf16.msra.mxu0 %v8268
    %8415 = vmatprep.subr.bf16.mxu0 0
    %8416 = vmatpush1.bf16.msra.mxu0 %v8269
    %8417 = vmatprep.subr.bf16.mxu0 0
    %8418 = vmatpush1.bf16.msra.mxu0 %v8270
    %8419 = vmatprep.subr.bf16.mxu0 0
    %8420 = vmatpush1.bf16.msra.mxu0 %v8271
    %8421 = vmatprep.subr.bf16.mxu0 0
    %8422 = vmatpush1.bf16.msra.mxu0 %v8272
    %8423 = vmatprep.subr.bf16.mxu0 0
    %8424 = vmatpush1.bf16.msra.mxu0 %v8273
    %8425 = vmatprep.subr.bf16.mxu0 0
    %8426 = vmatpush1.bf16.msra.mxu0 %v8274
    %8427 = vmatprep.subr.bf16.mxu0 0
    %8428 = vmatpush1.bf16.msra.mxu0 %v8275
    %8429 = vmatprep.subr.bf16.mxu0 0
    %8430 = vmatpush1.bf16.msra.mxu0 %v8276
    %8431 = vmatprep.subr.bf16.mxu0 0
    %8432 = vmatpush1.bf16.msra.mxu0 %v8277
    %8433 = vmatprep.subr.bf16.mxu0 0
    %8434 = vmatpush1.bf16.msra.mxu0 %v8278
    %8435 = vmatprep.subr.bf16.mxu0 0
    %8436 = vmatpush1.bf16.msra.mxu0 %v8279
    %8437 = vmatprep.subr.bf16.mxu0 0
    %8438 = vmatpush1.bf16.msra.mxu0 %v8280
    %8439 = vmatprep.subr.bf16.mxu0 0
    %8440 = vmatpush1.bf16.msra.mxu0 %v8281
    %8441 = vmatprep.mubr.bf16.mxu0 %v8217
    %8442 = vmatmul.mubr.bf16.gmra.mrb[0].mxu0 %v8216
    %v8443 = vpop.f32.mrb[0].mxu0
    %v8444 = vadd.f32 %v8404, %v8443
    %v8445 = vpop.f32.mrb[0].mxu0
    %v8446 = vpop.f32.mrb[0].mxu0
    %v8447 = vpop.f32.mrb[0].mxu0
    %8448 = vdwg.mxu0
    %8449 = vst [vmem:[%s13] sm:$0xff] %v8444
    // Predicated region
    $region58: #{smpl_param_regressor_forward.1} parent=1 // pred_check
      _
    $region59: #{smpl_param_regressor_forward.1} parent=1 // pred_check_branch
      %8451 = sbr.rel (0) target = $region61
    $region60: #{smpl_param_regressor_forward.1} parent=1 // pred_region
      _
    $region61: #{smpl_param_regressor_forward.1} parent=1 // pred_fallthru
      _
    // Predicated region
    $region62: #{smpl_param_regressor_forward.1} parent=1 // pred_check
      _
    $region63: #{smpl_param_regressor_forward.1} parent=1 // pred_check_branch
      %8453 = sbr.rel (0) target = $region65
    $region64: #{smpl_param_regressor_forward.1} parent=1 // pred_region
      _
    $region65: #{smpl_param_regressor_forward.1} parent=1 // pred_fallthru
      _
    %8454 = vsyncpa [#allocation10], 1
    %8455 = vsyncpa [#allocation12], 1
    %8456 = vsyncpa [#allocation15], 1
    %8457 = vsyncpa [#allocation18], 1
  %8458 = vsyncmov [#allocation8]
  %s8459 = vpop.sfrf %8458
  %p8460 = scmp.eq.s32.totalorder %s8459, 0
  %p8461 = pneg %p8460
  %8463 = shalt.err (%p8461)
  %s8464 = scalar_lea.sflag [#allocation8], 1
  %8465 = vsyncmov %s8464
  %s8466 = vpop.sfrf %8465
  %p8467 = scmp.eq.s32.totalorder %s8466, 0
  %p8468 = pneg %p8467
  %8470 = shalt.err (%p8468)
  %s8471 = scalar_lea.sflag [#allocation8], 2
  %8472 = vsyncmov %s8471
  %s8473 = vpop.sfrf %8472
  %p8474 = scmp.eq.s32.totalorder %s8473, 0
  %p8475 = pneg %p8474
  %8477 = shalt.err (%p8475)
  %s8478 = scalar_lea.sflag [#allocation8], 3
  %8479 = vsyncmov %s8478
  %s8480 = vpop.sfrf %8479
  %p8481 = scmp.eq.s32.totalorder %s8480, 0
  %p8482 = pneg %p8481
  %8484 = shalt.err (%p8482)
  %s8485 = scalar_lea.sflag [#allocation8], 4
  %8486 = vsyncmov %s8485
  %s8487 = vpop.sfrf %8486
  %p8488 = scmp.eq.s32.totalorder %s8487, 0
  %p8489 = pneg %p8488
  %8491 = shalt.err (%p8489)
  %s8492 = scalar_lea.sflag [#allocation8], 5
  %8493 = vsyncmov %s8492
  %s8494 = vpop.sfrf %8493
  %p8495 = scmp.eq.s32.totalorder %s8494, 0
  %p8496 = pneg %p8495
  %8498 = shalt.err (%p8496)

</llo_original>
